<compile_context>
chip_gen: v5e
topology: v5e:2x2
jax: 0.10.0
libtpu: 0.0.40
codegen_flags: <defaults>
</compile_context>

<pallas_src>
import functools

import jax
import jax.numpy as jnp
from jax.experimental import pallas as pl
from jax.experimental.pallas import tpu as pltpu

LN_EPS = 1e-5  # torch.nn.LayerNorm default


def _round_up(n, m):
    return (n + m - 1) // m * m


def _vmem_capacity_bytes():
    """Physical VMEM of the current TPU generation (64 MiB fallback = v7x)."""
    cap = 64 * 1024 * 1024
    try:
        info = pltpu.get_tpu_info()
        dev_cap = getattr(info, "vmem_capacity_bytes", None)
        if dev_cap:
            cap = int(dev_cap)
    except Exception:
        pass
    return cap


def _layer_norm_f32(y, gamma_ref, beta_ref):
    # y: (bm, d_model) f32. Two-pass mean / variance (numerically safe).
    mean = jnp.mean(y, axis=-1, keepdims=True)
    yc = y - mean
    var = jnp.mean(yc * yc, axis=-1, keepdims=True)
    inv = jax.lax.rsqrt(var + LN_EPS)
    return yc * inv * gamma_ref[...].astype(jnp.float32) \
        + beta_ref[...].astype(jnp.float32)


def _ffn_ln_kernel_resident(x_ref, w1_ref, w2_ref, gamma_ref, beta_ref, o_ref):
    # Weights fully resident: one fused step per row tile, no accumulator.
    x = x_ref[...]
    h = jnp.dot(x, w1_ref[...], preferred_element_type=jnp.float32)
    h = jnp.maximum(h, 0.0).astype(w2_ref.dtype)
    y = jnp.dot(h, w2_ref[...], preferred_element_type=jnp.float32)
    y = y + x.astype(jnp.float32)                      # residual
    o_ref[...] = _layer_norm_f32(y, gamma_ref, beta_ref).astype(o_ref.dtype)


def _ffn_ln_kernel_tiled(x_ref, w1_ref, w2_ref, gamma_ref, beta_ref, o_ref,
                         acc_ref):
    # d_ff tiled along a trailing "arbitrary" grid axis with f32 accumulator.
    k = pl.program_id(1)
    nk = pl.num_programs(1)

    @pl.when(k == 0)
    def _init():
        acc_ref[...] = jnp.zeros_like(acc_ref)

    # fc1 chunk + ReLU; operands in storage dtype, f32 MXU accumulation.
    h = jnp.dot(x_ref[...], w1_ref[...], preferred_element_type=jnp.float32)
    h = jnp.maximum(h, 0.0).astype(w2_ref.dtype)
    # fc2 chunk, accumulated in f32.
    acc_ref[...] += jnp.dot(h, w2_ref[...], preferred_element_type=jnp.float32)

    @pl.when(k == nk - 1)
    def _epilogue():
        y = acc_ref[...] + x_ref[...].astype(jnp.float32)   # residual
        o_ref[...] = _layer_norm_f32(y, gamma_ref, beta_ref).astype(o_ref.dtype)


@functools.partial(jax.jit, static_argnames=("block_m", "block_ff"))
def poswise_ffn(x, w1, w2, gamma, beta, *, block_m=None, block_ff=None):
    """x: [B, S, d_model]; w1: [d_model, d_ff]; w2: [d_ff, d_model];
    gamma, beta: [d_model].

    block_ff=None (default) keeps W1/W2 fully resident — the right choice on
    all generations while 2*d_model*d_ff*itemsize fits the VMEM budget.
    Set block_ff (multiple of 128; prefer 256-multiples on v6e/v7x) only when
    the weights get too large; block_m then defaults to 1024 to keep the
    weight-slice re-streaming amortized (MXU-bound, not HBM-bound).
    bf16 operands are the MXU-native fast path on all generations."""
    B, S, d_model = x.shape
    d_ff = w1.shape[1]
    M = B * S

    bf = d_ff if block_ff is None else block_ff
    assert d_ff % bf == 0, "block_ff must divide d_ff"
    assert bf == d_ff or bf % 128 == 0, "block_ff must be a multiple of 128"
    nk = d_ff // bf

    if block_m is None:
        # Resident weights: 512 rows amortizes per-step overhead and fits
        # VMEM. Tiled d_ff: 1024 rows keep each re-streamed slice MXU-bound.
        block_m = 512 if nk == 1 else 1024

    # dtype-aware minimum sublane tile: (8,128) f32, (16,128) bf16, (32,128) i8/fp8.
    sub = {4: 8, 2: 16, 1: 32}.get(x.dtype.itemsize, 8)

    if M >= 256:
        # MXU-aligned row tile; guarantee >=2 row tiles so the "parallel"
        # axis shards across the two TensorCores on v7x.
        bm = min(block_m, _round_up((M + 1) // 2, 128))
        bm = _round_up(bm, 128)
    else:
        bm = min(block_m, _round_up(M, sub))
        bm = _round_up(bm, sub)
    Mp = _round_up(M, bm)
    n_row_tiles = Mp // bm

    x2d = x.reshape(M, d_model)
    if Mp != M:
        x2d = jnp.pad(x2d, ((0, Mp - M), (0, 0)))

    gamma2d = gamma.reshape(1, d_model)
    beta2d = beta.reshape(1, d_model)

    # Explicit VMEM plan (double-buffered x/out tiles + weight blocks, h
    # intermediate, optional f32 accumulator), clamped to the device VMEM.
    xb_, w1b, w2b = x.dtype.itemsize, w1.dtype.itemsize, w2.dtype.itemsize
    vmem_plan = (
        2 * bm * d_model * xb_                                 # x tiles
        + 2 * bm * d_model * xb_                               # out tiles
        + 2 * (d_model * bf * w1b + bf * d_model * w2b)        # weight blocks
        + bm * bf * 4                                          # h intermediate
        + 4 * d_model * 4                                      # gamma/beta
        + (8 << 20)                                            # headroom
    )
    if nk > 1:
        vmem_plan += bm * d_model * 4                          # acc scratch
    vmem_bytes = int(min(vmem_plan, _vmem_capacity_bytes()))

    # Advisory cost estimate so XLA schedules the surrounding ops sensibly.
    weight_bytes = w1.size * w1b + w2.size * w2b
    if nk > 1:
        weight_bytes *= n_row_tiles   # slices are re-streamed once per row tile
    cost = pl.CostEstimate(
        flops=4 * Mp * d_model * d_ff,
        transcendentals=Mp,           # one rsqrt per row
        bytes_accessed=int(2 * Mp * d_model * xb_ + weight_bytes + 2 * d_model * 4),
    )

    if nk == 1:
        out2d = pl.pallas_call(
            _ffn_ln_kernel_resident,
            out_shape=jax.ShapeDtypeStruct((Mp, d_model), x.dtype),
            grid_spec=pltpu.PrefetchScalarGridSpec(
                num_scalar_prefetch=0,
                grid=(n_row_tiles,),
                in_specs=[
                    pl.BlockSpec((bm, d_model), lambda i: (i, 0)),      # x tile
                    pl.BlockSpec((d_model, d_ff), lambda i: (0, 0)),    # W1
                    pl.BlockSpec((d_ff, d_model), lambda i: (0, 0)),    # W2
                    pl.BlockSpec((1, d_model), lambda i: (0, 0)),       # gamma
                    pl.BlockSpec((1, d_model), lambda i: (0, 0)),       # beta
                ],
                out_specs=pl.BlockSpec((bm, d_model), lambda i: (i, 0)),
            ),
            compiler_params=pltpu.CompilerParams(
                dimension_semantics=("parallel",),
                vmem_limit_bytes=vmem_bytes,
            ),
            cost_estimate=cost,
        )(x2d, w1, w2, gamma2d, beta2d)
    else:
        out2d = pl.pallas_call(
            _ffn_ln_kernel_tiled,
            out_shape=jax.ShapeDtypeStruct((Mp, d_model), x.dtype),
            grid_spec=pltpu.PrefetchScalarGridSpec(
                num_scalar_prefetch=0,
                grid=(n_row_tiles, nk),
                in_specs=[
                    pl.BlockSpec((bm, d_model), lambda i, k: (i, 0)),   # x tile
                    pl.BlockSpec((d_model, bf), lambda i, k: (0, k)),   # W1 slice
                    pl.BlockSpec((bf, d_model), lambda i, k: (k, 0)),   # W2 slice
                    pl.BlockSpec((1, d_model), lambda i, k: (0, 0)),    # gamma
                    pl.BlockSpec((1, d_model), lambda i, k: (0, 0)),    # beta
                ],
                out_specs=pl.BlockSpec((bm, d_model), lambda i, k: (i, 0)),
                scratch_shapes=[pltpu.VMEM((bm, d_model), jnp.float32)],
            ),
            compiler_params=pltpu.CompilerParams(
                dimension_semantics=("parallel", "arbitrary"),
                vmem_limit_bytes=vmem_bytes,
            ),
            cost_estimate=cost,
        )(x2d, w1, w2, gamma2d, beta2d)

    if Mp != M:
        out2d = out2d[:M]
    return out2d.reshape(B, S, d_model)


def reference(x, w1, w2, gamma, beta):
    """Pure-JAX reference that mirrors the kernel's dtype handling."""
    xf = x.astype(jnp.float32)
    h = jnp.dot(x, w1, preferred_element_type=jnp.float32)
    h = jnp.maximum(h, 0.0).astype(w2.dtype)
    y = jnp.dot(h, w2, preferred_element_type=jnp.float32) + xf
    mean = jnp.mean(y, axis=-1, keepdims=True)
    var = jnp.mean((y - mean) ** 2, axis=-1, keepdims=True)
    out = (y - mean) / jnp.sqrt(var + LN_EPS) * gamma + beta
    return out.astype(x.dtype)


if __name__ == "__main__":
    # Module dims from the spec; small batch/seq for the smoke test.
    d_model, d_ff = 768, 2048
    batch, seq = 2, 8

    key = jax.random.PRNGKey(0)
    kx, k1, k2 = jax.random.split(key, 3)

    x = jax.random.normal(kx, (batch, seq, d_model), dtype=jnp.float32)
    # Deterministic param init (~ Kaiming-uniform scale, bias=False Linears).
    w1 = jax.random.uniform(k1, (d_model, d_ff), dtype=jnp.float32,
                            minval=-1.0, maxval=1.0) * (1.0 / d_model) ** 0.5
    w2 = jax.random.uniform(k2, (d_ff, d_model), dtype=jnp.float32,
                            minval=-1.0, maxval=1.0) * (1.0 / d_ff) ** 0.5
    gamma = jnp.ones((d_model,), dtype=jnp.float32)   # LayerNorm weight init
    beta = jnp.zeros((d_model,), dtype=jnp.float32)   # LayerNorm bias init

    # --- f32 path, weights resident (same dtype as the PyTorch module) ---
    out = poswise_ffn(x, w1, w2, gamma, beta)
    jax.block_until_ready(out)
    ref = reference(x, w1, w2, gamma, beta)
    assert out.shape == x.shape
    assert jnp.allclose(out, ref, atol=1e-3, rtol=1e-3), "f32 mismatch vs reference"

    # --- bf16 operand path (MXU-native), weights resident, M not a multiple
    #     of the row tile (exercises padding + 2 row tiles / megacore split).
    x_big = jax.random.normal(kx, (3, 100, d_model), dtype=jnp.float32)
    xb16 = x_big.astype(jnp.bfloat16)
    w1b16, w2b16 = w1.astype(jnp.bfloat16), w2.astype(jnp.bfloat16)
    out_r = poswise_ffn(xb16, w1b16, w2b16, gamma, beta)
    jax.block_until_ready(out_r)
    ref_b = reference(xb16, w1b16, w2b16, gamma, beta)
    assert out_r.shape == xb16.shape
    assert jnp.allclose(out_r.astype(jnp.float32), ref_b.astype(jnp.float32),
                        atol=3e-2, rtol=3e-2), "bf16 resident mismatch vs reference"

    # --- bf16 with explicit d_ff tiling (accumulator path; only needed when
    #     the weights no longer fit the VMEM budget) ---
    out_t = poswise_ffn(xb16, w1b16, w2b16, gamma, beta, block_ff=1024)
    jax.block_until_ready(out_t)
    assert out_t.shape == xb16.shape
    assert jnp.allclose(out_t.astype(jnp.float32), ref_b.astype(jnp.float32),
                        atol=3e-2, rtol=3e-2), "bf16 tiled mismatch vs reference"

    print("KERNEL_OK")
</pallas_src>

<mosaic_0001>
module attributes {stable_mosaic.version = 11 : i64} {
  func.func @_ffn_ln_kernel_resident(%arg0: i32, %arg1: memref<16x768xf32, #tpu.memory_space<vmem>>, %arg2: memref<768x2048xf32, #tpu.memory_space<vmem>>, %arg3: memref<2048x768xf32, #tpu.memory_space<vmem>>, %arg4: memref<1x768xf32, #tpu.memory_space<vmem>>, %arg5: memref<1x768xf32, #tpu.memory_space<vmem>>, %arg6: memref<16x768xf32, #tpu.memory_space<vmem>>) attributes {dimension_semantics = [#tpu.dimension_semantics<parallel>], iteration_bounds = array<i64: 1>, scalar_prefetch = 0 : i64, scratch_operands = 0 : i64, tpu.core_type = #tpu.core_type<tc>, window_params = [{transform_indices = @transform_0, window_bounds = array<i64: 16, 768>}, {pipeline_mode = #tpu.pipeline_mode<synchronous>, transform_indices = @transform_1, window_bounds = array<i64: 768, 2048>}, {pipeline_mode = #tpu.pipeline_mode<synchronous>, transform_indices = @transform_2, window_bounds = array<i64: 2048, 768>}, {pipeline_mode = #tpu.pipeline_mode<synchronous>, transform_indices = @transform_3, window_bounds = array<i64: 1, 768>}, {pipeline_mode = #tpu.pipeline_mode<synchronous>, transform_indices = @transform_4, window_bounds = array<i64: 1, 768>}, {transform_indices = @transform_5, window_bounds = array<i64: 16, 768>}]} {
    %c0 = arith.constant 0 : index
    %c0_0 = arith.constant 0 : index
    %0 = vector.load %arg1[%c0, %c0_0] : memref<16x768xf32, #tpu.memory_space<vmem>>, vector<16x768xf32>
    %c0_1 = arith.constant 0 : index
    %c0_2 = arith.constant 0 : index
    %1 = vector.load %arg2[%c0_1, %c0_2] : memref<768x2048xf32, #tpu.memory_space<vmem>>, vector<768x2048xf32>
    %cst = arith.constant dense<0.000000e+00> : vector<16x2048xf32>
    %2 = tpu.matmul %0, %1, %cst {dimension_numbers = #tpu.dot_dimension_numbers<[1], [0], [0], [1], [0, 0, 1, 1], [], []>} : vector<16x768xf32>, vector<768x2048xf32>, vector<16x2048xf32> -> vector<16x2048xf32>
    %cst_3 = arith.constant 0.000000e+00 : f32
    %3 = vector.broadcast %cst_3 : f32 to vector<16x2048xf32>
    %4 = arith.maximumf %2, %3 : vector<16x2048xf32>
    %c0_4 = arith.constant 0 : index
    %c0_5 = arith.constant 0 : index
    %5 = vector.load %arg3[%c0_4, %c0_5] : memref<2048x768xf32, #tpu.memory_space<vmem>>, vector<2048x768xf32>
    %cst_6 = arith.constant dense<0.000000e+00> : vector<16x768xf32>
    %6 = tpu.matmul %4, %5, %cst_6 {dimension_numbers = #tpu.dot_dimension_numbers<[1], [0], [0], [1], [0, 0, 1, 1], [], []>} : vector<16x2048xf32>, vector<2048x768xf32>, vector<16x768xf32> -> vector<16x768xf32>
    %7 = arith.addf %6, %0 : vector<16x768xf32>
    %cst_7 = arith.constant dense<0.000000e+00> : vector<16xf32>
    %8 = vector.multi_reduction <add>, %7, %cst_7 [1] : vector<16x768xf32> to vector<16xf32>
    %9 = vector.shape_cast %8 : vector<16xf32> to vector<16x1xf32>
    %cst_8 = arith.constant 7.680000e+02 : f32
    %10 = vector.broadcast %cst_8 : f32 to vector<16x1xf32>
    %11 = arith.divf %9, %10 : vector<16x1xf32>
    %12 = vector.broadcast %11 : vector<16x1xf32> to vector<16x768xf32>
    %13 = arith.subf %7, %12 : vector<16x768xf32>
    %14 = arith.mulf %13, %13 : vector<16x768xf32>
    %cst_9 = arith.constant dense<0.000000e+00> : vector<16xf32>
    %15 = vector.multi_reduction <add>, %14, %cst_9 [1] : vector<16x768xf32> to vector<16xf32>
    %16 = vector.shape_cast %15 : vector<16xf32> to vector<16x1xf32>
    %cst_10 = arith.constant 7.680000e+02 : f32
    %17 = vector.broadcast %cst_10 : f32 to vector<16x1xf32>
    %18 = arith.divf %16, %17 : vector<16x1xf32>
    %cst_11 = arith.constant 9.99999974E-6 : f32
    %19 = vector.broadcast %cst_11 : f32 to vector<16x1xf32>
    %20 = arith.addf %18, %19 : vector<16x1xf32>
    %21 = math.rsqrt %20 : vector<16x1xf32>
    %22 = vector.broadcast %21 : vector<16x1xf32> to vector<16x768xf32>
    %23 = arith.mulf %13, %22 : vector<16x768xf32>
    %c0_12 = arith.constant 0 : index
    %c0_13 = arith.constant 0 : index
    %24 = vector.load %arg4[%c0_12, %c0_13] : memref<1x768xf32, #tpu.memory_space<vmem>>, vector<1x768xf32>
    %25 = vector.broadcast %24 : vector<1x768xf32> to vector<16x768xf32>
    %26 = arith.mulf %23, %25 : vector<16x768xf32>
    %c0_14 = arith.constant 0 : index
    %c0_15 = arith.constant 0 : index
    %27 = vector.load %arg5[%c0_14, %c0_15] : memref<1x768xf32, #tpu.memory_space<vmem>>, vector<1x768xf32>
    %28 = vector.broadcast %27 : vector<1x768xf32> to vector<16x768xf32>
    %29 = arith.addf %26, %28 : vector<16x768xf32>
    %c0_16 = arith.constant 0 : index
    %c0_17 = arith.constant 0 : index
    %30 = vector.load %arg6[%c0_16, %c0_17] : memref<16x768xf32, #tpu.memory_space<vmem>>, vector<16x768xf32>
    tpu.vector_store %arg6[%c0_16, %c0_17], %29 {strides = array<i32>} : memref<16x768xf32, #tpu.memory_space<vmem>>, vector<16x768xf32>,
    return
  }
  func.func @transform_0(%arg0: i32) -> (i32, i32) {
    %c0_i32 = arith.constant 0 : i32
    %c0_i32_0 = arith.constant 0 : i32
    return %arg0, %c0_i32 : i32, i32
  }
  func.func @transform_1(%arg0: i32) -> (i32, i32) {
    %c0_i32 = arith.constant 0 : i32
    %c0_i32_0 = arith.constant 0 : i32
    %c0_i32_1 = arith.constant 0 : i32
    return %c0_i32, %c0_i32_0 : i32, i32
  }
  func.func @transform_2(%arg0: i32) -> (i32, i32) {
    %c0_i32 = arith.constant 0 : i32
    %c0_i32_0 = arith.constant 0 : i32
    %c0_i32_1 = arith.constant 0 : i32
    return %c0_i32, %c0_i32_0 : i32, i32
  }
  func.func @transform_3(%arg0: i32) -> (i32, i32) {
    %c0_i32 = arith.constant 0 : i32
    %c0_i32_0 = arith.constant 0 : i32
    %c0_i32_1 = arith.constant 0 : i32
    return %c0_i32, %c0_i32_0 : i32, i32
  }
  func.func @transform_4(%arg0: i32) -> (i32, i32) {
    %c0_i32 = arith.constant 0 : i32
    %c0_i32_0 = arith.constant 0 : i32
    %c0_i32_1 = arith.constant 0 : i32
    return %c0_i32, %c0_i32_0 : i32, i32
  }
  func.func @transform_5(%arg0: i32) -> (i32, i32) {
    %c0_i32 = arith.constant 0 : i32
    %c0_i32_0 = arith.constant 0 : i32
    return %arg0, %c0_i32 : i32, i32
  }
}

</mosaic_0001>

<llo_original>
// kernel: poswise_ffn.1
$region0: #{poswise_ffn.1}
  #allocation0 [shape = 'u32[]', space=smem, size = 0x4, offset = 0x4, fixed_abs, tag = 'smem constant byte address 0x4 - core index']
  #allocation1 [shape = 'u32[72,128]{1,0:T(1,128)}', space=vmem, size = 0x9000, scoped, tag = 'internal scratch']
  %s0 = inlined_call_operand.hbm [shape: f32[16,768], index: 0, kind: input, shape index: {}]
  %s1 = inlined_call_operand.hbm [shape: f32[768,2048], index: 1, kind: input, shape index: {}]
  %s2 = inlined_call_operand.hbm [shape: f32[2048,768], index: 2, kind: input, shape index: {}]
  %s3 = inlined_call_operand.vmem [shape: f32[1,768], index: 3, kind: input, shape index: {}]
  %s4 = inlined_call_operand.vmem [shape: f32[1,768], index: 4, kind: input, shape index: {}]
  %s5 = inlined_call_operand.hbm [shape: f32[16,768], index: 5, kind: output, shape index: {}]
  %s6 = sld [smem:[#allocation0]]
  $region42: #{poswise_ffn.1} parent=0
    _
  %s8 = ssub.s32 1, %s6
  %s9 = scalar_select 0, %s8, %s6
  $region1: #{poswise_ffn.1} parent=0
    #allocation2 [shape = 'u8[49152]{0}', space=vmem, size = 0xc000, scoped, tag = 'input window, operand 0, single buffered']
    #allocation3 [shape = 's32[1]{0}', space=sflag, size = 0x4, scoped, tag = 'scoped memory for poswise_ffn.1']
    #allocation4 [shape = 's32[1]{0}', space=sflag, size = 0x4, scoped, tag = 'scoped memory for poswise_ffn.1']
    #allocation5 [shape = 'u8[6291456]{0}', space=vmem, size = 0x600000, scoped, tag = 'input window, operand 1, single buffered']
    #allocation6 [shape = 's32[1]{0}', space=sflag, size = 0x4, scoped, tag = 'scoped memory for poswise_ffn.1']
    #allocation7 [shape = 'u8[6291456]{0}', space=vmem, size = 0x600000, scoped, tag = 'input window, operand 2, single buffered']
    #allocation8 [shape = 'u8[49152]{0}', space=vmem, size = 0xc000, scoped, tag = 'output window, operand 0, single buffered']
    %10 = vsyncpa [#allocation3], 0
    %11 = vsyncpa [#allocation6], 0
    %12 = vsyncpa [#allocation4], 0
    // Predicated region
    $region2: #{poswise_ffn.1} parent=1 // pred_check
      _
    $region3: #{poswise_ffn.1} parent=1 // pred_check_branch
      %14 = sbr.rel (0) target = $region5
    $region4: #{poswise_ffn.1} parent=1 // pred_region
      %16 = vsyncadd [#allocation3], 0
      %s17 = sshll.u32 %s0, 4
      %s18 = int_to_ptr.hbm [resolvable:$true] %s17
      %s19 = sshll.u32 [#allocation2], 4
      %s20 = int_to_ptr.vmem [resolvable:$true] %s19
      %25 = dma.hbm_to_vmem [thread:$0]  %s18, 1536, %s20, [#allocation3], 768, 768, 48
    $region5: #{poswise_ffn.1} parent=1 // pred_fallthru
      _
    // Predicated region
    $region6: #{poswise_ffn.1} parent=1 // pred_check
      _
    $region7: #{poswise_ffn.1} parent=1 // pred_check_branch
      %27 = sbr.rel (0) target = $region9
    $region8: #{poswise_ffn.1} parent=1 // pred_region
      %29 = vsyncadd [#allocation6], 0
      %s30 = sshll.u32 %s1, 4
      %s31 = int_to_ptr.hbm [resolvable:$true] %s30
      %s32 = sshll.u32 [#allocation5], 4
      %s33 = int_to_ptr.vmem [resolvable:$true] %s32
      %38 = dma.hbm_to_vmem [thread:$0]  %s31, 196608, %s33, [#allocation6], 2048, 2048, 128
    $region9: #{poswise_ffn.1} parent=1 // pred_fallthru
      _
    // Predicated region
    $region10: #{poswise_ffn.1} parent=1 // pred_check
      _
    $region11: #{poswise_ffn.1} parent=1 // pred_check_branch
      %40 = sbr.rel (0) target = $region13
    $region12: #{poswise_ffn.1} parent=1 // pred_region
      %42 = vsyncadd [#allocation6], 0
      %s43 = sshll.u32 %s2, 4
      %s44 = int_to_ptr.hbm [resolvable:$true] %s43
      %s45 = sshll.u32 [#allocation7], 4
      %s46 = int_to_ptr.vmem [resolvable:$true] %s45
      %51 = dma.hbm_to_vmem [thread:$0]  %s44, 196608, %s46, [#allocation6], 768, 768, 48
    $region13: #{poswise_ffn.1} parent=1 // pred_fallthru
      _
    // Predicated region
    $region14: #{poswise_ffn.1} parent=1 // pred_check
      _
    $region15: #{poswise_ffn.1} parent=1 // pred_check_branch
      %53 = sbr.rel (0) target = $region17
    $region16: #{poswise_ffn.1} parent=1 // pred_region
      _
    $region17: #{poswise_ffn.1} parent=1 // pred_fallthru
      _
    // Predicated region
    $region18: #{poswise_ffn.1} parent=1 // pred_check
      _
    $region19: #{poswise_ffn.1} parent=1 // pred_check_branch
      %55 = sbr.rel (0) target = $region21
    $region20: #{poswise_ffn.1} parent=1 // pred_region
      _
    $region21: #{poswise_ffn.1} parent=1 // pred_fallthru
      _
    // Predicated region
    $region22: #{poswise_ffn.1} parent=1 // pred_check
      _
    $region23: #{poswise_ffn.1} parent=1 // pred_check_branch
      %57 = sbr.rel (0) target = $region25
    $region24: #{poswise_ffn.1} parent=1 // pred_region
      %59 = dma.done [#allocation3], 1536
    $region25: #{poswise_ffn.1} parent=1 // pred_fallthru
      _
    // Predicated region
    $region26: #{poswise_ffn.1} parent=1 // pred_check
      _
    $region27: #{poswise_ffn.1} parent=1 // pred_check_branch
      %61 = sbr.rel (0) target = $region29
    $region28: #{poswise_ffn.1} parent=1 // pred_region
      %63 = dma.done [#allocation6], 196608
    $region29: #{poswise_ffn.1} parent=1 // pred_fallthru
      _
    // Predicated region
    $region30: #{poswise_ffn.1} parent=1 // pred_check
      _
    $region31: #{poswise_ffn.1} parent=1 // pred_check_branch
      %65 = sbr.rel (0) target = $region33
    $region32: #{poswise_ffn.1} parent=1 // pred_region
      %67 = dma.done [#allocation6], 196608
    $region33: #{poswise_ffn.1} parent=1 // pred_fallthru
      _
    %v68 = vld [vmem:[#allocation2] sm:$0xff]
    %v69 = vld [vmem:[#allocation2 + $0x8] sm:$0xff]
    %v70 = vld [vmem:[#allocation2 + $0x10] sm:$0xff]
    %v71 = vld [vmem:[#allocation2 + $0x18] sm:$0xff]
    %v72 = vld [vmem:[#allocation2 + $0x20] sm:$0xff]
    %v73 = vld [vmem:[#allocation2 + $0x28] sm:$0xff]
    %v74 = vld [vmem:[#allocation2 + $0x30] sm:$0xff]
    %v75 = vld [vmem:[#allocation2 + $0x38] sm:$0xff]
    %v76 = vld [vmem:[#allocation2 + $0x40] sm:$0xff]
    %v77 = vld [vmem:[#allocation2 + $0x48] sm:$0xff]
    %v78 = vld [vmem:[#allocation2 + $0x50] sm:$0xff]
    %v79 = vld [vmem:[#allocation2 + $0x58] sm:$0xff]
    %v80 = vld [vmem:[#allocation5] sm:$0xff]
    %v81 = vld [vmem:[#allocation5 + $0x8] sm:$0xff]
    %v82 = vld [vmem:[#allocation5 + $0x10] sm:$0xff]
    %v83 = vld [vmem:[#allocation5 + $0x18] sm:$0xff]
    %v84 = vld [vmem:[#allocation5 + $0x20] sm:$0xff]
    %v85 = vld [vmem:[#allocation5 + $0x28] sm:$0xff]
    %v86 = vld [vmem:[#allocation5 + $0x30] sm:$0xff]
    %v87 = vld [vmem:[#allocation5 + $0x38] sm:$0xff]
    %v88 = vld [vmem:[#allocation5 + $0x40] sm:$0xff]
    %v89 = vld [vmem:[#allocation5 + $0x48] sm:$0xff]
    %v90 = vld [vmem:[#allocation5 + $0x50] sm:$0xff]
    %v91 = vld [vmem:[#allocation5 + $0x58] sm:$0xff]
    %v92 = vld [vmem:[#allocation5 + $0x60] sm:$0xff]
    %v93 = vld [vmem:[#allocation5 + $0x68] sm:$0xff]
    %v94 = vld [vmem:[#allocation5 + $0x70] sm:$0xff]
    %v95 = vld [vmem:[#allocation5 + $0x78] sm:$0xff]
    %v96 = vld [vmem:[#allocation5 + $0x80] sm:$0xff]
    %v97 = vld [vmem:[#allocation5 + $0x88] sm:$0xff]
    %v98 = vld [vmem:[#allocation5 + $0x90] sm:$0xff]
    %v99 = vld [vmem:[#allocation5 + $0x98] sm:$0xff]
    %v100 = vld [vmem:[#allocation5 + $0xa0] sm:$0xff]
    %v101 = vld [vmem:[#allocation5 + $0xa8] sm:$0xff]
    %v102 = vld [vmem:[#allocation5 + $0xb0] sm:$0xff]
    %v103 = vld [vmem:[#allocation5 + $0xb8] sm:$0xff]
    %v104 = vld [vmem:[#allocation5 + $0xc0] sm:$0xff]
    %v105 = vld [vmem:[#allocation5 + $0xc8] sm:$0xff]
    %v106 = vld [vmem:[#allocation5 + $0xd0] sm:$0xff]
    %v107 = vld [vmem:[#allocation5 + $0xd8] sm:$0xff]
    %v108 = vld [vmem:[#allocation5 + $0xe0] sm:$0xff]
    %v109 = vld [vmem:[#allocation5 + $0xe8] sm:$0xff]
    %v110 = vld [vmem:[#allocation5 + $0xf0] sm:$0xff]
    %v111 = vld [vmem:[#allocation5 + $0xf8] sm:$0xff]
    %v112 = vld [vmem:[#allocation5 + $0x100] sm:$0xff]
    %v113 = vld [vmem:[#allocation5 + $0x108] sm:$0xff]
    %v114 = vld [vmem:[#allocation5 + $0x110] sm:$0xff]
    %v115 = vld [vmem:[#allocation5 + $0x118] sm:$0xff]
    %v116 = vld [vmem:[#allocation5 + $0x120] sm:$0xff]
    %v117 = vld [vmem:[#allocation5 + $0x128] sm:$0xff]
    %v118 = vld [vmem:[#allocation5 + $0x130] sm:$0xff]
    %v119 = vld [vmem:[#allocation5 + $0x138] sm:$0xff]
    %v120 = vld [vmem:[#allocation5 + $0x140] sm:$0xff]
    %v121 = vld [vmem:[#allocation5 + $0x148] sm:$0xff]
    %v122 = vld [vmem:[#allocation5 + $0x150] sm:$0xff]
    %v123 = vld [vmem:[#allocation5 + $0x158] sm:$0xff]
    %v124 = vld [vmem:[#allocation5 + $0x160] sm:$0xff]
    %v125 = vld [vmem:[#allocation5 + $0x168] sm:$0xff]
    %v126 = vld [vmem:[#allocation5 + $0x170] sm:$0xff]
    %v127 = vld [vmem:[#allocation5 + $0x178] sm:$0xff]
    %v128 = vld [vmem:[#allocation5 + $0x180] sm:$0xff]
    %v129 = vld [vmem:[#allocation5 + $0x188] sm:$0xff]
    %v130 = vld [vmem:[#allocation5 + $0x190] sm:$0xff]
    %v131 = vld [vmem:[#allocation5 + $0x198] sm:$0xff]
    %v132 = vld [vmem:[#allocation5 + $0x1a0] sm:$0xff]
    %v133 = vld [vmem:[#allocation5 + $0x1a8] sm:$0xff]
    %v134 = vld [vmem:[#allocation5 + $0x1b0] sm:$0xff]
    %v135 = vld [vmem:[#allocation5 + $0x1b8] sm:$0xff]
    %v136 = vld [vmem:[#allocation5 + $0x1c0] sm:$0xff]
    %v137 = vld [vmem:[#allocation5 + $0x1c8] sm:$0xff]
    %v138 = vld [vmem:[#allocation5 + $0x1d0] sm:$0xff]
    %v139 = vld [vmem:[#allocation5 + $0x1d8] sm:$0xff]
    %v140 = vld [vmem:[#allocation5 + $0x1e0] sm:$0xff]
    %v141 = vld [vmem:[#allocation5 + $0x1e8] sm:$0xff]
    %v142 = vld [vmem:[#allocation5 + $0x1f0] sm:$0xff]
    %v143 = vld [vmem:[#allocation5 + $0x1f8] sm:$0xff]
    %v144 = vld [vmem:[#allocation5 + $0x200] sm:$0xff]
    %v145 = vld [vmem:[#allocation5 + $0x208] sm:$0xff]
    %v146 = vld [vmem:[#allocation5 + $0x210] sm:$0xff]
    %v147 = vld [vmem:[#allocation5 + $0x218] sm:$0xff]
    %v148 = vld [vmem:[#allocation5 + $0x220] sm:$0xff]
    %v149 = vld [vmem:[#allocation5 + $0x228] sm:$0xff]
    %v150 = vld [vmem:[#allocation5 + $0x230] sm:$0xff]
    %v151 = vld [vmem:[#allocation5 + $0x238] sm:$0xff]
    %v152 = vld [vmem:[#allocation5 + $0x240] sm:$0xff]
    %v153 = vld [vmem:[#allocation5 + $0x248] sm:$0xff]
    %v154 = vld [vmem:[#allocation5 + $0x250] sm:$0xff]
    %v155 = vld [vmem:[#allocation5 + $0x258] sm:$0xff]
    %v156 = vld [vmem:[#allocation5 + $0x260] sm:$0xff]
    %v157 = vld [vmem:[#allocation5 + $0x268] sm:$0xff]
    %v158 = vld [vmem:[#allocation5 + $0x270] sm:$0xff]
    %v159 = vld [vmem:[#allocation5 + $0x278] sm:$0xff]
    %v160 = vld [vmem:[#allocation5 + $0x280] sm:$0xff]
    %v161 = vld [vmem:[#allocation5 + $0x288] sm:$0xff]
    %v162 = vld [vmem:[#allocation5 + $0x290] sm:$0xff]
    %v163 = vld [vmem:[#allocation5 + $0x298] sm:$0xff]
    %v164 = vld [vmem:[#allocation5 + $0x2a0] sm:$0xff]
    %v165 = vld [vmem:[#allocation5 + $0x2a8] sm:$0xff]
    %v166 = vld [vmem:[#allocation5 + $0x2b0] sm:$0xff]
    %v167 = vld [vmem:[#allocation5 + $0x2b8] sm:$0xff]
    %v168 = vld [vmem:[#allocation5 + $0x2c0] sm:$0xff]
    %v169 = vld [vmem:[#allocation5 + $0x2c8] sm:$0xff]
    %v170 = vld [vmem:[#allocation5 + $0x2d0] sm:$0xff]
    %v171 = vld [vmem:[#allocation5 + $0x2d8] sm:$0xff]
    %v172 = vld [vmem:[#allocation5 + $0x2e0] sm:$0xff]
    %v173 = vld [vmem:[#allocation5 + $0x2e8] sm:$0xff]
    %v174 = vld [vmem:[#allocation5 + $0x2f0] sm:$0xff]
    %v175 = vld [vmem:[#allocation5 + $0x2f8] sm:$0xff]
    %v176 = vld [vmem:[#allocation5 + $0x300] sm:$0xff]
    %v177 = vld [vmem:[#allocation5 + $0x308] sm:$0xff]
    %v178 = vld [vmem:[#allocation5 + $0x310] sm:$0xff]
    %v179 = vld [vmem:[#allocation5 + $0x318] sm:$0xff]
    %v180 = vld [vmem:[#allocation5 + $0x320] sm:$0xff]
    %v181 = vld [vmem:[#allocation5 + $0x328] sm:$0xff]
    %v182 = vld [vmem:[#allocation5 + $0x330] sm:$0xff]
    %v183 = vld [vmem:[#allocation5 + $0x338] sm:$0xff]
    %v184 = vld [vmem:[#allocation5 + $0x340] sm:$0xff]
    %v185 = vld [vmem:[#allocation5 + $0x348] sm:$0xff]
    %v186 = vld [vmem:[#allocation5 + $0x350] sm:$0xff]
    %v187 = vld [vmem:[#allocation5 + $0x358] sm:$0xff]
    %v188 = vld [vmem:[#allocation5 + $0x360] sm:$0xff]
    %v189 = vld [vmem:[#allocation5 + $0x368] sm:$0xff]
    %v190 = vld [vmem:[#allocation5 + $0x370] sm:$0xff]
    %v191 = vld [vmem:[#allocation5 + $0x378] sm:$0xff]
    %v192 = vld [vmem:[#allocation5 + $0x380] sm:$0xff]
    %v193 = vld [vmem:[#allocation5 + $0x388] sm:$0xff]
    %v194 = vld [vmem:[#allocation5 + $0x390] sm:$0xff]
    %v195 = vld [vmem:[#allocation5 + $0x398] sm:$0xff]
    %v196 = vld [vmem:[#allocation5 + $0x3a0] sm:$0xff]
    %v197 = vld [vmem:[#allocation5 + $0x3a8] sm:$0xff]
    %v198 = vld [vmem:[#allocation5 + $0x3b0] sm:$0xff]
    %v199 = vld [vmem:[#allocation5 + $0x3b8] sm:$0xff]
    %v200 = vld [vmem:[#allocation5 + $0x3c0] sm:$0xff]
    %v201 = vld [vmem:[#allocation5 + $0x3c8] sm:$0xff]
    %v202 = vld [vmem:[#allocation5 + $0x3d0] sm:$0xff]
    %v203 = vld [vmem:[#allocation5 + $0x3d8] sm:$0xff]
    %v204 = vld [vmem:[#allocation5 + $0x3e0] sm:$0xff]
    %v205 = vld [vmem:[#allocation5 + $0x3e8] sm:$0xff]
    %v206 = vld [vmem:[#allocation5 + $0x3f0] sm:$0xff]
    %v207 = vld [vmem:[#allocation5 + $0x3f8] sm:$0xff]
    %v208 = vld [vmem:[#allocation5 + $0x400] sm:$0xff]
    %v209 = vld [vmem:[#allocation5 + $0x408] sm:$0xff]
    %v210 = vld [vmem:[#allocation5 + $0x410] sm:$0xff]
    %v211 = vld [vmem:[#allocation5 + $0x418] sm:$0xff]
    %v212 = vld [vmem:[#allocation5 + $0x420] sm:$0xff]
    %v213 = vld [vmem:[#allocation5 + $0x428] sm:$0xff]
    %v214 = vld [vmem:[#allocation5 + $0x430] sm:$0xff]
    %v215 = vld [vmem:[#allocation5 + $0x438] sm:$0xff]
    %v216 = vld [vmem:[#allocation5 + $0x440] sm:$0xff]
    %v217 = vld [vmem:[#allocation5 + $0x448] sm:$0xff]
    %v218 = vld [vmem:[#allocation5 + $0x450] sm:$0xff]
    %v219 = vld [vmem:[#allocation5 + $0x458] sm:$0xff]
    %v220 = vld [vmem:[#allocation5 + $0x460] sm:$0xff]
    %v221 = vld [vmem:[#allocation5 + $0x468] sm:$0xff]
    %v222 = vld [vmem:[#allocation5 + $0x470] sm:$0xff]
    %v223 = vld [vmem:[#allocation5 + $0x478] sm:$0xff]
    %v224 = vld [vmem:[#allocation5 + $0x480] sm:$0xff]
    %v225 = vld [vmem:[#allocation5 + $0x488] sm:$0xff]
    %v226 = vld [vmem:[#allocation5 + $0x490] sm:$0xff]
    %v227 = vld [vmem:[#allocation5 + $0x498] sm:$0xff]
    %v228 = vld [vmem:[#allocation5 + $0x4a0] sm:$0xff]
    %v229 = vld [vmem:[#allocation5 + $0x4a8] sm:$0xff]
    %v230 = vld [vmem:[#allocation5 + $0x4b0] sm:$0xff]
    %v231 = vld [vmem:[#allocation5 + $0x4b8] sm:$0xff]
    %v232 = vld [vmem:[#allocation5 + $0x4c0] sm:$0xff]
    %v233 = vld [vmem:[#allocation5 + $0x4c8] sm:$0xff]
    %v234 = vld [vmem:[#allocation5 + $0x4d0] sm:$0xff]
    %v235 = vld [vmem:[#allocation5 + $0x4d8] sm:$0xff]
    %v236 = vld [vmem:[#allocation5 + $0x4e0] sm:$0xff]
    %v237 = vld [vmem:[#allocation5 + $0x4e8] sm:$0xff]
    %v238 = vld [vmem:[#allocation5 + $0x4f0] sm:$0xff]
    %v239 = vld [vmem:[#allocation5 + $0x4f8] sm:$0xff]
    %v240 = vld [vmem:[#allocation5 + $0x500] sm:$0xff]
    %v241 = vld [vmem:[#allocation5 + $0x508] sm:$0xff]
    %v242 = vld [vmem:[#allocation5 + $0x510] sm:$0xff]
    %v243 = vld [vmem:[#allocation5 + $0x518] sm:$0xff]
    %v244 = vld [vmem:[#allocation5 + $0x520] sm:$0xff]
    %v245 = vld [vmem:[#allocation5 + $0x528] sm:$0xff]
    %v246 = vld [vmem:[#allocation5 + $0x530] sm:$0xff]
    %v247 = vld [vmem:[#allocation5 + $0x538] sm:$0xff]
    %v248 = vld [vmem:[#allocation5 + $0x540] sm:$0xff]
    %v249 = vld [vmem:[#allocation5 + $0x548] sm:$0xff]
    %v250 = vld [vmem:[#allocation5 + $0x550] sm:$0xff]
    %v251 = vld [vmem:[#allocation5 + $0x558] sm:$0xff]
    %v252 = vld [vmem:[#allocation5 + $0x560] sm:$0xff]
    %v253 = vld [vmem:[#allocation5 + $0x568] sm:$0xff]
    %v254 = vld [vmem:[#allocation5 + $0x570] sm:$0xff]
    %v255 = vld [vmem:[#allocation5 + $0x578] sm:$0xff]
    %v256 = vld [vmem:[#allocation5 + $0x580] sm:$0xff]
    %v257 = vld [vmem:[#allocation5 + $0x588] sm:$0xff]
    %v258 = vld [vmem:[#allocation5 + $0x590] sm:$0xff]
    %v259 = vld [vmem:[#allocation5 + $0x598] sm:$0xff]
    %v260 = vld [vmem:[#allocation5 + $0x5a0] sm:$0xff]
    %v261 = vld [vmem:[#allocation5 + $0x5a8] sm:$0xff]
    %v262 = vld [vmem:[#allocation5 + $0x5b0] sm:$0xff]
    %v263 = vld [vmem:[#allocation5 + $0x5b8] sm:$0xff]
    %v264 = vld [vmem:[#allocation5 + $0x5c0] sm:$0xff]
    %v265 = vld [vmem:[#allocation5 + $0x5c8] sm:$0xff]
    %v266 = vld [vmem:[#allocation5 + $0x5d0] sm:$0xff]
    %v267 = vld [vmem:[#allocation5 + $0x5d8] sm:$0xff]
    %v268 = vld [vmem:[#allocation5 + $0x5e0] sm:$0xff]
    %v269 = vld [vmem:[#allocation5 + $0x5e8] sm:$0xff]
    %v270 = vld [vmem:[#allocation5 + $0x5f0] sm:$0xff]
    %v271 = vld [vmem:[#allocation5 + $0x5f8] sm:$0xff]
    %v272 = vld [vmem:[#allocation5 + $0x600] sm:$0xff]
    %v273 = vld [vmem:[#allocation5 + $0x608] sm:$0xff]
    %v274 = vld [vmem:[#allocation5 + $0x610] sm:$0xff]
    %v275 = vld [vmem:[#allocation5 + $0x618] sm:$0xff]
    %v276 = vld [vmem:[#allocation5 + $0x620] sm:$0xff]
    %v277 = vld [vmem:[#allocation5 + $0x628] sm:$0xff]
    %v278 = vld [vmem:[#allocation5 + $0x630] sm:$0xff]
    %v279 = vld [vmem:[#allocation5 + $0x638] sm:$0xff]
    %v280 = vld [vmem:[#allocation5 + $0x640] sm:$0xff]
    %v281 = vld [vmem:[#allocation5 + $0x648] sm:$0xff]
    %v282 = vld [vmem:[#allocation5 + $0x650] sm:$0xff]
    %v283 = vld [vmem:[#allocation5 + $0x658] sm:$0xff]
    %v284 = vld [vmem:[#allocation5 + $0x660] sm:$0xff]
    %v285 = vld [vmem:[#allocation5 + $0x668] sm:$0xff]
    %v286 = vld [vmem:[#allocation5 + $0x670] sm:$0xff]
    %v287 = vld [vmem:[#allocation5 + $0x678] sm:$0xff]
    %v288 = vld [vmem:[#allocation5 + $0x680] sm:$0xff]
    %v289 = vld [vmem:[#allocation5 + $0x688] sm:$0xff]
    %v290 = vld [vmem:[#allocation5 + $0x690] sm:$0xff]
    %v291 = vld [vmem:[#allocation5 + $0x698] sm:$0xff]
    %v292 = vld [vmem:[#allocation5 + $0x6a0] sm:$0xff]
    %v293 = vld [vmem:[#allocation5 + $0x6a8] sm:$0xff]
    %v294 = vld [vmem:[#allocation5 + $0x6b0] sm:$0xff]
    %v295 = vld [vmem:[#allocation5 + $0x6b8] sm:$0xff]
    %v296 = vld [vmem:[#allocation5 + $0x6c0] sm:$0xff]
    %v297 = vld [vmem:[#allocation5 + $0x6c8] sm:$0xff]
    %v298 = vld [vmem:[#allocation5 + $0x6d0] sm:$0xff]
    %v299 = vld [vmem:[#allocation5 + $0x6d8] sm:$0xff]
    %v300 = vld [vmem:[#allocation5 + $0x6e0] sm:$0xff]
    %v301 = vld [vmem:[#allocation5 + $0x6e8] sm:$0xff]
    %v302 = vld [vmem:[#allocation5 + $0x6f0] sm:$0xff]
    %v303 = vld [vmem:[#allocation5 + $0x6f8] sm:$0xff]
    %v304 = vld [vmem:[#allocation5 + $0x700] sm:$0xff]
    %v305 = vld [vmem:[#allocation5 + $0x708] sm:$0xff]
    %v306 = vld [vmem:[#allocation5 + $0x710] sm:$0xff]
    %v307 = vld [vmem:[#allocation5 + $0x718] sm:$0xff]
    %v308 = vld [vmem:[#allocation5 + $0x720] sm:$0xff]
    %v309 = vld [vmem:[#allocation5 + $0x728] sm:$0xff]
    %v310 = vld [vmem:[#allocation5 + $0x730] sm:$0xff]
    %v311 = vld [vmem:[#allocation5 + $0x738] sm:$0xff]
    %v312 = vld [vmem:[#allocation5 + $0x740] sm:$0xff]
    %v313 = vld [vmem:[#allocation5 + $0x748] sm:$0xff]
    %v314 = vld [vmem:[#allocation5 + $0x750] sm:$0xff]
    %v315 = vld [vmem:[#allocation5 + $0x758] sm:$0xff]
    %v316 = vld [vmem:[#allocation5 + $0x760] sm:$0xff]
    %v317 = vld [vmem:[#allocation5 + $0x768] sm:$0xff]
    %v318 = vld [vmem:[#allocation5 + $0x770] sm:$0xff]
    %v319 = vld [vmem:[#allocation5 + $0x778] sm:$0xff]
    %v320 = vld [vmem:[#allocation5 + $0x780] sm:$0xff]
    %v321 = vld [vmem:[#allocation5 + $0x788] sm:$0xff]
    %v322 = vld [vmem:[#allocation5 + $0x790] sm:$0xff]
    %v323 = vld [vmem:[#allocation5 + $0x798] sm:$0xff]
    %v324 = vld [vmem:[#allocation5 + $0x7a0] sm:$0xff]
    %v325 = vld [vmem:[#allocation5 + $0x7a8] sm:$0xff]
    %v326 = vld [vmem:[#allocation5 + $0x7b0] sm:$0xff]
    %v327 = vld [vmem:[#allocation5 + $0x7b8] sm:$0xff]
    %v328 = vld [vmem:[#allocation5 + $0x7c0] sm:$0xff]
    %v329 = vld [vmem:[#allocation5 + $0x7c8] sm:$0xff]
    %v330 = vld [vmem:[#allocation5 + $0x7d0] sm:$0xff]
    %v331 = vld [vmem:[#allocation5 + $0x7d8] sm:$0xff]
    %v332 = vld [vmem:[#allocation5 + $0x7e0] sm:$0xff]
    %v333 = vld [vmem:[#allocation5 + $0x7e8] sm:$0xff]
    %v334 = vld [vmem:[#allocation5 + $0x7f0] sm:$0xff]
    %v335 = vld [vmem:[#allocation5 + $0x7f8] sm:$0xff]
    %v336 = vld [vmem:[#allocation5 + $0x800] sm:$0xff]
    %v337 = vld [vmem:[#allocation5 + $0x808] sm:$0xff]
    %v338 = vld [vmem:[#allocation5 + $0x810] sm:$0xff]
    %v339 = vld [vmem:[#allocation5 + $0x818] sm:$0xff]
    %v340 = vld [vmem:[#allocation5 + $0x820] sm:$0xff]
    %v341 = vld [vmem:[#allocation5 + $0x828] sm:$0xff]
    %v342 = vld [vmem:[#allocation5 + $0x830] sm:$0xff]
    %v343 = vld [vmem:[#allocation5 + $0x838] sm:$0xff]
    %v344 = vld [vmem:[#allocation5 + $0x840] sm:$0xff]
    %v345 = vld [vmem:[#allocation5 + $0x848] sm:$0xff]
    %v346 = vld [vmem:[#allocation5 + $0x850] sm:$0xff]
    %v347 = vld [vmem:[#allocation5 + $0x858] sm:$0xff]
    %v348 = vld [vmem:[#allocation5 + $0x860] sm:$0xff]
    %v349 = vld [vmem:[#allocation5 + $0x868] sm:$0xff]
    %v350 = vld [vmem:[#allocation5 + $0x870] sm:$0xff]
    %v351 = vld [vmem:[#allocation5 + $0x878] sm:$0xff]
    %v352 = vld [vmem:[#allocation5 + $0x880] sm:$0xff]
    %v353 = vld [vmem:[#allocation5 + $0x888] sm:$0xff]
    %v354 = vld [vmem:[#allocation5 + $0x890] sm:$0xff]
    %v355 = vld [vmem:[#allocation5 + $0x898] sm:$0xff]
    %v356 = vld [vmem:[#allocation5 + $0x8a0] sm:$0xff]
    %v357 = vld [vmem:[#allocation5 + $0x8a8] sm:$0xff]
    %v358 = vld [vmem:[#allocation5 + $0x8b0] sm:$0xff]
    %v359 = vld [vmem:[#allocation5 + $0x8b8] sm:$0xff]
    %v360 = vld [vmem:[#allocation5 + $0x8c0] sm:$0xff]
    %v361 = vld [vmem:[#allocation5 + $0x8c8] sm:$0xff]
    %v362 = vld [vmem:[#allocation5 + $0x8d0] sm:$0xff]
    %v363 = vld [vmem:[#allocation5 + $0x8d8] sm:$0xff]
    %v364 = vld [vmem:[#allocation5 + $0x8e0] sm:$0xff]
    %v365 = vld [vmem:[#allocation5 + $0x8e8] sm:$0xff]
    %v366 = vld [vmem:[#allocation5 + $0x8f0] sm:$0xff]
    %v367 = vld [vmem:[#allocation5 + $0x8f8] sm:$0xff]
    %v368 = vld [vmem:[#allocation5 + $0x900] sm:$0xff]
    %v369 = vld [vmem:[#allocation5 + $0x908] sm:$0xff]
    %v370 = vld [vmem:[#allocation5 + $0x910] sm:$0xff]
    %v371 = vld [vmem:[#allocation5 + $0x918] sm:$0xff]
    %v372 = vld [vmem:[#allocation5 + $0x920] sm:$0xff]
    %v373 = vld [vmem:[#allocation5 + $0x928] sm:$0xff]
    %v374 = vld [vmem:[#allocation5 + $0x930] sm:$0xff]
    %v375 = vld [vmem:[#allocation5 + $0x938] sm:$0xff]
    %v376 = vld [vmem:[#allocation5 + $0x940] sm:$0xff]
    %v377 = vld [vmem:[#allocation5 + $0x948] sm:$0xff]
    %v378 = vld [vmem:[#allocation5 + $0x950] sm:$0xff]
    %v379 = vld [vmem:[#allocation5 + $0x958] sm:$0xff]
    %v380 = vld [vmem:[#allocation5 + $0x960] sm:$0xff]
    %v381 = vld [vmem:[#allocation5 + $0x968] sm:$0xff]
    %v382 = vld [vmem:[#allocation5 + $0x970] sm:$0xff]
    %v383 = vld [vmem:[#allocation5 + $0x978] sm:$0xff]
    %v384 = vld [vmem:[#allocation5 + $0x980] sm:$0xff]
    %v385 = vld [vmem:[#allocation5 + $0x988] sm:$0xff]
    %v386 = vld [vmem:[#allocation5 + $0x990] sm:$0xff]
    %v387 = vld [vmem:[#allocation5 + $0x998] sm:$0xff]
    %v388 = vld [vmem:[#allocation5 + $0x9a0] sm:$0xff]
    %v389 = vld [vmem:[#allocation5 + $0x9a8] sm:$0xff]
    %v390 = vld [vmem:[#allocation5 + $0x9b0] sm:$0xff]
    %v391 = vld [vmem:[#allocation5 + $0x9b8] sm:$0xff]
    %v392 = vld [vmem:[#allocation5 + $0x9c0] sm:$0xff]
    %v393 = vld [vmem:[#allocation5 + $0x9c8] sm:$0xff]
    %v394 = vld [vmem:[#allocation5 + $0x9d0] sm:$0xff]
    %v395 = vld [vmem:[#allocation5 + $0x9d8] sm:$0xff]
    %v396 = vld [vmem:[#allocation5 + $0x9e0] sm:$0xff]
    %v397 = vld [vmem:[#allocation5 + $0x9e8] sm:$0xff]
    %v398 = vld [vmem:[#allocation5 + $0x9f0] sm:$0xff]
    %v399 = vld [vmem:[#allocation5 + $0x9f8] sm:$0xff]
    %v400 = vld [vmem:[#allocation5 + $0xa00] sm:$0xff]
    %v401 = vld [vmem:[#allocation5 + $0xa08] sm:$0xff]
    %v402 = vld [vmem:[#allocation5 + $0xa10] sm:$0xff]
    %v403 = vld [vmem:[#allocation5 + $0xa18] sm:$0xff]
    %v404 = vld [vmem:[#allocation5 + $0xa20] sm:$0xff]
    %v405 = vld [vmem:[#allocation5 + $0xa28] sm:$0xff]
    %v406 = vld [vmem:[#allocation5 + $0xa30] sm:$0xff]
    %v407 = vld [vmem:[#allocation5 + $0xa38] sm:$0xff]
    %v408 = vld [vmem:[#allocation5 + $0xa40] sm:$0xff]
    %v409 = vld [vmem:[#allocation5 + $0xa48] sm:$0xff]
    %v410 = vld [vmem:[#allocation5 + $0xa50] sm:$0xff]
    %v411 = vld [vmem:[#allocation5 + $0xa58] sm:$0xff]
    %v412 = vld [vmem:[#allocation5 + $0xa60] sm:$0xff]
    %v413 = vld [vmem:[#allocation5 + $0xa68] sm:$0xff]
    %v414 = vld [vmem:[#allocation5 + $0xa70] sm:$0xff]
    %v415 = vld [vmem:[#allocation5 + $0xa78] sm:$0xff]
    %v416 = vld [vmem:[#allocation5 + $0xa80] sm:$0xff]
    %v417 = vld [vmem:[#allocation5 + $0xa88] sm:$0xff]
    %v418 = vld [vmem:[#allocation5 + $0xa90] sm:$0xff]
    %v419 = vld [vmem:[#allocation5 + $0xa98] sm:$0xff]
    %v420 = vld [vmem:[#allocation5 + $0xaa0] sm:$0xff]
    %v421 = vld [vmem:[#allocation5 + $0xaa8] sm:$0xff]
    %v422 = vld [vmem:[#allocation5 + $0xab0] sm:$0xff]
    %v423 = vld [vmem:[#allocation5 + $0xab8] sm:$0xff]
    %v424 = vld [vmem:[#allocation5 + $0xac0] sm:$0xff]
    %v425 = vld [vmem:[#allocation5 + $0xac8] sm:$0xff]
    %v426 = vld [vmem:[#allocation5 + $0xad0] sm:$0xff]
    %v427 = vld [vmem:[#allocation5 + $0xad8] sm:$0xff]
    %v428 = vld [vmem:[#allocation5 + $0xae0] sm:$0xff]
    %v429 = vld [vmem:[#allocation5 + $0xae8] sm:$0xff]
    %v430 = vld [vmem:[#allocation5 + $0xaf0] sm:$0xff]
    %v431 = vld [vmem:[#allocation5 + $0xaf8] sm:$0xff]
    %v432 = vld [vmem:[#allocation5 + $0xb00] sm:$0xff]
    %v433 = vld [vmem:[#allocation5 + $0xb08] sm:$0xff]
    %v434 = vld [vmem:[#allocation5 + $0xb10] sm:$0xff]
    %v435 = vld [vmem:[#allocation5 + $0xb18] sm:$0xff]
    %v436 = vld [vmem:[#allocation5 + $0xb20] sm:$0xff]
    %v437 = vld [vmem:[#allocation5 + $0xb28] sm:$0xff]
    %v438 = vld [vmem:[#allocation5 + $0xb30] sm:$0xff]
    %v439 = vld [vmem:[#allocation5 + $0xb38] sm:$0xff]
    %v440 = vld [vmem:[#allocation5 + $0xb40] sm:$0xff]
    %v441 = vld [vmem:[#allocation5 + $0xb48] sm:$0xff]
    %v442 = vld [vmem:[#allocation5 + $0xb50] sm:$0xff]
    %v443 = vld [vmem:[#allocation5 + $0xb58] sm:$0xff]
    %v444 = vld [vmem:[#allocation5 + $0xb60] sm:$0xff]
    %v445 = vld [vmem:[#allocation5 + $0xb68] sm:$0xff]
    %v446 = vld [vmem:[#allocation5 + $0xb70] sm:$0xff]
    %v447 = vld [vmem:[#allocation5 + $0xb78] sm:$0xff]
    %v448 = vld [vmem:[#allocation5 + $0xb80] sm:$0xff]
    %v449 = vld [vmem:[#allocation5 + $0xb88] sm:$0xff]
    %v450 = vld [vmem:[#allocation5 + $0xb90] sm:$0xff]
    %v451 = vld [vmem:[#allocation5 + $0xb98] sm:$0xff]
    %v452 = vld [vmem:[#allocation5 + $0xba0] sm:$0xff]
    %v453 = vld [vmem:[#allocation5 + $0xba8] sm:$0xff]
    %v454 = vld [vmem:[#allocation5 + $0xbb0] sm:$0xff]
    %v455 = vld [vmem:[#allocation5 + $0xbb8] sm:$0xff]
    %v456 = vld [vmem:[#allocation5 + $0xbc0] sm:$0xff]
    %v457 = vld [vmem:[#allocation5 + $0xbc8] sm:$0xff]
    %v458 = vld [vmem:[#allocation5 + $0xbd0] sm:$0xff]
    %v459 = vld [vmem:[#allocation5 + $0xbd8] sm:$0xff]
    %v460 = vld [vmem:[#allocation5 + $0xbe0] sm:$0xff]
    %v461 = vld [vmem:[#allocation5 + $0xbe8] sm:$0xff]
    %v462 = vld [vmem:[#allocation5 + $0xbf0] sm:$0xff]
    %v463 = vld [vmem:[#allocation5 + $0xbf8] sm:$0xff]
    %v464 = vld [vmem:[#allocation5 + $0xc00] sm:$0xff]
    %v465 = vld [vmem:[#allocation5 + $0xc08] sm:$0xff]
    %v466 = vld [vmem:[#allocation5 + $0xc10] sm:$0xff]
    %v467 = vld [vmem:[#allocation5 + $0xc18] sm:$0xff]
    %v468 = vld [vmem:[#allocation5 + $0xc20] sm:$0xff]
    %v469 = vld [vmem:[#allocation5 + $0xc28] sm:$0xff]
    %v470 = vld [vmem:[#allocation5 + $0xc30] sm:$0xff]
    %v471 = vld [vmem:[#allocation5 + $0xc38] sm:$0xff]
    %v472 = vld [vmem:[#allocation5 + $0xc40] sm:$0xff]
    %v473 = vld [vmem:[#allocation5 + $0xc48] sm:$0xff]
    %v474 = vld [vmem:[#allocation5 + $0xc50] sm:$0xff]
    %v475 = vld [vmem:[#allocation5 + $0xc58] sm:$0xff]
    %v476 = vld [vmem:[#allocation5 + $0xc60] sm:$0xff]
    %v477 = vld [vmem:[#allocation5 + $0xc68] sm:$0xff]
    %v478 = vld [vmem:[#allocation5 + $0xc70] sm:$0xff]
    %v479 = vld [vmem:[#allocation5 + $0xc78] sm:$0xff]
    %v480 = vld [vmem:[#allocation5 + $0xc80] sm:$0xff]
    %v481 = vld [vmem:[#allocation5 + $0xc88] sm:$0xff]
    %v482 = vld [vmem:[#allocation5 + $0xc90] sm:$0xff]
    %v483 = vld [vmem:[#allocation5 + $0xc98] sm:$0xff]
    %v484 = vld [vmem:[#allocation5 + $0xca0] sm:$0xff]
    %v485 = vld [vmem:[#allocation5 + $0xca8] sm:$0xff]
    %v486 = vld [vmem:[#allocation5 + $0xcb0] sm:$0xff]
    %v487 = vld [vmem:[#allocation5 + $0xcb8] sm:$0xff]
    %v488 = vld [vmem:[#allocation5 + $0xcc0] sm:$0xff]
    %v489 = vld [vmem:[#allocation5 + $0xcc8] sm:$0xff]
    %v490 = vld [vmem:[#allocation5 + $0xcd0] sm:$0xff]
    %v491 = vld [vmem:[#allocation5 + $0xcd8] sm:$0xff]
    %v492 = vld [vmem:[#allocation5 + $0xce0] sm:$0xff]
    %v493 = vld [vmem:[#allocation5 + $0xce8] sm:$0xff]
    %v494 = vld [vmem:[#allocation5 + $0xcf0] sm:$0xff]
    %v495 = vld [vmem:[#allocation5 + $0xcf8] sm:$0xff]
    %v496 = vld [vmem:[#allocation5 + $0xd00] sm:$0xff]
    %v497 = vld [vmem:[#allocation5 + $0xd08] sm:$0xff]
    %v498 = vld [vmem:[#allocation5 + $0xd10] sm:$0xff]
    %v499 = vld [vmem:[#allocation5 + $0xd18] sm:$0xff]
    %v500 = vld [vmem:[#allocation5 + $0xd20] sm:$0xff]
    %v501 = vld [vmem:[#allocation5 + $0xd28] sm:$0xff]
    %v502 = vld [vmem:[#allocation5 + $0xd30] sm:$0xff]
    %v503 = vld [vmem:[#allocation5 + $0xd38] sm:$0xff]
    %v504 = vld [vmem:[#allocation5 + $0xd40] sm:$0xff]
    %v505 = vld [vmem:[#allocation5 + $0xd48] sm:$0xff]
    %v506 = vld [vmem:[#allocation5 + $0xd50] sm:$0xff]
    %v507 = vld [vmem:[#allocation5 + $0xd58] sm:$0xff]
    %v508 = vld [vmem:[#allocation5 + $0xd60] sm:$0xff]
    %v509 = vld [vmem:[#allocation5 + $0xd68] sm:$0xff]
    %v510 = vld [vmem:[#allocation5 + $0xd70] sm:$0xff]
    %v511 = vld [vmem:[#allocation5 + $0xd78] sm:$0xff]
    %v512 = vld [vmem:[#allocation5 + $0xd80] sm:$0xff]
    %v513 = vld [vmem:[#allocation5 + $0xd88] sm:$0xff]
    %v514 = vld [vmem:[#allocation5 + $0xd90] sm:$0xff]
    %v515 = vld [vmem:[#allocation5 + $0xd98] sm:$0xff]
    %v516 = vld [vmem:[#allocation5 + $0xda0] sm:$0xff]
    %v517 = vld [vmem:[#allocation5 + $0xda8] sm:$0xff]
    %v518 = vld [vmem:[#allocation5 + $0xdb0] sm:$0xff]
    %v519 = vld [vmem:[#allocation5 + $0xdb8] sm:$0xff]
    %v520 = vld [vmem:[#allocation5 + $0xdc0] sm:$0xff]
    %v521 = vld [vmem:[#allocation5 + $0xdc8] sm:$0xff]
    %v522 = vld [vmem:[#allocation5 + $0xdd0] sm:$0xff]
    %v523 = vld [vmem:[#allocation5 + $0xdd8] sm:$0xff]
    %v524 = vld [vmem:[#allocation5 + $0xde0] sm:$0xff]
    %v525 = vld [vmem:[#allocation5 + $0xde8] sm:$0xff]
    %v526 = vld [vmem:[#allocation5 + $0xdf0] sm:$0xff]
    %v527 = vld [vmem:[#allocation5 + $0xdf8] sm:$0xff]
    %v528 = vld [vmem:[#allocation5 + $0xe00] sm:$0xff]
    %v529 = vld [vmem:[#allocation5 + $0xe08] sm:$0xff]
    %v530 = vld [vmem:[#allocation5 + $0xe10] sm:$0xff]
    %v531 = vld [vmem:[#allocation5 + $0xe18] sm:$0xff]
    %v532 = vld [vmem:[#allocation5 + $0xe20] sm:$0xff]
    %v533 = vld [vmem:[#allocation5 + $0xe28] sm:$0xff]
    %v534 = vld [vmem:[#allocation5 + $0xe30] sm:$0xff]
    %v535 = vld [vmem:[#allocation5 + $0xe38] sm:$0xff]
    %v536 = vld [vmem:[#allocation5 + $0xe40] sm:$0xff]
    %v537 = vld [vmem:[#allocation5 + $0xe48] sm:$0xff]
    %v538 = vld [vmem:[#allocation5 + $0xe50] sm:$0xff]
    %v539 = vld [vmem:[#allocation5 + $0xe58] sm:$0xff]
    %v540 = vld [vmem:[#allocation5 + $0xe60] sm:$0xff]
    %v541 = vld [vmem:[#allocation5 + $0xe68] sm:$0xff]
    %v542 = vld [vmem:[#allocation5 + $0xe70] sm:$0xff]
    %v543 = vld [vmem:[#allocation5 + $0xe78] sm:$0xff]
    %v544 = vld [vmem:[#allocation5 + $0xe80] sm:$0xff]
    %v545 = vld [vmem:[#allocation5 + $0xe88] sm:$0xff]
    %v546 = vld [vmem:[#allocation5 + $0xe90] sm:$0xff]
    %v547 = vld [vmem:[#allocation5 + $0xe98] sm:$0xff]
    %v548 = vld [vmem:[#allocation5 + $0xea0] sm:$0xff]
    %v549 = vld [vmem:[#allocation5 + $0xea8] sm:$0xff]
    %v550 = vld [vmem:[#allocation5 + $0xeb0] sm:$0xff]
    %v551 = vld [vmem:[#allocation5 + $0xeb8] sm:$0xff]
    %v552 = vld [vmem:[#allocation5 + $0xec0] sm:$0xff]
    %v553 = vld [vmem:[#allocation5 + $0xec8] sm:$0xff]
    %v554 = vld [vmem:[#allocation5 + $0xed0] sm:$0xff]
    %v555 = vld [vmem:[#allocation5 + $0xed8] sm:$0xff]
    %v556 = vld [vmem:[#allocation5 + $0xee0] sm:$0xff]
    %v557 = vld [vmem:[#allocation5 + $0xee8] sm:$0xff]
    %v558 = vld [vmem:[#allocation5 + $0xef0] sm:$0xff]
    %v559 = vld [vmem:[#allocation5 + $0xef8] sm:$0xff]
    %v560 = vld [vmem:[#allocation5 + $0xf00] sm:$0xff]
    %v561 = vld [vmem:[#allocation5 + $0xf08] sm:$0xff]
    %v562 = vld [vmem:[#allocation5 + $0xf10] sm:$0xff]
    %v563 = vld [vmem:[#allocation5 + $0xf18] sm:$0xff]
    %v564 = vld [vmem:[#allocation5 + $0xf20] sm:$0xff]
    %v565 = vld [vmem:[#allocation5 + $0xf28] sm:$0xff]
    %v566 = vld [vmem:[#allocation5 + $0xf30] sm:$0xff]
    %v567 = vld [vmem:[#allocation5 + $0xf38] sm:$0xff]
    %v568 = vld [vmem:[#allocation5 + $0xf40] sm:$0xff]
    %v569 = vld [vmem:[#allocation5 + $0xf48] sm:$0xff]
    %v570 = vld [vmem:[#allocation5 + $0xf50] sm:$0xff]
    %v571 = vld [vmem:[#allocation5 + $0xf58] sm:$0xff]
    %v572 = vld [vmem:[#allocation5 + $0xf60] sm:$0xff]
    %v573 = vld [vmem:[#allocation5 + $0xf68] sm:$0xff]
    %v574 = vld [vmem:[#allocation5 + $0xf70] sm:$0xff]
    %v575 = vld [vmem:[#allocation5 + $0xf78] sm:$0xff]
    %v576 = vld [vmem:[#allocation5 + $0xf80] sm:$0xff]
    %v577 = vld [vmem:[#allocation5 + $0xf88] sm:$0xff]
    %v578 = vld [vmem:[#allocation5 + $0xf90] sm:$0xff]
    %v579 = vld [vmem:[#allocation5 + $0xf98] sm:$0xff]
    %v580 = vld [vmem:[#allocation5 + $0xfa0] sm:$0xff]
    %v581 = vld [vmem:[#allocation5 + $0xfa8] sm:$0xff]
    %v582 = vld [vmem:[#allocation5 + $0xfb0] sm:$0xff]
    %v583 = vld [vmem:[#allocation5 + $0xfb8] sm:$0xff]
    %v584 = vld [vmem:[#allocation5 + $0xfc0] sm:$0xff]
    %v585 = vld [vmem:[#allocation5 + $0xfc8] sm:$0xff]
    %v586 = vld [vmem:[#allocation5 + $0xfd0] sm:$0xff]
    %v587 = vld [vmem:[#allocation5 + $0xfd8] sm:$0xff]
    %v588 = vld [vmem:[#allocation5 + $0xfe0] sm:$0xff]
    %v589 = vld [vmem:[#allocation5 + $0xfe8] sm:$0xff]
    %v590 = vld [vmem:[#allocation5 + $0xff0] sm:$0xff]
    %v591 = vld [vmem:[#allocation5 + $0xff8] sm:$0xff]
    %v592 = vld [vmem:[#allocation5 + $0x1000] sm:$0xff]
    %v593 = vld [vmem:[#allocation5 + $0x1008] sm:$0xff]
    %v594 = vld [vmem:[#allocation5 + $0x1010] sm:$0xff]
    %v595 = vld [vmem:[#allocation5 + $0x1018] sm:$0xff]
    %v596 = vld [vmem:[#allocation5 + $0x1020] sm:$0xff]
    %v597 = vld [vmem:[#allocation5 + $0x1028] sm:$0xff]
    %v598 = vld [vmem:[#allocation5 + $0x1030] sm:$0xff]
    %v599 = vld [vmem:[#allocation5 + $0x1038] sm:$0xff]
    %v600 = vld [vmem:[#allocation5 + $0x1040] sm:$0xff]
    %v601 = vld [vmem:[#allocation5 + $0x1048] sm:$0xff]
    %v602 = vld [vmem:[#allocation5 + $0x1050] sm:$0xff]
    %v603 = vld [vmem:[#allocation5 + $0x1058] sm:$0xff]
    %v604 = vld [vmem:[#allocation5 + $0x1060] sm:$0xff]
    %v605 = vld [vmem:[#allocation5 + $0x1068] sm:$0xff]
    %v606 = vld [vmem:[#allocation5 + $0x1070] sm:$0xff]
    %v607 = vld [vmem:[#allocation5 + $0x1078] sm:$0xff]
    %v608 = vld [vmem:[#allocation5 + $0x1080] sm:$0xff]
    %v609 = vld [vmem:[#allocation5 + $0x1088] sm:$0xff]
    %v610 = vld [vmem:[#allocation5 + $0x1090] sm:$0xff]
    %v611 = vld [vmem:[#allocation5 + $0x1098] sm:$0xff]
    %v612 = vld [vmem:[#allocation5 + $0x10a0] sm:$0xff]
    %v613 = vld [vmem:[#allocation5 + $0x10a8] sm:$0xff]
    %v614 = vld [vmem:[#allocation5 + $0x10b0] sm:$0xff]
    %v615 = vld [vmem:[#allocation5 + $0x10b8] sm:$0xff]
    %v616 = vld [vmem:[#allocation5 + $0x10c0] sm:$0xff]
    %v617 = vld [vmem:[#allocation5 + $0x10c8] sm:$0xff]
    %v618 = vld [vmem:[#allocation5 + $0x10d0] sm:$0xff]
    %v619 = vld [vmem:[#allocation5 + $0x10d8] sm:$0xff]
    %v620 = vld [vmem:[#allocation5 + $0x10e0] sm:$0xff]
    %v621 = vld [vmem:[#allocation5 + $0x10e8] sm:$0xff]
    %v622 = vld [vmem:[#allocation5 + $0x10f0] sm:$0xff]
    %v623 = vld [vmem:[#allocation5 + $0x10f8] sm:$0xff]
    %v624 = vld [vmem:[#allocation5 + $0x1100] sm:$0xff]
    %v625 = vld [vmem:[#allocation5 + $0x1108] sm:$0xff]
    %v626 = vld [vmem:[#allocation5 + $0x1110] sm:$0xff]
    %v627 = vld [vmem:[#allocation5 + $0x1118] sm:$0xff]
    %v628 = vld [vmem:[#allocation5 + $0x1120] sm:$0xff]
    %v629 = vld [vmem:[#allocation5 + $0x1128] sm:$0xff]
    %v630 = vld [vmem:[#allocation5 + $0x1130] sm:$0xff]
    %v631 = vld [vmem:[#allocation5 + $0x1138] sm:$0xff]
    %v632 = vld [vmem:[#allocation5 + $0x1140] sm:$0xff]
    %v633 = vld [vmem:[#allocation5 + $0x1148] sm:$0xff]
    %v634 = vld [vmem:[#allocation5 + $0x1150] sm:$0xff]
    %v635 = vld [vmem:[#allocation5 + $0x1158] sm:$0xff]
    %v636 = vld [vmem:[#allocation5 + $0x1160] sm:$0xff]
    %v637 = vld [vmem:[#allocation5 + $0x1168] sm:$0xff]
    %v638 = vld [vmem:[#allocation5 + $0x1170] sm:$0xff]
    %v639 = vld [vmem:[#allocation5 + $0x1178] sm:$0xff]
    %v640 = vld [vmem:[#allocation5 + $0x1180] sm:$0xff]
    %v641 = vld [vmem:[#allocation5 + $0x1188] sm:$0xff]
    %v642 = vld [vmem:[#allocation5 + $0x1190] sm:$0xff]
    %v643 = vld [vmem:[#allocation5 + $0x1198] sm:$0xff]
    %v644 = vld [vmem:[#allocation5 + $0x11a0] sm:$0xff]
    %v645 = vld [vmem:[#allocation5 + $0x11a8] sm:$0xff]
    %v646 = vld [vmem:[#allocation5 + $0x11b0] sm:$0xff]
    %v647 = vld [vmem:[#allocation5 + $0x11b8] sm:$0xff]
    %v648 = vld [vmem:[#allocation5 + $0x11c0] sm:$0xff]
    %v649 = vld [vmem:[#allocation5 + $0x11c8] sm:$0xff]
    %v650 = vld [vmem:[#allocation5 + $0x11d0] sm:$0xff]
    %v651 = vld [vmem:[#allocation5 + $0x11d8] sm:$0xff]
    %v652 = vld [vmem:[#allocation5 + $0x11e0] sm:$0xff]
    %v653 = vld [vmem:[#allocation5 + $0x11e8] sm:$0xff]
    %v654 = vld [vmem:[#allocation5 + $0x11f0] sm:$0xff]
    %v655 = vld [vmem:[#allocation5 + $0x11f8] sm:$0xff]
    %v656 = vld [vmem:[#allocation5 + $0x1200] sm:$0xff]
    %v657 = vld [vmem:[#allocation5 + $0x1208] sm:$0xff]
    %v658 = vld [vmem:[#allocation5 + $0x1210] sm:$0xff]
    %v659 = vld [vmem:[#allocation5 + $0x1218] sm:$0xff]
    %v660 = vld [vmem:[#allocation5 + $0x1220] sm:$0xff]
    %v661 = vld [vmem:[#allocation5 + $0x1228] sm:$0xff]
    %v662 = vld [vmem:[#allocation5 + $0x1230] sm:$0xff]
    %v663 = vld [vmem:[#allocation5 + $0x1238] sm:$0xff]
    %v664 = vld [vmem:[#allocation5 + $0x1240] sm:$0xff]
    %v665 = vld [vmem:[#allocation5 + $0x1248] sm:$0xff]
    %v666 = vld [vmem:[#allocation5 + $0x1250] sm:$0xff]
    %v667 = vld [vmem:[#allocation5 + $0x1258] sm:$0xff]
    %v668 = vld [vmem:[#allocation5 + $0x1260] sm:$0xff]
    %v669 = vld [vmem:[#allocation5 + $0x1268] sm:$0xff]
    %v670 = vld [vmem:[#allocation5 + $0x1270] sm:$0xff]
    %v671 = vld [vmem:[#allocation5 + $0x1278] sm:$0xff]
    %v672 = vld [vmem:[#allocation5 + $0x1280] sm:$0xff]
    %v673 = vld [vmem:[#allocation5 + $0x1288] sm:$0xff]
    %v674 = vld [vmem:[#allocation5 + $0x1290] sm:$0xff]
    %v675 = vld [vmem:[#allocation5 + $0x1298] sm:$0xff]
    %v676 = vld [vmem:[#allocation5 + $0x12a0] sm:$0xff]
    %v677 = vld [vmem:[#allocation5 + $0x12a8] sm:$0xff]
    %v678 = vld [vmem:[#allocation5 + $0x12b0] sm:$0xff]
    %v679 = vld [vmem:[#allocation5 + $0x12b8] sm:$0xff]
    %v680 = vld [vmem:[#allocation5 + $0x12c0] sm:$0xff]
    %v681 = vld [vmem:[#allocation5 + $0x12c8] sm:$0xff]
    %v682 = vld [vmem:[#allocation5 + $0x12d0] sm:$0xff]
    %v683 = vld [vmem:[#allocation5 + $0x12d8] sm:$0xff]
    %v684 = vld [vmem:[#allocation5 + $0x12e0] sm:$0xff]
    %v685 = vld [vmem:[#allocation5 + $0x12e8] sm:$0xff]
    %v686 = vld [vmem:[#allocation5 + $0x12f0] sm:$0xff]
    %v687 = vld [vmem:[#allocation5 + $0x12f8] sm:$0xff]
    %v688 = vld [vmem:[#allocation5 + $0x1300] sm:$0xff]
    %v689 = vld [vmem:[#allocation5 + $0x1308] sm:$0xff]
    %v690 = vld [vmem:[#allocation5 + $0x1310] sm:$0xff]
    %v691 = vld [vmem:[#allocation5 + $0x1318] sm:$0xff]
    %v692 = vld [vmem:[#allocation5 + $0x1320] sm:$0xff]
    %v693 = vld [vmem:[#allocation5 + $0x1328] sm:$0xff]
    %v694 = vld [vmem:[#allocation5 + $0x1330] sm:$0xff]
    %v695 = vld [vmem:[#allocation5 + $0x1338] sm:$0xff]
    %v696 = vld [vmem:[#allocation5 + $0x1340] sm:$0xff]
    %v697 = vld [vmem:[#allocation5 + $0x1348] sm:$0xff]
    %v698 = vld [vmem:[#allocation5 + $0x1350] sm:$0xff]
    %v699 = vld [vmem:[#allocation5 + $0x1358] sm:$0xff]
    %v700 = vld [vmem:[#allocation5 + $0x1360] sm:$0xff]
    %v701 = vld [vmem:[#allocation5 + $0x1368] sm:$0xff]
    %v702 = vld [vmem:[#allocation5 + $0x1370] sm:$0xff]
    %v703 = vld [vmem:[#allocation5 + $0x1378] sm:$0xff]
    %v704 = vld [vmem:[#allocation5 + $0x1380] sm:$0xff]
    %v705 = vld [vmem:[#allocation5 + $0x1388] sm:$0xff]
    %v706 = vld [vmem:[#allocation5 + $0x1390] sm:$0xff]
    %v707 = vld [vmem:[#allocation5 + $0x1398] sm:$0xff]
    %v708 = vld [vmem:[#allocation5 + $0x13a0] sm:$0xff]
    %v709 = vld [vmem:[#allocation5 + $0x13a8] sm:$0xff]
    %v710 = vld [vmem:[#allocation5 + $0x13b0] sm:$0xff]
    %v711 = vld [vmem:[#allocation5 + $0x13b8] sm:$0xff]
    %v712 = vld [vmem:[#allocation5 + $0x13c0] sm:$0xff]
    %v713 = vld [vmem:[#allocation5 + $0x13c8] sm:$0xff]
    %v714 = vld [vmem:[#allocation5 + $0x13d0] sm:$0xff]
    %v715 = vld [vmem:[#allocation5 + $0x13d8] sm:$0xff]
    %v716 = vld [vmem:[#allocation5 + $0x13e0] sm:$0xff]
    %v717 = vld [vmem:[#allocation5 + $0x13e8] sm:$0xff]
    %v718 = vld [vmem:[#allocation5 + $0x13f0] sm:$0xff]
    %v719 = vld [vmem:[#allocation5 + $0x13f8] sm:$0xff]
    %v720 = vld [vmem:[#allocation5 + $0x1400] sm:$0xff]
    %v721 = vld [vmem:[#allocation5 + $0x1408] sm:$0xff]
    %v722 = vld [vmem:[#allocation5 + $0x1410] sm:$0xff]
    %v723 = vld [vmem:[#allocation5 + $0x1418] sm:$0xff]
    %v724 = vld [vmem:[#allocation5 + $0x1420] sm:$0xff]
    %v725 = vld [vmem:[#allocation5 + $0x1428] sm:$0xff]
    %v726 = vld [vmem:[#allocation5 + $0x1430] sm:$0xff]
    %v727 = vld [vmem:[#allocation5 + $0x1438] sm:$0xff]
    %v728 = vld [vmem:[#allocation5 + $0x1440] sm:$0xff]
    %v729 = vld [vmem:[#allocation5 + $0x1448] sm:$0xff]
    %v730 = vld [vmem:[#allocation5 + $0x1450] sm:$0xff]
    %v731 = vld [vmem:[#allocation5 + $0x1458] sm:$0xff]
    %v732 = vld [vmem:[#allocation5 + $0x1460] sm:$0xff]
    %v733 = vld [vmem:[#allocation5 + $0x1468] sm:$0xff]
    %v734 = vld [vmem:[#allocation5 + $0x1470] sm:$0xff]
    %v735 = vld [vmem:[#allocation5 + $0x1478] sm:$0xff]
    %v736 = vld [vmem:[#allocation5 + $0x1480] sm:$0xff]
    %v737 = vld [vmem:[#allocation5 + $0x1488] sm:$0xff]
    %v738 = vld [vmem:[#allocation5 + $0x1490] sm:$0xff]
    %v739 = vld [vmem:[#allocation5 + $0x1498] sm:$0xff]
    %v740 = vld [vmem:[#allocation5 + $0x14a0] sm:$0xff]
    %v741 = vld [vmem:[#allocation5 + $0x14a8] sm:$0xff]
    %v742 = vld [vmem:[#allocation5 + $0x14b0] sm:$0xff]
    %v743 = vld [vmem:[#allocation5 + $0x14b8] sm:$0xff]
    %v744 = vld [vmem:[#allocation5 + $0x14c0] sm:$0xff]
    %v745 = vld [vmem:[#allocation5 + $0x14c8] sm:$0xff]
    %v746 = vld [vmem:[#allocation5 + $0x14d0] sm:$0xff]
    %v747 = vld [vmem:[#allocation5 + $0x14d8] sm:$0xff]
    %v748 = vld [vmem:[#allocation5 + $0x14e0] sm:$0xff]
    %v749 = vld [vmem:[#allocation5 + $0x14e8] sm:$0xff]
    %v750 = vld [vmem:[#allocation5 + $0x14f0] sm:$0xff]
    %v751 = vld [vmem:[#allocation5 + $0x14f8] sm:$0xff]
    %v752 = vld [vmem:[#allocation5 + $0x1500] sm:$0xff]
    %v753 = vld [vmem:[#allocation5 + $0x1508] sm:$0xff]
    %v754 = vld [vmem:[#allocation5 + $0x1510] sm:$0xff]
    %v755 = vld [vmem:[#allocation5 + $0x1518] sm:$0xff]
    %v756 = vld [vmem:[#allocation5 + $0x1520] sm:$0xff]
    %v757 = vld [vmem:[#allocation5 + $0x1528] sm:$0xff]
    %v758 = vld [vmem:[#allocation5 + $0x1530] sm:$0xff]
    %v759 = vld [vmem:[#allocation5 + $0x1538] sm:$0xff]
    %v760 = vld [vmem:[#allocation5 + $0x1540] sm:$0xff]
    %v761 = vld [vmem:[#allocation5 + $0x1548] sm:$0xff]
    %v762 = vld [vmem:[#allocation5 + $0x1550] sm:$0xff]
    %v763 = vld [vmem:[#allocation5 + $0x1558] sm:$0xff]
    %v764 = vld [vmem:[#allocation5 + $0x1560] sm:$0xff]
    %v765 = vld [vmem:[#allocation5 + $0x1568] sm:$0xff]
    %v766 = vld [vmem:[#allocation5 + $0x1570] sm:$0xff]
    %v767 = vld [vmem:[#allocation5 + $0x1578] sm:$0xff]
    %v768 = vld [vmem:[#allocation5 + $0x1580] sm:$0xff]
    %v769 = vld [vmem:[#allocation5 + $0x1588] sm:$0xff]
    %v770 = vld [vmem:[#allocation5 + $0x1590] sm:$0xff]
    %v771 = vld [vmem:[#allocation5 + $0x1598] sm:$0xff]
    %v772 = vld [vmem:[#allocation5 + $0x15a0] sm:$0xff]
    %v773 = vld [vmem:[#allocation5 + $0x15a8] sm:$0xff]
    %v774 = vld [vmem:[#allocation5 + $0x15b0] sm:$0xff]
    %v775 = vld [vmem:[#allocation5 + $0x15b8] sm:$0xff]
    %v776 = vld [vmem:[#allocation5 + $0x15c0] sm:$0xff]
    %v777 = vld [vmem:[#allocation5 + $0x15c8] sm:$0xff]
    %v778 = vld [vmem:[#allocation5 + $0x15d0] sm:$0xff]
    %v779 = vld [vmem:[#allocation5 + $0x15d8] sm:$0xff]
    %v780 = vld [vmem:[#allocation5 + $0x15e0] sm:$0xff]
    %v781 = vld [vmem:[#allocation5 + $0x15e8] sm:$0xff]
    %v782 = vld [vmem:[#allocation5 + $0x15f0] sm:$0xff]
    %v783 = vld [vmem:[#allocation5 + $0x15f8] sm:$0xff]
    %v784 = vld [vmem:[#allocation5 + $0x1600] sm:$0xff]
    %v785 = vld [vmem:[#allocation5 + $0x1608] sm:$0xff]
    %v786 = vld [vmem:[#allocation5 + $0x1610] sm:$0xff]
    %v787 = vld [vmem:[#allocation5 + $0x1618] sm:$0xff]
    %v788 = vld [vmem:[#allocation5 + $0x1620] sm:$0xff]
    %v789 = vld [vmem:[#allocation5 + $0x1628] sm:$0xff]
    %v790 = vld [vmem:[#allocation5 + $0x1630] sm:$0xff]
    %v791 = vld [vmem:[#allocation5 + $0x1638] sm:$0xff]
    %v792 = vld [vmem:[#allocation5 + $0x1640] sm:$0xff]
    %v793 = vld [vmem:[#allocation5 + $0x1648] sm:$0xff]
    %v794 = vld [vmem:[#allocation5 + $0x1650] sm:$0xff]
    %v795 = vld [vmem:[#allocation5 + $0x1658] sm:$0xff]
    %v796 = vld [vmem:[#allocation5 + $0x1660] sm:$0xff]
    %v797 = vld [vmem:[#allocation5 + $0x1668] sm:$0xff]
    %v798 = vld [vmem:[#allocation5 + $0x1670] sm:$0xff]
    %v799 = vld [vmem:[#allocation5 + $0x1678] sm:$0xff]
    %v800 = vld [vmem:[#allocation5 + $0x1680] sm:$0xff]
    %v801 = vld [vmem:[#allocation5 + $0x1688] sm:$0xff]
    %v802 = vld [vmem:[#allocation5 + $0x1690] sm:$0xff]
    %v803 = vld [vmem:[#allocation5 + $0x1698] sm:$0xff]
    %v804 = vld [vmem:[#allocation5 + $0x16a0] sm:$0xff]
    %v805 = vld [vmem:[#allocation5 + $0x16a8] sm:$0xff]
    %v806 = vld [vmem:[#allocation5 + $0x16b0] sm:$0xff]
    %v807 = vld [vmem:[#allocation5 + $0x16b8] sm:$0xff]
    %v808 = vld [vmem:[#allocation5 + $0x16c0] sm:$0xff]
    %v809 = vld [vmem:[#allocation5 + $0x16c8] sm:$0xff]
    %v810 = vld [vmem:[#allocation5 + $0x16d0] sm:$0xff]
    %v811 = vld [vmem:[#allocation5 + $0x16d8] sm:$0xff]
    %v812 = vld [vmem:[#allocation5 + $0x16e0] sm:$0xff]
    %v813 = vld [vmem:[#allocation5 + $0x16e8] sm:$0xff]
    %v814 = vld [vmem:[#allocation5 + $0x16f0] sm:$0xff]
    %v815 = vld [vmem:[#allocation5 + $0x16f8] sm:$0xff]
    %v816 = vld [vmem:[#allocation5 + $0x1700] sm:$0xff]
    %v817 = vld [vmem:[#allocation5 + $0x1708] sm:$0xff]
    %v818 = vld [vmem:[#allocation5 + $0x1710] sm:$0xff]
    %v819 = vld [vmem:[#allocation5 + $0x1718] sm:$0xff]
    %v820 = vld [vmem:[#allocation5 + $0x1720] sm:$0xff]
    %v821 = vld [vmem:[#allocation5 + $0x1728] sm:$0xff]
    %v822 = vld [vmem:[#allocation5 + $0x1730] sm:$0xff]
    %v823 = vld [vmem:[#allocation5 + $0x1738] sm:$0xff]
    %v824 = vld [vmem:[#allocation5 + $0x1740] sm:$0xff]
    %v825 = vld [vmem:[#allocation5 + $0x1748] sm:$0xff]
    %v826 = vld [vmem:[#allocation5 + $0x1750] sm:$0xff]
    %v827 = vld [vmem:[#allocation5 + $0x1758] sm:$0xff]
    %v828 = vld [vmem:[#allocation5 + $0x1760] sm:$0xff]
    %v829 = vld [vmem:[#allocation5 + $0x1768] sm:$0xff]
    %v830 = vld [vmem:[#allocation5 + $0x1770] sm:$0xff]
    %v831 = vld [vmem:[#allocation5 + $0x1778] sm:$0xff]
    %v832 = vld [vmem:[#allocation5 + $0x1780] sm:$0xff]
    %v833 = vld [vmem:[#allocation5 + $0x1788] sm:$0xff]
    %v834 = vld [vmem:[#allocation5 + $0x1790] sm:$0xff]
    %v835 = vld [vmem:[#allocation5 + $0x1798] sm:$0xff]
    %v836 = vld [vmem:[#allocation5 + $0x17a0] sm:$0xff]
    %v837 = vld [vmem:[#allocation5 + $0x17a8] sm:$0xff]
    %v838 = vld [vmem:[#allocation5 + $0x17b0] sm:$0xff]
    %v839 = vld [vmem:[#allocation5 + $0x17b8] sm:$0xff]
    %v840 = vld [vmem:[#allocation5 + $0x17c0] sm:$0xff]
    %v841 = vld [vmem:[#allocation5 + $0x17c8] sm:$0xff]
    %v842 = vld [vmem:[#allocation5 + $0x17d0] sm:$0xff]
    %v843 = vld [vmem:[#allocation5 + $0x17d8] sm:$0xff]
    %v844 = vld [vmem:[#allocation5 + $0x17e0] sm:$0xff]
    %v845 = vld [vmem:[#allocation5 + $0x17e8] sm:$0xff]
    %v846 = vld [vmem:[#allocation5 + $0x17f0] sm:$0xff]
    %v847 = vld [vmem:[#allocation5 + $0x17f8] sm:$0xff]
    %v848 = vld [vmem:[#allocation5 + $0x1800] sm:$0xff]
    %v849 = vld [vmem:[#allocation5 + $0x1808] sm:$0xff]
    %v850 = vld [vmem:[#allocation5 + $0x1810] sm:$0xff]
    %v851 = vld [vmem:[#allocation5 + $0x1818] sm:$0xff]
    %v852 = vld [vmem:[#allocation5 + $0x1820] sm:$0xff]
    %v853 = vld [vmem:[#allocation5 + $0x1828] sm:$0xff]
    %v854 = vld [vmem:[#allocation5 + $0x1830] sm:$0xff]
    %v855 = vld [vmem:[#allocation5 + $0x1838] sm:$0xff]
    %v856 = vld [vmem:[#allocation5 + $0x1840] sm:$0xff]
    %v857 = vld [vmem:[#allocation5 + $0x1848] sm:$0xff]
    %v858 = vld [vmem:[#allocation5 + $0x1850] sm:$0xff]
    %v859 = vld [vmem:[#allocation5 + $0x1858] sm:$0xff]
    %v860 = vld [vmem:[#allocation5 + $0x1860] sm:$0xff]
    %v861 = vld [vmem:[#allocation5 + $0x1868] sm:$0xff]
    %v862 = vld [vmem:[#allocation5 + $0x1870] sm:$0xff]
    %v863 = vld [vmem:[#allocation5 + $0x1878] sm:$0xff]
    %v864 = vld [vmem:[#allocation5 + $0x1880] sm:$0xff]
    %v865 = vld [vmem:[#allocation5 + $0x1888] sm:$0xff]
    %v866 = vld [vmem:[#allocation5 + $0x1890] sm:$0xff]
    %v867 = vld [vmem:[#allocation5 + $0x1898] sm:$0xff]
    %v868 = vld [vmem:[#allocation5 + $0x18a0] sm:$0xff]
    %v869 = vld [vmem:[#allocation5 + $0x18a8] sm:$0xff]
    %v870 = vld [vmem:[#allocation5 + $0x18b0] sm:$0xff]
    %v871 = vld [vmem:[#allocation5 + $0x18b8] sm:$0xff]
    %v872 = vld [vmem:[#allocation5 + $0x18c0] sm:$0xff]
    %v873 = vld [vmem:[#allocation5 + $0x18c8] sm:$0xff]
    %v874 = vld [vmem:[#allocation5 + $0x18d0] sm:$0xff]
    %v875 = vld [vmem:[#allocation5 + $0x18d8] sm:$0xff]
    %v876 = vld [vmem:[#allocation5 + $0x18e0] sm:$0xff]
    %v877 = vld [vmem:[#allocation5 + $0x18e8] sm:$0xff]
    %v878 = vld [vmem:[#allocation5 + $0x18f0] sm:$0xff]
    %v879 = vld [vmem:[#allocation5 + $0x18f8] sm:$0xff]
    %v880 = vld [vmem:[#allocation5 + $0x1900] sm:$0xff]
    %v881 = vld [vmem:[#allocation5 + $0x1908] sm:$0xff]
    %v882 = vld [vmem:[#allocation5 + $0x1910] sm:$0xff]
    %v883 = vld [vmem:[#allocation5 + $0x1918] sm:$0xff]
    %v884 = vld [vmem:[#allocation5 + $0x1920] sm:$0xff]
    %v885 = vld [vmem:[#allocation5 + $0x1928] sm:$0xff]
    %v886 = vld [vmem:[#allocation5 + $0x1930] sm:$0xff]
    %v887 = vld [vmem:[#allocation5 + $0x1938] sm:$0xff]
    %v888 = vld [vmem:[#allocation5 + $0x1940] sm:$0xff]
    %v889 = vld [vmem:[#allocation5 + $0x1948] sm:$0xff]
    %v890 = vld [vmem:[#allocation5 + $0x1950] sm:$0xff]
    %v891 = vld [vmem:[#allocation5 + $0x1958] sm:$0xff]
    %v892 = vld [vmem:[#allocation5 + $0x1960] sm:$0xff]
    %v893 = vld [vmem:[#allocation5 + $0x1968] sm:$0xff]
    %v894 = vld [vmem:[#allocation5 + $0x1970] sm:$0xff]
    %v895 = vld [vmem:[#allocation5 + $0x1978] sm:$0xff]
    %v896 = vld [vmem:[#allocation5 + $0x1980] sm:$0xff]
    %v897 = vld [vmem:[#allocation5 + $0x1988] sm:$0xff]
    %v898 = vld [vmem:[#allocation5 + $0x1990] sm:$0xff]
    %v899 = vld [vmem:[#allocation5 + $0x1998] sm:$0xff]
    %v900 = vld [vmem:[#allocation5 + $0x19a0] sm:$0xff]
    %v901 = vld [vmem:[#allocation5 + $0x19a8] sm:$0xff]
    %v902 = vld [vmem:[#allocation5 + $0x19b0] sm:$0xff]
    %v903 = vld [vmem:[#allocation5 + $0x19b8] sm:$0xff]
    %v904 = vld [vmem:[#allocation5 + $0x19c0] sm:$0xff]
    %v905 = vld [vmem:[#allocation5 + $0x19c8] sm:$0xff]
    %v906 = vld [vmem:[#allocation5 + $0x19d0] sm:$0xff]
    %v907 = vld [vmem:[#allocation5 + $0x19d8] sm:$0xff]
    %v908 = vld [vmem:[#allocation5 + $0x19e0] sm:$0xff]
    %v909 = vld [vmem:[#allocation5 + $0x19e8] sm:$0xff]
    %v910 = vld [vmem:[#allocation5 + $0x19f0] sm:$0xff]
    %v911 = vld [vmem:[#allocation5 + $0x19f8] sm:$0xff]
    %v912 = vld [vmem:[#allocation5 + $0x1a00] sm:$0xff]
    %v913 = vld [vmem:[#allocation5 + $0x1a08] sm:$0xff]
    %v914 = vld [vmem:[#allocation5 + $0x1a10] sm:$0xff]
    %v915 = vld [vmem:[#allocation5 + $0x1a18] sm:$0xff]
    %v916 = vld [vmem:[#allocation5 + $0x1a20] sm:$0xff]
    %v917 = vld [vmem:[#allocation5 + $0x1a28] sm:$0xff]
    %v918 = vld [vmem:[#allocation5 + $0x1a30] sm:$0xff]
    %v919 = vld [vmem:[#allocation5 + $0x1a38] sm:$0xff]
    %v920 = vld [vmem:[#allocation5 + $0x1a40] sm:$0xff]
    %v921 = vld [vmem:[#allocation5 + $0x1a48] sm:$0xff]
    %v922 = vld [vmem:[#allocation5 + $0x1a50] sm:$0xff]
    %v923 = vld [vmem:[#allocation5 + $0x1a58] sm:$0xff]
    %v924 = vld [vmem:[#allocation5 + $0x1a60] sm:$0xff]
    %v925 = vld [vmem:[#allocation5 + $0x1a68] sm:$0xff]
    %v926 = vld [vmem:[#allocation5 + $0x1a70] sm:$0xff]
    %v927 = vld [vmem:[#allocation5 + $0x1a78] sm:$0xff]
    %v928 = vld [vmem:[#allocation5 + $0x1a80] sm:$0xff]
    %v929 = vld [vmem:[#allocation5 + $0x1a88] sm:$0xff]
    %v930 = vld [vmem:[#allocation5 + $0x1a90] sm:$0xff]
    %v931 = vld [vmem:[#allocation5 + $0x1a98] sm:$0xff]
    %v932 = vld [vmem:[#allocation5 + $0x1aa0] sm:$0xff]
    %v933 = vld [vmem:[#allocation5 + $0x1aa8] sm:$0xff]
    %v934 = vld [vmem:[#allocation5 + $0x1ab0] sm:$0xff]
    %v935 = vld [vmem:[#allocation5 + $0x1ab8] sm:$0xff]
    %v936 = vld [vmem:[#allocation5 + $0x1ac0] sm:$0xff]
    %v937 = vld [vmem:[#allocation5 + $0x1ac8] sm:$0xff]
    %v938 = vld [vmem:[#allocation5 + $0x1ad0] sm:$0xff]
    %v939 = vld [vmem:[#allocation5 + $0x1ad8] sm:$0xff]
    %v940 = vld [vmem:[#allocation5 + $0x1ae0] sm:$0xff]
    %v941 = vld [vmem:[#allocation5 + $0x1ae8] sm:$0xff]
    %v942 = vld [vmem:[#allocation5 + $0x1af0] sm:$0xff]
    %v943 = vld [vmem:[#allocation5 + $0x1af8] sm:$0xff]
    %v944 = vld [vmem:[#allocation5 + $0x1b00] sm:$0xff]
    %v945 = vld [vmem:[#allocation5 + $0x1b08] sm:$0xff]
    %v946 = vld [vmem:[#allocation5 + $0x1b10] sm:$0xff]
    %v947 = vld [vmem:[#allocation5 + $0x1b18] sm:$0xff]
    %v948 = vld [vmem:[#allocation5 + $0x1b20] sm:$0xff]
    %v949 = vld [vmem:[#allocation5 + $0x1b28] sm:$0xff]
    %v950 = vld [vmem:[#allocation5 + $0x1b30] sm:$0xff]
    %v951 = vld [vmem:[#allocation5 + $0x1b38] sm:$0xff]
    %v952 = vld [vmem:[#allocation5 + $0x1b40] sm:$0xff]
    %v953 = vld [vmem:[#allocation5 + $0x1b48] sm:$0xff]
    %v954 = vld [vmem:[#allocation5 + $0x1b50] sm:$0xff]
    %v955 = vld [vmem:[#allocation5 + $0x1b58] sm:$0xff]
    %v956 = vld [vmem:[#allocation5 + $0x1b60] sm:$0xff]
    %v957 = vld [vmem:[#allocation5 + $0x1b68] sm:$0xff]
    %v958 = vld [vmem:[#allocation5 + $0x1b70] sm:$0xff]
    %v959 = vld [vmem:[#allocation5 + $0x1b78] sm:$0xff]
    %v960 = vld [vmem:[#allocation5 + $0x1b80] sm:$0xff]
    %v961 = vld [vmem:[#allocation5 + $0x1b88] sm:$0xff]
    %v962 = vld [vmem:[#allocation5 + $0x1b90] sm:$0xff]
    %v963 = vld [vmem:[#allocation5 + $0x1b98] sm:$0xff]
    %v964 = vld [vmem:[#allocation5 + $0x1ba0] sm:$0xff]
    %v965 = vld [vmem:[#allocation5 + $0x1ba8] sm:$0xff]
    %v966 = vld [vmem:[#allocation5 + $0x1bb0] sm:$0xff]
    %v967 = vld [vmem:[#allocation5 + $0x1bb8] sm:$0xff]
    %v968 = vld [vmem:[#allocation5 + $0x1bc0] sm:$0xff]
    %v969 = vld [vmem:[#allocation5 + $0x1bc8] sm:$0xff]
    %v970 = vld [vmem:[#allocation5 + $0x1bd0] sm:$0xff]
    %v971 = vld [vmem:[#allocation5 + $0x1bd8] sm:$0xff]
    %v972 = vld [vmem:[#allocation5 + $0x1be0] sm:$0xff]
    %v973 = vld [vmem:[#allocation5 + $0x1be8] sm:$0xff]
    %v974 = vld [vmem:[#allocation5 + $0x1bf0] sm:$0xff]
    %v975 = vld [vmem:[#allocation5 + $0x1bf8] sm:$0xff]
    %v976 = vld [vmem:[#allocation5 + $0x1c00] sm:$0xff]
    %v977 = vld [vmem:[#allocation5 + $0x1c08] sm:$0xff]
    %v978 = vld [vmem:[#allocation5 + $0x1c10] sm:$0xff]
    %v979 = vld [vmem:[#allocation5 + $0x1c18] sm:$0xff]
    %v980 = vld [vmem:[#allocation5 + $0x1c20] sm:$0xff]
    %v981 = vld [vmem:[#allocation5 + $0x1c28] sm:$0xff]
    %v982 = vld [vmem:[#allocation5 + $0x1c30] sm:$0xff]
    %v983 = vld [vmem:[#allocation5 + $0x1c38] sm:$0xff]
    %v984 = vld [vmem:[#allocation5 + $0x1c40] sm:$0xff]
    %v985 = vld [vmem:[#allocation5 + $0x1c48] sm:$0xff]
    %v986 = vld [vmem:[#allocation5 + $0x1c50] sm:$0xff]
    %v987 = vld [vmem:[#allocation5 + $0x1c58] sm:$0xff]
    %v988 = vld [vmem:[#allocation5 + $0x1c60] sm:$0xff]
    %v989 = vld [vmem:[#allocation5 + $0x1c68] sm:$0xff]
    %v990 = vld [vmem:[#allocation5 + $0x1c70] sm:$0xff]
    %v991 = vld [vmem:[#allocation5 + $0x1c78] sm:$0xff]
    %v992 = vld [vmem:[#allocation5 + $0x1c80] sm:$0xff]
    %v993 = vld [vmem:[#allocation5 + $0x1c88] sm:$0xff]
    %v994 = vld [vmem:[#allocation5 + $0x1c90] sm:$0xff]
    %v995 = vld [vmem:[#allocation5 + $0x1c98] sm:$0xff]
    %v996 = vld [vmem:[#allocation5 + $0x1ca0] sm:$0xff]
    %v997 = vld [vmem:[#allocation5 + $0x1ca8] sm:$0xff]
    %v998 = vld [vmem:[#allocation5 + $0x1cb0] sm:$0xff]
    %v999 = vld [vmem:[#allocation5 + $0x1cb8] sm:$0xff]
    %v1000 = vld [vmem:[#allocation5 + $0x1cc0] sm:$0xff]
    %v1001 = vld [vmem:[#allocation5 + $0x1cc8] sm:$0xff]
    %v1002 = vld [vmem:[#allocation5 + $0x1cd0] sm:$0xff]
    %v1003 = vld [vmem:[#allocation5 + $0x1cd8] sm:$0xff]
    %v1004 = vld [vmem:[#allocation5 + $0x1ce0] sm:$0xff]
    %v1005 = vld [vmem:[#allocation5 + $0x1ce8] sm:$0xff]
    %v1006 = vld [vmem:[#allocation5 + $0x1cf0] sm:$0xff]
    %v1007 = vld [vmem:[#allocation5 + $0x1cf8] sm:$0xff]
    %v1008 = vld [vmem:[#allocation5 + $0x1d00] sm:$0xff]
    %v1009 = vld [vmem:[#allocation5 + $0x1d08] sm:$0xff]
    %v1010 = vld [vmem:[#allocation5 + $0x1d10] sm:$0xff]
    %v1011 = vld [vmem:[#allocation5 + $0x1d18] sm:$0xff]
    %v1012 = vld [vmem:[#allocation5 + $0x1d20] sm:$0xff]
    %v1013 = vld [vmem:[#allocation5 + $0x1d28] sm:$0xff]
    %v1014 = vld [vmem:[#allocation5 + $0x1d30] sm:$0xff]
    %v1015 = vld [vmem:[#allocation5 + $0x1d38] sm:$0xff]
    %v1016 = vld [vmem:[#allocation5 + $0x1d40] sm:$0xff]
    %v1017 = vld [vmem:[#allocation5 + $0x1d48] sm:$0xff]
    %v1018 = vld [vmem:[#allocation5 + $0x1d50] sm:$0xff]
    %v1019 = vld [vmem:[#allocation5 + $0x1d58] sm:$0xff]
    %v1020 = vld [vmem:[#allocation5 + $0x1d60] sm:$0xff]
    %v1021 = vld [vmem:[#allocation5 + $0x1d68] sm:$0xff]
    %v1022 = vld [vmem:[#allocation5 + $0x1d70] sm:$0xff]
    %v1023 = vld [vmem:[#allocation5 + $0x1d78] sm:$0xff]
    %v1024 = vld [vmem:[#allocation5 + $0x1d80] sm:$0xff]
    %v1025 = vld [vmem:[#allocation5 + $0x1d88] sm:$0xff]
    %v1026 = vld [vmem:[#allocation5 + $0x1d90] sm:$0xff]
    %v1027 = vld [vmem:[#allocation5 + $0x1d98] sm:$0xff]
    %v1028 = vld [vmem:[#allocation5 + $0x1da0] sm:$0xff]
    %v1029 = vld [vmem:[#allocation5 + $0x1da8] sm:$0xff]
    %v1030 = vld [vmem:[#allocation5 + $0x1db0] sm:$0xff]
    %v1031 = vld [vmem:[#allocation5 + $0x1db8] sm:$0xff]
    %v1032 = vld [vmem:[#allocation5 + $0x1dc0] sm:$0xff]
    %v1033 = vld [vmem:[#allocation5 + $0x1dc8] sm:$0xff]
    %v1034 = vld [vmem:[#allocation5 + $0x1dd0] sm:$0xff]
    %v1035 = vld [vmem:[#allocation5 + $0x1dd8] sm:$0xff]
    %v1036 = vld [vmem:[#allocation5 + $0x1de0] sm:$0xff]
    %v1037 = vld [vmem:[#allocation5 + $0x1de8] sm:$0xff]
    %v1038 = vld [vmem:[#allocation5 + $0x1df0] sm:$0xff]
    %v1039 = vld [vmem:[#allocation5 + $0x1df8] sm:$0xff]
    %v1040 = vld [vmem:[#allocation5 + $0x1e00] sm:$0xff]
    %v1041 = vld [vmem:[#allocation5 + $0x1e08] sm:$0xff]
    %v1042 = vld [vmem:[#allocation5 + $0x1e10] sm:$0xff]
    %v1043 = vld [vmem:[#allocation5 + $0x1e18] sm:$0xff]
    %v1044 = vld [vmem:[#allocation5 + $0x1e20] sm:$0xff]
    %v1045 = vld [vmem:[#allocation5 + $0x1e28] sm:$0xff]
    %v1046 = vld [vmem:[#allocation5 + $0x1e30] sm:$0xff]
    %v1047 = vld [vmem:[#allocation5 + $0x1e38] sm:$0xff]
    %v1048 = vld [vmem:[#allocation5 + $0x1e40] sm:$0xff]
    %v1049 = vld [vmem:[#allocation5 + $0x1e48] sm:$0xff]
    %v1050 = vld [vmem:[#allocation5 + $0x1e50] sm:$0xff]
    %v1051 = vld [vmem:[#allocation5 + $0x1e58] sm:$0xff]
    %v1052 = vld [vmem:[#allocation5 + $0x1e60] sm:$0xff]
    %v1053 = vld [vmem:[#allocation5 + $0x1e68] sm:$0xff]
    %v1054 = vld [vmem:[#allocation5 + $0x1e70] sm:$0xff]
    %v1055 = vld [vmem:[#allocation5 + $0x1e78] sm:$0xff]
    %v1056 = vld [vmem:[#allocation5 + $0x1e80] sm:$0xff]
    %v1057 = vld [vmem:[#allocation5 + $0x1e88] sm:$0xff]
    %v1058 = vld [vmem:[#allocation5 + $0x1e90] sm:$0xff]
    %v1059 = vld [vmem:[#allocation5 + $0x1e98] sm:$0xff]
    %v1060 = vld [vmem:[#allocation5 + $0x1ea0] sm:$0xff]
    %v1061 = vld [vmem:[#allocation5 + $0x1ea8] sm:$0xff]
    %v1062 = vld [vmem:[#allocation5 + $0x1eb0] sm:$0xff]
    %v1063 = vld [vmem:[#allocation5 + $0x1eb8] sm:$0xff]
    %v1064 = vld [vmem:[#allocation5 + $0x1ec0] sm:$0xff]
    %v1065 = vld [vmem:[#allocation5 + $0x1ec8] sm:$0xff]
    %v1066 = vld [vmem:[#allocation5 + $0x1ed0] sm:$0xff]
    %v1067 = vld [vmem:[#allocation5 + $0x1ed8] sm:$0xff]
    %v1068 = vld [vmem:[#allocation5 + $0x1ee0] sm:$0xff]
    %v1069 = vld [vmem:[#allocation5 + $0x1ee8] sm:$0xff]
    %v1070 = vld [vmem:[#allocation5 + $0x1ef0] sm:$0xff]
    %v1071 = vld [vmem:[#allocation5 + $0x1ef8] sm:$0xff]
    %v1072 = vld [vmem:[#allocation5 + $0x1f00] sm:$0xff]
    %v1073 = vld [vmem:[#allocation5 + $0x1f08] sm:$0xff]
    %v1074 = vld [vmem:[#allocation5 + $0x1f10] sm:$0xff]
    %v1075 = vld [vmem:[#allocation5 + $0x1f18] sm:$0xff]
    %v1076 = vld [vmem:[#allocation5 + $0x1f20] sm:$0xff]
    %v1077 = vld [vmem:[#allocation5 + $0x1f28] sm:$0xff]
    %v1078 = vld [vmem:[#allocation5 + $0x1f30] sm:$0xff]
    %v1079 = vld [vmem:[#allocation5 + $0x1f38] sm:$0xff]
    %v1080 = vld [vmem:[#allocation5 + $0x1f40] sm:$0xff]
    %v1081 = vld [vmem:[#allocation5 + $0x1f48] sm:$0xff]
    %v1082 = vld [vmem:[#allocation5 + $0x1f50] sm:$0xff]
    %v1083 = vld [vmem:[#allocation5 + $0x1f58] sm:$0xff]
    %v1084 = vld [vmem:[#allocation5 + $0x1f60] sm:$0xff]
    %v1085 = vld [vmem:[#allocation5 + $0x1f68] sm:$0xff]
    %v1086 = vld [vmem:[#allocation5 + $0x1f70] sm:$0xff]
    %v1087 = vld [vmem:[#allocation5 + $0x1f78] sm:$0xff]
    %v1088 = vld [vmem:[#allocation5 + $0x1f80] sm:$0xff]
    %v1089 = vld [vmem:[#allocation5 + $0x1f88] sm:$0xff]
    %v1090 = vld [vmem:[#allocation5 + $0x1f90] sm:$0xff]
    %v1091 = vld [vmem:[#allocation5 + $0x1f98] sm:$0xff]
    %v1092 = vld [vmem:[#allocation5 + $0x1fa0] sm:$0xff]
    %v1093 = vld [vmem:[#allocation5 + $0x1fa8] sm:$0xff]
    %v1094 = vld [vmem:[#allocation5 + $0x1fb0] sm:$0xff]
    %v1095 = vld [vmem:[#allocation5 + $0x1fb8] sm:$0xff]
    %v1096 = vld [vmem:[#allocation5 + $0x1fc0] sm:$0xff]
    %v1097 = vld [vmem:[#allocation5 + $0x1fc8] sm:$0xff]
    %v1098 = vld [vmem:[#allocation5 + $0x1fd0] sm:$0xff]
    %v1099 = vld [vmem:[#allocation5 + $0x1fd8] sm:$0xff]
    %v1100 = vld [vmem:[#allocation5 + $0x1fe0] sm:$0xff]
    %v1101 = vld [vmem:[#allocation5 + $0x1fe8] sm:$0xff]
    %v1102 = vld [vmem:[#allocation5 + $0x1ff0] sm:$0xff]
    %v1103 = vld [vmem:[#allocation5 + $0x1ff8] sm:$0xff]
    %v1104 = vld [vmem:[#allocation5 + $0x2000] sm:$0xff]
    %v1105 = vld [vmem:[#allocation5 + $0x2008] sm:$0xff]
    %v1106 = vld [vmem:[#allocation5 + $0x2010] sm:$0xff]
    %v1107 = vld [vmem:[#allocation5 + $0x2018] sm:$0xff]
    %v1108 = vld [vmem:[#allocation5 + $0x2020] sm:$0xff]
    %v1109 = vld [vmem:[#allocation5 + $0x2028] sm:$0xff]
    %v1110 = vld [vmem:[#allocation5 + $0x2030] sm:$0xff]
    %v1111 = vld [vmem:[#allocation5 + $0x2038] sm:$0xff]
    %v1112 = vld [vmem:[#allocation5 + $0x2040] sm:$0xff]
    %v1113 = vld [vmem:[#allocation5 + $0x2048] sm:$0xff]
    %v1114 = vld [vmem:[#allocation5 + $0x2050] sm:$0xff]
    %v1115 = vld [vmem:[#allocation5 + $0x2058] sm:$0xff]
    %v1116 = vld [vmem:[#allocation5 + $0x2060] sm:$0xff]
    %v1117 = vld [vmem:[#allocation5 + $0x2068] sm:$0xff]
    %v1118 = vld [vmem:[#allocation5 + $0x2070] sm:$0xff]
    %v1119 = vld [vmem:[#allocation5 + $0x2078] sm:$0xff]
    %v1120 = vld [vmem:[#allocation5 + $0x2080] sm:$0xff]
    %v1121 = vld [vmem:[#allocation5 + $0x2088] sm:$0xff]
    %v1122 = vld [vmem:[#allocation5 + $0x2090] sm:$0xff]
    %v1123 = vld [vmem:[#allocation5 + $0x2098] sm:$0xff]
    %v1124 = vld [vmem:[#allocation5 + $0x20a0] sm:$0xff]
    %v1125 = vld [vmem:[#allocation5 + $0x20a8] sm:$0xff]
    %v1126 = vld [vmem:[#allocation5 + $0x20b0] sm:$0xff]
    %v1127 = vld [vmem:[#allocation5 + $0x20b8] sm:$0xff]
    %v1128 = vld [vmem:[#allocation5 + $0x20c0] sm:$0xff]
    %v1129 = vld [vmem:[#allocation5 + $0x20c8] sm:$0xff]
    %v1130 = vld [vmem:[#allocation5 + $0x20d0] sm:$0xff]
    %v1131 = vld [vmem:[#allocation5 + $0x20d8] sm:$0xff]
    %v1132 = vld [vmem:[#allocation5 + $0x20e0] sm:$0xff]
    %v1133 = vld [vmem:[#allocation5 + $0x20e8] sm:$0xff]
    %v1134 = vld [vmem:[#allocation5 + $0x20f0] sm:$0xff]
    %v1135 = vld [vmem:[#allocation5 + $0x20f8] sm:$0xff]
    %v1136 = vld [vmem:[#allocation5 + $0x2100] sm:$0xff]
    %v1137 = vld [vmem:[#allocation5 + $0x2108] sm:$0xff]
    %v1138 = vld [vmem:[#allocation5 + $0x2110] sm:$0xff]
    %v1139 = vld [vmem:[#allocation5 + $0x2118] sm:$0xff]
    %v1140 = vld [vmem:[#allocation5 + $0x2120] sm:$0xff]
    %v1141 = vld [vmem:[#allocation5 + $0x2128] sm:$0xff]
    %v1142 = vld [vmem:[#allocation5 + $0x2130] sm:$0xff]
    %v1143 = vld [vmem:[#allocation5 + $0x2138] sm:$0xff]
    %v1144 = vld [vmem:[#allocation5 + $0x2140] sm:$0xff]
    %v1145 = vld [vmem:[#allocation5 + $0x2148] sm:$0xff]
    %v1146 = vld [vmem:[#allocation5 + $0x2150] sm:$0xff]
    %v1147 = vld [vmem:[#allocation5 + $0x2158] sm:$0xff]
    %v1148 = vld [vmem:[#allocation5 + $0x2160] sm:$0xff]
    %v1149 = vld [vmem:[#allocation5 + $0x2168] sm:$0xff]
    %v1150 = vld [vmem:[#allocation5 + $0x2170] sm:$0xff]
    %v1151 = vld [vmem:[#allocation5 + $0x2178] sm:$0xff]
    %v1152 = vld [vmem:[#allocation5 + $0x2180] sm:$0xff]
    %v1153 = vld [vmem:[#allocation5 + $0x2188] sm:$0xff]
    %v1154 = vld [vmem:[#allocation5 + $0x2190] sm:$0xff]
    %v1155 = vld [vmem:[#allocation5 + $0x2198] sm:$0xff]
    %v1156 = vld [vmem:[#allocation5 + $0x21a0] sm:$0xff]
    %v1157 = vld [vmem:[#allocation5 + $0x21a8] sm:$0xff]
    %v1158 = vld [vmem:[#allocation5 + $0x21b0] sm:$0xff]
    %v1159 = vld [vmem:[#allocation5 + $0x21b8] sm:$0xff]
    %v1160 = vld [vmem:[#allocation5 + $0x21c0] sm:$0xff]
    %v1161 = vld [vmem:[#allocation5 + $0x21c8] sm:$0xff]
    %v1162 = vld [vmem:[#allocation5 + $0x21d0] sm:$0xff]
    %v1163 = vld [vmem:[#allocation5 + $0x21d8] sm:$0xff]
    %v1164 = vld [vmem:[#allocation5 + $0x21e0] sm:$0xff]
    %v1165 = vld [vmem:[#allocation5 + $0x21e8] sm:$0xff]
    %v1166 = vld [vmem:[#allocation5 + $0x21f0] sm:$0xff]
    %v1167 = vld [vmem:[#allocation5 + $0x21f8] sm:$0xff]
    %v1168 = vld [vmem:[#allocation5 + $0x2200] sm:$0xff]
    %v1169 = vld [vmem:[#allocation5 + $0x2208] sm:$0xff]
    %v1170 = vld [vmem:[#allocation5 + $0x2210] sm:$0xff]
    %v1171 = vld [vmem:[#allocation5 + $0x2218] sm:$0xff]
    %v1172 = vld [vmem:[#allocation5 + $0x2220] sm:$0xff]
    %v1173 = vld [vmem:[#allocation5 + $0x2228] sm:$0xff]
    %v1174 = vld [vmem:[#allocation5 + $0x2230] sm:$0xff]
    %v1175 = vld [vmem:[#allocation5 + $0x2238] sm:$0xff]
    %v1176 = vld [vmem:[#allocation5 + $0x2240] sm:$0xff]
    %v1177 = vld [vmem:[#allocation5 + $0x2248] sm:$0xff]
    %v1178 = vld [vmem:[#allocation5 + $0x2250] sm:$0xff]
    %v1179 = vld [vmem:[#allocation5 + $0x2258] sm:$0xff]
    %v1180 = vld [vmem:[#allocation5 + $0x2260] sm:$0xff]
    %v1181 = vld [vmem:[#allocation5 + $0x2268] sm:$0xff]
    %v1182 = vld [vmem:[#allocation5 + $0x2270] sm:$0xff]
    %v1183 = vld [vmem:[#allocation5 + $0x2278] sm:$0xff]
    %v1184 = vld [vmem:[#allocation5 + $0x2280] sm:$0xff]
    %v1185 = vld [vmem:[#allocation5 + $0x2288] sm:$0xff]
    %v1186 = vld [vmem:[#allocation5 + $0x2290] sm:$0xff]
    %v1187 = vld [vmem:[#allocation5 + $0x2298] sm:$0xff]
    %v1188 = vld [vmem:[#allocation5 + $0x22a0] sm:$0xff]
    %v1189 = vld [vmem:[#allocation5 + $0x22a8] sm:$0xff]
    %v1190 = vld [vmem:[#allocation5 + $0x22b0] sm:$0xff]
    %v1191 = vld [vmem:[#allocation5 + $0x22b8] sm:$0xff]
    %v1192 = vld [vmem:[#allocation5 + $0x22c0] sm:$0xff]
    %v1193 = vld [vmem:[#allocation5 + $0x22c8] sm:$0xff]
    %v1194 = vld [vmem:[#allocation5 + $0x22d0] sm:$0xff]
    %v1195 = vld [vmem:[#allocation5 + $0x22d8] sm:$0xff]
    %v1196 = vld [vmem:[#allocation5 + $0x22e0] sm:$0xff]
    %v1197 = vld [vmem:[#allocation5 + $0x22e8] sm:$0xff]
    %v1198 = vld [vmem:[#allocation5 + $0x22f0] sm:$0xff]
    %v1199 = vld [vmem:[#allocation5 + $0x22f8] sm:$0xff]
    %v1200 = vld [vmem:[#allocation5 + $0x2300] sm:$0xff]
    %v1201 = vld [vmem:[#allocation5 + $0x2308] sm:$0xff]
    %v1202 = vld [vmem:[#allocation5 + $0x2310] sm:$0xff]
    %v1203 = vld [vmem:[#allocation5 + $0x2318] sm:$0xff]
    %v1204 = vld [vmem:[#allocation5 + $0x2320] sm:$0xff]
    %v1205 = vld [vmem:[#allocation5 + $0x2328] sm:$0xff]
    %v1206 = vld [vmem:[#allocation5 + $0x2330] sm:$0xff]
    %v1207 = vld [vmem:[#allocation5 + $0x2338] sm:$0xff]
    %v1208 = vld [vmem:[#allocation5 + $0x2340] sm:$0xff]
    %v1209 = vld [vmem:[#allocation5 + $0x2348] sm:$0xff]
    %v1210 = vld [vmem:[#allocation5 + $0x2350] sm:$0xff]
    %v1211 = vld [vmem:[#allocation5 + $0x2358] sm:$0xff]
    %v1212 = vld [vmem:[#allocation5 + $0x2360] sm:$0xff]
    %v1213 = vld [vmem:[#allocation5 + $0x2368] sm:$0xff]
    %v1214 = vld [vmem:[#allocation5 + $0x2370] sm:$0xff]
    %v1215 = vld [vmem:[#allocation5 + $0x2378] sm:$0xff]
    %v1216 = vld [vmem:[#allocation5 + $0x2380] sm:$0xff]
    %v1217 = vld [vmem:[#allocation5 + $0x2388] sm:$0xff]
    %v1218 = vld [vmem:[#allocation5 + $0x2390] sm:$0xff]
    %v1219 = vld [vmem:[#allocation5 + $0x2398] sm:$0xff]
    %v1220 = vld [vmem:[#allocation5 + $0x23a0] sm:$0xff]
    %v1221 = vld [vmem:[#allocation5 + $0x23a8] sm:$0xff]
    %v1222 = vld [vmem:[#allocation5 + $0x23b0] sm:$0xff]
    %v1223 = vld [vmem:[#allocation5 + $0x23b8] sm:$0xff]
    %v1224 = vld [vmem:[#allocation5 + $0x23c0] sm:$0xff]
    %v1225 = vld [vmem:[#allocation5 + $0x23c8] sm:$0xff]
    %v1226 = vld [vmem:[#allocation5 + $0x23d0] sm:$0xff]
    %v1227 = vld [vmem:[#allocation5 + $0x23d8] sm:$0xff]
    %v1228 = vld [vmem:[#allocation5 + $0x23e0] sm:$0xff]
    %v1229 = vld [vmem:[#allocation5 + $0x23e8] sm:$0xff]
    %v1230 = vld [vmem:[#allocation5 + $0x23f0] sm:$0xff]
    %v1231 = vld [vmem:[#allocation5 + $0x23f8] sm:$0xff]
    %v1232 = vld [vmem:[#allocation5 + $0x2400] sm:$0xff]
    %v1233 = vld [vmem:[#allocation5 + $0x2408] sm:$0xff]
    %v1234 = vld [vmem:[#allocation5 + $0x2410] sm:$0xff]
    %v1235 = vld [vmem:[#allocation5 + $0x2418] sm:$0xff]
    %v1236 = vld [vmem:[#allocation5 + $0x2420] sm:$0xff]
    %v1237 = vld [vmem:[#allocation5 + $0x2428] sm:$0xff]
    %v1238 = vld [vmem:[#allocation5 + $0x2430] sm:$0xff]
    %v1239 = vld [vmem:[#allocation5 + $0x2438] sm:$0xff]
    %v1240 = vld [vmem:[#allocation5 + $0x2440] sm:$0xff]
    %v1241 = vld [vmem:[#allocation5 + $0x2448] sm:$0xff]
    %v1242 = vld [vmem:[#allocation5 + $0x2450] sm:$0xff]
    %v1243 = vld [vmem:[#allocation5 + $0x2458] sm:$0xff]
    %v1244 = vld [vmem:[#allocation5 + $0x2460] sm:$0xff]
    %v1245 = vld [vmem:[#allocation5 + $0x2468] sm:$0xff]
    %v1246 = vld [vmem:[#allocation5 + $0x2470] sm:$0xff]
    %v1247 = vld [vmem:[#allocation5 + $0x2478] sm:$0xff]
    %v1248 = vld [vmem:[#allocation5 + $0x2480] sm:$0xff]
    %v1249 = vld [vmem:[#allocation5 + $0x2488] sm:$0xff]
    %v1250 = vld [vmem:[#allocation5 + $0x2490] sm:$0xff]
    %v1251 = vld [vmem:[#allocation5 + $0x2498] sm:$0xff]
    %v1252 = vld [vmem:[#allocation5 + $0x24a0] sm:$0xff]
    %v1253 = vld [vmem:[#allocation5 + $0x24a8] sm:$0xff]
    %v1254 = vld [vmem:[#allocation5 + $0x24b0] sm:$0xff]
    %v1255 = vld [vmem:[#allocation5 + $0x24b8] sm:$0xff]
    %v1256 = vld [vmem:[#allocation5 + $0x24c0] sm:$0xff]
    %v1257 = vld [vmem:[#allocation5 + $0x24c8] sm:$0xff]
    %v1258 = vld [vmem:[#allocation5 + $0x24d0] sm:$0xff]
    %v1259 = vld [vmem:[#allocation5 + $0x24d8] sm:$0xff]
    %v1260 = vld [vmem:[#allocation5 + $0x24e0] sm:$0xff]
    %v1261 = vld [vmem:[#allocation5 + $0x24e8] sm:$0xff]
    %v1262 = vld [vmem:[#allocation5 + $0x24f0] sm:$0xff]
    %v1263 = vld [vmem:[#allocation5 + $0x24f8] sm:$0xff]
    %v1264 = vld [vmem:[#allocation5 + $0x2500] sm:$0xff]
    %v1265 = vld [vmem:[#allocation5 + $0x2508] sm:$0xff]
    %v1266 = vld [vmem:[#allocation5 + $0x2510] sm:$0xff]
    %v1267 = vld [vmem:[#allocation5 + $0x2518] sm:$0xff]
    %v1268 = vld [vmem:[#allocation5 + $0x2520] sm:$0xff]
    %v1269 = vld [vmem:[#allocation5 + $0x2528] sm:$0xff]
    %v1270 = vld [vmem:[#allocation5 + $0x2530] sm:$0xff]
    %v1271 = vld [vmem:[#allocation5 + $0x2538] sm:$0xff]
    %v1272 = vld [vmem:[#allocation5 + $0x2540] sm:$0xff]
    %v1273 = vld [vmem:[#allocation5 + $0x2548] sm:$0xff]
    %v1274 = vld [vmem:[#allocation5 + $0x2550] sm:$0xff]
    %v1275 = vld [vmem:[#allocation5 + $0x2558] sm:$0xff]
    %v1276 = vld [vmem:[#allocation5 + $0x2560] sm:$0xff]
    %v1277 = vld [vmem:[#allocation5 + $0x2568] sm:$0xff]
    %v1278 = vld [vmem:[#allocation5 + $0x2570] sm:$0xff]
    %v1279 = vld [vmem:[#allocation5 + $0x2578] sm:$0xff]
    %v1280 = vld [vmem:[#allocation5 + $0x2580] sm:$0xff]
    %v1281 = vld [vmem:[#allocation5 + $0x2588] sm:$0xff]
    %v1282 = vld [vmem:[#allocation5 + $0x2590] sm:$0xff]
    %v1283 = vld [vmem:[#allocation5 + $0x2598] sm:$0xff]
    %v1284 = vld [vmem:[#allocation5 + $0x25a0] sm:$0xff]
    %v1285 = vld [vmem:[#allocation5 + $0x25a8] sm:$0xff]
    %v1286 = vld [vmem:[#allocation5 + $0x25b0] sm:$0xff]
    %v1287 = vld [vmem:[#allocation5 + $0x25b8] sm:$0xff]
    %v1288 = vld [vmem:[#allocation5 + $0x25c0] sm:$0xff]
    %v1289 = vld [vmem:[#allocation5 + $0x25c8] sm:$0xff]
    %v1290 = vld [vmem:[#allocation5 + $0x25d0] sm:$0xff]
    %v1291 = vld [vmem:[#allocation5 + $0x25d8] sm:$0xff]
    %v1292 = vld [vmem:[#allocation5 + $0x25e0] sm:$0xff]
    %v1293 = vld [vmem:[#allocation5 + $0x25e8] sm:$0xff]
    %v1294 = vld [vmem:[#allocation5 + $0x25f0] sm:$0xff]
    %v1295 = vld [vmem:[#allocation5 + $0x25f8] sm:$0xff]
    %v1296 = vld [vmem:[#allocation5 + $0x2600] sm:$0xff]
    %v1297 = vld [vmem:[#allocation5 + $0x2608] sm:$0xff]
    %v1298 = vld [vmem:[#allocation5 + $0x2610] sm:$0xff]
    %v1299 = vld [vmem:[#allocation5 + $0x2618] sm:$0xff]
    %v1300 = vld [vmem:[#allocation5 + $0x2620] sm:$0xff]
    %v1301 = vld [vmem:[#allocation5 + $0x2628] sm:$0xff]
    %v1302 = vld [vmem:[#allocation5 + $0x2630] sm:$0xff]
    %v1303 = vld [vmem:[#allocation5 + $0x2638] sm:$0xff]
    %v1304 = vld [vmem:[#allocation5 + $0x2640] sm:$0xff]
    %v1305 = vld [vmem:[#allocation5 + $0x2648] sm:$0xff]
    %v1306 = vld [vmem:[#allocation5 + $0x2650] sm:$0xff]
    %v1307 = vld [vmem:[#allocation5 + $0x2658] sm:$0xff]
    %v1308 = vld [vmem:[#allocation5 + $0x2660] sm:$0xff]
    %v1309 = vld [vmem:[#allocation5 + $0x2668] sm:$0xff]
    %v1310 = vld [vmem:[#allocation5 + $0x2670] sm:$0xff]
    %v1311 = vld [vmem:[#allocation5 + $0x2678] sm:$0xff]
    %v1312 = vld [vmem:[#allocation5 + $0x2680] sm:$0xff]
    %v1313 = vld [vmem:[#allocation5 + $0x2688] sm:$0xff]
    %v1314 = vld [vmem:[#allocation5 + $0x2690] sm:$0xff]
    %v1315 = vld [vmem:[#allocation5 + $0x2698] sm:$0xff]
    %v1316 = vld [vmem:[#allocation5 + $0x26a0] sm:$0xff]
    %v1317 = vld [vmem:[#allocation5 + $0x26a8] sm:$0xff]
    %v1318 = vld [vmem:[#allocation5 + $0x26b0] sm:$0xff]
    %v1319 = vld [vmem:[#allocation5 + $0x26b8] sm:$0xff]
    %v1320 = vld [vmem:[#allocation5 + $0x26c0] sm:$0xff]
    %v1321 = vld [vmem:[#allocation5 + $0x26c8] sm:$0xff]
    %v1322 = vld [vmem:[#allocation5 + $0x26d0] sm:$0xff]
    %v1323 = vld [vmem:[#allocation5 + $0x26d8] sm:$0xff]
    %v1324 = vld [vmem:[#allocation5 + $0x26e0] sm:$0xff]
    %v1325 = vld [vmem:[#allocation5 + $0x26e8] sm:$0xff]
    %v1326 = vld [vmem:[#allocation5 + $0x26f0] sm:$0xff]
    %v1327 = vld [vmem:[#allocation5 + $0x26f8] sm:$0xff]
    %v1328 = vld [vmem:[#allocation5 + $0x2700] sm:$0xff]
    %v1329 = vld [vmem:[#allocation5 + $0x2708] sm:$0xff]
    %v1330 = vld [vmem:[#allocation5 + $0x2710] sm:$0xff]
    %v1331 = vld [vmem:[#allocation5 + $0x2718] sm:$0xff]
    %v1332 = vld [vmem:[#allocation5 + $0x2720] sm:$0xff]
    %v1333 = vld [vmem:[#allocation5 + $0x2728] sm:$0xff]
    %v1334 = vld [vmem:[#allocation5 + $0x2730] sm:$0xff]
    %v1335 = vld [vmem:[#allocation5 + $0x2738] sm:$0xff]
    %v1336 = vld [vmem:[#allocation5 + $0x2740] sm:$0xff]
    %v1337 = vld [vmem:[#allocation5 + $0x2748] sm:$0xff]
    %v1338 = vld [vmem:[#allocation5 + $0x2750] sm:$0xff]
    %v1339 = vld [vmem:[#allocation5 + $0x2758] sm:$0xff]
    %v1340 = vld [vmem:[#allocation5 + $0x2760] sm:$0xff]
    %v1341 = vld [vmem:[#allocation5 + $0x2768] sm:$0xff]
    %v1342 = vld [vmem:[#allocation5 + $0x2770] sm:$0xff]
    %v1343 = vld [vmem:[#allocation5 + $0x2778] sm:$0xff]
    %v1344 = vld [vmem:[#allocation5 + $0x2780] sm:$0xff]
    %v1345 = vld [vmem:[#allocation5 + $0x2788] sm:$0xff]
    %v1346 = vld [vmem:[#allocation5 + $0x2790] sm:$0xff]
    %v1347 = vld [vmem:[#allocation5 + $0x2798] sm:$0xff]
    %v1348 = vld [vmem:[#allocation5 + $0x27a0] sm:$0xff]
    %v1349 = vld [vmem:[#allocation5 + $0x27a8] sm:$0xff]
    %v1350 = vld [vmem:[#allocation5 + $0x27b0] sm:$0xff]
    %v1351 = vld [vmem:[#allocation5 + $0x27b8] sm:$0xff]
    %v1352 = vld [vmem:[#allocation5 + $0x27c0] sm:$0xff]
    %v1353 = vld [vmem:[#allocation5 + $0x27c8] sm:$0xff]
    %v1354 = vld [vmem:[#allocation5 + $0x27d0] sm:$0xff]
    %v1355 = vld [vmem:[#allocation5 + $0x27d8] sm:$0xff]
    %v1356 = vld [vmem:[#allocation5 + $0x27e0] sm:$0xff]
    %v1357 = vld [vmem:[#allocation5 + $0x27e8] sm:$0xff]
    %v1358 = vld [vmem:[#allocation5 + $0x27f0] sm:$0xff]
    %v1359 = vld [vmem:[#allocation5 + $0x27f8] sm:$0xff]
    %v1360 = vld [vmem:[#allocation5 + $0x2800] sm:$0xff]
    %v1361 = vld [vmem:[#allocation5 + $0x2808] sm:$0xff]
    %v1362 = vld [vmem:[#allocation5 + $0x2810] sm:$0xff]
    %v1363 = vld [vmem:[#allocation5 + $0x2818] sm:$0xff]
    %v1364 = vld [vmem:[#allocation5 + $0x2820] sm:$0xff]
    %v1365 = vld [vmem:[#allocation5 + $0x2828] sm:$0xff]
    %v1366 = vld [vmem:[#allocation5 + $0x2830] sm:$0xff]
    %v1367 = vld [vmem:[#allocation5 + $0x2838] sm:$0xff]
    %v1368 = vld [vmem:[#allocation5 + $0x2840] sm:$0xff]
    %v1369 = vld [vmem:[#allocation5 + $0x2848] sm:$0xff]
    %v1370 = vld [vmem:[#allocation5 + $0x2850] sm:$0xff]
    %v1371 = vld [vmem:[#allocation5 + $0x2858] sm:$0xff]
    %v1372 = vld [vmem:[#allocation5 + $0x2860] sm:$0xff]
    %v1373 = vld [vmem:[#allocation5 + $0x2868] sm:$0xff]
    %v1374 = vld [vmem:[#allocation5 + $0x2870] sm:$0xff]
    %v1375 = vld [vmem:[#allocation5 + $0x2878] sm:$0xff]
    %v1376 = vld [vmem:[#allocation5 + $0x2880] sm:$0xff]
    %v1377 = vld [vmem:[#allocation5 + $0x2888] sm:$0xff]
    %v1378 = vld [vmem:[#allocation5 + $0x2890] sm:$0xff]
    %v1379 = vld [vmem:[#allocation5 + $0x2898] sm:$0xff]
    %v1380 = vld [vmem:[#allocation5 + $0x28a0] sm:$0xff]
    %v1381 = vld [vmem:[#allocation5 + $0x28a8] sm:$0xff]
    %v1382 = vld [vmem:[#allocation5 + $0x28b0] sm:$0xff]
    %v1383 = vld [vmem:[#allocation5 + $0x28b8] sm:$0xff]
    %v1384 = vld [vmem:[#allocation5 + $0x28c0] sm:$0xff]
    %v1385 = vld [vmem:[#allocation5 + $0x28c8] sm:$0xff]
    %v1386 = vld [vmem:[#allocation5 + $0x28d0] sm:$0xff]
    %v1387 = vld [vmem:[#allocation5 + $0x28d8] sm:$0xff]
    %v1388 = vld [vmem:[#allocation5 + $0x28e0] sm:$0xff]
    %v1389 = vld [vmem:[#allocation5 + $0x28e8] sm:$0xff]
    %v1390 = vld [vmem:[#allocation5 + $0x28f0] sm:$0xff]
    %v1391 = vld [vmem:[#allocation5 + $0x28f8] sm:$0xff]
    %v1392 = vld [vmem:[#allocation5 + $0x2900] sm:$0xff]
    %v1393 = vld [vmem:[#allocation5 + $0x2908] sm:$0xff]
    %v1394 = vld [vmem:[#allocation5 + $0x2910] sm:$0xff]
    %v1395 = vld [vmem:[#allocation5 + $0x2918] sm:$0xff]
    %v1396 = vld [vmem:[#allocation5 + $0x2920] sm:$0xff]
    %v1397 = vld [vmem:[#allocation5 + $0x2928] sm:$0xff]
    %v1398 = vld [vmem:[#allocation5 + $0x2930] sm:$0xff]
    %v1399 = vld [vmem:[#allocation5 + $0x2938] sm:$0xff]
    %v1400 = vld [vmem:[#allocation5 + $0x2940] sm:$0xff]
    %v1401 = vld [vmem:[#allocation5 + $0x2948] sm:$0xff]
    %v1402 = vld [vmem:[#allocation5 + $0x2950] sm:$0xff]
    %v1403 = vld [vmem:[#allocation5 + $0x2958] sm:$0xff]
    %v1404 = vld [vmem:[#allocation5 + $0x2960] sm:$0xff]
    %v1405 = vld [vmem:[#allocation5 + $0x2968] sm:$0xff]
    %v1406 = vld [vmem:[#allocation5 + $0x2970] sm:$0xff]
    %v1407 = vld [vmem:[#allocation5 + $0x2978] sm:$0xff]
    %v1408 = vld [vmem:[#allocation5 + $0x2980] sm:$0xff]
    %v1409 = vld [vmem:[#allocation5 + $0x2988] sm:$0xff]
    %v1410 = vld [vmem:[#allocation5 + $0x2990] sm:$0xff]
    %v1411 = vld [vmem:[#allocation5 + $0x2998] sm:$0xff]
    %v1412 = vld [vmem:[#allocation5 + $0x29a0] sm:$0xff]
    %v1413 = vld [vmem:[#allocation5 + $0x29a8] sm:$0xff]
    %v1414 = vld [vmem:[#allocation5 + $0x29b0] sm:$0xff]
    %v1415 = vld [vmem:[#allocation5 + $0x29b8] sm:$0xff]
    %v1416 = vld [vmem:[#allocation5 + $0x29c0] sm:$0xff]
    %v1417 = vld [vmem:[#allocation5 + $0x29c8] sm:$0xff]
    %v1418 = vld [vmem:[#allocation5 + $0x29d0] sm:$0xff]
    %v1419 = vld [vmem:[#allocation5 + $0x29d8] sm:$0xff]
    %v1420 = vld [vmem:[#allocation5 + $0x29e0] sm:$0xff]
    %v1421 = vld [vmem:[#allocation5 + $0x29e8] sm:$0xff]
    %v1422 = vld [vmem:[#allocation5 + $0x29f0] sm:$0xff]
    %v1423 = vld [vmem:[#allocation5 + $0x29f8] sm:$0xff]
    %v1424 = vld [vmem:[#allocation5 + $0x2a00] sm:$0xff]
    %v1425 = vld [vmem:[#allocation5 + $0x2a08] sm:$0xff]
    %v1426 = vld [vmem:[#allocation5 + $0x2a10] sm:$0xff]
    %v1427 = vld [vmem:[#allocation5 + $0x2a18] sm:$0xff]
    %v1428 = vld [vmem:[#allocation5 + $0x2a20] sm:$0xff]
    %v1429 = vld [vmem:[#allocation5 + $0x2a28] sm:$0xff]
    %v1430 = vld [vmem:[#allocation5 + $0x2a30] sm:$0xff]
    %v1431 = vld [vmem:[#allocation5 + $0x2a38] sm:$0xff]
    %v1432 = vld [vmem:[#allocation5 + $0x2a40] sm:$0xff]
    %v1433 = vld [vmem:[#allocation5 + $0x2a48] sm:$0xff]
    %v1434 = vld [vmem:[#allocation5 + $0x2a50] sm:$0xff]
    %v1435 = vld [vmem:[#allocation5 + $0x2a58] sm:$0xff]
    %v1436 = vld [vmem:[#allocation5 + $0x2a60] sm:$0xff]
    %v1437 = vld [vmem:[#allocation5 + $0x2a68] sm:$0xff]
    %v1438 = vld [vmem:[#allocation5 + $0x2a70] sm:$0xff]
    %v1439 = vld [vmem:[#allocation5 + $0x2a78] sm:$0xff]
    %v1440 = vld [vmem:[#allocation5 + $0x2a80] sm:$0xff]
    %v1441 = vld [vmem:[#allocation5 + $0x2a88] sm:$0xff]
    %v1442 = vld [vmem:[#allocation5 + $0x2a90] sm:$0xff]
    %v1443 = vld [vmem:[#allocation5 + $0x2a98] sm:$0xff]
    %v1444 = vld [vmem:[#allocation5 + $0x2aa0] sm:$0xff]
    %v1445 = vld [vmem:[#allocation5 + $0x2aa8] sm:$0xff]
    %v1446 = vld [vmem:[#allocation5 + $0x2ab0] sm:$0xff]
    %v1447 = vld [vmem:[#allocation5 + $0x2ab8] sm:$0xff]
    %v1448 = vld [vmem:[#allocation5 + $0x2ac0] sm:$0xff]
    %v1449 = vld [vmem:[#allocation5 + $0x2ac8] sm:$0xff]
    %v1450 = vld [vmem:[#allocation5 + $0x2ad0] sm:$0xff]
    %v1451 = vld [vmem:[#allocation5 + $0x2ad8] sm:$0xff]
    %v1452 = vld [vmem:[#allocation5 + $0x2ae0] sm:$0xff]
    %v1453 = vld [vmem:[#allocation5 + $0x2ae8] sm:$0xff]
    %v1454 = vld [vmem:[#allocation5 + $0x2af0] sm:$0xff]
    %v1455 = vld [vmem:[#allocation5 + $0x2af8] sm:$0xff]
    %v1456 = vld [vmem:[#allocation5 + $0x2b00] sm:$0xff]
    %v1457 = vld [vmem:[#allocation5 + $0x2b08] sm:$0xff]
    %v1458 = vld [vmem:[#allocation5 + $0x2b10] sm:$0xff]
    %v1459 = vld [vmem:[#allocation5 + $0x2b18] sm:$0xff]
    %v1460 = vld [vmem:[#allocation5 + $0x2b20] sm:$0xff]
    %v1461 = vld [vmem:[#allocation5 + $0x2b28] sm:$0xff]
    %v1462 = vld [vmem:[#allocation5 + $0x2b30] sm:$0xff]
    %v1463 = vld [vmem:[#allocation5 + $0x2b38] sm:$0xff]
    %v1464 = vld [vmem:[#allocation5 + $0x2b40] sm:$0xff]
    %v1465 = vld [vmem:[#allocation5 + $0x2b48] sm:$0xff]
    %v1466 = vld [vmem:[#allocation5 + $0x2b50] sm:$0xff]
    %v1467 = vld [vmem:[#allocation5 + $0x2b58] sm:$0xff]
    %v1468 = vld [vmem:[#allocation5 + $0x2b60] sm:$0xff]
    %v1469 = vld [vmem:[#allocation5 + $0x2b68] sm:$0xff]
    %v1470 = vld [vmem:[#allocation5 + $0x2b70] sm:$0xff]
    %v1471 = vld [vmem:[#allocation5 + $0x2b78] sm:$0xff]
    %v1472 = vld [vmem:[#allocation5 + $0x2b80] sm:$0xff]
    %v1473 = vld [vmem:[#allocation5 + $0x2b88] sm:$0xff]
    %v1474 = vld [vmem:[#allocation5 + $0x2b90] sm:$0xff]
    %v1475 = vld [vmem:[#allocation5 + $0x2b98] sm:$0xff]
    %v1476 = vld [vmem:[#allocation5 + $0x2ba0] sm:$0xff]
    %v1477 = vld [vmem:[#allocation5 + $0x2ba8] sm:$0xff]
    %v1478 = vld [vmem:[#allocation5 + $0x2bb0] sm:$0xff]
    %v1479 = vld [vmem:[#allocation5 + $0x2bb8] sm:$0xff]
    %v1480 = vld [vmem:[#allocation5 + $0x2bc0] sm:$0xff]
    %v1481 = vld [vmem:[#allocation5 + $0x2bc8] sm:$0xff]
    %v1482 = vld [vmem:[#allocation5 + $0x2bd0] sm:$0xff]
    %v1483 = vld [vmem:[#allocation5 + $0x2bd8] sm:$0xff]
    %v1484 = vld [vmem:[#allocation5 + $0x2be0] sm:$0xff]
    %v1485 = vld [vmem:[#allocation5 + $0x2be8] sm:$0xff]
    %v1486 = vld [vmem:[#allocation5 + $0x2bf0] sm:$0xff]
    %v1487 = vld [vmem:[#allocation5 + $0x2bf8] sm:$0xff]
    %v1488 = vld [vmem:[#allocation5 + $0x2c00] sm:$0xff]
    %v1489 = vld [vmem:[#allocation5 + $0x2c08] sm:$0xff]
    %v1490 = vld [vmem:[#allocation5 + $0x2c10] sm:$0xff]
    %v1491 = vld [vmem:[#allocation5 + $0x2c18] sm:$0xff]
    %v1492 = vld [vmem:[#allocation5 + $0x2c20] sm:$0xff]
    %v1493 = vld [vmem:[#allocation5 + $0x2c28] sm:$0xff]
    %v1494 = vld [vmem:[#allocation5 + $0x2c30] sm:$0xff]
    %v1495 = vld [vmem:[#allocation5 + $0x2c38] sm:$0xff]
    %v1496 = vld [vmem:[#allocation5 + $0x2c40] sm:$0xff]
    %v1497 = vld [vmem:[#allocation5 + $0x2c48] sm:$0xff]
    %v1498 = vld [vmem:[#allocation5 + $0x2c50] sm:$0xff]
    %v1499 = vld [vmem:[#allocation5 + $0x2c58] sm:$0xff]
    %v1500 = vld [vmem:[#allocation5 + $0x2c60] sm:$0xff]
    %v1501 = vld [vmem:[#allocation5 + $0x2c68] sm:$0xff]
    %v1502 = vld [vmem:[#allocation5 + $0x2c70] sm:$0xff]
    %v1503 = vld [vmem:[#allocation5 + $0x2c78] sm:$0xff]
    %v1504 = vld [vmem:[#allocation5 + $0x2c80] sm:$0xff]
    %v1505 = vld [vmem:[#allocation5 + $0x2c88] sm:$0xff]
    %v1506 = vld [vmem:[#allocation5 + $0x2c90] sm:$0xff]
    %v1507 = vld [vmem:[#allocation5 + $0x2c98] sm:$0xff]
    %v1508 = vld [vmem:[#allocation5 + $0x2ca0] sm:$0xff]
    %v1509 = vld [vmem:[#allocation5 + $0x2ca8] sm:$0xff]
    %v1510 = vld [vmem:[#allocation5 + $0x2cb0] sm:$0xff]
    %v1511 = vld [vmem:[#allocation5 + $0x2cb8] sm:$0xff]
    %v1512 = vld [vmem:[#allocation5 + $0x2cc0] sm:$0xff]
    %v1513 = vld [vmem:[#allocation5 + $0x2cc8] sm:$0xff]
    %v1514 = vld [vmem:[#allocation5 + $0x2cd0] sm:$0xff]
    %v1515 = vld [vmem:[#allocation5 + $0x2cd8] sm:$0xff]
    %v1516 = vld [vmem:[#allocation5 + $0x2ce0] sm:$0xff]
    %v1517 = vld [vmem:[#allocation5 + $0x2ce8] sm:$0xff]
    %v1518 = vld [vmem:[#allocation5 + $0x2cf0] sm:$0xff]
    %v1519 = vld [vmem:[#allocation5 + $0x2cf8] sm:$0xff]
    %v1520 = vld [vmem:[#allocation5 + $0x2d00] sm:$0xff]
    %v1521 = vld [vmem:[#allocation5 + $0x2d08] sm:$0xff]
    %v1522 = vld [vmem:[#allocation5 + $0x2d10] sm:$0xff]
    %v1523 = vld [vmem:[#allocation5 + $0x2d18] sm:$0xff]
    %v1524 = vld [vmem:[#allocation5 + $0x2d20] sm:$0xff]
    %v1525 = vld [vmem:[#allocation5 + $0x2d28] sm:$0xff]
    %v1526 = vld [vmem:[#allocation5 + $0x2d30] sm:$0xff]
    %v1527 = vld [vmem:[#allocation5 + $0x2d38] sm:$0xff]
    %v1528 = vld [vmem:[#allocation5 + $0x2d40] sm:$0xff]
    %v1529 = vld [vmem:[#allocation5 + $0x2d48] sm:$0xff]
    %v1530 = vld [vmem:[#allocation5 + $0x2d50] sm:$0xff]
    %v1531 = vld [vmem:[#allocation5 + $0x2d58] sm:$0xff]
    %v1532 = vld [vmem:[#allocation5 + $0x2d60] sm:$0xff]
    %v1533 = vld [vmem:[#allocation5 + $0x2d68] sm:$0xff]
    %v1534 = vld [vmem:[#allocation5 + $0x2d70] sm:$0xff]
    %v1535 = vld [vmem:[#allocation5 + $0x2d78] sm:$0xff]
    %v1536 = vld [vmem:[#allocation5 + $0x2d80] sm:$0xff]
    %v1537 = vld [vmem:[#allocation5 + $0x2d88] sm:$0xff]
    %v1538 = vld [vmem:[#allocation5 + $0x2d90] sm:$0xff]
    %v1539 = vld [vmem:[#allocation5 + $0x2d98] sm:$0xff]
    %v1540 = vld [vmem:[#allocation5 + $0x2da0] sm:$0xff]
    %v1541 = vld [vmem:[#allocation5 + $0x2da8] sm:$0xff]
    %v1542 = vld [vmem:[#allocation5 + $0x2db0] sm:$0xff]
    %v1543 = vld [vmem:[#allocation5 + $0x2db8] sm:$0xff]
    %v1544 = vld [vmem:[#allocation5 + $0x2dc0] sm:$0xff]
    %v1545 = vld [vmem:[#allocation5 + $0x2dc8] sm:$0xff]
    %v1546 = vld [vmem:[#allocation5 + $0x2dd0] sm:$0xff]
    %v1547 = vld [vmem:[#allocation5 + $0x2dd8] sm:$0xff]
    %v1548 = vld [vmem:[#allocation5 + $0x2de0] sm:$0xff]
    %v1549 = vld [vmem:[#allocation5 + $0x2de8] sm:$0xff]
    %v1550 = vld [vmem:[#allocation5 + $0x2df0] sm:$0xff]
    %v1551 = vld [vmem:[#allocation5 + $0x2df8] sm:$0xff]
    %v1552 = vld [vmem:[#allocation5 + $0x2e00] sm:$0xff]
    %v1553 = vld [vmem:[#allocation5 + $0x2e08] sm:$0xff]
    %v1554 = vld [vmem:[#allocation5 + $0x2e10] sm:$0xff]
    %v1555 = vld [vmem:[#allocation5 + $0x2e18] sm:$0xff]
    %v1556 = vld [vmem:[#allocation5 + $0x2e20] sm:$0xff]
    %v1557 = vld [vmem:[#allocation5 + $0x2e28] sm:$0xff]
    %v1558 = vld [vmem:[#allocation5 + $0x2e30] sm:$0xff]
    %v1559 = vld [vmem:[#allocation5 + $0x2e38] sm:$0xff]
    %v1560 = vld [vmem:[#allocation5 + $0x2e40] sm:$0xff]
    %v1561 = vld [vmem:[#allocation5 + $0x2e48] sm:$0xff]
    %v1562 = vld [vmem:[#allocation5 + $0x2e50] sm:$0xff]
    %v1563 = vld [vmem:[#allocation5 + $0x2e58] sm:$0xff]
    %v1564 = vld [vmem:[#allocation5 + $0x2e60] sm:$0xff]
    %v1565 = vld [vmem:[#allocation5 + $0x2e68] sm:$0xff]
    %v1566 = vld [vmem:[#allocation5 + $0x2e70] sm:$0xff]
    %v1567 = vld [vmem:[#allocation5 + $0x2e78] sm:$0xff]
    %v1568 = vld [vmem:[#allocation5 + $0x2e80] sm:$0xff]
    %v1569 = vld [vmem:[#allocation5 + $0x2e88] sm:$0xff]
    %v1570 = vld [vmem:[#allocation5 + $0x2e90] sm:$0xff]
    %v1571 = vld [vmem:[#allocation5 + $0x2e98] sm:$0xff]
    %v1572 = vld [vmem:[#allocation5 + $0x2ea0] sm:$0xff]
    %v1573 = vld [vmem:[#allocation5 + $0x2ea8] sm:$0xff]
    %v1574 = vld [vmem:[#allocation5 + $0x2eb0] sm:$0xff]
    %v1575 = vld [vmem:[#allocation5 + $0x2eb8] sm:$0xff]
    %v1576 = vld [vmem:[#allocation5 + $0x2ec0] sm:$0xff]
    %v1577 = vld [vmem:[#allocation5 + $0x2ec8] sm:$0xff]
    %v1578 = vld [vmem:[#allocation5 + $0x2ed0] sm:$0xff]
    %v1579 = vld [vmem:[#allocation5 + $0x2ed8] sm:$0xff]
    %v1580 = vld [vmem:[#allocation5 + $0x2ee0] sm:$0xff]
    %v1581 = vld [vmem:[#allocation5 + $0x2ee8] sm:$0xff]
    %v1582 = vld [vmem:[#allocation5 + $0x2ef0] sm:$0xff]
    %v1583 = vld [vmem:[#allocation5 + $0x2ef8] sm:$0xff]
    %v1584 = vld [vmem:[#allocation5 + $0x2f00] sm:$0xff]
    %v1585 = vld [vmem:[#allocation5 + $0x2f08] sm:$0xff]
    %v1586 = vld [vmem:[#allocation5 + $0x2f10] sm:$0xff]
    %v1587 = vld [vmem:[#allocation5 + $0x2f18] sm:$0xff]
    %v1588 = vld [vmem:[#allocation5 + $0x2f20] sm:$0xff]
    %v1589 = vld [vmem:[#allocation5 + $0x2f28] sm:$0xff]
    %v1590 = vld [vmem:[#allocation5 + $0x2f30] sm:$0xff]
    %v1591 = vld [vmem:[#allocation5 + $0x2f38] sm:$0xff]
    %v1592 = vld [vmem:[#allocation5 + $0x2f40] sm:$0xff]
    %v1593 = vld [vmem:[#allocation5 + $0x2f48] sm:$0xff]
    %v1594 = vld [vmem:[#allocation5 + $0x2f50] sm:$0xff]
    %v1595 = vld [vmem:[#allocation5 + $0x2f58] sm:$0xff]
    %v1596 = vld [vmem:[#allocation5 + $0x2f60] sm:$0xff]
    %v1597 = vld [vmem:[#allocation5 + $0x2f68] sm:$0xff]
    %v1598 = vld [vmem:[#allocation5 + $0x2f70] sm:$0xff]
    %v1599 = vld [vmem:[#allocation5 + $0x2f78] sm:$0xff]
    %v1600 = vld [vmem:[#allocation5 + $0x2f80] sm:$0xff]
    %v1601 = vld [vmem:[#allocation5 + $0x2f88] sm:$0xff]
    %v1602 = vld [vmem:[#allocation5 + $0x2f90] sm:$0xff]
    %v1603 = vld [vmem:[#allocation5 + $0x2f98] sm:$0xff]
    %v1604 = vld [vmem:[#allocation5 + $0x2fa0] sm:$0xff]
    %v1605 = vld [vmem:[#allocation5 + $0x2fa8] sm:$0xff]
    %v1606 = vld [vmem:[#allocation5 + $0x2fb0] sm:$0xff]
    %v1607 = vld [vmem:[#allocation5 + $0x2fb8] sm:$0xff]
    %v1608 = vld [vmem:[#allocation5 + $0x2fc0] sm:$0xff]
    %v1609 = vld [vmem:[#allocation5 + $0x2fc8] sm:$0xff]
    %v1610 = vld [vmem:[#allocation5 + $0x2fd0] sm:$0xff]
    %v1611 = vld [vmem:[#allocation5 + $0x2fd8] sm:$0xff]
    %v1612 = vld [vmem:[#allocation5 + $0x2fe0] sm:$0xff]
    %v1613 = vld [vmem:[#allocation5 + $0x2fe8] sm:$0xff]
    %v1614 = vld [vmem:[#allocation5 + $0x2ff0] sm:$0xff]
    %v1615 = vld [vmem:[#allocation5 + $0x2ff8] sm:$0xff]
    %1616 = vmatpush.msra.mxu0 %v320
    %1617 = vmatpush.msra.mxu0 %v304
    %1618 = vmatpush.msra.mxu0 %v288
    %1619 = vmatpush.msra.mxu0 %v272
    %1620 = vmatpush.msra.mxu0 %v256
    %1621 = vmatpush.msra.mxu0 %v240
    %1622 = vmatpush.msra.mxu0 %v224
    %1623 = vmatpush.msra.mxu0 %v208
    %1624 = vmatpush.msra.mxu0 %v192
    %1625 = vmatpush.msra.mxu0 %v176
    %1626 = vmatpush.msra.mxu0 %v160
    %1627 = vmatpush.msra.mxu0 %v144
    %1628 = vmatpush.msra.mxu0 %v128
    %1629 = vmatpush.msra.mxu0 %v112
    %1630 = vmatpush.msra.mxu0 %v96
    %1631 = vmatpush.msra.mxu0 %v80
    %1632 = vmatmul.f32.gmra.mxu0 %v68
    %v1633 = vpop.f32.mrf.mxu0
    %v1634 = vadd.f32 0.0, %v1633
    %1635 = vmatmul.f32.gmra.mxu0 %v74
    %v1636 = vpop.f32.mrf.mxu0
    %v1637 = vadd.f32 0.0, %v1636
    %1638 = vdwg.mxu0
    %1639 = vmatpush.msra.mxu0 %v576
    %1640 = vmatpush.msra.mxu0 %v560
    %1641 = vmatpush.msra.mxu0 %v544
    %1642 = vmatpush.msra.mxu0 %v528
    %1643 = vmatpush.msra.mxu0 %v512
    %1644 = vmatpush.msra.mxu0 %v496
    %1645 = vmatpush.msra.mxu0 %v480
    %1646 = vmatpush.msra.mxu0 %v464
    %1647 = vmatpush.msra.mxu0 %v448
    %1648 = vmatpush.msra.mxu0 %v432
    %1649 = vmatpush.msra.mxu0 %v416
    %1650 = vmatpush.msra.mxu0 %v400
    %1651 = vmatpush.msra.mxu0 %v384
    %1652 = vmatpush.msra.mxu0 %v368
    %1653 = vmatpush.msra.mxu0 %v352
    %1654 = vmatpush.msra.mxu0 %v336
    %1655 = vmatmul.f32.gmra.mxu0 %v69
    %v1656 = vpop.f32.mrf.mxu0
    %v1657 = vadd.f32 %v1634, %v1656
    %1658 = vmatmul.f32.gmra.mxu0 %v75
    %v1659 = vpop.f32.mrf.mxu0
    %v1660 = vadd.f32 %v1637, %v1659
    %1661 = vdwg.mxu0
    %1662 = vmatpush.msra.mxu0 %v832
    %1663 = vmatpush.msra.mxu0 %v816
    %1664 = vmatpush.msra.mxu0 %v800
    %1665 = vmatpush.msra.mxu0 %v784
    %1666 = vmatpush.msra.mxu0 %v768
    %1667 = vmatpush.msra.mxu0 %v752
    %1668 = vmatpush.msra.mxu0 %v736
    %1669 = vmatpush.msra.mxu0 %v720
    %1670 = vmatpush.msra.mxu0 %v704
    %1671 = vmatpush.msra.mxu0 %v688
    %1672 = vmatpush.msra.mxu0 %v672
    %1673 = vmatpush.msra.mxu0 %v656
    %1674 = vmatpush.msra.mxu0 %v640
    %1675 = vmatpush.msra.mxu0 %v624
    %1676 = vmatpush.msra.mxu0 %v608
    %1677 = vmatpush.msra.mxu0 %v592
    %1678 = vmatmul.f32.gmra.mxu0 %v70
    %v1679 = vpop.f32.mrf.mxu0
    %v1680 = vadd.f32 %v1657, %v1679
    %1681 = vmatmul.f32.gmra.mxu0 %v76
    %v1682 = vpop.f32.mrf.mxu0
    %v1683 = vadd.f32 %v1660, %v1682
    %1684 = vdwg.mxu0
    %1685 = vmatpush.msra.mxu0 %v1088
    %1686 = vmatpush.msra.mxu0 %v1072
    %1687 = vmatpush.msra.mxu0 %v1056
    %1688 = vmatpush.msra.mxu0 %v1040
    %1689 = vmatpush.msra.mxu0 %v1024
    %1690 = vmatpush.msra.mxu0 %v1008
    %1691 = vmatpush.msra.mxu0 %v992
    %1692 = vmatpush.msra.mxu0 %v976
    %1693 = vmatpush.msra.mxu0 %v960
    %1694 = vmatpush.msra.mxu0 %v944
    %1695 = vmatpush.msra.mxu0 %v928
    %1696 = vmatpush.msra.mxu0 %v912
    %1697 = vmatpush.msra.mxu0 %v896
    %1698 = vmatpush.msra.mxu0 %v880
    %1699 = vmatpush.msra.mxu0 %v864
    %1700 = vmatpush.msra.mxu0 %v848
    %1701 = vmatmul.f32.gmra.mxu0 %v71
    %v1702 = vpop.f32.mrf.mxu0
    %v1703 = vadd.f32 %v1680, %v1702
    %1704 = vmatmul.f32.gmra.mxu0 %v77
    %v1705 = vpop.f32.mrf.mxu0
    %v1706 = vadd.f32 %v1683, %v1705
    %1707 = vdwg.mxu0
    %1708 = vmatpush.msra.mxu0 %v1344
    %1709 = vmatpush.msra.mxu0 %v1328
    %1710 = vmatpush.msra.mxu0 %v1312
    %1711 = vmatpush.msra.mxu0 %v1296
    %1712 = vmatpush.msra.mxu0 %v1280
    %1713 = vmatpush.msra.mxu0 %v1264
    %1714 = vmatpush.msra.mxu0 %v1248
    %1715 = vmatpush.msra.mxu0 %v1232
    %1716 = vmatpush.msra.mxu0 %v1216
    %1717 = vmatpush.msra.mxu0 %v1200
    %1718 = vmatpush.msra.mxu0 %v1184
    %1719 = vmatpush.msra.mxu0 %v1168
    %1720 = vmatpush.msra.mxu0 %v1152
    %1721 = vmatpush.msra.mxu0 %v1136
    %1722 = vmatpush.msra.mxu0 %v1120
    %1723 = vmatpush.msra.mxu0 %v1104
    %1724 = vmatmul.f32.gmra.mxu0 %v72
    %v1725 = vpop.f32.mrf.mxu0
    %v1726 = vadd.f32 %v1703, %v1725
    %1727 = vmatmul.f32.gmra.mxu0 %v78
    %v1728 = vpop.f32.mrf.mxu0
    %v1729 = vadd.f32 %v1706, %v1728
    %1730 = vdwg.mxu0
    %1731 = vmatpush.msra.mxu0 %v1600
    %1732 = vmatpush.msra.mxu0 %v1584
    %1733 = vmatpush.msra.mxu0 %v1568
    %1734 = vmatpush.msra.mxu0 %v1552
    %1735 = vmatpush.msra.mxu0 %v1536
    %1736 = vmatpush.msra.mxu0 %v1520
    %1737 = vmatpush.msra.mxu0 %v1504
    %1738 = vmatpush.msra.mxu0 %v1488
    %1739 = vmatpush.msra.mxu0 %v1472
    %1740 = vmatpush.msra.mxu0 %v1456
    %1741 = vmatpush.msra.mxu0 %v1440
    %1742 = vmatpush.msra.mxu0 %v1424
    %1743 = vmatpush.msra.mxu0 %v1408
    %1744 = vmatpush.msra.mxu0 %v1392
    %1745 = vmatpush.msra.mxu0 %v1376
    %1746 = vmatpush.msra.mxu0 %v1360
    %1747 = vmatmul.f32.gmra.mxu0 %v73
    %v1748 = vpop.f32.mrf.mxu0
    %v1749 = vadd.f32 %v1726, %v1748
    %1750 = vmatmul.f32.gmra.mxu0 %v79
    %v1751 = vpop.f32.mrf.mxu0
    %v1752 = vadd.f32 %v1729, %v1751
    %1753 = vdwg.mxu0
    %1754 = vmatpush.msra.mxu0 %v321
    %1755 = vmatpush.msra.mxu0 %v305
    %1756 = vmatpush.msra.mxu0 %v289
    %1757 = vmatpush.msra.mxu0 %v273
    %1758 = vmatpush.msra.mxu0 %v257
    %1759 = vmatpush.msra.mxu0 %v241
    %1760 = vmatpush.msra.mxu0 %v225
    %1761 = vmatpush.msra.mxu0 %v209
    %1762 = vmatpush.msra.mxu0 %v193
    %1763 = vmatpush.msra.mxu0 %v177
    %1764 = vmatpush.msra.mxu0 %v161
    %1765 = vmatpush.msra.mxu0 %v145
    %1766 = vmatpush.msra.mxu0 %v129
    %1767 = vmatpush.msra.mxu0 %v113
    %1768 = vmatpush.msra.mxu0 %v97
    %1769 = vmatpush.msra.mxu0 %v81
    %1770 = vmatmul.f32.gmra.mxu0 %v68
    %v1771 = vpop.f32.mrf.mxu0
    %v1772 = vadd.f32 0.0, %v1771
    %1773 = vmatmul.f32.gmra.mxu0 %v74
    %v1774 = vpop.f32.mrf.mxu0
    %v1775 = vadd.f32 0.0, %v1774
    %1776 = vdwg.mxu0
    %1777 = vmatpush.msra.mxu0 %v577
    %1778 = vmatpush.msra.mxu0 %v561
    %1779 = vmatpush.msra.mxu0 %v545
    %1780 = vmatpush.msra.mxu0 %v529
    %1781 = vmatpush.msra.mxu0 %v513
    %1782 = vmatpush.msra.mxu0 %v497
    %1783 = vmatpush.msra.mxu0 %v481
    %1784 = vmatpush.msra.mxu0 %v465
    %1785 = vmatpush.msra.mxu0 %v449
    %1786 = vmatpush.msra.mxu0 %v433
    %1787 = vmatpush.msra.mxu0 %v417
    %1788 = vmatpush.msra.mxu0 %v401
    %1789 = vmatpush.msra.mxu0 %v385
    %1790 = vmatpush.msra.mxu0 %v369
    %1791 = vmatpush.msra.mxu0 %v353
    %1792 = vmatpush.msra.mxu0 %v337
    %1793 = vmatmul.f32.gmra.mxu0 %v69
    %v1794 = vpop.f32.mrf.mxu0
    %v1795 = vadd.f32 %v1772, %v1794
    %1796 = vmatmul.f32.gmra.mxu0 %v75
    %v1797 = vpop.f32.mrf.mxu0
    %v1798 = vadd.f32 %v1775, %v1797
    %1799 = vdwg.mxu0
    %1800 = vmatpush.msra.mxu0 %v833
    %1801 = vmatpush.msra.mxu0 %v817
    %1802 = vmatpush.msra.mxu0 %v801
    %1803 = vmatpush.msra.mxu0 %v785
    %1804 = vmatpush.msra.mxu0 %v769
    %1805 = vmatpush.msra.mxu0 %v753
    %1806 = vmatpush.msra.mxu0 %v737
    %1807 = vmatpush.msra.mxu0 %v721
    %1808 = vmatpush.msra.mxu0 %v705
    %1809 = vmatpush.msra.mxu0 %v689
    %1810 = vmatpush.msra.mxu0 %v673
    %1811 = vmatpush.msra.mxu0 %v657
    %1812 = vmatpush.msra.mxu0 %v641
    %1813 = vmatpush.msra.mxu0 %v625
    %1814 = vmatpush.msra.mxu0 %v609
    %1815 = vmatpush.msra.mxu0 %v593
    %1816 = vmatmul.f32.gmra.mxu0 %v70
    %v1817 = vpop.f32.mrf.mxu0
    %v1818 = vadd.f32 %v1795, %v1817
    %1819 = vmatmul.f32.gmra.mxu0 %v76
    %v1820 = vpop.f32.mrf.mxu0
    %v1821 = vadd.f32 %v1798, %v1820
    %1822 = vdwg.mxu0
    %1823 = vmatpush.msra.mxu0 %v1089
    %1824 = vmatpush.msra.mxu0 %v1073
    %1825 = vmatpush.msra.mxu0 %v1057
    %1826 = vmatpush.msra.mxu0 %v1041
    %1827 = vmatpush.msra.mxu0 %v1025
    %1828 = vmatpush.msra.mxu0 %v1009
    %1829 = vmatpush.msra.mxu0 %v993
    %1830 = vmatpush.msra.mxu0 %v977
    %1831 = vmatpush.msra.mxu0 %v961
    %1832 = vmatpush.msra.mxu0 %v945
    %1833 = vmatpush.msra.mxu0 %v929
    %1834 = vmatpush.msra.mxu0 %v913
    %1835 = vmatpush.msra.mxu0 %v897
    %1836 = vmatpush.msra.mxu0 %v881
    %1837 = vmatpush.msra.mxu0 %v865
    %1838 = vmatpush.msra.mxu0 %v849
    %1839 = vmatmul.f32.gmra.mxu0 %v71
    %v1840 = vpop.f32.mrf.mxu0
    %v1841 = vadd.f32 %v1818, %v1840
    %1842 = vmatmul.f32.gmra.mxu0 %v77
    %v1843 = vpop.f32.mrf.mxu0
    %v1844 = vadd.f32 %v1821, %v1843
    %1845 = vdwg.mxu0
    %1846 = vmatpush.msra.mxu0 %v1345
    %1847 = vmatpush.msra.mxu0 %v1329
    %1848 = vmatpush.msra.mxu0 %v1313
    %1849 = vmatpush.msra.mxu0 %v1297
    %1850 = vmatpush.msra.mxu0 %v1281
    %1851 = vmatpush.msra.mxu0 %v1265
    %1852 = vmatpush.msra.mxu0 %v1249
    %1853 = vmatpush.msra.mxu0 %v1233
    %1854 = vmatpush.msra.mxu0 %v1217
    %1855 = vmatpush.msra.mxu0 %v1201
    %1856 = vmatpush.msra.mxu0 %v1185
    %1857 = vmatpush.msra.mxu0 %v1169
    %1858 = vmatpush.msra.mxu0 %v1153
    %1859 = vmatpush.msra.mxu0 %v1137
    %1860 = vmatpush.msra.mxu0 %v1121
    %1861 = vmatpush.msra.mxu0 %v1105
    %1862 = vmatmul.f32.gmra.mxu0 %v72
    %v1863 = vpop.f32.mrf.mxu0
    %v1864 = vadd.f32 %v1841, %v1863
    %1865 = vmatmul.f32.gmra.mxu0 %v78
    %v1866 = vpop.f32.mrf.mxu0
    %v1867 = vadd.f32 %v1844, %v1866
    %1868 = vdwg.mxu0
    %1869 = vmatpush.msra.mxu0 %v1601
    %1870 = vmatpush.msra.mxu0 %v1585
    %1871 = vmatpush.msra.mxu0 %v1569
    %1872 = vmatpush.msra.mxu0 %v1553
    %1873 = vmatpush.msra.mxu0 %v1537
    %1874 = vmatpush.msra.mxu0 %v1521
    %1875 = vmatpush.msra.mxu0 %v1505
    %1876 = vmatpush.msra.mxu0 %v1489
    %1877 = vmatpush.msra.mxu0 %v1473
    %1878 = vmatpush.msra.mxu0 %v1457
    %1879 = vmatpush.msra.mxu0 %v1441
    %1880 = vmatpush.msra.mxu0 %v1425
    %1881 = vmatpush.msra.mxu0 %v1409
    %1882 = vmatpush.msra.mxu0 %v1393
    %1883 = vmatpush.msra.mxu0 %v1377
    %1884 = vmatpush.msra.mxu0 %v1361
    %1885 = vmatmul.f32.gmra.mxu0 %v73
    %v1886 = vpop.f32.mrf.mxu0
    %v1887 = vadd.f32 %v1864, %v1886
    %1888 = vmatmul.f32.gmra.mxu0 %v79
    %v1889 = vpop.f32.mrf.mxu0
    %v1890 = vadd.f32 %v1867, %v1889
    %1891 = vdwg.mxu0
    %1892 = vmatpush.msra.mxu0 %v322
    %1893 = vmatpush.msra.mxu0 %v306
    %1894 = vmatpush.msra.mxu0 %v290
    %1895 = vmatpush.msra.mxu0 %v274
    %1896 = vmatpush.msra.mxu0 %v258
    %1897 = vmatpush.msra.mxu0 %v242
    %1898 = vmatpush.msra.mxu0 %v226
    %1899 = vmatpush.msra.mxu0 %v210
    %1900 = vmatpush.msra.mxu0 %v194
    %1901 = vmatpush.msra.mxu0 %v178
    %1902 = vmatpush.msra.mxu0 %v162
    %1903 = vmatpush.msra.mxu0 %v146
    %1904 = vmatpush.msra.mxu0 %v130
    %1905 = vmatpush.msra.mxu0 %v114
    %1906 = vmatpush.msra.mxu0 %v98
    %1907 = vmatpush.msra.mxu0 %v82
    %1908 = vmatmul.f32.gmra.mxu0 %v68
    %v1909 = vpop.f32.mrf.mxu0
    %v1910 = vadd.f32 0.0, %v1909
    %1911 = vmatmul.f32.gmra.mxu0 %v74
    %v1912 = vpop.f32.mrf.mxu0
    %v1913 = vadd.f32 0.0, %v1912
    %1914 = vdwg.mxu0
    %1915 = vmatpush.msra.mxu0 %v578
    %1916 = vmatpush.msra.mxu0 %v562
    %1917 = vmatpush.msra.mxu0 %v546
    %1918 = vmatpush.msra.mxu0 %v530
    %1919 = vmatpush.msra.mxu0 %v514
    %1920 = vmatpush.msra.mxu0 %v498
    %1921 = vmatpush.msra.mxu0 %v482
    %1922 = vmatpush.msra.mxu0 %v466
    %1923 = vmatpush.msra.mxu0 %v450
    %1924 = vmatpush.msra.mxu0 %v434
    %1925 = vmatpush.msra.mxu0 %v418
    %1926 = vmatpush.msra.mxu0 %v402
    %1927 = vmatpush.msra.mxu0 %v386
    %1928 = vmatpush.msra.mxu0 %v370
    %1929 = vmatpush.msra.mxu0 %v354
    %1930 = vmatpush.msra.mxu0 %v338
    %1931 = vmatmul.f32.gmra.mxu0 %v69
    %v1932 = vpop.f32.mrf.mxu0
    %v1933 = vadd.f32 %v1910, %v1932
    %1934 = vmatmul.f32.gmra.mxu0 %v75
    %v1935 = vpop.f32.mrf.mxu0
    %v1936 = vadd.f32 %v1913, %v1935
    %1937 = vdwg.mxu0
    %1938 = vmatpush.msra.mxu0 %v834
    %1939 = vmatpush.msra.mxu0 %v818
    %1940 = vmatpush.msra.mxu0 %v802
    %1941 = vmatpush.msra.mxu0 %v786
    %1942 = vmatpush.msra.mxu0 %v770
    %1943 = vmatpush.msra.mxu0 %v754
    %1944 = vmatpush.msra.mxu0 %v738
    %1945 = vmatpush.msra.mxu0 %v722
    %1946 = vmatpush.msra.mxu0 %v706
    %1947 = vmatpush.msra.mxu0 %v690
    %1948 = vmatpush.msra.mxu0 %v674
    %1949 = vmatpush.msra.mxu0 %v658
    %1950 = vmatpush.msra.mxu0 %v642
    %1951 = vmatpush.msra.mxu0 %v626
    %1952 = vmatpush.msra.mxu0 %v610
    %1953 = vmatpush.msra.mxu0 %v594
    %1954 = vmatmul.f32.gmra.mxu0 %v70
    %v1955 = vpop.f32.mrf.mxu0
    %v1956 = vadd.f32 %v1933, %v1955
    %1957 = vmatmul.f32.gmra.mxu0 %v76
    %v1958 = vpop.f32.mrf.mxu0
    %v1959 = vadd.f32 %v1936, %v1958
    %1960 = vdwg.mxu0
    %1961 = vmatpush.msra.mxu0 %v1090
    %1962 = vmatpush.msra.mxu0 %v1074
    %1963 = vmatpush.msra.mxu0 %v1058
    %1964 = vmatpush.msra.mxu0 %v1042
    %1965 = vmatpush.msra.mxu0 %v1026
    %1966 = vmatpush.msra.mxu0 %v1010
    %1967 = vmatpush.msra.mxu0 %v994
    %1968 = vmatpush.msra.mxu0 %v978
    %1969 = vmatpush.msra.mxu0 %v962
    %1970 = vmatpush.msra.mxu0 %v946
    %1971 = vmatpush.msra.mxu0 %v930
    %1972 = vmatpush.msra.mxu0 %v914
    %1973 = vmatpush.msra.mxu0 %v898
    %1974 = vmatpush.msra.mxu0 %v882
    %1975 = vmatpush.msra.mxu0 %v866
    %1976 = vmatpush.msra.mxu0 %v850
    %1977 = vmatmul.f32.gmra.mxu0 %v71
    %v1978 = vpop.f32.mrf.mxu0
    %v1979 = vadd.f32 %v1956, %v1978
    %1980 = vmatmul.f32.gmra.mxu0 %v77
    %v1981 = vpop.f32.mrf.mxu0
    %v1982 = vadd.f32 %v1959, %v1981
    %1983 = vdwg.mxu0
    %1984 = vmatpush.msra.mxu0 %v1346
    %1985 = vmatpush.msra.mxu0 %v1330
    %1986 = vmatpush.msra.mxu0 %v1314
    %1987 = vmatpush.msra.mxu0 %v1298
    %1988 = vmatpush.msra.mxu0 %v1282
    %1989 = vmatpush.msra.mxu0 %v1266
    %1990 = vmatpush.msra.mxu0 %v1250
    %1991 = vmatpush.msra.mxu0 %v1234
    %1992 = vmatpush.msra.mxu0 %v1218
    %1993 = vmatpush.msra.mxu0 %v1202
    %1994 = vmatpush.msra.mxu0 %v1186
    %1995 = vmatpush.msra.mxu0 %v1170
    %1996 = vmatpush.msra.mxu0 %v1154
    %1997 = vmatpush.msra.mxu0 %v1138
    %1998 = vmatpush.msra.mxu0 %v1122
    %1999 = vmatpush.msra.mxu0 %v1106
    %2000 = vmatmul.f32.gmra.mxu0 %v72
    %v2001 = vpop.f32.mrf.mxu0
    %v2002 = vadd.f32 %v1979, %v2001
    %2003 = vmatmul.f32.gmra.mxu0 %v78
    %v2004 = vpop.f32.mrf.mxu0
    %v2005 = vadd.f32 %v1982, %v2004
    %2006 = vdwg.mxu0
    %2007 = vmatpush.msra.mxu0 %v1602
    %2008 = vmatpush.msra.mxu0 %v1586
    %2009 = vmatpush.msra.mxu0 %v1570
    %2010 = vmatpush.msra.mxu0 %v1554
    %2011 = vmatpush.msra.mxu0 %v1538
    %2012 = vmatpush.msra.mxu0 %v1522
    %2013 = vmatpush.msra.mxu0 %v1506
    %2014 = vmatpush.msra.mxu0 %v1490
    %2015 = vmatpush.msra.mxu0 %v1474
    %2016 = vmatpush.msra.mxu0 %v1458
    %2017 = vmatpush.msra.mxu0 %v1442
    %2018 = vmatpush.msra.mxu0 %v1426
    %2019 = vmatpush.msra.mxu0 %v1410
    %2020 = vmatpush.msra.mxu0 %v1394
    %2021 = vmatpush.msra.mxu0 %v1378
    %2022 = vmatpush.msra.mxu0 %v1362
    %2023 = vmatmul.f32.gmra.mxu0 %v73
    %v2024 = vpop.f32.mrf.mxu0
    %v2025 = vadd.f32 %v2002, %v2024
    %2026 = vmatmul.f32.gmra.mxu0 %v79
    %v2027 = vpop.f32.mrf.mxu0
    %v2028 = vadd.f32 %v2005, %v2027
    %2029 = vdwg.mxu0
    %2030 = vmatpush.msra.mxu0 %v323
    %2031 = vmatpush.msra.mxu0 %v307
    %2032 = vmatpush.msra.mxu0 %v291
    %2033 = vmatpush.msra.mxu0 %v275
    %2034 = vmatpush.msra.mxu0 %v259
    %2035 = vmatpush.msra.mxu0 %v243
    %2036 = vmatpush.msra.mxu0 %v227
    %2037 = vmatpush.msra.mxu0 %v211
    %2038 = vmatpush.msra.mxu0 %v195
    %2039 = vmatpush.msra.mxu0 %v179
    %2040 = vmatpush.msra.mxu0 %v163
    %2041 = vmatpush.msra.mxu0 %v147
    %2042 = vmatpush.msra.mxu0 %v131
    %2043 = vmatpush.msra.mxu0 %v115
    %2044 = vmatpush.msra.mxu0 %v99
    %2045 = vmatpush.msra.mxu0 %v83
    %2046 = vmatmul.f32.gmra.mxu0 %v68
    %v2047 = vpop.f32.mrf.mxu0
    %v2048 = vadd.f32 0.0, %v2047
    %2049 = vmatmul.f32.gmra.mxu0 %v74
    %v2050 = vpop.f32.mrf.mxu0
    %v2051 = vadd.f32 0.0, %v2050
    %2052 = vdwg.mxu0
    %2053 = vmatpush.msra.mxu0 %v579
    %2054 = vmatpush.msra.mxu0 %v563
    %2055 = vmatpush.msra.mxu0 %v547
    %2056 = vmatpush.msra.mxu0 %v531
    %2057 = vmatpush.msra.mxu0 %v515
    %2058 = vmatpush.msra.mxu0 %v499
    %2059 = vmatpush.msra.mxu0 %v483
    %2060 = vmatpush.msra.mxu0 %v467
    %2061 = vmatpush.msra.mxu0 %v451
    %2062 = vmatpush.msra.mxu0 %v435
    %2063 = vmatpush.msra.mxu0 %v419
    %2064 = vmatpush.msra.mxu0 %v403
    %2065 = vmatpush.msra.mxu0 %v387
    %2066 = vmatpush.msra.mxu0 %v371
    %2067 = vmatpush.msra.mxu0 %v355
    %2068 = vmatpush.msra.mxu0 %v339
    %2069 = vmatmul.f32.gmra.mxu0 %v69
    %v2070 = vpop.f32.mrf.mxu0
    %v2071 = vadd.f32 %v2048, %v2070
    %2072 = vmatmul.f32.gmra.mxu0 %v75
    %v2073 = vpop.f32.mrf.mxu0
    %v2074 = vadd.f32 %v2051, %v2073
    %2075 = vdwg.mxu0
    %2076 = vmatpush.msra.mxu0 %v835
    %2077 = vmatpush.msra.mxu0 %v819
    %2078 = vmatpush.msra.mxu0 %v803
    %2079 = vmatpush.msra.mxu0 %v787
    %2080 = vmatpush.msra.mxu0 %v771
    %2081 = vmatpush.msra.mxu0 %v755
    %2082 = vmatpush.msra.mxu0 %v739
    %2083 = vmatpush.msra.mxu0 %v723
    %2084 = vmatpush.msra.mxu0 %v707
    %2085 = vmatpush.msra.mxu0 %v691
    %2086 = vmatpush.msra.mxu0 %v675
    %2087 = vmatpush.msra.mxu0 %v659
    %2088 = vmatpush.msra.mxu0 %v643
    %2089 = vmatpush.msra.mxu0 %v627
    %2090 = vmatpush.msra.mxu0 %v611
    %2091 = vmatpush.msra.mxu0 %v595
    %2092 = vmatmul.f32.gmra.mxu0 %v70
    %v2093 = vpop.f32.mrf.mxu0
    %v2094 = vadd.f32 %v2071, %v2093
    %2095 = vmatmul.f32.gmra.mxu0 %v76
    %v2096 = vpop.f32.mrf.mxu0
    %v2097 = vadd.f32 %v2074, %v2096
    %2098 = vdwg.mxu0
    %2099 = vmatpush.msra.mxu0 %v1091
    %2100 = vmatpush.msra.mxu0 %v1075
    %2101 = vmatpush.msra.mxu0 %v1059
    %2102 = vmatpush.msra.mxu0 %v1043
    %2103 = vmatpush.msra.mxu0 %v1027
    %2104 = vmatpush.msra.mxu0 %v1011
    %2105 = vmatpush.msra.mxu0 %v995
    %2106 = vmatpush.msra.mxu0 %v979
    %2107 = vmatpush.msra.mxu0 %v963
    %2108 = vmatpush.msra.mxu0 %v947
    %2109 = vmatpush.msra.mxu0 %v931
    %2110 = vmatpush.msra.mxu0 %v915
    %2111 = vmatpush.msra.mxu0 %v899
    %2112 = vmatpush.msra.mxu0 %v883
    %2113 = vmatpush.msra.mxu0 %v867
    %2114 = vmatpush.msra.mxu0 %v851
    %2115 = vmatmul.f32.gmra.mxu0 %v71
    %v2116 = vpop.f32.mrf.mxu0
    %v2117 = vadd.f32 %v2094, %v2116
    %2118 = vmatmul.f32.gmra.mxu0 %v77
    %v2119 = vpop.f32.mrf.mxu0
    %v2120 = vadd.f32 %v2097, %v2119
    %2121 = vdwg.mxu0
    %2122 = vmatpush.msra.mxu0 %v1347
    %2123 = vmatpush.msra.mxu0 %v1331
    %2124 = vmatpush.msra.mxu0 %v1315
    %2125 = vmatpush.msra.mxu0 %v1299
    %2126 = vmatpush.msra.mxu0 %v1283
    %2127 = vmatpush.msra.mxu0 %v1267
    %2128 = vmatpush.msra.mxu0 %v1251
    %2129 = vmatpush.msra.mxu0 %v1235
    %2130 = vmatpush.msra.mxu0 %v1219
    %2131 = vmatpush.msra.mxu0 %v1203
    %2132 = vmatpush.msra.mxu0 %v1187
    %2133 = vmatpush.msra.mxu0 %v1171
    %2134 = vmatpush.msra.mxu0 %v1155
    %2135 = vmatpush.msra.mxu0 %v1139
    %2136 = vmatpush.msra.mxu0 %v1123
    %2137 = vmatpush.msra.mxu0 %v1107
    %2138 = vmatmul.f32.gmra.mxu0 %v72
    %v2139 = vpop.f32.mrf.mxu0
    %v2140 = vadd.f32 %v2117, %v2139
    %2141 = vmatmul.f32.gmra.mxu0 %v78
    %v2142 = vpop.f32.mrf.mxu0
    %v2143 = vadd.f32 %v2120, %v2142
    %2144 = vdwg.mxu0
    %2145 = vmatpush.msra.mxu0 %v1603
    %2146 = vmatpush.msra.mxu0 %v1587
    %2147 = vmatpush.msra.mxu0 %v1571
    %2148 = vmatpush.msra.mxu0 %v1555
    %2149 = vmatpush.msra.mxu0 %v1539
    %2150 = vmatpush.msra.mxu0 %v1523
    %2151 = vmatpush.msra.mxu0 %v1507
    %2152 = vmatpush.msra.mxu0 %v1491
    %2153 = vmatpush.msra.mxu0 %v1475
    %2154 = vmatpush.msra.mxu0 %v1459
    %2155 = vmatpush.msra.mxu0 %v1443
    %2156 = vmatpush.msra.mxu0 %v1427
    %2157 = vmatpush.msra.mxu0 %v1411
    %2158 = vmatpush.msra.mxu0 %v1395
    %2159 = vmatpush.msra.mxu0 %v1379
    %2160 = vmatpush.msra.mxu0 %v1363
    %2161 = vmatmul.f32.gmra.mxu0 %v73
    %v2162 = vpop.f32.mrf.mxu0
    %v2163 = vadd.f32 %v2140, %v2162
    %2164 = vmatmul.f32.gmra.mxu0 %v79
    %v2165 = vpop.f32.mrf.mxu0
    %v2166 = vadd.f32 %v2143, %v2165
    %2167 = vdwg.mxu0
    %2168 = vmatpush.msra.mxu0 %v324
    %2169 = vmatpush.msra.mxu0 %v308
    %2170 = vmatpush.msra.mxu0 %v292
    %2171 = vmatpush.msra.mxu0 %v276
    %2172 = vmatpush.msra.mxu0 %v260
    %2173 = vmatpush.msra.mxu0 %v244
    %2174 = vmatpush.msra.mxu0 %v228
    %2175 = vmatpush.msra.mxu0 %v212
    %2176 = vmatpush.msra.mxu0 %v196
    %2177 = vmatpush.msra.mxu0 %v180
    %2178 = vmatpush.msra.mxu0 %v164
    %2179 = vmatpush.msra.mxu0 %v148
    %2180 = vmatpush.msra.mxu0 %v132
    %2181 = vmatpush.msra.mxu0 %v116
    %2182 = vmatpush.msra.mxu0 %v100
    %2183 = vmatpush.msra.mxu0 %v84
    %2184 = vmatmul.f32.gmra.mxu0 %v68
    %v2185 = vpop.f32.mrf.mxu0
    %v2186 = vadd.f32 0.0, %v2185
    %2187 = vmatmul.f32.gmra.mxu0 %v74
    %v2188 = vpop.f32.mrf.mxu0
    %v2189 = vadd.f32 0.0, %v2188
    %2190 = vdwg.mxu0
    %2191 = vmatpush.msra.mxu0 %v580
    %2192 = vmatpush.msra.mxu0 %v564
    %2193 = vmatpush.msra.mxu0 %v548
    %2194 = vmatpush.msra.mxu0 %v532
    %2195 = vmatpush.msra.mxu0 %v516
    %2196 = vmatpush.msra.mxu0 %v500
    %2197 = vmatpush.msra.mxu0 %v484
    %2198 = vmatpush.msra.mxu0 %v468
    %2199 = vmatpush.msra.mxu0 %v452
    %2200 = vmatpush.msra.mxu0 %v436
    %2201 = vmatpush.msra.mxu0 %v420
    %2202 = vmatpush.msra.mxu0 %v404
    %2203 = vmatpush.msra.mxu0 %v388
    %2204 = vmatpush.msra.mxu0 %v372
    %2205 = vmatpush.msra.mxu0 %v356
    %2206 = vmatpush.msra.mxu0 %v340
    %2207 = vmatmul.f32.gmra.mxu0 %v69
    %v2208 = vpop.f32.mrf.mxu0
    %v2209 = vadd.f32 %v2186, %v2208
    %2210 = vmatmul.f32.gmra.mxu0 %v75
    %v2211 = vpop.f32.mrf.mxu0
    %v2212 = vadd.f32 %v2189, %v2211
    %2213 = vdwg.mxu0
    %2214 = vmatpush.msra.mxu0 %v836
    %2215 = vmatpush.msra.mxu0 %v820
    %2216 = vmatpush.msra.mxu0 %v804
    %2217 = vmatpush.msra.mxu0 %v788
    %2218 = vmatpush.msra.mxu0 %v772
    %2219 = vmatpush.msra.mxu0 %v756
    %2220 = vmatpush.msra.mxu0 %v740
    %2221 = vmatpush.msra.mxu0 %v724
    %2222 = vmatpush.msra.mxu0 %v708
    %2223 = vmatpush.msra.mxu0 %v692
    %2224 = vmatpush.msra.mxu0 %v676
    %2225 = vmatpush.msra.mxu0 %v660
    %2226 = vmatpush.msra.mxu0 %v644
    %2227 = vmatpush.msra.mxu0 %v628
    %2228 = vmatpush.msra.mxu0 %v612
    %2229 = vmatpush.msra.mxu0 %v596
    %2230 = vmatmul.f32.gmra.mxu0 %v70
    %v2231 = vpop.f32.mrf.mxu0
    %v2232 = vadd.f32 %v2209, %v2231
    %2233 = vmatmul.f32.gmra.mxu0 %v76
    %v2234 = vpop.f32.mrf.mxu0
    %v2235 = vadd.f32 %v2212, %v2234
    %2236 = vdwg.mxu0
    %2237 = vmatpush.msra.mxu0 %v1092
    %2238 = vmatpush.msra.mxu0 %v1076
    %2239 = vmatpush.msra.mxu0 %v1060
    %2240 = vmatpush.msra.mxu0 %v1044
    %2241 = vmatpush.msra.mxu0 %v1028
    %2242 = vmatpush.msra.mxu0 %v1012
    %2243 = vmatpush.msra.mxu0 %v996
    %2244 = vmatpush.msra.mxu0 %v980
    %2245 = vmatpush.msra.mxu0 %v964
    %2246 = vmatpush.msra.mxu0 %v948
    %2247 = vmatpush.msra.mxu0 %v932
    %2248 = vmatpush.msra.mxu0 %v916
    %2249 = vmatpush.msra.mxu0 %v900
    %2250 = vmatpush.msra.mxu0 %v884
    %2251 = vmatpush.msra.mxu0 %v868
    %2252 = vmatpush.msra.mxu0 %v852
    %2253 = vmatmul.f32.gmra.mxu0 %v71
    %v2254 = vpop.f32.mrf.mxu0
    %v2255 = vadd.f32 %v2232, %v2254
    %2256 = vmatmul.f32.gmra.mxu0 %v77
    %v2257 = vpop.f32.mrf.mxu0
    %v2258 = vadd.f32 %v2235, %v2257
    %2259 = vdwg.mxu0
    %2260 = vmatpush.msra.mxu0 %v1348
    %2261 = vmatpush.msra.mxu0 %v1332
    %2262 = vmatpush.msra.mxu0 %v1316
    %2263 = vmatpush.msra.mxu0 %v1300
    %2264 = vmatpush.msra.mxu0 %v1284
    %2265 = vmatpush.msra.mxu0 %v1268
    %2266 = vmatpush.msra.mxu0 %v1252
    %2267 = vmatpush.msra.mxu0 %v1236
    %2268 = vmatpush.msra.mxu0 %v1220
    %2269 = vmatpush.msra.mxu0 %v1204
    %2270 = vmatpush.msra.mxu0 %v1188
    %2271 = vmatpush.msra.mxu0 %v1172
    %2272 = vmatpush.msra.mxu0 %v1156
    %2273 = vmatpush.msra.mxu0 %v1140
    %2274 = vmatpush.msra.mxu0 %v1124
    %2275 = vmatpush.msra.mxu0 %v1108
    %2276 = vmatmul.f32.gmra.mxu0 %v72
    %v2277 = vpop.f32.mrf.mxu0
    %v2278 = vadd.f32 %v2255, %v2277
    %2279 = vmatmul.f32.gmra.mxu0 %v78
    %v2280 = vpop.f32.mrf.mxu0
    %v2281 = vadd.f32 %v2258, %v2280
    %2282 = vdwg.mxu0
    %2283 = vmatpush.msra.mxu0 %v1604
    %2284 = vmatpush.msra.mxu0 %v1588
    %2285 = vmatpush.msra.mxu0 %v1572
    %2286 = vmatpush.msra.mxu0 %v1556
    %2287 = vmatpush.msra.mxu0 %v1540
    %2288 = vmatpush.msra.mxu0 %v1524
    %2289 = vmatpush.msra.mxu0 %v1508
    %2290 = vmatpush.msra.mxu0 %v1492
    %2291 = vmatpush.msra.mxu0 %v1476
    %2292 = vmatpush.msra.mxu0 %v1460
    %2293 = vmatpush.msra.mxu0 %v1444
    %2294 = vmatpush.msra.mxu0 %v1428
    %2295 = vmatpush.msra.mxu0 %v1412
    %2296 = vmatpush.msra.mxu0 %v1396
    %2297 = vmatpush.msra.mxu0 %v1380
    %2298 = vmatpush.msra.mxu0 %v1364
    %2299 = vmatmul.f32.gmra.mxu0 %v73
    %v2300 = vpop.f32.mrf.mxu0
    %v2301 = vadd.f32 %v2278, %v2300
    %2302 = vmatmul.f32.gmra.mxu0 %v79
    %v2303 = vpop.f32.mrf.mxu0
    %v2304 = vadd.f32 %v2281, %v2303
    %2305 = vdwg.mxu0
    %2306 = vmatpush.msra.mxu0 %v325
    %2307 = vmatpush.msra.mxu0 %v309
    %2308 = vmatpush.msra.mxu0 %v293
    %2309 = vmatpush.msra.mxu0 %v277
    %2310 = vmatpush.msra.mxu0 %v261
    %2311 = vmatpush.msra.mxu0 %v245
    %2312 = vmatpush.msra.mxu0 %v229
    %2313 = vmatpush.msra.mxu0 %v213
    %2314 = vmatpush.msra.mxu0 %v197
    %2315 = vmatpush.msra.mxu0 %v181
    %2316 = vmatpush.msra.mxu0 %v165
    %2317 = vmatpush.msra.mxu0 %v149
    %2318 = vmatpush.msra.mxu0 %v133
    %2319 = vmatpush.msra.mxu0 %v117
    %2320 = vmatpush.msra.mxu0 %v101
    %2321 = vmatpush.msra.mxu0 %v85
    %2322 = vmatmul.f32.gmra.mxu0 %v68
    %v2323 = vpop.f32.mrf.mxu0
    %v2324 = vadd.f32 0.0, %v2323
    %2325 = vmatmul.f32.gmra.mxu0 %v74
    %v2326 = vpop.f32.mrf.mxu0
    %v2327 = vadd.f32 0.0, %v2326
    %2328 = vdwg.mxu0
    %2329 = vmatpush.msra.mxu0 %v581
    %2330 = vmatpush.msra.mxu0 %v565
    %2331 = vmatpush.msra.mxu0 %v549
    %2332 = vmatpush.msra.mxu0 %v533
    %2333 = vmatpush.msra.mxu0 %v517
    %2334 = vmatpush.msra.mxu0 %v501
    %2335 = vmatpush.msra.mxu0 %v485
    %2336 = vmatpush.msra.mxu0 %v469
    %2337 = vmatpush.msra.mxu0 %v453
    %2338 = vmatpush.msra.mxu0 %v437
    %2339 = vmatpush.msra.mxu0 %v421
    %2340 = vmatpush.msra.mxu0 %v405
    %2341 = vmatpush.msra.mxu0 %v389
    %2342 = vmatpush.msra.mxu0 %v373
    %2343 = vmatpush.msra.mxu0 %v357
    %2344 = vmatpush.msra.mxu0 %v341
    %2345 = vmatmul.f32.gmra.mxu0 %v69
    %v2346 = vpop.f32.mrf.mxu0
    %v2347 = vadd.f32 %v2324, %v2346
    %2348 = vmatmul.f32.gmra.mxu0 %v75
    %v2349 = vpop.f32.mrf.mxu0
    %v2350 = vadd.f32 %v2327, %v2349
    %2351 = vdwg.mxu0
    %2352 = vmatpush.msra.mxu0 %v837
    %2353 = vmatpush.msra.mxu0 %v821
    %2354 = vmatpush.msra.mxu0 %v805
    %2355 = vmatpush.msra.mxu0 %v789
    %2356 = vmatpush.msra.mxu0 %v773
    %2357 = vmatpush.msra.mxu0 %v757
    %2358 = vmatpush.msra.mxu0 %v741
    %2359 = vmatpush.msra.mxu0 %v725
    %2360 = vmatpush.msra.mxu0 %v709
    %2361 = vmatpush.msra.mxu0 %v693
    %2362 = vmatpush.msra.mxu0 %v677
    %2363 = vmatpush.msra.mxu0 %v661
    %2364 = vmatpush.msra.mxu0 %v645
    %2365 = vmatpush.msra.mxu0 %v629
    %2366 = vmatpush.msra.mxu0 %v613
    %2367 = vmatpush.msra.mxu0 %v597
    %2368 = vmatmul.f32.gmra.mxu0 %v70
    %v2369 = vpop.f32.mrf.mxu0
    %v2370 = vadd.f32 %v2347, %v2369
    %2371 = vmatmul.f32.gmra.mxu0 %v76
    %v2372 = vpop.f32.mrf.mxu0
    %v2373 = vadd.f32 %v2350, %v2372
    %2374 = vdwg.mxu0
    %2375 = vmatpush.msra.mxu0 %v1093
    %2376 = vmatpush.msra.mxu0 %v1077
    %2377 = vmatpush.msra.mxu0 %v1061
    %2378 = vmatpush.msra.mxu0 %v1045
    %2379 = vmatpush.msra.mxu0 %v1029
    %2380 = vmatpush.msra.mxu0 %v1013
    %2381 = vmatpush.msra.mxu0 %v997
    %2382 = vmatpush.msra.mxu0 %v981
    %2383 = vmatpush.msra.mxu0 %v965
    %2384 = vmatpush.msra.mxu0 %v949
    %2385 = vmatpush.msra.mxu0 %v933
    %2386 = vmatpush.msra.mxu0 %v917
    %2387 = vmatpush.msra.mxu0 %v901
    %2388 = vmatpush.msra.mxu0 %v885
    %2389 = vmatpush.msra.mxu0 %v869
    %2390 = vmatpush.msra.mxu0 %v853
    %2391 = vmatmul.f32.gmra.mxu0 %v71
    %v2392 = vpop.f32.mrf.mxu0
    %v2393 = vadd.f32 %v2370, %v2392
    %2394 = vmatmul.f32.gmra.mxu0 %v77
    %v2395 = vpop.f32.mrf.mxu0
    %v2396 = vadd.f32 %v2373, %v2395
    %2397 = vdwg.mxu0
    %2398 = vmatpush.msra.mxu0 %v1349
    %2399 = vmatpush.msra.mxu0 %v1333
    %2400 = vmatpush.msra.mxu0 %v1317
    %2401 = vmatpush.msra.mxu0 %v1301
    %2402 = vmatpush.msra.mxu0 %v1285
    %2403 = vmatpush.msra.mxu0 %v1269
    %2404 = vmatpush.msra.mxu0 %v1253
    %2405 = vmatpush.msra.mxu0 %v1237
    %2406 = vmatpush.msra.mxu0 %v1221
    %2407 = vmatpush.msra.mxu0 %v1205
    %2408 = vmatpush.msra.mxu0 %v1189
    %2409 = vmatpush.msra.mxu0 %v1173
    %2410 = vmatpush.msra.mxu0 %v1157
    %2411 = vmatpush.msra.mxu0 %v1141
    %2412 = vmatpush.msra.mxu0 %v1125
    %2413 = vmatpush.msra.mxu0 %v1109
    %2414 = vmatmul.f32.gmra.mxu0 %v72
    %v2415 = vpop.f32.mrf.mxu0
    %v2416 = vadd.f32 %v2393, %v2415
    %2417 = vmatmul.f32.gmra.mxu0 %v78
    %v2418 = vpop.f32.mrf.mxu0
    %v2419 = vadd.f32 %v2396, %v2418
    %2420 = vdwg.mxu0
    %2421 = vmatpush.msra.mxu0 %v1605
    %2422 = vmatpush.msra.mxu0 %v1589
    %2423 = vmatpush.msra.mxu0 %v1573
    %2424 = vmatpush.msra.mxu0 %v1557
    %2425 = vmatpush.msra.mxu0 %v1541
    %2426 = vmatpush.msra.mxu0 %v1525
    %2427 = vmatpush.msra.mxu0 %v1509
    %2428 = vmatpush.msra.mxu0 %v1493
    %2429 = vmatpush.msra.mxu0 %v1477
    %2430 = vmatpush.msra.mxu0 %v1461
    %2431 = vmatpush.msra.mxu0 %v1445
    %2432 = vmatpush.msra.mxu0 %v1429
    %2433 = vmatpush.msra.mxu0 %v1413
    %2434 = vmatpush.msra.mxu0 %v1397
    %2435 = vmatpush.msra.mxu0 %v1381
    %2436 = vmatpush.msra.mxu0 %v1365
    %2437 = vmatmul.f32.gmra.mxu0 %v73
    %v2438 = vpop.f32.mrf.mxu0
    %v2439 = vadd.f32 %v2416, %v2438
    %2440 = vmatmul.f32.gmra.mxu0 %v79
    %v2441 = vpop.f32.mrf.mxu0
    %v2442 = vadd.f32 %v2419, %v2441
    %2443 = vdwg.mxu0
    %2444 = vmatpush.msra.mxu0 %v326
    %2445 = vmatpush.msra.mxu0 %v310
    %2446 = vmatpush.msra.mxu0 %v294
    %2447 = vmatpush.msra.mxu0 %v278
    %2448 = vmatpush.msra.mxu0 %v262
    %2449 = vmatpush.msra.mxu0 %v246
    %2450 = vmatpush.msra.mxu0 %v230
    %2451 = vmatpush.msra.mxu0 %v214
    %2452 = vmatpush.msra.mxu0 %v198
    %2453 = vmatpush.msra.mxu0 %v182
    %2454 = vmatpush.msra.mxu0 %v166
    %2455 = vmatpush.msra.mxu0 %v150
    %2456 = vmatpush.msra.mxu0 %v134
    %2457 = vmatpush.msra.mxu0 %v118
    %2458 = vmatpush.msra.mxu0 %v102
    %2459 = vmatpush.msra.mxu0 %v86
    %2460 = vmatmul.f32.gmra.mxu0 %v68
    %v2461 = vpop.f32.mrf.mxu0
    %v2462 = vadd.f32 0.0, %v2461
    %2463 = vmatmul.f32.gmra.mxu0 %v74
    %v2464 = vpop.f32.mrf.mxu0
    %v2465 = vadd.f32 0.0, %v2464
    %2466 = vdwg.mxu0
    %2467 = vmatpush.msra.mxu0 %v582
    %2468 = vmatpush.msra.mxu0 %v566
    %2469 = vmatpush.msra.mxu0 %v550
    %2470 = vmatpush.msra.mxu0 %v534
    %2471 = vmatpush.msra.mxu0 %v518
    %2472 = vmatpush.msra.mxu0 %v502
    %2473 = vmatpush.msra.mxu0 %v486
    %2474 = vmatpush.msra.mxu0 %v470
    %2475 = vmatpush.msra.mxu0 %v454
    %2476 = vmatpush.msra.mxu0 %v438
    %2477 = vmatpush.msra.mxu0 %v422
    %2478 = vmatpush.msra.mxu0 %v406
    %2479 = vmatpush.msra.mxu0 %v390
    %2480 = vmatpush.msra.mxu0 %v374
    %2481 = vmatpush.msra.mxu0 %v358
    %2482 = vmatpush.msra.mxu0 %v342
    %2483 = vmatmul.f32.gmra.mxu0 %v69
    %v2484 = vpop.f32.mrf.mxu0
    %v2485 = vadd.f32 %v2462, %v2484
    %2486 = vmatmul.f32.gmra.mxu0 %v75
    %v2487 = vpop.f32.mrf.mxu0
    %v2488 = vadd.f32 %v2465, %v2487
    %2489 = vdwg.mxu0
    %2490 = vmatpush.msra.mxu0 %v838
    %2491 = vmatpush.msra.mxu0 %v822
    %2492 = vmatpush.msra.mxu0 %v806
    %2493 = vmatpush.msra.mxu0 %v790
    %2494 = vmatpush.msra.mxu0 %v774
    %2495 = vmatpush.msra.mxu0 %v758
    %2496 = vmatpush.msra.mxu0 %v742
    %2497 = vmatpush.msra.mxu0 %v726
    %2498 = vmatpush.msra.mxu0 %v710
    %2499 = vmatpush.msra.mxu0 %v694
    %2500 = vmatpush.msra.mxu0 %v678
    %2501 = vmatpush.msra.mxu0 %v662
    %2502 = vmatpush.msra.mxu0 %v646
    %2503 = vmatpush.msra.mxu0 %v630
    %2504 = vmatpush.msra.mxu0 %v614
    %2505 = vmatpush.msra.mxu0 %v598
    %2506 = vmatmul.f32.gmra.mxu0 %v70
    %v2507 = vpop.f32.mrf.mxu0
    %v2508 = vadd.f32 %v2485, %v2507
    %2509 = vmatmul.f32.gmra.mxu0 %v76
    %v2510 = vpop.f32.mrf.mxu0
    %v2511 = vadd.f32 %v2488, %v2510
    %2512 = vdwg.mxu0
    %2513 = vmatpush.msra.mxu0 %v1094
    %2514 = vmatpush.msra.mxu0 %v1078
    %2515 = vmatpush.msra.mxu0 %v1062
    %2516 = vmatpush.msra.mxu0 %v1046
    %2517 = vmatpush.msra.mxu0 %v1030
    %2518 = vmatpush.msra.mxu0 %v1014
    %2519 = vmatpush.msra.mxu0 %v998
    %2520 = vmatpush.msra.mxu0 %v982
    %2521 = vmatpush.msra.mxu0 %v966
    %2522 = vmatpush.msra.mxu0 %v950
    %2523 = vmatpush.msra.mxu0 %v934
    %2524 = vmatpush.msra.mxu0 %v918
    %2525 = vmatpush.msra.mxu0 %v902
    %2526 = vmatpush.msra.mxu0 %v886
    %2527 = vmatpush.msra.mxu0 %v870
    %2528 = vmatpush.msra.mxu0 %v854
    %2529 = vmatmul.f32.gmra.mxu0 %v71
    %v2530 = vpop.f32.mrf.mxu0
    %v2531 = vadd.f32 %v2508, %v2530
    %2532 = vmatmul.f32.gmra.mxu0 %v77
    %v2533 = vpop.f32.mrf.mxu0
    %v2534 = vadd.f32 %v2511, %v2533
    %2535 = vdwg.mxu0
    %2536 = vmatpush.msra.mxu0 %v1350
    %2537 = vmatpush.msra.mxu0 %v1334
    %2538 = vmatpush.msra.mxu0 %v1318
    %2539 = vmatpush.msra.mxu0 %v1302
    %2540 = vmatpush.msra.mxu0 %v1286
    %2541 = vmatpush.msra.mxu0 %v1270
    %2542 = vmatpush.msra.mxu0 %v1254
    %2543 = vmatpush.msra.mxu0 %v1238
    %2544 = vmatpush.msra.mxu0 %v1222
    %2545 = vmatpush.msra.mxu0 %v1206
    %2546 = vmatpush.msra.mxu0 %v1190
    %2547 = vmatpush.msra.mxu0 %v1174
    %2548 = vmatpush.msra.mxu0 %v1158
    %2549 = vmatpush.msra.mxu0 %v1142
    %2550 = vmatpush.msra.mxu0 %v1126
    %2551 = vmatpush.msra.mxu0 %v1110
    %2552 = vmatmul.f32.gmra.mxu0 %v72
    %v2553 = vpop.f32.mrf.mxu0
    %v2554 = vadd.f32 %v2531, %v2553
    %2555 = vmatmul.f32.gmra.mxu0 %v78
    %v2556 = vpop.f32.mrf.mxu0
    %v2557 = vadd.f32 %v2534, %v2556
    %2558 = vdwg.mxu0
    %2559 = vmatpush.msra.mxu0 %v1606
    %2560 = vmatpush.msra.mxu0 %v1590
    %2561 = vmatpush.msra.mxu0 %v1574
    %2562 = vmatpush.msra.mxu0 %v1558
    %2563 = vmatpush.msra.mxu0 %v1542
    %2564 = vmatpush.msra.mxu0 %v1526
    %2565 = vmatpush.msra.mxu0 %v1510
    %2566 = vmatpush.msra.mxu0 %v1494
    %2567 = vmatpush.msra.mxu0 %v1478
    %2568 = vmatpush.msra.mxu0 %v1462
    %2569 = vmatpush.msra.mxu0 %v1446
    %2570 = vmatpush.msra.mxu0 %v1430
    %2571 = vmatpush.msra.mxu0 %v1414
    %2572 = vmatpush.msra.mxu0 %v1398
    %2573 = vmatpush.msra.mxu0 %v1382
    %2574 = vmatpush.msra.mxu0 %v1366
    %2575 = vmatmul.f32.gmra.mxu0 %v73
    %v2576 = vpop.f32.mrf.mxu0
    %v2577 = vadd.f32 %v2554, %v2576
    %2578 = vmatmul.f32.gmra.mxu0 %v79
    %v2579 = vpop.f32.mrf.mxu0
    %v2580 = vadd.f32 %v2557, %v2579
    %2581 = vdwg.mxu0
    %2582 = vmatpush.msra.mxu0 %v327
    %2583 = vmatpush.msra.mxu0 %v311
    %2584 = vmatpush.msra.mxu0 %v295
    %2585 = vmatpush.msra.mxu0 %v279
    %2586 = vmatpush.msra.mxu0 %v263
    %2587 = vmatpush.msra.mxu0 %v247
    %2588 = vmatpush.msra.mxu0 %v231
    %2589 = vmatpush.msra.mxu0 %v215
    %2590 = vmatpush.msra.mxu0 %v199
    %2591 = vmatpush.msra.mxu0 %v183
    %2592 = vmatpush.msra.mxu0 %v167
    %2593 = vmatpush.msra.mxu0 %v151
    %2594 = vmatpush.msra.mxu0 %v135
    %2595 = vmatpush.msra.mxu0 %v119
    %2596 = vmatpush.msra.mxu0 %v103
    %2597 = vmatpush.msra.mxu0 %v87
    %2598 = vmatmul.f32.gmra.mxu0 %v68
    %v2599 = vpop.f32.mrf.mxu0
    %v2600 = vadd.f32 0.0, %v2599
    %2601 = vmatmul.f32.gmra.mxu0 %v74
    %v2602 = vpop.f32.mrf.mxu0
    %v2603 = vadd.f32 0.0, %v2602
    %2604 = vdwg.mxu0
    %2605 = vmatpush.msra.mxu0 %v583
    %2606 = vmatpush.msra.mxu0 %v567
    %2607 = vmatpush.msra.mxu0 %v551
    %2608 = vmatpush.msra.mxu0 %v535
    %2609 = vmatpush.msra.mxu0 %v519
    %2610 = vmatpush.msra.mxu0 %v503
    %2611 = vmatpush.msra.mxu0 %v487
    %2612 = vmatpush.msra.mxu0 %v471
    %2613 = vmatpush.msra.mxu0 %v455
    %2614 = vmatpush.msra.mxu0 %v439
    %2615 = vmatpush.msra.mxu0 %v423
    %2616 = vmatpush.msra.mxu0 %v407
    %2617 = vmatpush.msra.mxu0 %v391
    %2618 = vmatpush.msra.mxu0 %v375
    %2619 = vmatpush.msra.mxu0 %v359
    %2620 = vmatpush.msra.mxu0 %v343
    %2621 = vmatmul.f32.gmra.mxu0 %v69
    %v2622 = vpop.f32.mrf.mxu0
    %v2623 = vadd.f32 %v2600, %v2622
    %2624 = vmatmul.f32.gmra.mxu0 %v75
    %v2625 = vpop.f32.mrf.mxu0
    %v2626 = vadd.f32 %v2603, %v2625
    %2627 = vdwg.mxu0
    %2628 = vmatpush.msra.mxu0 %v839
    %2629 = vmatpush.msra.mxu0 %v823
    %2630 = vmatpush.msra.mxu0 %v807
    %2631 = vmatpush.msra.mxu0 %v791
    %2632 = vmatpush.msra.mxu0 %v775
    %2633 = vmatpush.msra.mxu0 %v759
    %2634 = vmatpush.msra.mxu0 %v743
    %2635 = vmatpush.msra.mxu0 %v727
    %2636 = vmatpush.msra.mxu0 %v711
    %2637 = vmatpush.msra.mxu0 %v695
    %2638 = vmatpush.msra.mxu0 %v679
    %2639 = vmatpush.msra.mxu0 %v663
    %2640 = vmatpush.msra.mxu0 %v647
    %2641 = vmatpush.msra.mxu0 %v631
    %2642 = vmatpush.msra.mxu0 %v615
    %2643 = vmatpush.msra.mxu0 %v599
    %2644 = vmatmul.f32.gmra.mxu0 %v70
    %v2645 = vpop.f32.mrf.mxu0
    %v2646 = vadd.f32 %v2623, %v2645
    %2647 = vmatmul.f32.gmra.mxu0 %v76
    %v2648 = vpop.f32.mrf.mxu0
    %v2649 = vadd.f32 %v2626, %v2648
    %2650 = vdwg.mxu0
    %2651 = vmatpush.msra.mxu0 %v1095
    %2652 = vmatpush.msra.mxu0 %v1079
    %2653 = vmatpush.msra.mxu0 %v1063
    %2654 = vmatpush.msra.mxu0 %v1047
    %2655 = vmatpush.msra.mxu0 %v1031
    %2656 = vmatpush.msra.mxu0 %v1015
    %2657 = vmatpush.msra.mxu0 %v999
    %2658 = vmatpush.msra.mxu0 %v983
    %2659 = vmatpush.msra.mxu0 %v967
    %2660 = vmatpush.msra.mxu0 %v951
    %2661 = vmatpush.msra.mxu0 %v935
    %2662 = vmatpush.msra.mxu0 %v919
    %2663 = vmatpush.msra.mxu0 %v903
    %2664 = vmatpush.msra.mxu0 %v887
    %2665 = vmatpush.msra.mxu0 %v871
    %2666 = vmatpush.msra.mxu0 %v855
    %2667 = vmatmul.f32.gmra.mxu0 %v71
    %v2668 = vpop.f32.mrf.mxu0
    %v2669 = vadd.f32 %v2646, %v2668
    %2670 = vmatmul.f32.gmra.mxu0 %v77
    %v2671 = vpop.f32.mrf.mxu0
    %v2672 = vadd.f32 %v2649, %v2671
    %2673 = vdwg.mxu0
    %2674 = vmatpush.msra.mxu0 %v1351
    %2675 = vmatpush.msra.mxu0 %v1335
    %2676 = vmatpush.msra.mxu0 %v1319
    %2677 = vmatpush.msra.mxu0 %v1303
    %2678 = vmatpush.msra.mxu0 %v1287
    %2679 = vmatpush.msra.mxu0 %v1271
    %2680 = vmatpush.msra.mxu0 %v1255
    %2681 = vmatpush.msra.mxu0 %v1239
    %2682 = vmatpush.msra.mxu0 %v1223
    %2683 = vmatpush.msra.mxu0 %v1207
    %2684 = vmatpush.msra.mxu0 %v1191
    %2685 = vmatpush.msra.mxu0 %v1175
    %2686 = vmatpush.msra.mxu0 %v1159
    %2687 = vmatpush.msra.mxu0 %v1143
    %2688 = vmatpush.msra.mxu0 %v1127
    %2689 = vmatpush.msra.mxu0 %v1111
    %2690 = vmatmul.f32.gmra.mxu0 %v72
    %v2691 = vpop.f32.mrf.mxu0
    %v2692 = vadd.f32 %v2669, %v2691
    %2693 = vmatmul.f32.gmra.mxu0 %v78
    %v2694 = vpop.f32.mrf.mxu0
    %v2695 = vadd.f32 %v2672, %v2694
    %2696 = vdwg.mxu0
    %2697 = vmatpush.msra.mxu0 %v1607
    %2698 = vmatpush.msra.mxu0 %v1591
    %2699 = vmatpush.msra.mxu0 %v1575
    %2700 = vmatpush.msra.mxu0 %v1559
    %2701 = vmatpush.msra.mxu0 %v1543
    %2702 = vmatpush.msra.mxu0 %v1527
    %2703 = vmatpush.msra.mxu0 %v1511
    %2704 = vmatpush.msra.mxu0 %v1495
    %2705 = vmatpush.msra.mxu0 %v1479
    %2706 = vmatpush.msra.mxu0 %v1463
    %2707 = vmatpush.msra.mxu0 %v1447
    %2708 = vmatpush.msra.mxu0 %v1431
    %2709 = vmatpush.msra.mxu0 %v1415
    %2710 = vmatpush.msra.mxu0 %v1399
    %2711 = vmatpush.msra.mxu0 %v1383
    %2712 = vmatpush.msra.mxu0 %v1367
    %2713 = vmatmul.f32.gmra.mxu0 %v73
    %v2714 = vpop.f32.mrf.mxu0
    %v2715 = vadd.f32 %v2692, %v2714
    %2716 = vmatmul.f32.gmra.mxu0 %v79
    %v2717 = vpop.f32.mrf.mxu0
    %v2718 = vadd.f32 %v2695, %v2717
    %2719 = vdwg.mxu0
    %2720 = vmatpush.msra.mxu0 %v328
    %2721 = vmatpush.msra.mxu0 %v312
    %2722 = vmatpush.msra.mxu0 %v296
    %2723 = vmatpush.msra.mxu0 %v280
    %2724 = vmatpush.msra.mxu0 %v264
    %2725 = vmatpush.msra.mxu0 %v248
    %2726 = vmatpush.msra.mxu0 %v232
    %2727 = vmatpush.msra.mxu0 %v216
    %2728 = vmatpush.msra.mxu0 %v200
    %2729 = vmatpush.msra.mxu0 %v184
    %2730 = vmatpush.msra.mxu0 %v168
    %2731 = vmatpush.msra.mxu0 %v152
    %2732 = vmatpush.msra.mxu0 %v136
    %2733 = vmatpush.msra.mxu0 %v120
    %2734 = vmatpush.msra.mxu0 %v104
    %2735 = vmatpush.msra.mxu0 %v88
    %2736 = vmatmul.f32.gmra.mxu0 %v68
    %v2737 = vpop.f32.mrf.mxu0
    %v2738 = vadd.f32 0.0, %v2737
    %2739 = vmatmul.f32.gmra.mxu0 %v74
    %v2740 = vpop.f32.mrf.mxu0
    %v2741 = vadd.f32 0.0, %v2740
    %2742 = vdwg.mxu0
    %2743 = vmatpush.msra.mxu0 %v584
    %2744 = vmatpush.msra.mxu0 %v568
    %2745 = vmatpush.msra.mxu0 %v552
    %2746 = vmatpush.msra.mxu0 %v536
    %2747 = vmatpush.msra.mxu0 %v520
    %2748 = vmatpush.msra.mxu0 %v504
    %2749 = vmatpush.msra.mxu0 %v488
    %2750 = vmatpush.msra.mxu0 %v472
    %2751 = vmatpush.msra.mxu0 %v456
    %2752 = vmatpush.msra.mxu0 %v440
    %2753 = vmatpush.msra.mxu0 %v424
    %2754 = vmatpush.msra.mxu0 %v408
    %2755 = vmatpush.msra.mxu0 %v392
    %2756 = vmatpush.msra.mxu0 %v376
    %2757 = vmatpush.msra.mxu0 %v360
    %2758 = vmatpush.msra.mxu0 %v344
    %2759 = vmatmul.f32.gmra.mxu0 %v69
    %v2760 = vpop.f32.mrf.mxu0
    %v2761 = vadd.f32 %v2738, %v2760
    %2762 = vmatmul.f32.gmra.mxu0 %v75
    %v2763 = vpop.f32.mrf.mxu0
    %v2764 = vadd.f32 %v2741, %v2763
    %2765 = vdwg.mxu0
    %2766 = vmatpush.msra.mxu0 %v840
    %2767 = vmatpush.msra.mxu0 %v824
    %2768 = vmatpush.msra.mxu0 %v808
    %2769 = vmatpush.msra.mxu0 %v792
    %2770 = vmatpush.msra.mxu0 %v776
    %2771 = vmatpush.msra.mxu0 %v760
    %2772 = vmatpush.msra.mxu0 %v744
    %2773 = vmatpush.msra.mxu0 %v728
    %2774 = vmatpush.msra.mxu0 %v712
    %2775 = vmatpush.msra.mxu0 %v696
    %2776 = vmatpush.msra.mxu0 %v680
    %2777 = vmatpush.msra.mxu0 %v664
    %2778 = vmatpush.msra.mxu0 %v648
    %2779 = vmatpush.msra.mxu0 %v632
    %2780 = vmatpush.msra.mxu0 %v616
    %2781 = vmatpush.msra.mxu0 %v600
    %2782 = vmatmul.f32.gmra.mxu0 %v70
    %v2783 = vpop.f32.mrf.mxu0
    %v2784 = vadd.f32 %v2761, %v2783
    %2785 = vmatmul.f32.gmra.mxu0 %v76
    %v2786 = vpop.f32.mrf.mxu0
    %v2787 = vadd.f32 %v2764, %v2786
    %2788 = vdwg.mxu0
    %2789 = vmatpush.msra.mxu0 %v1096
    %2790 = vmatpush.msra.mxu0 %v1080
    %2791 = vmatpush.msra.mxu0 %v1064
    %2792 = vmatpush.msra.mxu0 %v1048
    %2793 = vmatpush.msra.mxu0 %v1032
    %2794 = vmatpush.msra.mxu0 %v1016
    %2795 = vmatpush.msra.mxu0 %v1000
    %2796 = vmatpush.msra.mxu0 %v984
    %2797 = vmatpush.msra.mxu0 %v968
    %2798 = vmatpush.msra.mxu0 %v952
    %2799 = vmatpush.msra.mxu0 %v936
    %2800 = vmatpush.msra.mxu0 %v920
    %2801 = vmatpush.msra.mxu0 %v904
    %2802 = vmatpush.msra.mxu0 %v888
    %2803 = vmatpush.msra.mxu0 %v872
    %2804 = vmatpush.msra.mxu0 %v856
    %2805 = vmatmul.f32.gmra.mxu0 %v71
    %v2806 = vpop.f32.mrf.mxu0
    %v2807 = vadd.f32 %v2784, %v2806
    %2808 = vmatmul.f32.gmra.mxu0 %v77
    %v2809 = vpop.f32.mrf.mxu0
    %v2810 = vadd.f32 %v2787, %v2809
    %2811 = vdwg.mxu0
    %2812 = vmatpush.msra.mxu0 %v1352
    %2813 = vmatpush.msra.mxu0 %v1336
    %2814 = vmatpush.msra.mxu0 %v1320
    %2815 = vmatpush.msra.mxu0 %v1304
    %2816 = vmatpush.msra.mxu0 %v1288
    %2817 = vmatpush.msra.mxu0 %v1272
    %2818 = vmatpush.msra.mxu0 %v1256
    %2819 = vmatpush.msra.mxu0 %v1240
    %2820 = vmatpush.msra.mxu0 %v1224
    %2821 = vmatpush.msra.mxu0 %v1208
    %2822 = vmatpush.msra.mxu0 %v1192
    %2823 = vmatpush.msra.mxu0 %v1176
    %2824 = vmatpush.msra.mxu0 %v1160
    %2825 = vmatpush.msra.mxu0 %v1144
    %2826 = vmatpush.msra.mxu0 %v1128
    %2827 = vmatpush.msra.mxu0 %v1112
    %2828 = vmatmul.f32.gmra.mxu0 %v72
    %v2829 = vpop.f32.mrf.mxu0
    %v2830 = vadd.f32 %v2807, %v2829
    %2831 = vmatmul.f32.gmra.mxu0 %v78
    %v2832 = vpop.f32.mrf.mxu0
    %v2833 = vadd.f32 %v2810, %v2832
    %2834 = vdwg.mxu0
    %2835 = vmatpush.msra.mxu0 %v1608
    %2836 = vmatpush.msra.mxu0 %v1592
    %2837 = vmatpush.msra.mxu0 %v1576
    %2838 = vmatpush.msra.mxu0 %v1560
    %2839 = vmatpush.msra.mxu0 %v1544
    %2840 = vmatpush.msra.mxu0 %v1528
    %2841 = vmatpush.msra.mxu0 %v1512
    %2842 = vmatpush.msra.mxu0 %v1496
    %2843 = vmatpush.msra.mxu0 %v1480
    %2844 = vmatpush.msra.mxu0 %v1464
    %2845 = vmatpush.msra.mxu0 %v1448
    %2846 = vmatpush.msra.mxu0 %v1432
    %2847 = vmatpush.msra.mxu0 %v1416
    %2848 = vmatpush.msra.mxu0 %v1400
    %2849 = vmatpush.msra.mxu0 %v1384
    %2850 = vmatpush.msra.mxu0 %v1368
    %2851 = vmatmul.f32.gmra.mxu0 %v73
    %v2852 = vpop.f32.mrf.mxu0
    %v2853 = vadd.f32 %v2830, %v2852
    %2854 = vmatmul.f32.gmra.mxu0 %v79
    %v2855 = vpop.f32.mrf.mxu0
    %v2856 = vadd.f32 %v2833, %v2855
    %2857 = vdwg.mxu0
    %2858 = vmatpush.msra.mxu0 %v329
    %2859 = vmatpush.msra.mxu0 %v313
    %2860 = vmatpush.msra.mxu0 %v297
    %2861 = vmatpush.msra.mxu0 %v281
    %2862 = vmatpush.msra.mxu0 %v265
    %2863 = vmatpush.msra.mxu0 %v249
    %2864 = vmatpush.msra.mxu0 %v233
    %2865 = vmatpush.msra.mxu0 %v217
    %2866 = vmatpush.msra.mxu0 %v201
    %2867 = vmatpush.msra.mxu0 %v185
    %2868 = vmatpush.msra.mxu0 %v169
    %2869 = vmatpush.msra.mxu0 %v153
    %2870 = vmatpush.msra.mxu0 %v137
    %2871 = vmatpush.msra.mxu0 %v121
    %2872 = vmatpush.msra.mxu0 %v105
    %2873 = vmatpush.msra.mxu0 %v89
    %2874 = vmatmul.f32.gmra.mxu0 %v68
    %v2875 = vpop.f32.mrf.mxu0
    %v2876 = vadd.f32 0.0, %v2875
    %2877 = vmatmul.f32.gmra.mxu0 %v74
    %v2878 = vpop.f32.mrf.mxu0
    %v2879 = vadd.f32 0.0, %v2878
    %2880 = vdwg.mxu0
    %2881 = vmatpush.msra.mxu0 %v585
    %2882 = vmatpush.msra.mxu0 %v569
    %2883 = vmatpush.msra.mxu0 %v553
    %2884 = vmatpush.msra.mxu0 %v537
    %2885 = vmatpush.msra.mxu0 %v521
    %2886 = vmatpush.msra.mxu0 %v505
    %2887 = vmatpush.msra.mxu0 %v489
    %2888 = vmatpush.msra.mxu0 %v473
    %2889 = vmatpush.msra.mxu0 %v457
    %2890 = vmatpush.msra.mxu0 %v441
    %2891 = vmatpush.msra.mxu0 %v425
    %2892 = vmatpush.msra.mxu0 %v409
    %2893 = vmatpush.msra.mxu0 %v393
    %2894 = vmatpush.msra.mxu0 %v377
    %2895 = vmatpush.msra.mxu0 %v361
    %2896 = vmatpush.msra.mxu0 %v345
    %2897 = vmatmul.f32.gmra.mxu0 %v69
    %v2898 = vpop.f32.mrf.mxu0
    %v2899 = vadd.f32 %v2876, %v2898
    %2900 = vmatmul.f32.gmra.mxu0 %v75
    %v2901 = vpop.f32.mrf.mxu0
    %v2902 = vadd.f32 %v2879, %v2901
    %2903 = vdwg.mxu0
    %2904 = vmatpush.msra.mxu0 %v841
    %2905 = vmatpush.msra.mxu0 %v825
    %2906 = vmatpush.msra.mxu0 %v809
    %2907 = vmatpush.msra.mxu0 %v793
    %2908 = vmatpush.msra.mxu0 %v777
    %2909 = vmatpush.msra.mxu0 %v761
    %2910 = vmatpush.msra.mxu0 %v745
    %2911 = vmatpush.msra.mxu0 %v729
    %2912 = vmatpush.msra.mxu0 %v713
    %2913 = vmatpush.msra.mxu0 %v697
    %2914 = vmatpush.msra.mxu0 %v681
    %2915 = vmatpush.msra.mxu0 %v665
    %2916 = vmatpush.msra.mxu0 %v649
    %2917 = vmatpush.msra.mxu0 %v633
    %2918 = vmatpush.msra.mxu0 %v617
    %2919 = vmatpush.msra.mxu0 %v601
    %2920 = vmatmul.f32.gmra.mxu0 %v70
    %v2921 = vpop.f32.mrf.mxu0
    %v2922 = vadd.f32 %v2899, %v2921
    %2923 = vmatmul.f32.gmra.mxu0 %v76
    %v2924 = vpop.f32.mrf.mxu0
    %v2925 = vadd.f32 %v2902, %v2924
    %2926 = vdwg.mxu0
    %2927 = vmatpush.msra.mxu0 %v1097
    %2928 = vmatpush.msra.mxu0 %v1081
    %2929 = vmatpush.msra.mxu0 %v1065
    %2930 = vmatpush.msra.mxu0 %v1049
    %2931 = vmatpush.msra.mxu0 %v1033
    %2932 = vmatpush.msra.mxu0 %v1017
    %2933 = vmatpush.msra.mxu0 %v1001
    %2934 = vmatpush.msra.mxu0 %v985
    %2935 = vmatpush.msra.mxu0 %v969
    %2936 = vmatpush.msra.mxu0 %v953
    %2937 = vmatpush.msra.mxu0 %v937
    %2938 = vmatpush.msra.mxu0 %v921
    %2939 = vmatpush.msra.mxu0 %v905
    %2940 = vmatpush.msra.mxu0 %v889
    %2941 = vmatpush.msra.mxu0 %v873
    %2942 = vmatpush.msra.mxu0 %v857
    %2943 = vmatmul.f32.gmra.mxu0 %v71
    %v2944 = vpop.f32.mrf.mxu0
    %v2945 = vadd.f32 %v2922, %v2944
    %2946 = vmatmul.f32.gmra.mxu0 %v77
    %v2947 = vpop.f32.mrf.mxu0
    %v2948 = vadd.f32 %v2925, %v2947
    %2949 = vdwg.mxu0
    %2950 = vmatpush.msra.mxu0 %v1353
    %2951 = vmatpush.msra.mxu0 %v1337
    %2952 = vmatpush.msra.mxu0 %v1321
    %2953 = vmatpush.msra.mxu0 %v1305
    %2954 = vmatpush.msra.mxu0 %v1289
    %2955 = vmatpush.msra.mxu0 %v1273
    %2956 = vmatpush.msra.mxu0 %v1257
    %2957 = vmatpush.msra.mxu0 %v1241
    %2958 = vmatpush.msra.mxu0 %v1225
    %2959 = vmatpush.msra.mxu0 %v1209
    %2960 = vmatpush.msra.mxu0 %v1193
    %2961 = vmatpush.msra.mxu0 %v1177
    %2962 = vmatpush.msra.mxu0 %v1161
    %2963 = vmatpush.msra.mxu0 %v1145
    %2964 = vmatpush.msra.mxu0 %v1129
    %2965 = vmatpush.msra.mxu0 %v1113
    %2966 = vmatmul.f32.gmra.mxu0 %v72
    %v2967 = vpop.f32.mrf.mxu0
    %v2968 = vadd.f32 %v2945, %v2967
    %2969 = vmatmul.f32.gmra.mxu0 %v78
    %v2970 = vpop.f32.mrf.mxu0
    %v2971 = vadd.f32 %v2948, %v2970
    %2972 = vdwg.mxu0
    %2973 = vmatpush.msra.mxu0 %v1609
    %2974 = vmatpush.msra.mxu0 %v1593
    %2975 = vmatpush.msra.mxu0 %v1577
    %2976 = vmatpush.msra.mxu0 %v1561
    %2977 = vmatpush.msra.mxu0 %v1545
    %2978 = vmatpush.msra.mxu0 %v1529
    %2979 = vmatpush.msra.mxu0 %v1513
    %2980 = vmatpush.msra.mxu0 %v1497
    %2981 = vmatpush.msra.mxu0 %v1481
    %2982 = vmatpush.msra.mxu0 %v1465
    %2983 = vmatpush.msra.mxu0 %v1449
    %2984 = vmatpush.msra.mxu0 %v1433
    %2985 = vmatpush.msra.mxu0 %v1417
    %2986 = vmatpush.msra.mxu0 %v1401
    %2987 = vmatpush.msra.mxu0 %v1385
    %2988 = vmatpush.msra.mxu0 %v1369
    %2989 = vmatmul.f32.gmra.mxu0 %v73
    %v2990 = vpop.f32.mrf.mxu0
    %v2991 = vadd.f32 %v2968, %v2990
    %2992 = vmatmul.f32.gmra.mxu0 %v79
    %v2993 = vpop.f32.mrf.mxu0
    %v2994 = vadd.f32 %v2971, %v2993
    %2995 = vdwg.mxu0
    %2996 = vmatpush.msra.mxu0 %v330
    %2997 = vmatpush.msra.mxu0 %v314
    %2998 = vmatpush.msra.mxu0 %v298
    %2999 = vmatpush.msra.mxu0 %v282
    %3000 = vmatpush.msra.mxu0 %v266
    %3001 = vmatpush.msra.mxu0 %v250
    %3002 = vmatpush.msra.mxu0 %v234
    %3003 = vmatpush.msra.mxu0 %v218
    %3004 = vmatpush.msra.mxu0 %v202
    %3005 = vmatpush.msra.mxu0 %v186
    %3006 = vmatpush.msra.mxu0 %v170
    %3007 = vmatpush.msra.mxu0 %v154
    %3008 = vmatpush.msra.mxu0 %v138
    %3009 = vmatpush.msra.mxu0 %v122
    %3010 = vmatpush.msra.mxu0 %v106
    %3011 = vmatpush.msra.mxu0 %v90
    %3012 = vmatmul.f32.gmra.mxu0 %v68
    %v3013 = vpop.f32.mrf.mxu0
    %v3014 = vadd.f32 0.0, %v3013
    %3015 = vmatmul.f32.gmra.mxu0 %v74
    %v3016 = vpop.f32.mrf.mxu0
    %v3017 = vadd.f32 0.0, %v3016
    %3018 = vdwg.mxu0
    %3019 = vmatpush.msra.mxu0 %v586
    %3020 = vmatpush.msra.mxu0 %v570
    %3021 = vmatpush.msra.mxu0 %v554
    %3022 = vmatpush.msra.mxu0 %v538
    %3023 = vmatpush.msra.mxu0 %v522
    %3024 = vmatpush.msra.mxu0 %v506
    %3025 = vmatpush.msra.mxu0 %v490
    %3026 = vmatpush.msra.mxu0 %v474
    %3027 = vmatpush.msra.mxu0 %v458
    %3028 = vmatpush.msra.mxu0 %v442
    %3029 = vmatpush.msra.mxu0 %v426
    %3030 = vmatpush.msra.mxu0 %v410
    %3031 = vmatpush.msra.mxu0 %v394
    %3032 = vmatpush.msra.mxu0 %v378
    %3033 = vmatpush.msra.mxu0 %v362
    %3034 = vmatpush.msra.mxu0 %v346
    %3035 = vmatmul.f32.gmra.mxu0 %v69
    %v3036 = vpop.f32.mrf.mxu0
    %v3037 = vadd.f32 %v3014, %v3036
    %3038 = vmatmul.f32.gmra.mxu0 %v75
    %v3039 = vpop.f32.mrf.mxu0
    %v3040 = vadd.f32 %v3017, %v3039
    %3041 = vdwg.mxu0
    %3042 = vmatpush.msra.mxu0 %v842
    %3043 = vmatpush.msra.mxu0 %v826
    %3044 = vmatpush.msra.mxu0 %v810
    %3045 = vmatpush.msra.mxu0 %v794
    %3046 = vmatpush.msra.mxu0 %v778
    %3047 = vmatpush.msra.mxu0 %v762
    %3048 = vmatpush.msra.mxu0 %v746
    %3049 = vmatpush.msra.mxu0 %v730
    %3050 = vmatpush.msra.mxu0 %v714
    %3051 = vmatpush.msra.mxu0 %v698
    %3052 = vmatpush.msra.mxu0 %v682
    %3053 = vmatpush.msra.mxu0 %v666
    %3054 = vmatpush.msra.mxu0 %v650
    %3055 = vmatpush.msra.mxu0 %v634
    %3056 = vmatpush.msra.mxu0 %v618
    %3057 = vmatpush.msra.mxu0 %v602
    %3058 = vmatmul.f32.gmra.mxu0 %v70
    %v3059 = vpop.f32.mrf.mxu0
    %v3060 = vadd.f32 %v3037, %v3059
    %3061 = vmatmul.f32.gmra.mxu0 %v76
    %v3062 = vpop.f32.mrf.mxu0
    %v3063 = vadd.f32 %v3040, %v3062
    %3064 = vdwg.mxu0
    %3065 = vmatpush.msra.mxu0 %v1098
    %3066 = vmatpush.msra.mxu0 %v1082
    %3067 = vmatpush.msra.mxu0 %v1066
    %3068 = vmatpush.msra.mxu0 %v1050
    %3069 = vmatpush.msra.mxu0 %v1034
    %3070 = vmatpush.msra.mxu0 %v1018
    %3071 = vmatpush.msra.mxu0 %v1002
    %3072 = vmatpush.msra.mxu0 %v986
    %3073 = vmatpush.msra.mxu0 %v970
    %3074 = vmatpush.msra.mxu0 %v954
    %3075 = vmatpush.msra.mxu0 %v938
    %3076 = vmatpush.msra.mxu0 %v922
    %3077 = vmatpush.msra.mxu0 %v906
    %3078 = vmatpush.msra.mxu0 %v890
    %3079 = vmatpush.msra.mxu0 %v874
    %3080 = vmatpush.msra.mxu0 %v858
    %3081 = vmatmul.f32.gmra.mxu0 %v71
    %v3082 = vpop.f32.mrf.mxu0
    %v3083 = vadd.f32 %v3060, %v3082
    %3084 = vmatmul.f32.gmra.mxu0 %v77
    %v3085 = vpop.f32.mrf.mxu0
    %v3086 = vadd.f32 %v3063, %v3085
    %3087 = vdwg.mxu0
    %3088 = vmatpush.msra.mxu0 %v1354
    %3089 = vmatpush.msra.mxu0 %v1338
    %3090 = vmatpush.msra.mxu0 %v1322
    %3091 = vmatpush.msra.mxu0 %v1306
    %3092 = vmatpush.msra.mxu0 %v1290
    %3093 = vmatpush.msra.mxu0 %v1274
    %3094 = vmatpush.msra.mxu0 %v1258
    %3095 = vmatpush.msra.mxu0 %v1242
    %3096 = vmatpush.msra.mxu0 %v1226
    %3097 = vmatpush.msra.mxu0 %v1210
    %3098 = vmatpush.msra.mxu0 %v1194
    %3099 = vmatpush.msra.mxu0 %v1178
    %3100 = vmatpush.msra.mxu0 %v1162
    %3101 = vmatpush.msra.mxu0 %v1146
    %3102 = vmatpush.msra.mxu0 %v1130
    %3103 = vmatpush.msra.mxu0 %v1114
    %3104 = vmatmul.f32.gmra.mxu0 %v72
    %v3105 = vpop.f32.mrf.mxu0
    %v3106 = vadd.f32 %v3083, %v3105
    %3107 = vmatmul.f32.gmra.mxu0 %v78
    %v3108 = vpop.f32.mrf.mxu0
    %v3109 = vadd.f32 %v3086, %v3108
    %3110 = vdwg.mxu0
    %3111 = vmatpush.msra.mxu0 %v1610
    %3112 = vmatpush.msra.mxu0 %v1594
    %3113 = vmatpush.msra.mxu0 %v1578
    %3114 = vmatpush.msra.mxu0 %v1562
    %3115 = vmatpush.msra.mxu0 %v1546
    %3116 = vmatpush.msra.mxu0 %v1530
    %3117 = vmatpush.msra.mxu0 %v1514
    %3118 = vmatpush.msra.mxu0 %v1498
    %3119 = vmatpush.msra.mxu0 %v1482
    %3120 = vmatpush.msra.mxu0 %v1466
    %3121 = vmatpush.msra.mxu0 %v1450
    %3122 = vmatpush.msra.mxu0 %v1434
    %3123 = vmatpush.msra.mxu0 %v1418
    %3124 = vmatpush.msra.mxu0 %v1402
    %3125 = vmatpush.msra.mxu0 %v1386
    %3126 = vmatpush.msra.mxu0 %v1370
    %3127 = vmatmul.f32.gmra.mxu0 %v73
    %v3128 = vpop.f32.mrf.mxu0
    %v3129 = vadd.f32 %v3106, %v3128
    %3130 = vmatmul.f32.gmra.mxu0 %v79
    %v3131 = vpop.f32.mrf.mxu0
    %v3132 = vadd.f32 %v3109, %v3131
    %3133 = vdwg.mxu0
    %3134 = vmatpush.msra.mxu0 %v331
    %3135 = vmatpush.msra.mxu0 %v315
    %3136 = vmatpush.msra.mxu0 %v299
    %3137 = vmatpush.msra.mxu0 %v283
    %3138 = vmatpush.msra.mxu0 %v267
    %3139 = vmatpush.msra.mxu0 %v251
    %3140 = vmatpush.msra.mxu0 %v235
    %3141 = vmatpush.msra.mxu0 %v219
    %3142 = vmatpush.msra.mxu0 %v203
    %3143 = vmatpush.msra.mxu0 %v187
    %3144 = vmatpush.msra.mxu0 %v171
    %3145 = vmatpush.msra.mxu0 %v155
    %3146 = vmatpush.msra.mxu0 %v139
    %3147 = vmatpush.msra.mxu0 %v123
    %3148 = vmatpush.msra.mxu0 %v107
    %3149 = vmatpush.msra.mxu0 %v91
    %3150 = vmatmul.f32.gmra.mxu0 %v68
    %v3151 = vpop.f32.mrf.mxu0
    %v3152 = vadd.f32 0.0, %v3151
    %3153 = vmatmul.f32.gmra.mxu0 %v74
    %v3154 = vpop.f32.mrf.mxu0
    %v3155 = vadd.f32 0.0, %v3154
    %3156 = vdwg.mxu0
    %3157 = vmatpush.msra.mxu0 %v587
    %3158 = vmatpush.msra.mxu0 %v571
    %3159 = vmatpush.msra.mxu0 %v555
    %3160 = vmatpush.msra.mxu0 %v539
    %3161 = vmatpush.msra.mxu0 %v523
    %3162 = vmatpush.msra.mxu0 %v507
    %3163 = vmatpush.msra.mxu0 %v491
    %3164 = vmatpush.msra.mxu0 %v475
    %3165 = vmatpush.msra.mxu0 %v459
    %3166 = vmatpush.msra.mxu0 %v443
    %3167 = vmatpush.msra.mxu0 %v427
    %3168 = vmatpush.msra.mxu0 %v411
    %3169 = vmatpush.msra.mxu0 %v395
    %3170 = vmatpush.msra.mxu0 %v379
    %3171 = vmatpush.msra.mxu0 %v363
    %3172 = vmatpush.msra.mxu0 %v347
    %3173 = vmatmul.f32.gmra.mxu0 %v69
    %v3174 = vpop.f32.mrf.mxu0
    %v3175 = vadd.f32 %v3152, %v3174
    %3176 = vmatmul.f32.gmra.mxu0 %v75
    %v3177 = vpop.f32.mrf.mxu0
    %v3178 = vadd.f32 %v3155, %v3177
    %3179 = vdwg.mxu0
    %3180 = vmatpush.msra.mxu0 %v843
    %3181 = vmatpush.msra.mxu0 %v827
    %3182 = vmatpush.msra.mxu0 %v811
    %3183 = vmatpush.msra.mxu0 %v795
    %3184 = vmatpush.msra.mxu0 %v779
    %3185 = vmatpush.msra.mxu0 %v763
    %3186 = vmatpush.msra.mxu0 %v747
    %3187 = vmatpush.msra.mxu0 %v731
    %3188 = vmatpush.msra.mxu0 %v715
    %3189 = vmatpush.msra.mxu0 %v699
    %3190 = vmatpush.msra.mxu0 %v683
    %3191 = vmatpush.msra.mxu0 %v667
    %3192 = vmatpush.msra.mxu0 %v651
    %3193 = vmatpush.msra.mxu0 %v635
    %3194 = vmatpush.msra.mxu0 %v619
    %3195 = vmatpush.msra.mxu0 %v603
    %3196 = vmatmul.f32.gmra.mxu0 %v70
    %v3197 = vpop.f32.mrf.mxu0
    %v3198 = vadd.f32 %v3175, %v3197
    %3199 = vmatmul.f32.gmra.mxu0 %v76
    %v3200 = vpop.f32.mrf.mxu0
    %v3201 = vadd.f32 %v3178, %v3200
    %3202 = vdwg.mxu0
    %3203 = vmatpush.msra.mxu0 %v1099
    %3204 = vmatpush.msra.mxu0 %v1083
    %3205 = vmatpush.msra.mxu0 %v1067
    %3206 = vmatpush.msra.mxu0 %v1051
    %3207 = vmatpush.msra.mxu0 %v1035
    %3208 = vmatpush.msra.mxu0 %v1019
    %3209 = vmatpush.msra.mxu0 %v1003
    %3210 = vmatpush.msra.mxu0 %v987
    %3211 = vmatpush.msra.mxu0 %v971
    %3212 = vmatpush.msra.mxu0 %v955
    %3213 = vmatpush.msra.mxu0 %v939
    %3214 = vmatpush.msra.mxu0 %v923
    %3215 = vmatpush.msra.mxu0 %v907
    %3216 = vmatpush.msra.mxu0 %v891
    %3217 = vmatpush.msra.mxu0 %v875
    %3218 = vmatpush.msra.mxu0 %v859
    %3219 = vmatmul.f32.gmra.mxu0 %v71
    %v3220 = vpop.f32.mrf.mxu0
    %v3221 = vadd.f32 %v3198, %v3220
    %3222 = vmatmul.f32.gmra.mxu0 %v77
    %v3223 = vpop.f32.mrf.mxu0
    %v3224 = vadd.f32 %v3201, %v3223
    %3225 = vdwg.mxu0
    %3226 = vmatpush.msra.mxu0 %v1355
    %3227 = vmatpush.msra.mxu0 %v1339
    %3228 = vmatpush.msra.mxu0 %v1323
    %3229 = vmatpush.msra.mxu0 %v1307
    %3230 = vmatpush.msra.mxu0 %v1291
    %3231 = vmatpush.msra.mxu0 %v1275
    %3232 = vmatpush.msra.mxu0 %v1259
    %3233 = vmatpush.msra.mxu0 %v1243
    %3234 = vmatpush.msra.mxu0 %v1227
    %3235 = vmatpush.msra.mxu0 %v1211
    %3236 = vmatpush.msra.mxu0 %v1195
    %3237 = vmatpush.msra.mxu0 %v1179
    %3238 = vmatpush.msra.mxu0 %v1163
    %3239 = vmatpush.msra.mxu0 %v1147
    %3240 = vmatpush.msra.mxu0 %v1131
    %3241 = vmatpush.msra.mxu0 %v1115
    %3242 = vmatmul.f32.gmra.mxu0 %v72
    %v3243 = vpop.f32.mrf.mxu0
    %v3244 = vadd.f32 %v3221, %v3243
    %3245 = vmatmul.f32.gmra.mxu0 %v78
    %v3246 = vpop.f32.mrf.mxu0
    %v3247 = vadd.f32 %v3224, %v3246
    %3248 = vdwg.mxu0
    %3249 = vmatpush.msra.mxu0 %v1611
    %3250 = vmatpush.msra.mxu0 %v1595
    %3251 = vmatpush.msra.mxu0 %v1579
    %3252 = vmatpush.msra.mxu0 %v1563
    %3253 = vmatpush.msra.mxu0 %v1547
    %3254 = vmatpush.msra.mxu0 %v1531
    %3255 = vmatpush.msra.mxu0 %v1515
    %3256 = vmatpush.msra.mxu0 %v1499
    %3257 = vmatpush.msra.mxu0 %v1483
    %3258 = vmatpush.msra.mxu0 %v1467
    %3259 = vmatpush.msra.mxu0 %v1451
    %3260 = vmatpush.msra.mxu0 %v1435
    %3261 = vmatpush.msra.mxu0 %v1419
    %3262 = vmatpush.msra.mxu0 %v1403
    %3263 = vmatpush.msra.mxu0 %v1387
    %3264 = vmatpush.msra.mxu0 %v1371
    %3265 = vmatmul.f32.gmra.mxu0 %v73
    %v3266 = vpop.f32.mrf.mxu0
    %v3267 = vadd.f32 %v3244, %v3266
    %3268 = vmatmul.f32.gmra.mxu0 %v79
    %v3269 = vpop.f32.mrf.mxu0
    %v3270 = vadd.f32 %v3247, %v3269
    %3271 = vdwg.mxu0
    %3272 = vmatpush.msra.mxu0 %v332
    %3273 = vmatpush.msra.mxu0 %v316
    %3274 = vmatpush.msra.mxu0 %v300
    %3275 = vmatpush.msra.mxu0 %v284
    %3276 = vmatpush.msra.mxu0 %v268
    %3277 = vmatpush.msra.mxu0 %v252
    %3278 = vmatpush.msra.mxu0 %v236
    %3279 = vmatpush.msra.mxu0 %v220
    %3280 = vmatpush.msra.mxu0 %v204
    %3281 = vmatpush.msra.mxu0 %v188
    %3282 = vmatpush.msra.mxu0 %v172
    %3283 = vmatpush.msra.mxu0 %v156
    %3284 = vmatpush.msra.mxu0 %v140
    %3285 = vmatpush.msra.mxu0 %v124
    %3286 = vmatpush.msra.mxu0 %v108
    %3287 = vmatpush.msra.mxu0 %v92
    %3288 = vmatmul.f32.gmra.mxu0 %v68
    %v3289 = vpop.f32.mrf.mxu0
    %v3290 = vadd.f32 0.0, %v3289
    %3291 = vmatmul.f32.gmra.mxu0 %v74
    %v3292 = vpop.f32.mrf.mxu0
    %v3293 = vadd.f32 0.0, %v3292
    %3294 = vdwg.mxu0
    %3295 = vmatpush.msra.mxu0 %v588
    %3296 = vmatpush.msra.mxu0 %v572
    %3297 = vmatpush.msra.mxu0 %v556
    %3298 = vmatpush.msra.mxu0 %v540
    %3299 = vmatpush.msra.mxu0 %v524
    %3300 = vmatpush.msra.mxu0 %v508
    %3301 = vmatpush.msra.mxu0 %v492
    %3302 = vmatpush.msra.mxu0 %v476
    %3303 = vmatpush.msra.mxu0 %v460
    %3304 = vmatpush.msra.mxu0 %v444
    %3305 = vmatpush.msra.mxu0 %v428
    %3306 = vmatpush.msra.mxu0 %v412
    %3307 = vmatpush.msra.mxu0 %v396
    %3308 = vmatpush.msra.mxu0 %v380
    %3309 = vmatpush.msra.mxu0 %v364
    %3310 = vmatpush.msra.mxu0 %v348
    %3311 = vmatmul.f32.gmra.mxu0 %v69
    %v3312 = vpop.f32.mrf.mxu0
    %v3313 = vadd.f32 %v3290, %v3312
    %3314 = vmatmul.f32.gmra.mxu0 %v75
    %v3315 = vpop.f32.mrf.mxu0
    %v3316 = vadd.f32 %v3293, %v3315
    %3317 = vdwg.mxu0
    %3318 = vmatpush.msra.mxu0 %v844
    %3319 = vmatpush.msra.mxu0 %v828
    %3320 = vmatpush.msra.mxu0 %v812
    %3321 = vmatpush.msra.mxu0 %v796
    %3322 = vmatpush.msra.mxu0 %v780
    %3323 = vmatpush.msra.mxu0 %v764
    %3324 = vmatpush.msra.mxu0 %v748
    %3325 = vmatpush.msra.mxu0 %v732
    %3326 = vmatpush.msra.mxu0 %v716
    %3327 = vmatpush.msra.mxu0 %v700
    %3328 = vmatpush.msra.mxu0 %v684
    %3329 = vmatpush.msra.mxu0 %v668
    %3330 = vmatpush.msra.mxu0 %v652
    %3331 = vmatpush.msra.mxu0 %v636
    %3332 = vmatpush.msra.mxu0 %v620
    %3333 = vmatpush.msra.mxu0 %v604
    %3334 = vmatmul.f32.gmra.mxu0 %v70
    %v3335 = vpop.f32.mrf.mxu0
    %v3336 = vadd.f32 %v3313, %v3335
    %3337 = vmatmul.f32.gmra.mxu0 %v76
    %v3338 = vpop.f32.mrf.mxu0
    %v3339 = vadd.f32 %v3316, %v3338
    %3340 = vdwg.mxu0
    %3341 = vmatpush.msra.mxu0 %v1100
    %3342 = vmatpush.msra.mxu0 %v1084
    %3343 = vmatpush.msra.mxu0 %v1068
    %3344 = vmatpush.msra.mxu0 %v1052
    %3345 = vmatpush.msra.mxu0 %v1036
    %3346 = vmatpush.msra.mxu0 %v1020
    %3347 = vmatpush.msra.mxu0 %v1004
    %3348 = vmatpush.msra.mxu0 %v988
    %3349 = vmatpush.msra.mxu0 %v972
    %3350 = vmatpush.msra.mxu0 %v956
    %3351 = vmatpush.msra.mxu0 %v940
    %3352 = vmatpush.msra.mxu0 %v924
    %3353 = vmatpush.msra.mxu0 %v908
    %3354 = vmatpush.msra.mxu0 %v892
    %3355 = vmatpush.msra.mxu0 %v876
    %3356 = vmatpush.msra.mxu0 %v860
    %3357 = vmatmul.f32.gmra.mxu0 %v71
    %v3358 = vpop.f32.mrf.mxu0
    %v3359 = vadd.f32 %v3336, %v3358
    %3360 = vmatmul.f32.gmra.mxu0 %v77
    %v3361 = vpop.f32.mrf.mxu0
    %v3362 = vadd.f32 %v3339, %v3361
    %3363 = vdwg.mxu0
    %3364 = vmatpush.msra.mxu0 %v1356
    %3365 = vmatpush.msra.mxu0 %v1340
    %3366 = vmatpush.msra.mxu0 %v1324
    %3367 = vmatpush.msra.mxu0 %v1308
    %3368 = vmatpush.msra.mxu0 %v1292
    %3369 = vmatpush.msra.mxu0 %v1276
    %3370 = vmatpush.msra.mxu0 %v1260
    %3371 = vmatpush.msra.mxu0 %v1244
    %3372 = vmatpush.msra.mxu0 %v1228
    %3373 = vmatpush.msra.mxu0 %v1212
    %3374 = vmatpush.msra.mxu0 %v1196
    %3375 = vmatpush.msra.mxu0 %v1180
    %3376 = vmatpush.msra.mxu0 %v1164
    %3377 = vmatpush.msra.mxu0 %v1148
    %3378 = vmatpush.msra.mxu0 %v1132
    %3379 = vmatpush.msra.mxu0 %v1116
    %3380 = vmatmul.f32.gmra.mxu0 %v72
    %v3381 = vpop.f32.mrf.mxu0
    %v3382 = vadd.f32 %v3359, %v3381
    %3383 = vmatmul.f32.gmra.mxu0 %v78
    %v3384 = vpop.f32.mrf.mxu0
    %v3385 = vadd.f32 %v3362, %v3384
    %3386 = vdwg.mxu0
    %3387 = vmatpush.msra.mxu0 %v1612
    %3388 = vmatpush.msra.mxu0 %v1596
    %3389 = vmatpush.msra.mxu0 %v1580
    %3390 = vmatpush.msra.mxu0 %v1564
    %3391 = vmatpush.msra.mxu0 %v1548
    %3392 = vmatpush.msra.mxu0 %v1532
    %3393 = vmatpush.msra.mxu0 %v1516
    %3394 = vmatpush.msra.mxu0 %v1500
    %3395 = vmatpush.msra.mxu0 %v1484
    %3396 = vmatpush.msra.mxu0 %v1468
    %3397 = vmatpush.msra.mxu0 %v1452
    %3398 = vmatpush.msra.mxu0 %v1436
    %3399 = vmatpush.msra.mxu0 %v1420
    %3400 = vmatpush.msra.mxu0 %v1404
    %3401 = vmatpush.msra.mxu0 %v1388
    %3402 = vmatpush.msra.mxu0 %v1372
    %3403 = vmatmul.f32.gmra.mxu0 %v73
    %v3404 = vpop.f32.mrf.mxu0
    %v3405 = vadd.f32 %v3382, %v3404
    %3406 = vmatmul.f32.gmra.mxu0 %v79
    %v3407 = vpop.f32.mrf.mxu0
    %v3408 = vadd.f32 %v3385, %v3407
    %3409 = vdwg.mxu0
    %3410 = vmatpush.msra.mxu0 %v333
    %3411 = vmatpush.msra.mxu0 %v317
    %3412 = vmatpush.msra.mxu0 %v301
    %3413 = vmatpush.msra.mxu0 %v285
    %3414 = vmatpush.msra.mxu0 %v269
    %3415 = vmatpush.msra.mxu0 %v253
    %3416 = vmatpush.msra.mxu0 %v237
    %3417 = vmatpush.msra.mxu0 %v221
    %3418 = vmatpush.msra.mxu0 %v205
    %3419 = vmatpush.msra.mxu0 %v189
    %3420 = vmatpush.msra.mxu0 %v173
    %3421 = vmatpush.msra.mxu0 %v157
    %3422 = vmatpush.msra.mxu0 %v141
    %3423 = vmatpush.msra.mxu0 %v125
    %3424 = vmatpush.msra.mxu0 %v109
    %3425 = vmatpush.msra.mxu0 %v93
    %3426 = vmatmul.f32.gmra.mxu0 %v68
    %v3427 = vpop.f32.mrf.mxu0
    %v3428 = vadd.f32 0.0, %v3427
    %3429 = vmatmul.f32.gmra.mxu0 %v74
    %v3430 = vpop.f32.mrf.mxu0
    %v3431 = vadd.f32 0.0, %v3430
    %3432 = vdwg.mxu0
    %3433 = vmatpush.msra.mxu0 %v589
    %3434 = vmatpush.msra.mxu0 %v573
    %3435 = vmatpush.msra.mxu0 %v557
    %3436 = vmatpush.msra.mxu0 %v541
    %3437 = vmatpush.msra.mxu0 %v525
    %3438 = vmatpush.msra.mxu0 %v509
    %3439 = vmatpush.msra.mxu0 %v493
    %3440 = vmatpush.msra.mxu0 %v477
    %3441 = vmatpush.msra.mxu0 %v461
    %3442 = vmatpush.msra.mxu0 %v445
    %3443 = vmatpush.msra.mxu0 %v429
    %3444 = vmatpush.msra.mxu0 %v413
    %3445 = vmatpush.msra.mxu0 %v397
    %3446 = vmatpush.msra.mxu0 %v381
    %3447 = vmatpush.msra.mxu0 %v365
    %3448 = vmatpush.msra.mxu0 %v349
    %3449 = vmatmul.f32.gmra.mxu0 %v69
    %v3450 = vpop.f32.mrf.mxu0
    %v3451 = vadd.f32 %v3428, %v3450
    %3452 = vmatmul.f32.gmra.mxu0 %v75
    %v3453 = vpop.f32.mrf.mxu0
    %v3454 = vadd.f32 %v3431, %v3453
    %3455 = vdwg.mxu0
    %3456 = vmatpush.msra.mxu0 %v845
    %3457 = vmatpush.msra.mxu0 %v829
    %3458 = vmatpush.msra.mxu0 %v813
    %3459 = vmatpush.msra.mxu0 %v797
    %3460 = vmatpush.msra.mxu0 %v781
    %3461 = vmatpush.msra.mxu0 %v765
    %3462 = vmatpush.msra.mxu0 %v749
    %3463 = vmatpush.msra.mxu0 %v733
    %3464 = vmatpush.msra.mxu0 %v717
    %3465 = vmatpush.msra.mxu0 %v701
    %3466 = vmatpush.msra.mxu0 %v685
    %3467 = vmatpush.msra.mxu0 %v669
    %3468 = vmatpush.msra.mxu0 %v653
    %3469 = vmatpush.msra.mxu0 %v637
    %3470 = vmatpush.msra.mxu0 %v621
    %3471 = vmatpush.msra.mxu0 %v605
    %3472 = vmatmul.f32.gmra.mxu0 %v70
    %v3473 = vpop.f32.mrf.mxu0
    %v3474 = vadd.f32 %v3451, %v3473
    %3475 = vmatmul.f32.gmra.mxu0 %v76
    %v3476 = vpop.f32.mrf.mxu0
    %v3477 = vadd.f32 %v3454, %v3476
    %3478 = vdwg.mxu0
    %3479 = vmatpush.msra.mxu0 %v1101
    %3480 = vmatpush.msra.mxu0 %v1085
    %3481 = vmatpush.msra.mxu0 %v1069
    %3482 = vmatpush.msra.mxu0 %v1053
    %3483 = vmatpush.msra.mxu0 %v1037
    %3484 = vmatpush.msra.mxu0 %v1021
    %3485 = vmatpush.msra.mxu0 %v1005
    %3486 = vmatpush.msra.mxu0 %v989
    %3487 = vmatpush.msra.mxu0 %v973
    %3488 = vmatpush.msra.mxu0 %v957
    %3489 = vmatpush.msra.mxu0 %v941
    %3490 = vmatpush.msra.mxu0 %v925
    %3491 = vmatpush.msra.mxu0 %v909
    %3492 = vmatpush.msra.mxu0 %v893
    %3493 = vmatpush.msra.mxu0 %v877
    %3494 = vmatpush.msra.mxu0 %v861
    %3495 = vmatmul.f32.gmra.mxu0 %v71
    %v3496 = vpop.f32.mrf.mxu0
    %v3497 = vadd.f32 %v3474, %v3496
    %3498 = vmatmul.f32.gmra.mxu0 %v77
    %v3499 = vpop.f32.mrf.mxu0
    %v3500 = vadd.f32 %v3477, %v3499
    %3501 = vdwg.mxu0
    %3502 = vmatpush.msra.mxu0 %v1357
    %3503 = vmatpush.msra.mxu0 %v1341
    %3504 = vmatpush.msra.mxu0 %v1325
    %3505 = vmatpush.msra.mxu0 %v1309
    %3506 = vmatpush.msra.mxu0 %v1293
    %3507 = vmatpush.msra.mxu0 %v1277
    %3508 = vmatpush.msra.mxu0 %v1261
    %3509 = vmatpush.msra.mxu0 %v1245
    %3510 = vmatpush.msra.mxu0 %v1229
    %3511 = vmatpush.msra.mxu0 %v1213
    %3512 = vmatpush.msra.mxu0 %v1197
    %3513 = vmatpush.msra.mxu0 %v1181
    %3514 = vmatpush.msra.mxu0 %v1165
    %3515 = vmatpush.msra.mxu0 %v1149
    %3516 = vmatpush.msra.mxu0 %v1133
    %3517 = vmatpush.msra.mxu0 %v1117
    %3518 = vmatmul.f32.gmra.mxu0 %v72
    %v3519 = vpop.f32.mrf.mxu0
    %v3520 = vadd.f32 %v3497, %v3519
    %3521 = vmatmul.f32.gmra.mxu0 %v78
    %v3522 = vpop.f32.mrf.mxu0
    %v3523 = vadd.f32 %v3500, %v3522
    %3524 = vdwg.mxu0
    %3525 = vmatpush.msra.mxu0 %v1613
    %3526 = vmatpush.msra.mxu0 %v1597
    %3527 = vmatpush.msra.mxu0 %v1581
    %3528 = vmatpush.msra.mxu0 %v1565
    %3529 = vmatpush.msra.mxu0 %v1549
    %3530 = vmatpush.msra.mxu0 %v1533
    %3531 = vmatpush.msra.mxu0 %v1517
    %3532 = vmatpush.msra.mxu0 %v1501
    %3533 = vmatpush.msra.mxu0 %v1485
    %3534 = vmatpush.msra.mxu0 %v1469
    %3535 = vmatpush.msra.mxu0 %v1453
    %3536 = vmatpush.msra.mxu0 %v1437
    %3537 = vmatpush.msra.mxu0 %v1421
    %3538 = vmatpush.msra.mxu0 %v1405
    %3539 = vmatpush.msra.mxu0 %v1389
    %3540 = vmatpush.msra.mxu0 %v1373
    %3541 = vmatmul.f32.gmra.mxu0 %v73
    %v3542 = vpop.f32.mrf.mxu0
    %v3543 = vadd.f32 %v3520, %v3542
    %3544 = vmatmul.f32.gmra.mxu0 %v79
    %v3545 = vpop.f32.mrf.mxu0
    %v3546 = vadd.f32 %v3523, %v3545
    %3547 = vdwg.mxu0
    %3548 = vmatpush.msra.mxu0 %v334
    %3549 = vmatpush.msra.mxu0 %v318
    %3550 = vmatpush.msra.mxu0 %v302
    %3551 = vmatpush.msra.mxu0 %v286
    %3552 = vmatpush.msra.mxu0 %v270
    %3553 = vmatpush.msra.mxu0 %v254
    %3554 = vmatpush.msra.mxu0 %v238
    %3555 = vmatpush.msra.mxu0 %v222
    %3556 = vmatpush.msra.mxu0 %v206
    %3557 = vmatpush.msra.mxu0 %v190
    %3558 = vmatpush.msra.mxu0 %v174
    %3559 = vmatpush.msra.mxu0 %v158
    %3560 = vmatpush.msra.mxu0 %v142
    %3561 = vmatpush.msra.mxu0 %v126
    %3562 = vmatpush.msra.mxu0 %v110
    %3563 = vmatpush.msra.mxu0 %v94
    %3564 = vmatmul.f32.gmra.mxu0 %v68
    %v3565 = vpop.f32.mrf.mxu0
    %v3566 = vadd.f32 0.0, %v3565
    %3567 = vmatmul.f32.gmra.mxu0 %v74
    %v3568 = vpop.f32.mrf.mxu0
    %v3569 = vadd.f32 0.0, %v3568
    %3570 = vdwg.mxu0
    %3571 = vmatpush.msra.mxu0 %v590
    %3572 = vmatpush.msra.mxu0 %v574
    %3573 = vmatpush.msra.mxu0 %v558
    %3574 = vmatpush.msra.mxu0 %v542
    %3575 = vmatpush.msra.mxu0 %v526
    %3576 = vmatpush.msra.mxu0 %v510
    %3577 = vmatpush.msra.mxu0 %v494
    %3578 = vmatpush.msra.mxu0 %v478
    %3579 = vmatpush.msra.mxu0 %v462
    %3580 = vmatpush.msra.mxu0 %v446
    %3581 = vmatpush.msra.mxu0 %v430
    %3582 = vmatpush.msra.mxu0 %v414
    %3583 = vmatpush.msra.mxu0 %v398
    %3584 = vmatpush.msra.mxu0 %v382
    %3585 = vmatpush.msra.mxu0 %v366
    %3586 = vmatpush.msra.mxu0 %v350
    %3587 = vmatmul.f32.gmra.mxu0 %v69
    %v3588 = vpop.f32.mrf.mxu0
    %v3589 = vadd.f32 %v3566, %v3588
    %3590 = vmatmul.f32.gmra.mxu0 %v75
    %v3591 = vpop.f32.mrf.mxu0
    %v3592 = vadd.f32 %v3569, %v3591
    %3593 = vdwg.mxu0
    %3594 = vmatpush.msra.mxu0 %v846
    %3595 = vmatpush.msra.mxu0 %v830
    %3596 = vmatpush.msra.mxu0 %v814
    %3597 = vmatpush.msra.mxu0 %v798
    %3598 = vmatpush.msra.mxu0 %v782
    %3599 = vmatpush.msra.mxu0 %v766
    %3600 = vmatpush.msra.mxu0 %v750
    %3601 = vmatpush.msra.mxu0 %v734
    %3602 = vmatpush.msra.mxu0 %v718
    %3603 = vmatpush.msra.mxu0 %v702
    %3604 = vmatpush.msra.mxu0 %v686
    %3605 = vmatpush.msra.mxu0 %v670
    %3606 = vmatpush.msra.mxu0 %v654
    %3607 = vmatpush.msra.mxu0 %v638
    %3608 = vmatpush.msra.mxu0 %v622
    %3609 = vmatpush.msra.mxu0 %v606
    %3610 = vmatmul.f32.gmra.mxu0 %v70
    %v3611 = vpop.f32.mrf.mxu0
    %v3612 = vadd.f32 %v3589, %v3611
    %3613 = vmatmul.f32.gmra.mxu0 %v76
    %v3614 = vpop.f32.mrf.mxu0
    %v3615 = vadd.f32 %v3592, %v3614
    %3616 = vdwg.mxu0
    %3617 = vmatpush.msra.mxu0 %v1102
    %3618 = vmatpush.msra.mxu0 %v1086
    %3619 = vmatpush.msra.mxu0 %v1070
    %3620 = vmatpush.msra.mxu0 %v1054
    %3621 = vmatpush.msra.mxu0 %v1038
    %3622 = vmatpush.msra.mxu0 %v1022
    %3623 = vmatpush.msra.mxu0 %v1006
    %3624 = vmatpush.msra.mxu0 %v990
    %3625 = vmatpush.msra.mxu0 %v974
    %3626 = vmatpush.msra.mxu0 %v958
    %3627 = vmatpush.msra.mxu0 %v942
    %3628 = vmatpush.msra.mxu0 %v926
    %3629 = vmatpush.msra.mxu0 %v910
    %3630 = vmatpush.msra.mxu0 %v894
    %3631 = vmatpush.msra.mxu0 %v878
    %3632 = vmatpush.msra.mxu0 %v862
    %3633 = vmatmul.f32.gmra.mxu0 %v71
    %v3634 = vpop.f32.mrf.mxu0
    %v3635 = vadd.f32 %v3612, %v3634
    %3636 = vmatmul.f32.gmra.mxu0 %v77
    %v3637 = vpop.f32.mrf.mxu0
    %v3638 = vadd.f32 %v3615, %v3637
    %3639 = vdwg.mxu0
    %3640 = vmatpush.msra.mxu0 %v1358
    %3641 = vmatpush.msra.mxu0 %v1342
    %3642 = vmatpush.msra.mxu0 %v1326
    %3643 = vmatpush.msra.mxu0 %v1310
    %3644 = vmatpush.msra.mxu0 %v1294
    %3645 = vmatpush.msra.mxu0 %v1278
    %3646 = vmatpush.msra.mxu0 %v1262
    %3647 = vmatpush.msra.mxu0 %v1246
    %3648 = vmatpush.msra.mxu0 %v1230
    %3649 = vmatpush.msra.mxu0 %v1214
    %3650 = vmatpush.msra.mxu0 %v1198
    %3651 = vmatpush.msra.mxu0 %v1182
    %3652 = vmatpush.msra.mxu0 %v1166
    %3653 = vmatpush.msra.mxu0 %v1150
    %3654 = vmatpush.msra.mxu0 %v1134
    %3655 = vmatpush.msra.mxu0 %v1118
    %3656 = vmatmul.f32.gmra.mxu0 %v72
    %v3657 = vpop.f32.mrf.mxu0
    %v3658 = vadd.f32 %v3635, %v3657
    %3659 = vmatmul.f32.gmra.mxu0 %v78
    %v3660 = vpop.f32.mrf.mxu0
    %v3661 = vadd.f32 %v3638, %v3660
    %3662 = vdwg.mxu0
    %3663 = vmatpush.msra.mxu0 %v1614
    %3664 = vmatpush.msra.mxu0 %v1598
    %3665 = vmatpush.msra.mxu0 %v1582
    %3666 = vmatpush.msra.mxu0 %v1566
    %3667 = vmatpush.msra.mxu0 %v1550
    %3668 = vmatpush.msra.mxu0 %v1534
    %3669 = vmatpush.msra.mxu0 %v1518
    %3670 = vmatpush.msra.mxu0 %v1502
    %3671 = vmatpush.msra.mxu0 %v1486
    %3672 = vmatpush.msra.mxu0 %v1470
    %3673 = vmatpush.msra.mxu0 %v1454
    %3674 = vmatpush.msra.mxu0 %v1438
    %3675 = vmatpush.msra.mxu0 %v1422
    %3676 = vmatpush.msra.mxu0 %v1406
    %3677 = vmatpush.msra.mxu0 %v1390
    %3678 = vmatpush.msra.mxu0 %v1374
    %3679 = vmatmul.f32.gmra.mxu0 %v73
    %v3680 = vpop.f32.mrf.mxu0
    %v3681 = vadd.f32 %v3658, %v3680
    %3682 = vmatmul.f32.gmra.mxu0 %v79
    %v3683 = vpop.f32.mrf.mxu0
    %v3684 = vadd.f32 %v3661, %v3683
    %3685 = vdwg.mxu0
    %3686 = vmatpush.msra.mxu0 %v335
    %3687 = vmatpush.msra.mxu0 %v319
    %3688 = vmatpush.msra.mxu0 %v303
    %3689 = vmatpush.msra.mxu0 %v287
    %3690 = vmatpush.msra.mxu0 %v271
    %3691 = vmatpush.msra.mxu0 %v255
    %3692 = vmatpush.msra.mxu0 %v239
    %3693 = vmatpush.msra.mxu0 %v223
    %3694 = vmatpush.msra.mxu0 %v207
    %3695 = vmatpush.msra.mxu0 %v191
    %3696 = vmatpush.msra.mxu0 %v175
    %3697 = vmatpush.msra.mxu0 %v159
    %3698 = vmatpush.msra.mxu0 %v143
    %3699 = vmatpush.msra.mxu0 %v127
    %3700 = vmatpush.msra.mxu0 %v111
    %3701 = vmatpush.msra.mxu0 %v95
    %3702 = vmatmul.f32.gmra.mxu0 %v68
    %v3703 = vpop.f32.mrf.mxu0
    %v3704 = vadd.f32 0.0, %v3703
    %3705 = vmatmul.f32.gmra.mxu0 %v74
    %v3706 = vpop.f32.mrf.mxu0
    %v3707 = vadd.f32 0.0, %v3706
    %3708 = vdwg.mxu0
    %3709 = vmatpush.msra.mxu0 %v591
    %3710 = vmatpush.msra.mxu0 %v575
    %3711 = vmatpush.msra.mxu0 %v559
    %3712 = vmatpush.msra.mxu0 %v543
    %3713 = vmatpush.msra.mxu0 %v527
    %3714 = vmatpush.msra.mxu0 %v511
    %3715 = vmatpush.msra.mxu0 %v495
    %3716 = vmatpush.msra.mxu0 %v479
    %3717 = vmatpush.msra.mxu0 %v463
    %3718 = vmatpush.msra.mxu0 %v447
    %3719 = vmatpush.msra.mxu0 %v431
    %3720 = vmatpush.msra.mxu0 %v415
    %3721 = vmatpush.msra.mxu0 %v399
    %3722 = vmatpush.msra.mxu0 %v383
    %3723 = vmatpush.msra.mxu0 %v367
    %3724 = vmatpush.msra.mxu0 %v351
    %3725 = vmatmul.f32.gmra.mxu0 %v69
    %v3726 = vpop.f32.mrf.mxu0
    %v3727 = vadd.f32 %v3704, %v3726
    %3728 = vmatmul.f32.gmra.mxu0 %v75
    %v3729 = vpop.f32.mrf.mxu0
    %v3730 = vadd.f32 %v3707, %v3729
    %3731 = vdwg.mxu0
    %3732 = vmatpush.msra.mxu0 %v847
    %3733 = vmatpush.msra.mxu0 %v831
    %3734 = vmatpush.msra.mxu0 %v815
    %3735 = vmatpush.msra.mxu0 %v799
    %3736 = vmatpush.msra.mxu0 %v783
    %3737 = vmatpush.msra.mxu0 %v767
    %3738 = vmatpush.msra.mxu0 %v751
    %3739 = vmatpush.msra.mxu0 %v735
    %3740 = vmatpush.msra.mxu0 %v719
    %3741 = vmatpush.msra.mxu0 %v703
    %3742 = vmatpush.msra.mxu0 %v687
    %3743 = vmatpush.msra.mxu0 %v671
    %3744 = vmatpush.msra.mxu0 %v655
    %3745 = vmatpush.msra.mxu0 %v639
    %3746 = vmatpush.msra.mxu0 %v623
    %3747 = vmatpush.msra.mxu0 %v607
    %3748 = vmatmul.f32.gmra.mxu0 %v70
    %v3749 = vpop.f32.mrf.mxu0
    %v3750 = vadd.f32 %v3727, %v3749
    %3751 = vmatmul.f32.gmra.mxu0 %v76
    %v3752 = vpop.f32.mrf.mxu0
    %v3753 = vadd.f32 %v3730, %v3752
    %3754 = vdwg.mxu0
    %3755 = vmatpush.msra.mxu0 %v1103
    %3756 = vmatpush.msra.mxu0 %v1087
    %3757 = vmatpush.msra.mxu0 %v1071
    %3758 = vmatpush.msra.mxu0 %v1055
    %3759 = vmatpush.msra.mxu0 %v1039
    %3760 = vmatpush.msra.mxu0 %v1023
    %3761 = vmatpush.msra.mxu0 %v1007
    %3762 = vmatpush.msra.mxu0 %v991
    %3763 = vmatpush.msra.mxu0 %v975
    %3764 = vmatpush.msra.mxu0 %v959
    %3765 = vmatpush.msra.mxu0 %v943
    %3766 = vmatpush.msra.mxu0 %v927
    %3767 = vmatpush.msra.mxu0 %v911
    %3768 = vmatpush.msra.mxu0 %v895
    %3769 = vmatpush.msra.mxu0 %v879
    %3770 = vmatpush.msra.mxu0 %v863
    %3771 = vmatmul.f32.gmra.mxu0 %v71
    %v3772 = vpop.f32.mrf.mxu0
    %v3773 = vadd.f32 %v3750, %v3772
    %3774 = vmatmul.f32.gmra.mxu0 %v77
    %v3775 = vpop.f32.mrf.mxu0
    %v3776 = vadd.f32 %v3753, %v3775
    %3777 = vdwg.mxu0
    %3778 = vmatpush.msra.mxu0 %v1359
    %3779 = vmatpush.msra.mxu0 %v1343
    %3780 = vmatpush.msra.mxu0 %v1327
    %3781 = vmatpush.msra.mxu0 %v1311
    %3782 = vmatpush.msra.mxu0 %v1295
    %3783 = vmatpush.msra.mxu0 %v1279
    %3784 = vmatpush.msra.mxu0 %v1263
    %3785 = vmatpush.msra.mxu0 %v1247
    %3786 = vmatpush.msra.mxu0 %v1231
    %3787 = vmatpush.msra.mxu0 %v1215
    %3788 = vmatpush.msra.mxu0 %v1199
    %3789 = vmatpush.msra.mxu0 %v1183
    %3790 = vmatpush.msra.mxu0 %v1167
    %3791 = vmatpush.msra.mxu0 %v1151
    %3792 = vmatpush.msra.mxu0 %v1135
    %3793 = vmatpush.msra.mxu0 %v1119
    %3794 = vmatmul.f32.gmra.mxu0 %v72
    %v3795 = vpop.f32.mrf.mxu0
    %v3796 = vadd.f32 %v3773, %v3795
    %3797 = vmatmul.f32.gmra.mxu0 %v78
    %v3798 = vpop.f32.mrf.mxu0
    %v3799 = vadd.f32 %v3776, %v3798
    %3800 = vdwg.mxu0
    %3801 = vmatpush.msra.mxu0 %v1615
    %3802 = vmatpush.msra.mxu0 %v1599
    %3803 = vmatpush.msra.mxu0 %v1583
    %3804 = vmatpush.msra.mxu0 %v1567
    %3805 = vmatpush.msra.mxu0 %v1551
    %3806 = vmatpush.msra.mxu0 %v1535
    %3807 = vmatpush.msra.mxu0 %v1519
    %3808 = vmatpush.msra.mxu0 %v1503
    %3809 = vmatpush.msra.mxu0 %v1487
    %3810 = vmatpush.msra.mxu0 %v1471
    %3811 = vmatpush.msra.mxu0 %v1455
    %3812 = vmatpush.msra.mxu0 %v1439
    %3813 = vmatpush.msra.mxu0 %v1423
    %3814 = vmatpush.msra.mxu0 %v1407
    %3815 = vmatpush.msra.mxu0 %v1391
    %3816 = vmatpush.msra.mxu0 %v1375
    %3817 = vmatmul.f32.gmra.mxu0 %v73
    %v3818 = vpop.f32.mrf.mxu0
    %v3819 = vadd.f32 %v3796, %v3818
    %3820 = vmatmul.f32.gmra.mxu0 %v79
    %v3821 = vpop.f32.mrf.mxu0
    %v3822 = vadd.f32 %v3799, %v3821
    %3823 = vdwg.mxu0
    %v3824 = vmax.f32 %v1749, 0.0
    %v3825 = vmax.f32 %v1887, 0.0
    %v3826 = vmax.f32 %v2025, 0.0
    %v3827 = vmax.f32 %v2163, 0.0
    %v3828 = vmax.f32 %v2301, 0.0
    %v3829 = vmax.f32 %v2439, 0.0
    %v3830 = vmax.f32 %v2577, 0.0
    %v3831 = vmax.f32 %v2715, 0.0
    %v3832 = vmax.f32 %v2853, 0.0
    %v3833 = vmax.f32 %v2991, 0.0
    %v3834 = vmax.f32 %v3129, 0.0
    %v3835 = vmax.f32 %v3267, 0.0
    %v3836 = vmax.f32 %v3405, 0.0
    %v3837 = vmax.f32 %v3543, 0.0
    %v3838 = vmax.f32 %v3681, 0.0
    %v3839 = vmax.f32 %v3819, 0.0
    %v3840 = vmax.f32 %v1752, 0.0
    %v3841 = vmax.f32 %v1890, 0.0
    %v3842 = vmax.f32 %v2028, 0.0
    %v3843 = vmax.f32 %v2166, 0.0
    %v3844 = vmax.f32 %v2304, 0.0
    %v3845 = vmax.f32 %v2442, 0.0
    %v3846 = vmax.f32 %v2580, 0.0
    %v3847 = vmax.f32 %v2718, 0.0
    %v3848 = vmax.f32 %v2856, 0.0
    %v3849 = vmax.f32 %v2994, 0.0
    %v3850 = vmax.f32 %v3132, 0.0
    %v3851 = vmax.f32 %v3270, 0.0
    %v3852 = vmax.f32 %v3408, 0.0
    %v3853 = vmax.f32 %v3546, 0.0
    %v3854 = vmax.f32 %v3684, 0.0
    %v3855 = vmax.f32 %v3822, 0.0
    %v3856 = vld [vmem:[#allocation7] sm:$0xff]
    %v3857 = vld [vmem:[#allocation7 + $0x8] sm:$0xff]
    %v3858 = vld [vmem:[#allocation7 + $0x10] sm:$0xff]
    %v3859 = vld [vmem:[#allocation7 + $0x18] sm:$0xff]
    %v3860 = vld [vmem:[#allocation7 + $0x20] sm:$0xff]
    %v3861 = vld [vmem:[#allocation7 + $0x28] sm:$0xff]
    %v3862 = vld [vmem:[#allocation7 + $0x30] sm:$0xff]
    %v3863 = vld [vmem:[#allocation7 + $0x38] sm:$0xff]
    %v3864 = vld [vmem:[#allocation7 + $0x40] sm:$0xff]
    %v3865 = vld [vmem:[#allocation7 + $0x48] sm:$0xff]
    %v3866 = vld [vmem:[#allocation7 + $0x50] sm:$0xff]
    %v3867 = vld [vmem:[#allocation7 + $0x58] sm:$0xff]
    %v3868 = vld [vmem:[#allocation7 + $0x60] sm:$0xff]
    %v3869 = vld [vmem:[#allocation7 + $0x68] sm:$0xff]
    %v3870 = vld [vmem:[#allocation7 + $0x70] sm:$0xff]
    %v3871 = vld [vmem:[#allocation7 + $0x78] sm:$0xff]
    %v3872 = vld [vmem:[#allocation7 + $0x80] sm:$0xff]
    %v3873 = vld [vmem:[#allocation7 + $0x88] sm:$0xff]
    %v3874 = vld [vmem:[#allocation7 + $0x90] sm:$0xff]
    %v3875 = vld [vmem:[#allocation7 + $0x98] sm:$0xff]
    %v3876 = vld [vmem:[#allocation7 + $0xa0] sm:$0xff]
    %v3877 = vld [vmem:[#allocation7 + $0xa8] sm:$0xff]
    %v3878 = vld [vmem:[#allocation7 + $0xb0] sm:$0xff]
    %v3879 = vld [vmem:[#allocation7 + $0xb8] sm:$0xff]
    %v3880 = vld [vmem:[#allocation7 + $0xc0] sm:$0xff]
    %v3881 = vld [vmem:[#allocation7 + $0xc8] sm:$0xff]
    %v3882 = vld [vmem:[#allocation7 + $0xd0] sm:$0xff]
    %v3883 = vld [vmem:[#allocation7 + $0xd8] sm:$0xff]
    %v3884 = vld [vmem:[#allocation7 + $0xe0] sm:$0xff]
    %v3885 = vld [vmem:[#allocation7 + $0xe8] sm:$0xff]
    %v3886 = vld [vmem:[#allocation7 + $0xf0] sm:$0xff]
    %v3887 = vld [vmem:[#allocation7 + $0xf8] sm:$0xff]
    %v3888 = vld [vmem:[#allocation7 + $0x100] sm:$0xff]
    %v3889 = vld [vmem:[#allocation7 + $0x108] sm:$0xff]
    %v3890 = vld [vmem:[#allocation7 + $0x110] sm:$0xff]
    %v3891 = vld [vmem:[#allocation7 + $0x118] sm:$0xff]
    %v3892 = vld [vmem:[#allocation7 + $0x120] sm:$0xff]
    %v3893 = vld [vmem:[#allocation7 + $0x128] sm:$0xff]
    %v3894 = vld [vmem:[#allocation7 + $0x130] sm:$0xff]
    %v3895 = vld [vmem:[#allocation7 + $0x138] sm:$0xff]
    %v3896 = vld [vmem:[#allocation7 + $0x140] sm:$0xff]
    %v3897 = vld [vmem:[#allocation7 + $0x148] sm:$0xff]
    %v3898 = vld [vmem:[#allocation7 + $0x150] sm:$0xff]
    %v3899 = vld [vmem:[#allocation7 + $0x158] sm:$0xff]
    %v3900 = vld [vmem:[#allocation7 + $0x160] sm:$0xff]
    %v3901 = vld [vmem:[#allocation7 + $0x168] sm:$0xff]
    %v3902 = vld [vmem:[#allocation7 + $0x170] sm:$0xff]
    %v3903 = vld [vmem:[#allocation7 + $0x178] sm:$0xff]
    %v3904 = vld [vmem:[#allocation7 + $0x180] sm:$0xff]
    %v3905 = vld [vmem:[#allocation7 + $0x188] sm:$0xff]
    %v3906 = vld [vmem:[#allocation7 + $0x190] sm:$0xff]
    %v3907 = vld [vmem:[#allocation7 + $0x198] sm:$0xff]
    %v3908 = vld [vmem:[#allocation7 + $0x1a0] sm:$0xff]
    %v3909 = vld [vmem:[#allocation7 + $0x1a8] sm:$0xff]
    %v3910 = vld [vmem:[#allocation7 + $0x1b0] sm:$0xff]
    %v3911 = vld [vmem:[#allocation7 + $0x1b8] sm:$0xff]
    %v3912 = vld [vmem:[#allocation7 + $0x1c0] sm:$0xff]
    %v3913 = vld [vmem:[#allocation7 + $0x1c8] sm:$0xff]
    %v3914 = vld [vmem:[#allocation7 + $0x1d0] sm:$0xff]
    %v3915 = vld [vmem:[#allocation7 + $0x1d8] sm:$0xff]
    %v3916 = vld [vmem:[#allocation7 + $0x1e0] sm:$0xff]
    %v3917 = vld [vmem:[#allocation7 + $0x1e8] sm:$0xff]
    %v3918 = vld [vmem:[#allocation7 + $0x1f0] sm:$0xff]
    %v3919 = vld [vmem:[#allocation7 + $0x1f8] sm:$0xff]
    %v3920 = vld [vmem:[#allocation7 + $0x200] sm:$0xff]
    %v3921 = vld [vmem:[#allocation7 + $0x208] sm:$0xff]
    %v3922 = vld [vmem:[#allocation7 + $0x210] sm:$0xff]
    %v3923 = vld [vmem:[#allocation7 + $0x218] sm:$0xff]
    %v3924 = vld [vmem:[#allocation7 + $0x220] sm:$0xff]
    %v3925 = vld [vmem:[#allocation7 + $0x228] sm:$0xff]
    %v3926 = vld [vmem:[#allocation7 + $0x230] sm:$0xff]
    %v3927 = vld [vmem:[#allocation7 + $0x238] sm:$0xff]
    %v3928 = vld [vmem:[#allocation7 + $0x240] sm:$0xff]
    %v3929 = vld [vmem:[#allocation7 + $0x248] sm:$0xff]
    %v3930 = vld [vmem:[#allocation7 + $0x250] sm:$0xff]
    %v3931 = vld [vmem:[#allocation7 + $0x258] sm:$0xff]
    %v3932 = vld [vmem:[#allocation7 + $0x260] sm:$0xff]
    %v3933 = vld [vmem:[#allocation7 + $0x268] sm:$0xff]
    %v3934 = vld [vmem:[#allocation7 + $0x270] sm:$0xff]
    %v3935 = vld [vmem:[#allocation7 + $0x278] sm:$0xff]
    %v3936 = vld [vmem:[#allocation7 + $0x280] sm:$0xff]
    %v3937 = vld [vmem:[#allocation7 + $0x288] sm:$0xff]
    %v3938 = vld [vmem:[#allocation7 + $0x290] sm:$0xff]
    %v3939 = vld [vmem:[#allocation7 + $0x298] sm:$0xff]
    %v3940 = vld [vmem:[#allocation7 + $0x2a0] sm:$0xff]
    %v3941 = vld [vmem:[#allocation7 + $0x2a8] sm:$0xff]
    %v3942 = vld [vmem:[#allocation7 + $0x2b0] sm:$0xff]
    %v3943 = vld [vmem:[#allocation7 + $0x2b8] sm:$0xff]
    %v3944 = vld [vmem:[#allocation7 + $0x2c0] sm:$0xff]
    %v3945 = vld [vmem:[#allocation7 + $0x2c8] sm:$0xff]
    %v3946 = vld [vmem:[#allocation7 + $0x2d0] sm:$0xff]
    %v3947 = vld [vmem:[#allocation7 + $0x2d8] sm:$0xff]
    %v3948 = vld [vmem:[#allocation7 + $0x2e0] sm:$0xff]
    %v3949 = vld [vmem:[#allocation7 + $0x2e8] sm:$0xff]
    %v3950 = vld [vmem:[#allocation7 + $0x2f0] sm:$0xff]
    %v3951 = vld [vmem:[#allocation7 + $0x2f8] sm:$0xff]
    %v3952 = vld [vmem:[#allocation7 + $0x300] sm:$0xff]
    %v3953 = vld [vmem:[#allocation7 + $0x308] sm:$0xff]
    %v3954 = vld [vmem:[#allocation7 + $0x310] sm:$0xff]
    %v3955 = vld [vmem:[#allocation7 + $0x318] sm:$0xff]
    %v3956 = vld [vmem:[#allocation7 + $0x320] sm:$0xff]
    %v3957 = vld [vmem:[#allocation7 + $0x328] sm:$0xff]
    %v3958 = vld [vmem:[#allocation7 + $0x330] sm:$0xff]
    %v3959 = vld [vmem:[#allocation7 + $0x338] sm:$0xff]
    %v3960 = vld [vmem:[#allocation7 + $0x340] sm:$0xff]
    %v3961 = vld [vmem:[#allocation7 + $0x348] sm:$0xff]
    %v3962 = vld [vmem:[#allocation7 + $0x350] sm:$0xff]
    %v3963 = vld [vmem:[#allocation7 + $0x358] sm:$0xff]
    %v3964 = vld [vmem:[#allocation7 + $0x360] sm:$0xff]
    %v3965 = vld [vmem:[#allocation7 + $0x368] sm:$0xff]
    %v3966 = vld [vmem:[#allocation7 + $0x370] sm:$0xff]
    %v3967 = vld [vmem:[#allocation7 + $0x378] sm:$0xff]
    %v3968 = vld [vmem:[#allocation7 + $0x380] sm:$0xff]
    %v3969 = vld [vmem:[#allocation7 + $0x388] sm:$0xff]
    %v3970 = vld [vmem:[#allocation7 + $0x390] sm:$0xff]
    %v3971 = vld [vmem:[#allocation7 + $0x398] sm:$0xff]
    %v3972 = vld [vmem:[#allocation7 + $0x3a0] sm:$0xff]
    %v3973 = vld [vmem:[#allocation7 + $0x3a8] sm:$0xff]
    %v3974 = vld [vmem:[#allocation7 + $0x3b0] sm:$0xff]
    %v3975 = vld [vmem:[#allocation7 + $0x3b8] sm:$0xff]
    %v3976 = vld [vmem:[#allocation7 + $0x3c0] sm:$0xff]
    %v3977 = vld [vmem:[#allocation7 + $0x3c8] sm:$0xff]
    %v3978 = vld [vmem:[#allocation7 + $0x3d0] sm:$0xff]
    %v3979 = vld [vmem:[#allocation7 + $0x3d8] sm:$0xff]
    %v3980 = vld [vmem:[#allocation7 + $0x3e0] sm:$0xff]
    %v3981 = vld [vmem:[#allocation7 + $0x3e8] sm:$0xff]
    %v3982 = vld [vmem:[#allocation7 + $0x3f0] sm:$0xff]
    %v3983 = vld [vmem:[#allocation7 + $0x3f8] sm:$0xff]
    %v3984 = vld [vmem:[#allocation7 + $0x400] sm:$0xff]
    %v3985 = vld [vmem:[#allocation7 + $0x408] sm:$0xff]
    %v3986 = vld [vmem:[#allocation7 + $0x410] sm:$0xff]
    %v3987 = vld [vmem:[#allocation7 + $0x418] sm:$0xff]
    %v3988 = vld [vmem:[#allocation7 + $0x420] sm:$0xff]
    %v3989 = vld [vmem:[#allocation7 + $0x428] sm:$0xff]
    %v3990 = vld [vmem:[#allocation7 + $0x430] sm:$0xff]
    %v3991 = vld [vmem:[#allocation7 + $0x438] sm:$0xff]
    %v3992 = vld [vmem:[#allocation7 + $0x440] sm:$0xff]
    %v3993 = vld [vmem:[#allocation7 + $0x448] sm:$0xff]
    %v3994 = vld [vmem:[#allocation7 + $0x450] sm:$0xff]
    %v3995 = vld [vmem:[#allocation7 + $0x458] sm:$0xff]
    %v3996 = vld [vmem:[#allocation7 + $0x460] sm:$0xff]
    %v3997 = vld [vmem:[#allocation7 + $0x468] sm:$0xff]
    %v3998 = vld [vmem:[#allocation7 + $0x470] sm:$0xff]
    %v3999 = vld [vmem:[#allocation7 + $0x478] sm:$0xff]
    %v4000 = vld [vmem:[#allocation7 + $0x480] sm:$0xff]
    %v4001 = vld [vmem:[#allocation7 + $0x488] sm:$0xff]
    %v4002 = vld [vmem:[#allocation7 + $0x490] sm:$0xff]
    %v4003 = vld [vmem:[#allocation7 + $0x498] sm:$0xff]
    %v4004 = vld [vmem:[#allocation7 + $0x4a0] sm:$0xff]
    %v4005 = vld [vmem:[#allocation7 + $0x4a8] sm:$0xff]
    %v4006 = vld [vmem:[#allocation7 + $0x4b0] sm:$0xff]
    %v4007 = vld [vmem:[#allocation7 + $0x4b8] sm:$0xff]
    %v4008 = vld [vmem:[#allocation7 + $0x4c0] sm:$0xff]
    %v4009 = vld [vmem:[#allocation7 + $0x4c8] sm:$0xff]
    %v4010 = vld [vmem:[#allocation7 + $0x4d0] sm:$0xff]
    %v4011 = vld [vmem:[#allocation7 + $0x4d8] sm:$0xff]
    %v4012 = vld [vmem:[#allocation7 + $0x4e0] sm:$0xff]
    %v4013 = vld [vmem:[#allocation7 + $0x4e8] sm:$0xff]
    %v4014 = vld [vmem:[#allocation7 + $0x4f0] sm:$0xff]
    %v4015 = vld [vmem:[#allocation7 + $0x4f8] sm:$0xff]
    %v4016 = vld [vmem:[#allocation7 + $0x500] sm:$0xff]
    %v4017 = vld [vmem:[#allocation7 + $0x508] sm:$0xff]
    %v4018 = vld [vmem:[#allocation7 + $0x510] sm:$0xff]
    %v4019 = vld [vmem:[#allocation7 + $0x518] sm:$0xff]
    %v4020 = vld [vmem:[#allocation7 + $0x520] sm:$0xff]
    %v4021 = vld [vmem:[#allocation7 + $0x528] sm:$0xff]
    %v4022 = vld [vmem:[#allocation7 + $0x530] sm:$0xff]
    %v4023 = vld [vmem:[#allocation7 + $0x538] sm:$0xff]
    %v4024 = vld [vmem:[#allocation7 + $0x540] sm:$0xff]
    %v4025 = vld [vmem:[#allocation7 + $0x548] sm:$0xff]
    %v4026 = vld [vmem:[#allocation7 + $0x550] sm:$0xff]
    %v4027 = vld [vmem:[#allocation7 + $0x558] sm:$0xff]
    %v4028 = vld [vmem:[#allocation7 + $0x560] sm:$0xff]
    %v4029 = vld [vmem:[#allocation7 + $0x568] sm:$0xff]
    %v4030 = vld [vmem:[#allocation7 + $0x570] sm:$0xff]
    %v4031 = vld [vmem:[#allocation7 + $0x578] sm:$0xff]
    %v4032 = vld [vmem:[#allocation7 + $0x580] sm:$0xff]
    %v4033 = vld [vmem:[#allocation7 + $0x588] sm:$0xff]
    %v4034 = vld [vmem:[#allocation7 + $0x590] sm:$0xff]
    %v4035 = vld [vmem:[#allocation7 + $0x598] sm:$0xff]
    %v4036 = vld [vmem:[#allocation7 + $0x5a0] sm:$0xff]
    %v4037 = vld [vmem:[#allocation7 + $0x5a8] sm:$0xff]
    %v4038 = vld [vmem:[#allocation7 + $0x5b0] sm:$0xff]
    %v4039 = vld [vmem:[#allocation7 + $0x5b8] sm:$0xff]
    %v4040 = vld [vmem:[#allocation7 + $0x5c0] sm:$0xff]
    %v4041 = vld [vmem:[#allocation7 + $0x5c8] sm:$0xff]
    %v4042 = vld [vmem:[#allocation7 + $0x5d0] sm:$0xff]
    %v4043 = vld [vmem:[#allocation7 + $0x5d8] sm:$0xff]
    %v4044 = vld [vmem:[#allocation7 + $0x5e0] sm:$0xff]
    %v4045 = vld [vmem:[#allocation7 + $0x5e8] sm:$0xff]
    %v4046 = vld [vmem:[#allocation7 + $0x5f0] sm:$0xff]
    %v4047 = vld [vmem:[#allocation7 + $0x5f8] sm:$0xff]
    %v4048 = vld [vmem:[#allocation7 + $0x600] sm:$0xff]
    %v4049 = vld [vmem:[#allocation7 + $0x608] sm:$0xff]
    %v4050 = vld [vmem:[#allocation7 + $0x610] sm:$0xff]
    %v4051 = vld [vmem:[#allocation7 + $0x618] sm:$0xff]
    %v4052 = vld [vmem:[#allocation7 + $0x620] sm:$0xff]
    %v4053 = vld [vmem:[#allocation7 + $0x628] sm:$0xff]
    %v4054 = vld [vmem:[#allocation7 + $0x630] sm:$0xff]
    %v4055 = vld [vmem:[#allocation7 + $0x638] sm:$0xff]
    %v4056 = vld [vmem:[#allocation7 + $0x640] sm:$0xff]
    %v4057 = vld [vmem:[#allocation7 + $0x648] sm:$0xff]
    %v4058 = vld [vmem:[#allocation7 + $0x650] sm:$0xff]
    %v4059 = vld [vmem:[#allocation7 + $0x658] sm:$0xff]
    %v4060 = vld [vmem:[#allocation7 + $0x660] sm:$0xff]
    %v4061 = vld [vmem:[#allocation7 + $0x668] sm:$0xff]
    %v4062 = vld [vmem:[#allocation7 + $0x670] sm:$0xff]
    %v4063 = vld [vmem:[#allocation7 + $0x678] sm:$0xff]
    %v4064 = vld [vmem:[#allocation7 + $0x680] sm:$0xff]
    %v4065 = vld [vmem:[#allocation7 + $0x688] sm:$0xff]
    %v4066 = vld [vmem:[#allocation7 + $0x690] sm:$0xff]
    %v4067 = vld [vmem:[#allocation7 + $0x698] sm:$0xff]
    %v4068 = vld [vmem:[#allocation7 + $0x6a0] sm:$0xff]
    %v4069 = vld [vmem:[#allocation7 + $0x6a8] sm:$0xff]
    %v4070 = vld [vmem:[#allocation7 + $0x6b0] sm:$0xff]
    %v4071 = vld [vmem:[#allocation7 + $0x6b8] sm:$0xff]
    %v4072 = vld [vmem:[#allocation7 + $0x6c0] sm:$0xff]
    %v4073 = vld [vmem:[#allocation7 + $0x6c8] sm:$0xff]
    %v4074 = vld [vmem:[#allocation7 + $0x6d0] sm:$0xff]
    %v4075 = vld [vmem:[#allocation7 + $0x6d8] sm:$0xff]
    %v4076 = vld [vmem:[#allocation7 + $0x6e0] sm:$0xff]
    %v4077 = vld [vmem:[#allocation7 + $0x6e8] sm:$0xff]
    %v4078 = vld [vmem:[#allocation7 + $0x6f0] sm:$0xff]
    %v4079 = vld [vmem:[#allocation7 + $0x6f8] sm:$0xff]
    %v4080 = vld [vmem:[#allocation7 + $0x700] sm:$0xff]
    %v4081 = vld [vmem:[#allocation7 + $0x708] sm:$0xff]
    %v4082 = vld [vmem:[#allocation7 + $0x710] sm:$0xff]
    %v4083 = vld [vmem:[#allocation7 + $0x718] sm:$0xff]
    %v4084 = vld [vmem:[#allocation7 + $0x720] sm:$0xff]
    %v4085 = vld [vmem:[#allocation7 + $0x728] sm:$0xff]
    %v4086 = vld [vmem:[#allocation7 + $0x730] sm:$0xff]
    %v4087 = vld [vmem:[#allocation7 + $0x738] sm:$0xff]
    %v4088 = vld [vmem:[#allocation7 + $0x740] sm:$0xff]
    %v4089 = vld [vmem:[#allocation7 + $0x748] sm:$0xff]
    %v4090 = vld [vmem:[#allocation7 + $0x750] sm:$0xff]
    %v4091 = vld [vmem:[#allocation7 + $0x758] sm:$0xff]
    %v4092 = vld [vmem:[#allocation7 + $0x760] sm:$0xff]
    %v4093 = vld [vmem:[#allocation7 + $0x768] sm:$0xff]
    %v4094 = vld [vmem:[#allocation7 + $0x770] sm:$0xff]
    %v4095 = vld [vmem:[#allocation7 + $0x778] sm:$0xff]
    %v4096 = vld [vmem:[#allocation7 + $0x780] sm:$0xff]
    %v4097 = vld [vmem:[#allocation7 + $0x788] sm:$0xff]
    %v4098 = vld [vmem:[#allocation7 + $0x790] sm:$0xff]
    %v4099 = vld [vmem:[#allocation7 + $0x798] sm:$0xff]
    %v4100 = vld [vmem:[#allocation7 + $0x7a0] sm:$0xff]
    %v4101 = vld [vmem:[#allocation7 + $0x7a8] sm:$0xff]
    %v4102 = vld [vmem:[#allocation7 + $0x7b0] sm:$0xff]
    %v4103 = vld [vmem:[#allocation7 + $0x7b8] sm:$0xff]
    %v4104 = vld [vmem:[#allocation7 + $0x7c0] sm:$0xff]
    %v4105 = vld [vmem:[#allocation7 + $0x7c8] sm:$0xff]
    %v4106 = vld [vmem:[#allocation7 + $0x7d0] sm:$0xff]
    %v4107 = vld [vmem:[#allocation7 + $0x7d8] sm:$0xff]
    %v4108 = vld [vmem:[#allocation7 + $0x7e0] sm:$0xff]
    %v4109 = vld [vmem:[#allocation7 + $0x7e8] sm:$0xff]
    %v4110 = vld [vmem:[#allocation7 + $0x7f0] sm:$0xff]
    %v4111 = vld [vmem:[#allocation7 + $0x7f8] sm:$0xff]
    %v4112 = vld [vmem:[#allocation7 + $0x800] sm:$0xff]
    %v4113 = vld [vmem:[#allocation7 + $0x808] sm:$0xff]
    %v4114 = vld [vmem:[#allocation7 + $0x810] sm:$0xff]
    %v4115 = vld [vmem:[#allocation7 + $0x818] sm:$0xff]
    %v4116 = vld [vmem:[#allocation7 + $0x820] sm:$0xff]
    %v4117 = vld [vmem:[#allocation7 + $0x828] sm:$0xff]
    %v4118 = vld [vmem:[#allocation7 + $0x830] sm:$0xff]
    %v4119 = vld [vmem:[#allocation7 + $0x838] sm:$0xff]
    %v4120 = vld [vmem:[#allocation7 + $0x840] sm:$0xff]
    %v4121 = vld [vmem:[#allocation7 + $0x848] sm:$0xff]
    %v4122 = vld [vmem:[#allocation7 + $0x850] sm:$0xff]
    %v4123 = vld [vmem:[#allocation7 + $0x858] sm:$0xff]
    %v4124 = vld [vmem:[#allocation7 + $0x860] sm:$0xff]
    %v4125 = vld [vmem:[#allocation7 + $0x868] sm:$0xff]
    %v4126 = vld [vmem:[#allocation7 + $0x870] sm:$0xff]
    %v4127 = vld [vmem:[#allocation7 + $0x878] sm:$0xff]
    %v4128 = vld [vmem:[#allocation7 + $0x880] sm:$0xff]
    %v4129 = vld [vmem:[#allocation7 + $0x888] sm:$0xff]
    %v4130 = vld [vmem:[#allocation7 + $0x890] sm:$0xff]
    %v4131 = vld [vmem:[#allocation7 + $0x898] sm:$0xff]
    %v4132 = vld [vmem:[#allocation7 + $0x8a0] sm:$0xff]
    %v4133 = vld [vmem:[#allocation7 + $0x8a8] sm:$0xff]
    %v4134 = vld [vmem:[#allocation7 + $0x8b0] sm:$0xff]
    %v4135 = vld [vmem:[#allocation7 + $0x8b8] sm:$0xff]
    %v4136 = vld [vmem:[#allocation7 + $0x8c0] sm:$0xff]
    %v4137 = vld [vmem:[#allocation7 + $0x8c8] sm:$0xff]
    %v4138 = vld [vmem:[#allocation7 + $0x8d0] sm:$0xff]
    %v4139 = vld [vmem:[#allocation7 + $0x8d8] sm:$0xff]
    %v4140 = vld [vmem:[#allocation7 + $0x8e0] sm:$0xff]
    %v4141 = vld [vmem:[#allocation7 + $0x8e8] sm:$0xff]
    %v4142 = vld [vmem:[#allocation7 + $0x8f0] sm:$0xff]
    %v4143 = vld [vmem:[#allocation7 + $0x8f8] sm:$0xff]
    %v4144 = vld [vmem:[#allocation7 + $0x900] sm:$0xff]
    %v4145 = vld [vmem:[#allocation7 + $0x908] sm:$0xff]
    %v4146 = vld [vmem:[#allocation7 + $0x910] sm:$0xff]
    %v4147 = vld [vmem:[#allocation7 + $0x918] sm:$0xff]
    %v4148 = vld [vmem:[#allocation7 + $0x920] sm:$0xff]
    %v4149 = vld [vmem:[#allocation7 + $0x928] sm:$0xff]
    %v4150 = vld [vmem:[#allocation7 + $0x930] sm:$0xff]
    %v4151 = vld [vmem:[#allocation7 + $0x938] sm:$0xff]
    %v4152 = vld [vmem:[#allocation7 + $0x940] sm:$0xff]
    %v4153 = vld [vmem:[#allocation7 + $0x948] sm:$0xff]
    %v4154 = vld [vmem:[#allocation7 + $0x950] sm:$0xff]
    %v4155 = vld [vmem:[#allocation7 + $0x958] sm:$0xff]
    %v4156 = vld [vmem:[#allocation7 + $0x960] sm:$0xff]
    %v4157 = vld [vmem:[#allocation7 + $0x968] sm:$0xff]
    %v4158 = vld [vmem:[#allocation7 + $0x970] sm:$0xff]
    %v4159 = vld [vmem:[#allocation7 + $0x978] sm:$0xff]
    %v4160 = vld [vmem:[#allocation7 + $0x980] sm:$0xff]
    %v4161 = vld [vmem:[#allocation7 + $0x988] sm:$0xff]
    %v4162 = vld [vmem:[#allocation7 + $0x990] sm:$0xff]
    %v4163 = vld [vmem:[#allocation7 + $0x998] sm:$0xff]
    %v4164 = vld [vmem:[#allocation7 + $0x9a0] sm:$0xff]
    %v4165 = vld [vmem:[#allocation7 + $0x9a8] sm:$0xff]
    %v4166 = vld [vmem:[#allocation7 + $0x9b0] sm:$0xff]
    %v4167 = vld [vmem:[#allocation7 + $0x9b8] sm:$0xff]
    %v4168 = vld [vmem:[#allocation7 + $0x9c0] sm:$0xff]
    %v4169 = vld [vmem:[#allocation7 + $0x9c8] sm:$0xff]
    %v4170 = vld [vmem:[#allocation7 + $0x9d0] sm:$0xff]
    %v4171 = vld [vmem:[#allocation7 + $0x9d8] sm:$0xff]
    %v4172 = vld [vmem:[#allocation7 + $0x9e0] sm:$0xff]
    %v4173 = vld [vmem:[#allocation7 + $0x9e8] sm:$0xff]
    %v4174 = vld [vmem:[#allocation7 + $0x9f0] sm:$0xff]
    %v4175 = vld [vmem:[#allocation7 + $0x9f8] sm:$0xff]
    %v4176 = vld [vmem:[#allocation7 + $0xa00] sm:$0xff]
    %v4177 = vld [vmem:[#allocation7 + $0xa08] sm:$0xff]
    %v4178 = vld [vmem:[#allocation7 + $0xa10] sm:$0xff]
    %v4179 = vld [vmem:[#allocation7 + $0xa18] sm:$0xff]
    %v4180 = vld [vmem:[#allocation7 + $0xa20] sm:$0xff]
    %v4181 = vld [vmem:[#allocation7 + $0xa28] sm:$0xff]
    %v4182 = vld [vmem:[#allocation7 + $0xa30] sm:$0xff]
    %v4183 = vld [vmem:[#allocation7 + $0xa38] sm:$0xff]
    %v4184 = vld [vmem:[#allocation7 + $0xa40] sm:$0xff]
    %v4185 = vld [vmem:[#allocation7 + $0xa48] sm:$0xff]
    %v4186 = vld [vmem:[#allocation7 + $0xa50] sm:$0xff]
    %v4187 = vld [vmem:[#allocation7 + $0xa58] sm:$0xff]
    %v4188 = vld [vmem:[#allocation7 + $0xa60] sm:$0xff]
    %v4189 = vld [vmem:[#allocation7 + $0xa68] sm:$0xff]
    %v4190 = vld [vmem:[#allocation7 + $0xa70] sm:$0xff]
    %v4191 = vld [vmem:[#allocation7 + $0xa78] sm:$0xff]
    %v4192 = vld [vmem:[#allocation7 + $0xa80] sm:$0xff]
    %v4193 = vld [vmem:[#allocation7 + $0xa88] sm:$0xff]
    %v4194 = vld [vmem:[#allocation7 + $0xa90] sm:$0xff]
    %v4195 = vld [vmem:[#allocation7 + $0xa98] sm:$0xff]
    %v4196 = vld [vmem:[#allocation7 + $0xaa0] sm:$0xff]
    %v4197 = vld [vmem:[#allocation7 + $0xaa8] sm:$0xff]
    %v4198 = vld [vmem:[#allocation7 + $0xab0] sm:$0xff]
    %v4199 = vld [vmem:[#allocation7 + $0xab8] sm:$0xff]
    %v4200 = vld [vmem:[#allocation7 + $0xac0] sm:$0xff]
    %v4201 = vld [vmem:[#allocation7 + $0xac8] sm:$0xff]
    %v4202 = vld [vmem:[#allocation7 + $0xad0] sm:$0xff]
    %v4203 = vld [vmem:[#allocation7 + $0xad8] sm:$0xff]
    %v4204 = vld [vmem:[#allocation7 + $0xae0] sm:$0xff]
    %v4205 = vld [vmem:[#allocation7 + $0xae8] sm:$0xff]
    %v4206 = vld [vmem:[#allocation7 + $0xaf0] sm:$0xff]
    %v4207 = vld [vmem:[#allocation7 + $0xaf8] sm:$0xff]
    %v4208 = vld [vmem:[#allocation7 + $0xb00] sm:$0xff]
    %v4209 = vld [vmem:[#allocation7 + $0xb08] sm:$0xff]
    %v4210 = vld [vmem:[#allocation7 + $0xb10] sm:$0xff]
    %v4211 = vld [vmem:[#allocation7 + $0xb18] sm:$0xff]
    %v4212 = vld [vmem:[#allocation7 + $0xb20] sm:$0xff]
    %v4213 = vld [vmem:[#allocation7 + $0xb28] sm:$0xff]
    %v4214 = vld [vmem:[#allocation7 + $0xb30] sm:$0xff]
    %v4215 = vld [vmem:[#allocation7 + $0xb38] sm:$0xff]
    %v4216 = vld [vmem:[#allocation7 + $0xb40] sm:$0xff]
    %v4217 = vld [vmem:[#allocation7 + $0xb48] sm:$0xff]
    %v4218 = vld [vmem:[#allocation7 + $0xb50] sm:$0xff]
    %v4219 = vld [vmem:[#allocation7 + $0xb58] sm:$0xff]
    %v4220 = vld [vmem:[#allocation7 + $0xb60] sm:$0xff]
    %v4221 = vld [vmem:[#allocation7 + $0xb68] sm:$0xff]
    %v4222 = vld [vmem:[#allocation7 + $0xb70] sm:$0xff]
    %v4223 = vld [vmem:[#allocation7 + $0xb78] sm:$0xff]
    %v4224 = vld [vmem:[#allocation7 + $0xb80] sm:$0xff]
    %v4225 = vld [vmem:[#allocation7 + $0xb88] sm:$0xff]
    %v4226 = vld [vmem:[#allocation7 + $0xb90] sm:$0xff]
    %v4227 = vld [vmem:[#allocation7 + $0xb98] sm:$0xff]
    %v4228 = vld [vmem:[#allocation7 + $0xba0] sm:$0xff]
    %v4229 = vld [vmem:[#allocation7 + $0xba8] sm:$0xff]
    %v4230 = vld [vmem:[#allocation7 + $0xbb0] sm:$0xff]
    %v4231 = vld [vmem:[#allocation7 + $0xbb8] sm:$0xff]
    %v4232 = vld [vmem:[#allocation7 + $0xbc0] sm:$0xff]
    %v4233 = vld [vmem:[#allocation7 + $0xbc8] sm:$0xff]
    %v4234 = vld [vmem:[#allocation7 + $0xbd0] sm:$0xff]
    %v4235 = vld [vmem:[#allocation7 + $0xbd8] sm:$0xff]
    %v4236 = vld [vmem:[#allocation7 + $0xbe0] sm:$0xff]
    %v4237 = vld [vmem:[#allocation7 + $0xbe8] sm:$0xff]
    %v4238 = vld [vmem:[#allocation7 + $0xbf0] sm:$0xff]
    %v4239 = vld [vmem:[#allocation7 + $0xbf8] sm:$0xff]
    %v4240 = vld [vmem:[#allocation7 + $0xc00] sm:$0xff]
    %v4241 = vld [vmem:[#allocation7 + $0xc08] sm:$0xff]
    %v4242 = vld [vmem:[#allocation7 + $0xc10] sm:$0xff]
    %v4243 = vld [vmem:[#allocation7 + $0xc18] sm:$0xff]
    %v4244 = vld [vmem:[#allocation7 + $0xc20] sm:$0xff]
    %v4245 = vld [vmem:[#allocation7 + $0xc28] sm:$0xff]
    %v4246 = vld [vmem:[#allocation7 + $0xc30] sm:$0xff]
    %v4247 = vld [vmem:[#allocation7 + $0xc38] sm:$0xff]
    %v4248 = vld [vmem:[#allocation7 + $0xc40] sm:$0xff]
    %v4249 = vld [vmem:[#allocation7 + $0xc48] sm:$0xff]
    %v4250 = vld [vmem:[#allocation7 + $0xc50] sm:$0xff]
    %v4251 = vld [vmem:[#allocation7 + $0xc58] sm:$0xff]
    %v4252 = vld [vmem:[#allocation7 + $0xc60] sm:$0xff]
    %v4253 = vld [vmem:[#allocation7 + $0xc68] sm:$0xff]
    %v4254 = vld [vmem:[#allocation7 + $0xc70] sm:$0xff]
    %v4255 = vld [vmem:[#allocation7 + $0xc78] sm:$0xff]
    %v4256 = vld [vmem:[#allocation7 + $0xc80] sm:$0xff]
    %v4257 = vld [vmem:[#allocation7 + $0xc88] sm:$0xff]
    %v4258 = vld [vmem:[#allocation7 + $0xc90] sm:$0xff]
    %v4259 = vld [vmem:[#allocation7 + $0xc98] sm:$0xff]
    %v4260 = vld [vmem:[#allocation7 + $0xca0] sm:$0xff]
    %v4261 = vld [vmem:[#allocation7 + $0xca8] sm:$0xff]
    %v4262 = vld [vmem:[#allocation7 + $0xcb0] sm:$0xff]
    %v4263 = vld [vmem:[#allocation7 + $0xcb8] sm:$0xff]
    %v4264 = vld [vmem:[#allocation7 + $0xcc0] sm:$0xff]
    %v4265 = vld [vmem:[#allocation7 + $0xcc8] sm:$0xff]
    %v4266 = vld [vmem:[#allocation7 + $0xcd0] sm:$0xff]
    %v4267 = vld [vmem:[#allocation7 + $0xcd8] sm:$0xff]
    %v4268 = vld [vmem:[#allocation7 + $0xce0] sm:$0xff]
    %v4269 = vld [vmem:[#allocation7 + $0xce8] sm:$0xff]
    %v4270 = vld [vmem:[#allocation7 + $0xcf0] sm:$0xff]
    %v4271 = vld [vmem:[#allocation7 + $0xcf8] sm:$0xff]
    %v4272 = vld [vmem:[#allocation7 + $0xd00] sm:$0xff]
    %v4273 = vld [vmem:[#allocation7 + $0xd08] sm:$0xff]
    %v4274 = vld [vmem:[#allocation7 + $0xd10] sm:$0xff]
    %v4275 = vld [vmem:[#allocation7 + $0xd18] sm:$0xff]
    %v4276 = vld [vmem:[#allocation7 + $0xd20] sm:$0xff]
    %v4277 = vld [vmem:[#allocation7 + $0xd28] sm:$0xff]
    %v4278 = vld [vmem:[#allocation7 + $0xd30] sm:$0xff]
    %v4279 = vld [vmem:[#allocation7 + $0xd38] sm:$0xff]
    %v4280 = vld [vmem:[#allocation7 + $0xd40] sm:$0xff]
    %v4281 = vld [vmem:[#allocation7 + $0xd48] sm:$0xff]
    %v4282 = vld [vmem:[#allocation7 + $0xd50] sm:$0xff]
    %v4283 = vld [vmem:[#allocation7 + $0xd58] sm:$0xff]
    %v4284 = vld [vmem:[#allocation7 + $0xd60] sm:$0xff]
    %v4285 = vld [vmem:[#allocation7 + $0xd68] sm:$0xff]
    %v4286 = vld [vmem:[#allocation7 + $0xd70] sm:$0xff]
    %v4287 = vld [vmem:[#allocation7 + $0xd78] sm:$0xff]
    %v4288 = vld [vmem:[#allocation7 + $0xd80] sm:$0xff]
    %v4289 = vld [vmem:[#allocation7 + $0xd88] sm:$0xff]
    %v4290 = vld [vmem:[#allocation7 + $0xd90] sm:$0xff]
    %v4291 = vld [vmem:[#allocation7 + $0xd98] sm:$0xff]
    %v4292 = vld [vmem:[#allocation7 + $0xda0] sm:$0xff]
    %v4293 = vld [vmem:[#allocation7 + $0xda8] sm:$0xff]
    %v4294 = vld [vmem:[#allocation7 + $0xdb0] sm:$0xff]
    %v4295 = vld [vmem:[#allocation7 + $0xdb8] sm:$0xff]
    %v4296 = vld [vmem:[#allocation7 + $0xdc0] sm:$0xff]
    %v4297 = vld [vmem:[#allocation7 + $0xdc8] sm:$0xff]
    %v4298 = vld [vmem:[#allocation7 + $0xdd0] sm:$0xff]
    %v4299 = vld [vmem:[#allocation7 + $0xdd8] sm:$0xff]
    %v4300 = vld [vmem:[#allocation7 + $0xde0] sm:$0xff]
    %v4301 = vld [vmem:[#allocation7 + $0xde8] sm:$0xff]
    %v4302 = vld [vmem:[#allocation7 + $0xdf0] sm:$0xff]
    %v4303 = vld [vmem:[#allocation7 + $0xdf8] sm:$0xff]
    %v4304 = vld [vmem:[#allocation7 + $0xe00] sm:$0xff]
    %v4305 = vld [vmem:[#allocation7 + $0xe08] sm:$0xff]
    %v4306 = vld [vmem:[#allocation7 + $0xe10] sm:$0xff]
    %v4307 = vld [vmem:[#allocation7 + $0xe18] sm:$0xff]
    %v4308 = vld [vmem:[#allocation7 + $0xe20] sm:$0xff]
    %v4309 = vld [vmem:[#allocation7 + $0xe28] sm:$0xff]
    %v4310 = vld [vmem:[#allocation7 + $0xe30] sm:$0xff]
    %v4311 = vld [vmem:[#allocation7 + $0xe38] sm:$0xff]
    %v4312 = vld [vmem:[#allocation7 + $0xe40] sm:$0xff]
    %v4313 = vld [vmem:[#allocation7 + $0xe48] sm:$0xff]
    %v4314 = vld [vmem:[#allocation7 + $0xe50] sm:$0xff]
    %v4315 = vld [vmem:[#allocation7 + $0xe58] sm:$0xff]
    %v4316 = vld [vmem:[#allocation7 + $0xe60] sm:$0xff]
    %v4317 = vld [vmem:[#allocation7 + $0xe68] sm:$0xff]
    %v4318 = vld [vmem:[#allocation7 + $0xe70] sm:$0xff]
    %v4319 = vld [vmem:[#allocation7 + $0xe78] sm:$0xff]
    %v4320 = vld [vmem:[#allocation7 + $0xe80] sm:$0xff]
    %v4321 = vld [vmem:[#allocation7 + $0xe88] sm:$0xff]
    %v4322 = vld [vmem:[#allocation7 + $0xe90] sm:$0xff]
    %v4323 = vld [vmem:[#allocation7 + $0xe98] sm:$0xff]
    %v4324 = vld [vmem:[#allocation7 + $0xea0] sm:$0xff]
    %v4325 = vld [vmem:[#allocation7 + $0xea8] sm:$0xff]
    %v4326 = vld [vmem:[#allocation7 + $0xeb0] sm:$0xff]
    %v4327 = vld [vmem:[#allocation7 + $0xeb8] sm:$0xff]
    %v4328 = vld [vmem:[#allocation7 + $0xec0] sm:$0xff]
    %v4329 = vld [vmem:[#allocation7 + $0xec8] sm:$0xff]
    %v4330 = vld [vmem:[#allocation7 + $0xed0] sm:$0xff]
    %v4331 = vld [vmem:[#allocation7 + $0xed8] sm:$0xff]
    %v4332 = vld [vmem:[#allocation7 + $0xee0] sm:$0xff]
    %v4333 = vld [vmem:[#allocation7 + $0xee8] sm:$0xff]
    %v4334 = vld [vmem:[#allocation7 + $0xef0] sm:$0xff]
    %v4335 = vld [vmem:[#allocation7 + $0xef8] sm:$0xff]
    %v4336 = vld [vmem:[#allocation7 + $0xf00] sm:$0xff]
    %v4337 = vld [vmem:[#allocation7 + $0xf08] sm:$0xff]
    %v4338 = vld [vmem:[#allocation7 + $0xf10] sm:$0xff]
    %v4339 = vld [vmem:[#allocation7 + $0xf18] sm:$0xff]
    %v4340 = vld [vmem:[#allocation7 + $0xf20] sm:$0xff]
    %v4341 = vld [vmem:[#allocation7 + $0xf28] sm:$0xff]
    %v4342 = vld [vmem:[#allocation7 + $0xf30] sm:$0xff]
    %v4343 = vld [vmem:[#allocation7 + $0xf38] sm:$0xff]
    %v4344 = vld [vmem:[#allocation7 + $0xf40] sm:$0xff]
    %v4345 = vld [vmem:[#allocation7 + $0xf48] sm:$0xff]
    %v4346 = vld [vmem:[#allocation7 + $0xf50] sm:$0xff]
    %v4347 = vld [vmem:[#allocation7 + $0xf58] sm:$0xff]
    %v4348 = vld [vmem:[#allocation7 + $0xf60] sm:$0xff]
    %v4349 = vld [vmem:[#allocation7 + $0xf68] sm:$0xff]
    %v4350 = vld [vmem:[#allocation7 + $0xf70] sm:$0xff]
    %v4351 = vld [vmem:[#allocation7 + $0xf78] sm:$0xff]
    %v4352 = vld [vmem:[#allocation7 + $0xf80] sm:$0xff]
    %v4353 = vld [vmem:[#allocation7 + $0xf88] sm:$0xff]
    %v4354 = vld [vmem:[#allocation7 + $0xf90] sm:$0xff]
    %v4355 = vld [vmem:[#allocation7 + $0xf98] sm:$0xff]
    %v4356 = vld [vmem:[#allocation7 + $0xfa0] sm:$0xff]
    %v4357 = vld [vmem:[#allocation7 + $0xfa8] sm:$0xff]
    %v4358 = vld [vmem:[#allocation7 + $0xfb0] sm:$0xff]
    %v4359 = vld [vmem:[#allocation7 + $0xfb8] sm:$0xff]
    %v4360 = vld [vmem:[#allocation7 + $0xfc0] sm:$0xff]
    %v4361 = vld [vmem:[#allocation7 + $0xfc8] sm:$0xff]
    %v4362 = vld [vmem:[#allocation7 + $0xfd0] sm:$0xff]
    %v4363 = vld [vmem:[#allocation7 + $0xfd8] sm:$0xff]
    %v4364 = vld [vmem:[#allocation7 + $0xfe0] sm:$0xff]
    %v4365 = vld [vmem:[#allocation7 + $0xfe8] sm:$0xff]
    %v4366 = vld [vmem:[#allocation7 + $0xff0] sm:$0xff]
    %v4367 = vld [vmem:[#allocation7 + $0xff8] sm:$0xff]
    %v4368 = vld [vmem:[#allocation7 + $0x1000] sm:$0xff]
    %v4369 = vld [vmem:[#allocation7 + $0x1008] sm:$0xff]
    %v4370 = vld [vmem:[#allocation7 + $0x1010] sm:$0xff]
    %v4371 = vld [vmem:[#allocation7 + $0x1018] sm:$0xff]
    %v4372 = vld [vmem:[#allocation7 + $0x1020] sm:$0xff]
    %v4373 = vld [vmem:[#allocation7 + $0x1028] sm:$0xff]
    %v4374 = vld [vmem:[#allocation7 + $0x1030] sm:$0xff]
    %v4375 = vld [vmem:[#allocation7 + $0x1038] sm:$0xff]
    %v4376 = vld [vmem:[#allocation7 + $0x1040] sm:$0xff]
    %v4377 = vld [vmem:[#allocation7 + $0x1048] sm:$0xff]
    %v4378 = vld [vmem:[#allocation7 + $0x1050] sm:$0xff]
    %v4379 = vld [vmem:[#allocation7 + $0x1058] sm:$0xff]
    %v4380 = vld [vmem:[#allocation7 + $0x1060] sm:$0xff]
    %v4381 = vld [vmem:[#allocation7 + $0x1068] sm:$0xff]
    %v4382 = vld [vmem:[#allocation7 + $0x1070] sm:$0xff]
    %v4383 = vld [vmem:[#allocation7 + $0x1078] sm:$0xff]
    %v4384 = vld [vmem:[#allocation7 + $0x1080] sm:$0xff]
    %v4385 = vld [vmem:[#allocation7 + $0x1088] sm:$0xff]
    %v4386 = vld [vmem:[#allocation7 + $0x1090] sm:$0xff]
    %v4387 = vld [vmem:[#allocation7 + $0x1098] sm:$0xff]
    %v4388 = vld [vmem:[#allocation7 + $0x10a0] sm:$0xff]
    %v4389 = vld [vmem:[#allocation7 + $0x10a8] sm:$0xff]
    %v4390 = vld [vmem:[#allocation7 + $0x10b0] sm:$0xff]
    %v4391 = vld [vmem:[#allocation7 + $0x10b8] sm:$0xff]
    %v4392 = vld [vmem:[#allocation7 + $0x10c0] sm:$0xff]
    %v4393 = vld [vmem:[#allocation7 + $0x10c8] sm:$0xff]
    %v4394 = vld [vmem:[#allocation7 + $0x10d0] sm:$0xff]
    %v4395 = vld [vmem:[#allocation7 + $0x10d8] sm:$0xff]
    %v4396 = vld [vmem:[#allocation7 + $0x10e0] sm:$0xff]
    %v4397 = vld [vmem:[#allocation7 + $0x10e8] sm:$0xff]
    %v4398 = vld [vmem:[#allocation7 + $0x10f0] sm:$0xff]
    %v4399 = vld [vmem:[#allocation7 + $0x10f8] sm:$0xff]
    %v4400 = vld [vmem:[#allocation7 + $0x1100] sm:$0xff]
    %v4401 = vld [vmem:[#allocation7 + $0x1108] sm:$0xff]
    %v4402 = vld [vmem:[#allocation7 + $0x1110] sm:$0xff]
    %v4403 = vld [vmem:[#allocation7 + $0x1118] sm:$0xff]
    %v4404 = vld [vmem:[#allocation7 + $0x1120] sm:$0xff]
    %v4405 = vld [vmem:[#allocation7 + $0x1128] sm:$0xff]
    %v4406 = vld [vmem:[#allocation7 + $0x1130] sm:$0xff]
    %v4407 = vld [vmem:[#allocation7 + $0x1138] sm:$0xff]
    %v4408 = vld [vmem:[#allocation7 + $0x1140] sm:$0xff]
    %v4409 = vld [vmem:[#allocation7 + $0x1148] sm:$0xff]
    %v4410 = vld [vmem:[#allocation7 + $0x1150] sm:$0xff]
    %v4411 = vld [vmem:[#allocation7 + $0x1158] sm:$0xff]
    %v4412 = vld [vmem:[#allocation7 + $0x1160] sm:$0xff]
    %v4413 = vld [vmem:[#allocation7 + $0x1168] sm:$0xff]
    %v4414 = vld [vmem:[#allocation7 + $0x1170] sm:$0xff]
    %v4415 = vld [vmem:[#allocation7 + $0x1178] sm:$0xff]
    %v4416 = vld [vmem:[#allocation7 + $0x1180] sm:$0xff]
    %v4417 = vld [vmem:[#allocation7 + $0x1188] sm:$0xff]
    %v4418 = vld [vmem:[#allocation7 + $0x1190] sm:$0xff]
    %v4419 = vld [vmem:[#allocation7 + $0x1198] sm:$0xff]
    %v4420 = vld [vmem:[#allocation7 + $0x11a0] sm:$0xff]
    %v4421 = vld [vmem:[#allocation7 + $0x11a8] sm:$0xff]
    %v4422 = vld [vmem:[#allocation7 + $0x11b0] sm:$0xff]
    %v4423 = vld [vmem:[#allocation7 + $0x11b8] sm:$0xff]
    %v4424 = vld [vmem:[#allocation7 + $0x11c0] sm:$0xff]
    %v4425 = vld [vmem:[#allocation7 + $0x11c8] sm:$0xff]
    %v4426 = vld [vmem:[#allocation7 + $0x11d0] sm:$0xff]
    %v4427 = vld [vmem:[#allocation7 + $0x11d8] sm:$0xff]
    %v4428 = vld [vmem:[#allocation7 + $0x11e0] sm:$0xff]
    %v4429 = vld [vmem:[#allocation7 + $0x11e8] sm:$0xff]
    %v4430 = vld [vmem:[#allocation7 + $0x11f0] sm:$0xff]
    %v4431 = vld [vmem:[#allocation7 + $0x11f8] sm:$0xff]
    %v4432 = vld [vmem:[#allocation7 + $0x1200] sm:$0xff]
    %v4433 = vld [vmem:[#allocation7 + $0x1208] sm:$0xff]
    %v4434 = vld [vmem:[#allocation7 + $0x1210] sm:$0xff]
    %v4435 = vld [vmem:[#allocation7 + $0x1218] sm:$0xff]
    %v4436 = vld [vmem:[#allocation7 + $0x1220] sm:$0xff]
    %v4437 = vld [vmem:[#allocation7 + $0x1228] sm:$0xff]
    %v4438 = vld [vmem:[#allocation7 + $0x1230] sm:$0xff]
    %v4439 = vld [vmem:[#allocation7 + $0x1238] sm:$0xff]
    %v4440 = vld [vmem:[#allocation7 + $0x1240] sm:$0xff]
    %v4441 = vld [vmem:[#allocation7 + $0x1248] sm:$0xff]
    %v4442 = vld [vmem:[#allocation7 + $0x1250] sm:$0xff]
    %v4443 = vld [vmem:[#allocation7 + $0x1258] sm:$0xff]
    %v4444 = vld [vmem:[#allocation7 + $0x1260] sm:$0xff]
    %v4445 = vld [vmem:[#allocation7 + $0x1268] sm:$0xff]
    %v4446 = vld [vmem:[#allocation7 + $0x1270] sm:$0xff]
    %v4447 = vld [vmem:[#allocation7 + $0x1278] sm:$0xff]
    %v4448 = vld [vmem:[#allocation7 + $0x1280] sm:$0xff]
    %v4449 = vld [vmem:[#allocation7 + $0x1288] sm:$0xff]
    %v4450 = vld [vmem:[#allocation7 + $0x1290] sm:$0xff]
    %v4451 = vld [vmem:[#allocation7 + $0x1298] sm:$0xff]
    %v4452 = vld [vmem:[#allocation7 + $0x12a0] sm:$0xff]
    %v4453 = vld [vmem:[#allocation7 + $0x12a8] sm:$0xff]
    %v4454 = vld [vmem:[#allocation7 + $0x12b0] sm:$0xff]
    %v4455 = vld [vmem:[#allocation7 + $0x12b8] sm:$0xff]
    %v4456 = vld [vmem:[#allocation7 + $0x12c0] sm:$0xff]
    %v4457 = vld [vmem:[#allocation7 + $0x12c8] sm:$0xff]
    %v4458 = vld [vmem:[#allocation7 + $0x12d0] sm:$0xff]
    %v4459 = vld [vmem:[#allocation7 + $0x12d8] sm:$0xff]
    %v4460 = vld [vmem:[#allocation7 + $0x12e0] sm:$0xff]
    %v4461 = vld [vmem:[#allocation7 + $0x12e8] sm:$0xff]
    %v4462 = vld [vmem:[#allocation7 + $0x12f0] sm:$0xff]
    %v4463 = vld [vmem:[#allocation7 + $0x12f8] sm:$0xff]
    %v4464 = vld [vmem:[#allocation7 + $0x1300] sm:$0xff]
    %v4465 = vld [vmem:[#allocation7 + $0x1308] sm:$0xff]
    %v4466 = vld [vmem:[#allocation7 + $0x1310] sm:$0xff]
    %v4467 = vld [vmem:[#allocation7 + $0x1318] sm:$0xff]
    %v4468 = vld [vmem:[#allocation7 + $0x1320] sm:$0xff]
    %v4469 = vld [vmem:[#allocation7 + $0x1328] sm:$0xff]
    %v4470 = vld [vmem:[#allocation7 + $0x1330] sm:$0xff]
    %v4471 = vld [vmem:[#allocation7 + $0x1338] sm:$0xff]
    %v4472 = vld [vmem:[#allocation7 + $0x1340] sm:$0xff]
    %v4473 = vld [vmem:[#allocation7 + $0x1348] sm:$0xff]
    %v4474 = vld [vmem:[#allocation7 + $0x1350] sm:$0xff]
    %v4475 = vld [vmem:[#allocation7 + $0x1358] sm:$0xff]
    %v4476 = vld [vmem:[#allocation7 + $0x1360] sm:$0xff]
    %v4477 = vld [vmem:[#allocation7 + $0x1368] sm:$0xff]
    %v4478 = vld [vmem:[#allocation7 + $0x1370] sm:$0xff]
    %v4479 = vld [vmem:[#allocation7 + $0x1378] sm:$0xff]
    %v4480 = vld [vmem:[#allocation7 + $0x1380] sm:$0xff]
    %v4481 = vld [vmem:[#allocation7 + $0x1388] sm:$0xff]
    %v4482 = vld [vmem:[#allocation7 + $0x1390] sm:$0xff]
    %v4483 = vld [vmem:[#allocation7 + $0x1398] sm:$0xff]
    %v4484 = vld [vmem:[#allocation7 + $0x13a0] sm:$0xff]
    %v4485 = vld [vmem:[#allocation7 + $0x13a8] sm:$0xff]
    %v4486 = vld [vmem:[#allocation7 + $0x13b0] sm:$0xff]
    %v4487 = vld [vmem:[#allocation7 + $0x13b8] sm:$0xff]
    %v4488 = vld [vmem:[#allocation7 + $0x13c0] sm:$0xff]
    %v4489 = vld [vmem:[#allocation7 + $0x13c8] sm:$0xff]
    %v4490 = vld [vmem:[#allocation7 + $0x13d0] sm:$0xff]
    %v4491 = vld [vmem:[#allocation7 + $0x13d8] sm:$0xff]
    %v4492 = vld [vmem:[#allocation7 + $0x13e0] sm:$0xff]
    %v4493 = vld [vmem:[#allocation7 + $0x13e8] sm:$0xff]
    %v4494 = vld [vmem:[#allocation7 + $0x13f0] sm:$0xff]
    %v4495 = vld [vmem:[#allocation7 + $0x13f8] sm:$0xff]
    %v4496 = vld [vmem:[#allocation7 + $0x1400] sm:$0xff]
    %v4497 = vld [vmem:[#allocation7 + $0x1408] sm:$0xff]
    %v4498 = vld [vmem:[#allocation7 + $0x1410] sm:$0xff]
    %v4499 = vld [vmem:[#allocation7 + $0x1418] sm:$0xff]
    %v4500 = vld [vmem:[#allocation7 + $0x1420] sm:$0xff]
    %v4501 = vld [vmem:[#allocation7 + $0x1428] sm:$0xff]
    %v4502 = vld [vmem:[#allocation7 + $0x1430] sm:$0xff]
    %v4503 = vld [vmem:[#allocation7 + $0x1438] sm:$0xff]
    %v4504 = vld [vmem:[#allocation7 + $0x1440] sm:$0xff]
    %v4505 = vld [vmem:[#allocation7 + $0x1448] sm:$0xff]
    %v4506 = vld [vmem:[#allocation7 + $0x1450] sm:$0xff]
    %v4507 = vld [vmem:[#allocation7 + $0x1458] sm:$0xff]
    %v4508 = vld [vmem:[#allocation7 + $0x1460] sm:$0xff]
    %v4509 = vld [vmem:[#allocation7 + $0x1468] sm:$0xff]
    %v4510 = vld [vmem:[#allocation7 + $0x1470] sm:$0xff]
    %v4511 = vld [vmem:[#allocation7 + $0x1478] sm:$0xff]
    %v4512 = vld [vmem:[#allocation7 + $0x1480] sm:$0xff]
    %v4513 = vld [vmem:[#allocation7 + $0x1488] sm:$0xff]
    %v4514 = vld [vmem:[#allocation7 + $0x1490] sm:$0xff]
    %v4515 = vld [vmem:[#allocation7 + $0x1498] sm:$0xff]
    %v4516 = vld [vmem:[#allocation7 + $0x14a0] sm:$0xff]
    %v4517 = vld [vmem:[#allocation7 + $0x14a8] sm:$0xff]
    %v4518 = vld [vmem:[#allocation7 + $0x14b0] sm:$0xff]
    %v4519 = vld [vmem:[#allocation7 + $0x14b8] sm:$0xff]
    %v4520 = vld [vmem:[#allocation7 + $0x14c0] sm:$0xff]
    %v4521 = vld [vmem:[#allocation7 + $0x14c8] sm:$0xff]
    %v4522 = vld [vmem:[#allocation7 + $0x14d0] sm:$0xff]
    %v4523 = vld [vmem:[#allocation7 + $0x14d8] sm:$0xff]
    %v4524 = vld [vmem:[#allocation7 + $0x14e0] sm:$0xff]
    %v4525 = vld [vmem:[#allocation7 + $0x14e8] sm:$0xff]
    %v4526 = vld [vmem:[#allocation7 + $0x14f0] sm:$0xff]
    %v4527 = vld [vmem:[#allocation7 + $0x14f8] sm:$0xff]
    %v4528 = vld [vmem:[#allocation7 + $0x1500] sm:$0xff]
    %v4529 = vld [vmem:[#allocation7 + $0x1508] sm:$0xff]
    %v4530 = vld [vmem:[#allocation7 + $0x1510] sm:$0xff]
    %v4531 = vld [vmem:[#allocation7 + $0x1518] sm:$0xff]
    %v4532 = vld [vmem:[#allocation7 + $0x1520] sm:$0xff]
    %v4533 = vld [vmem:[#allocation7 + $0x1528] sm:$0xff]
    %v4534 = vld [vmem:[#allocation7 + $0x1530] sm:$0xff]
    %v4535 = vld [vmem:[#allocation7 + $0x1538] sm:$0xff]
    %v4536 = vld [vmem:[#allocation7 + $0x1540] sm:$0xff]
    %v4537 = vld [vmem:[#allocation7 + $0x1548] sm:$0xff]
    %v4538 = vld [vmem:[#allocation7 + $0x1550] sm:$0xff]
    %v4539 = vld [vmem:[#allocation7 + $0x1558] sm:$0xff]
    %v4540 = vld [vmem:[#allocation7 + $0x1560] sm:$0xff]
    %v4541 = vld [vmem:[#allocation7 + $0x1568] sm:$0xff]
    %v4542 = vld [vmem:[#allocation7 + $0x1570] sm:$0xff]
    %v4543 = vld [vmem:[#allocation7 + $0x1578] sm:$0xff]
    %v4544 = vld [vmem:[#allocation7 + $0x1580] sm:$0xff]
    %v4545 = vld [vmem:[#allocation7 + $0x1588] sm:$0xff]
    %v4546 = vld [vmem:[#allocation7 + $0x1590] sm:$0xff]
    %v4547 = vld [vmem:[#allocation7 + $0x1598] sm:$0xff]
    %v4548 = vld [vmem:[#allocation7 + $0x15a0] sm:$0xff]
    %v4549 = vld [vmem:[#allocation7 + $0x15a8] sm:$0xff]
    %v4550 = vld [vmem:[#allocation7 + $0x15b0] sm:$0xff]
    %v4551 = vld [vmem:[#allocation7 + $0x15b8] sm:$0xff]
    %v4552 = vld [vmem:[#allocation7 + $0x15c0] sm:$0xff]
    %v4553 = vld [vmem:[#allocation7 + $0x15c8] sm:$0xff]
    %v4554 = vld [vmem:[#allocation7 + $0x15d0] sm:$0xff]
    %v4555 = vld [vmem:[#allocation7 + $0x15d8] sm:$0xff]
    %v4556 = vld [vmem:[#allocation7 + $0x15e0] sm:$0xff]
    %v4557 = vld [vmem:[#allocation7 + $0x15e8] sm:$0xff]
    %v4558 = vld [vmem:[#allocation7 + $0x15f0] sm:$0xff]
    %v4559 = vld [vmem:[#allocation7 + $0x15f8] sm:$0xff]
    %v4560 = vld [vmem:[#allocation7 + $0x1600] sm:$0xff]
    %v4561 = vld [vmem:[#allocation7 + $0x1608] sm:$0xff]
    %v4562 = vld [vmem:[#allocation7 + $0x1610] sm:$0xff]
    %v4563 = vld [vmem:[#allocation7 + $0x1618] sm:$0xff]
    %v4564 = vld [vmem:[#allocation7 + $0x1620] sm:$0xff]
    %v4565 = vld [vmem:[#allocation7 + $0x1628] sm:$0xff]
    %v4566 = vld [vmem:[#allocation7 + $0x1630] sm:$0xff]
    %v4567 = vld [vmem:[#allocation7 + $0x1638] sm:$0xff]
    %v4568 = vld [vmem:[#allocation7 + $0x1640] sm:$0xff]
    %v4569 = vld [vmem:[#allocation7 + $0x1648] sm:$0xff]
    %v4570 = vld [vmem:[#allocation7 + $0x1650] sm:$0xff]
    %v4571 = vld [vmem:[#allocation7 + $0x1658] sm:$0xff]
    %v4572 = vld [vmem:[#allocation7 + $0x1660] sm:$0xff]
    %v4573 = vld [vmem:[#allocation7 + $0x1668] sm:$0xff]
    %v4574 = vld [vmem:[#allocation7 + $0x1670] sm:$0xff]
    %v4575 = vld [vmem:[#allocation7 + $0x1678] sm:$0xff]
    %v4576 = vld [vmem:[#allocation7 + $0x1680] sm:$0xff]
    %v4577 = vld [vmem:[#allocation7 + $0x1688] sm:$0xff]
    %v4578 = vld [vmem:[#allocation7 + $0x1690] sm:$0xff]
    %v4579 = vld [vmem:[#allocation7 + $0x1698] sm:$0xff]
    %v4580 = vld [vmem:[#allocation7 + $0x16a0] sm:$0xff]
    %v4581 = vld [vmem:[#allocation7 + $0x16a8] sm:$0xff]
    %v4582 = vld [vmem:[#allocation7 + $0x16b0] sm:$0xff]
    %v4583 = vld [vmem:[#allocation7 + $0x16b8] sm:$0xff]
    %v4584 = vld [vmem:[#allocation7 + $0x16c0] sm:$0xff]
    %v4585 = vld [vmem:[#allocation7 + $0x16c8] sm:$0xff]
    %v4586 = vld [vmem:[#allocation7 + $0x16d0] sm:$0xff]
    %v4587 = vld [vmem:[#allocation7 + $0x16d8] sm:$0xff]
    %v4588 = vld [vmem:[#allocation7 + $0x16e0] sm:$0xff]
    %v4589 = vld [vmem:[#allocation7 + $0x16e8] sm:$0xff]
    %v4590 = vld [vmem:[#allocation7 + $0x16f0] sm:$0xff]
    %v4591 = vld [vmem:[#allocation7 + $0x16f8] sm:$0xff]
    %v4592 = vld [vmem:[#allocation7 + $0x1700] sm:$0xff]
    %v4593 = vld [vmem:[#allocation7 + $0x1708] sm:$0xff]
    %v4594 = vld [vmem:[#allocation7 + $0x1710] sm:$0xff]
    %v4595 = vld [vmem:[#allocation7 + $0x1718] sm:$0xff]
    %v4596 = vld [vmem:[#allocation7 + $0x1720] sm:$0xff]
    %v4597 = vld [vmem:[#allocation7 + $0x1728] sm:$0xff]
    %v4598 = vld [vmem:[#allocation7 + $0x1730] sm:$0xff]
    %v4599 = vld [vmem:[#allocation7 + $0x1738] sm:$0xff]
    %v4600 = vld [vmem:[#allocation7 + $0x1740] sm:$0xff]
    %v4601 = vld [vmem:[#allocation7 + $0x1748] sm:$0xff]
    %v4602 = vld [vmem:[#allocation7 + $0x1750] sm:$0xff]
    %v4603 = vld [vmem:[#allocation7 + $0x1758] sm:$0xff]
    %v4604 = vld [vmem:[#allocation7 + $0x1760] sm:$0xff]
    %v4605 = vld [vmem:[#allocation7 + $0x1768] sm:$0xff]
    %v4606 = vld [vmem:[#allocation7 + $0x1770] sm:$0xff]
    %v4607 = vld [vmem:[#allocation7 + $0x1778] sm:$0xff]
    %v4608 = vld [vmem:[#allocation7 + $0x1780] sm:$0xff]
    %v4609 = vld [vmem:[#allocation7 + $0x1788] sm:$0xff]
    %v4610 = vld [vmem:[#allocation7 + $0x1790] sm:$0xff]
    %v4611 = vld [vmem:[#allocation7 + $0x1798] sm:$0xff]
    %v4612 = vld [vmem:[#allocation7 + $0x17a0] sm:$0xff]
    %v4613 = vld [vmem:[#allocation7 + $0x17a8] sm:$0xff]
    %v4614 = vld [vmem:[#allocation7 + $0x17b0] sm:$0xff]
    %v4615 = vld [vmem:[#allocation7 + $0x17b8] sm:$0xff]
    %v4616 = vld [vmem:[#allocation7 + $0x17c0] sm:$0xff]
    %v4617 = vld [vmem:[#allocation7 + $0x17c8] sm:$0xff]
    %v4618 = vld [vmem:[#allocation7 + $0x17d0] sm:$0xff]
    %v4619 = vld [vmem:[#allocation7 + $0x17d8] sm:$0xff]
    %v4620 = vld [vmem:[#allocation7 + $0x17e0] sm:$0xff]
    %v4621 = vld [vmem:[#allocation7 + $0x17e8] sm:$0xff]
    %v4622 = vld [vmem:[#allocation7 + $0x17f0] sm:$0xff]
    %v4623 = vld [vmem:[#allocation7 + $0x17f8] sm:$0xff]
    %v4624 = vld [vmem:[#allocation7 + $0x1800] sm:$0xff]
    %v4625 = vld [vmem:[#allocation7 + $0x1808] sm:$0xff]
    %v4626 = vld [vmem:[#allocation7 + $0x1810] sm:$0xff]
    %v4627 = vld [vmem:[#allocation7 + $0x1818] sm:$0xff]
    %v4628 = vld [vmem:[#allocation7 + $0x1820] sm:$0xff]
    %v4629 = vld [vmem:[#allocation7 + $0x1828] sm:$0xff]
    %v4630 = vld [vmem:[#allocation7 + $0x1830] sm:$0xff]
    %v4631 = vld [vmem:[#allocation7 + $0x1838] sm:$0xff]
    %v4632 = vld [vmem:[#allocation7 + $0x1840] sm:$0xff]
    %v4633 = vld [vmem:[#allocation7 + $0x1848] sm:$0xff]
    %v4634 = vld [vmem:[#allocation7 + $0x1850] sm:$0xff]
    %v4635 = vld [vmem:[#allocation7 + $0x1858] sm:$0xff]
    %v4636 = vld [vmem:[#allocation7 + $0x1860] sm:$0xff]
    %v4637 = vld [vmem:[#allocation7 + $0x1868] sm:$0xff]
    %v4638 = vld [vmem:[#allocation7 + $0x1870] sm:$0xff]
    %v4639 = vld [vmem:[#allocation7 + $0x1878] sm:$0xff]
    %v4640 = vld [vmem:[#allocation7 + $0x1880] sm:$0xff]
    %v4641 = vld [vmem:[#allocation7 + $0x1888] sm:$0xff]
    %v4642 = vld [vmem:[#allocation7 + $0x1890] sm:$0xff]
    %v4643 = vld [vmem:[#allocation7 + $0x1898] sm:$0xff]
    %v4644 = vld [vmem:[#allocation7 + $0x18a0] sm:$0xff]
    %v4645 = vld [vmem:[#allocation7 + $0x18a8] sm:$0xff]
    %v4646 = vld [vmem:[#allocation7 + $0x18b0] sm:$0xff]
    %v4647 = vld [vmem:[#allocation7 + $0x18b8] sm:$0xff]
    %v4648 = vld [vmem:[#allocation7 + $0x18c0] sm:$0xff]
    %v4649 = vld [vmem:[#allocation7 + $0x18c8] sm:$0xff]
    %v4650 = vld [vmem:[#allocation7 + $0x18d0] sm:$0xff]
    %v4651 = vld [vmem:[#allocation7 + $0x18d8] sm:$0xff]
    %v4652 = vld [vmem:[#allocation7 + $0x18e0] sm:$0xff]
    %v4653 = vld [vmem:[#allocation7 + $0x18e8] sm:$0xff]
    %v4654 = vld [vmem:[#allocation7 + $0x18f0] sm:$0xff]
    %v4655 = vld [vmem:[#allocation7 + $0x18f8] sm:$0xff]
    %v4656 = vld [vmem:[#allocation7 + $0x1900] sm:$0xff]
    %v4657 = vld [vmem:[#allocation7 + $0x1908] sm:$0xff]
    %v4658 = vld [vmem:[#allocation7 + $0x1910] sm:$0xff]
    %v4659 = vld [vmem:[#allocation7 + $0x1918] sm:$0xff]
    %v4660 = vld [vmem:[#allocation7 + $0x1920] sm:$0xff]
    %v4661 = vld [vmem:[#allocation7 + $0x1928] sm:$0xff]
    %v4662 = vld [vmem:[#allocation7 + $0x1930] sm:$0xff]
    %v4663 = vld [vmem:[#allocation7 + $0x1938] sm:$0xff]
    %v4664 = vld [vmem:[#allocation7 + $0x1940] sm:$0xff]
    %v4665 = vld [vmem:[#allocation7 + $0x1948] sm:$0xff]
    %v4666 = vld [vmem:[#allocation7 + $0x1950] sm:$0xff]
    %v4667 = vld [vmem:[#allocation7 + $0x1958] sm:$0xff]
    %v4668 = vld [vmem:[#allocation7 + $0x1960] sm:$0xff]
    %v4669 = vld [vmem:[#allocation7 + $0x1968] sm:$0xff]
    %v4670 = vld [vmem:[#allocation7 + $0x1970] sm:$0xff]
    %v4671 = vld [vmem:[#allocation7 + $0x1978] sm:$0xff]
    %v4672 = vld [vmem:[#allocation7 + $0x1980] sm:$0xff]
    %v4673 = vld [vmem:[#allocation7 + $0x1988] sm:$0xff]
    %v4674 = vld [vmem:[#allocation7 + $0x1990] sm:$0xff]
    %v4675 = vld [vmem:[#allocation7 + $0x1998] sm:$0xff]
    %v4676 = vld [vmem:[#allocation7 + $0x19a0] sm:$0xff]
    %v4677 = vld [vmem:[#allocation7 + $0x19a8] sm:$0xff]
    %v4678 = vld [vmem:[#allocation7 + $0x19b0] sm:$0xff]
    %v4679 = vld [vmem:[#allocation7 + $0x19b8] sm:$0xff]
    %v4680 = vld [vmem:[#allocation7 + $0x19c0] sm:$0xff]
    %v4681 = vld [vmem:[#allocation7 + $0x19c8] sm:$0xff]
    %v4682 = vld [vmem:[#allocation7 + $0x19d0] sm:$0xff]
    %v4683 = vld [vmem:[#allocation7 + $0x19d8] sm:$0xff]
    %v4684 = vld [vmem:[#allocation7 + $0x19e0] sm:$0xff]
    %v4685 = vld [vmem:[#allocation7 + $0x19e8] sm:$0xff]
    %v4686 = vld [vmem:[#allocation7 + $0x19f0] sm:$0xff]
    %v4687 = vld [vmem:[#allocation7 + $0x19f8] sm:$0xff]
    %v4688 = vld [vmem:[#allocation7 + $0x1a00] sm:$0xff]
    %v4689 = vld [vmem:[#allocation7 + $0x1a08] sm:$0xff]
    %v4690 = vld [vmem:[#allocation7 + $0x1a10] sm:$0xff]
    %v4691 = vld [vmem:[#allocation7 + $0x1a18] sm:$0xff]
    %v4692 = vld [vmem:[#allocation7 + $0x1a20] sm:$0xff]
    %v4693 = vld [vmem:[#allocation7 + $0x1a28] sm:$0xff]
    %v4694 = vld [vmem:[#allocation7 + $0x1a30] sm:$0xff]
    %v4695 = vld [vmem:[#allocation7 + $0x1a38] sm:$0xff]
    %v4696 = vld [vmem:[#allocation7 + $0x1a40] sm:$0xff]
    %v4697 = vld [vmem:[#allocation7 + $0x1a48] sm:$0xff]
    %v4698 = vld [vmem:[#allocation7 + $0x1a50] sm:$0xff]
    %v4699 = vld [vmem:[#allocation7 + $0x1a58] sm:$0xff]
    %v4700 = vld [vmem:[#allocation7 + $0x1a60] sm:$0xff]
    %v4701 = vld [vmem:[#allocation7 + $0x1a68] sm:$0xff]
    %v4702 = vld [vmem:[#allocation7 + $0x1a70] sm:$0xff]
    %v4703 = vld [vmem:[#allocation7 + $0x1a78] sm:$0xff]
    %v4704 = vld [vmem:[#allocation7 + $0x1a80] sm:$0xff]
    %v4705 = vld [vmem:[#allocation7 + $0x1a88] sm:$0xff]
    %v4706 = vld [vmem:[#allocation7 + $0x1a90] sm:$0xff]
    %v4707 = vld [vmem:[#allocation7 + $0x1a98] sm:$0xff]
    %v4708 = vld [vmem:[#allocation7 + $0x1aa0] sm:$0xff]
    %v4709 = vld [vmem:[#allocation7 + $0x1aa8] sm:$0xff]
    %v4710 = vld [vmem:[#allocation7 + $0x1ab0] sm:$0xff]
    %v4711 = vld [vmem:[#allocation7 + $0x1ab8] sm:$0xff]
    %v4712 = vld [vmem:[#allocation7 + $0x1ac0] sm:$0xff]
    %v4713 = vld [vmem:[#allocation7 + $0x1ac8] sm:$0xff]
    %v4714 = vld [vmem:[#allocation7 + $0x1ad0] sm:$0xff]
    %v4715 = vld [vmem:[#allocation7 + $0x1ad8] sm:$0xff]
    %v4716 = vld [vmem:[#allocation7 + $0x1ae0] sm:$0xff]
    %v4717 = vld [vmem:[#allocation7 + $0x1ae8] sm:$0xff]
    %v4718 = vld [vmem:[#allocation7 + $0x1af0] sm:$0xff]
    %v4719 = vld [vmem:[#allocation7 + $0x1af8] sm:$0xff]
    %v4720 = vld [vmem:[#allocation7 + $0x1b00] sm:$0xff]
    %v4721 = vld [vmem:[#allocation7 + $0x1b08] sm:$0xff]
    %v4722 = vld [vmem:[#allocation7 + $0x1b10] sm:$0xff]
    %v4723 = vld [vmem:[#allocation7 + $0x1b18] sm:$0xff]
    %v4724 = vld [vmem:[#allocation7 + $0x1b20] sm:$0xff]
    %v4725 = vld [vmem:[#allocation7 + $0x1b28] sm:$0xff]
    %v4726 = vld [vmem:[#allocation7 + $0x1b30] sm:$0xff]
    %v4727 = vld [vmem:[#allocation7 + $0x1b38] sm:$0xff]
    %v4728 = vld [vmem:[#allocation7 + $0x1b40] sm:$0xff]
    %v4729 = vld [vmem:[#allocation7 + $0x1b48] sm:$0xff]
    %v4730 = vld [vmem:[#allocation7 + $0x1b50] sm:$0xff]
    %v4731 = vld [vmem:[#allocation7 + $0x1b58] sm:$0xff]
    %v4732 = vld [vmem:[#allocation7 + $0x1b60] sm:$0xff]
    %v4733 = vld [vmem:[#allocation7 + $0x1b68] sm:$0xff]
    %v4734 = vld [vmem:[#allocation7 + $0x1b70] sm:$0xff]
    %v4735 = vld [vmem:[#allocation7 + $0x1b78] sm:$0xff]
    %v4736 = vld [vmem:[#allocation7 + $0x1b80] sm:$0xff]
    %v4737 = vld [vmem:[#allocation7 + $0x1b88] sm:$0xff]
    %v4738 = vld [vmem:[#allocation7 + $0x1b90] sm:$0xff]
    %v4739 = vld [vmem:[#allocation7 + $0x1b98] sm:$0xff]
    %v4740 = vld [vmem:[#allocation7 + $0x1ba0] sm:$0xff]
    %v4741 = vld [vmem:[#allocation7 + $0x1ba8] sm:$0xff]
    %v4742 = vld [vmem:[#allocation7 + $0x1bb0] sm:$0xff]
    %v4743 = vld [vmem:[#allocation7 + $0x1bb8] sm:$0xff]
    %v4744 = vld [vmem:[#allocation7 + $0x1bc0] sm:$0xff]
    %v4745 = vld [vmem:[#allocation7 + $0x1bc8] sm:$0xff]
    %v4746 = vld [vmem:[#allocation7 + $0x1bd0] sm:$0xff]
    %v4747 = vld [vmem:[#allocation7 + $0x1bd8] sm:$0xff]
    %v4748 = vld [vmem:[#allocation7 + $0x1be0] sm:$0xff]
    %v4749 = vld [vmem:[#allocation7 + $0x1be8] sm:$0xff]
    %v4750 = vld [vmem:[#allocation7 + $0x1bf0] sm:$0xff]
    %v4751 = vld [vmem:[#allocation7 + $0x1bf8] sm:$0xff]
    %v4752 = vld [vmem:[#allocation7 + $0x1c00] sm:$0xff]
    %v4753 = vld [vmem:[#allocation7 + $0x1c08] sm:$0xff]
    %v4754 = vld [vmem:[#allocation7 + $0x1c10] sm:$0xff]
    %v4755 = vld [vmem:[#allocation7 + $0x1c18] sm:$0xff]
    %v4756 = vld [vmem:[#allocation7 + $0x1c20] sm:$0xff]
    %v4757 = vld [vmem:[#allocation7 + $0x1c28] sm:$0xff]
    %v4758 = vld [vmem:[#allocation7 + $0x1c30] sm:$0xff]
    %v4759 = vld [vmem:[#allocation7 + $0x1c38] sm:$0xff]
    %v4760 = vld [vmem:[#allocation7 + $0x1c40] sm:$0xff]
    %v4761 = vld [vmem:[#allocation7 + $0x1c48] sm:$0xff]
    %v4762 = vld [vmem:[#allocation7 + $0x1c50] sm:$0xff]
    %v4763 = vld [vmem:[#allocation7 + $0x1c58] sm:$0xff]
    %v4764 = vld [vmem:[#allocation7 + $0x1c60] sm:$0xff]
    %v4765 = vld [vmem:[#allocation7 + $0x1c68] sm:$0xff]
    %v4766 = vld [vmem:[#allocation7 + $0x1c70] sm:$0xff]
    %v4767 = vld [vmem:[#allocation7 + $0x1c78] sm:$0xff]
    %v4768 = vld [vmem:[#allocation7 + $0x1c80] sm:$0xff]
    %v4769 = vld [vmem:[#allocation7 + $0x1c88] sm:$0xff]
    %v4770 = vld [vmem:[#allocation7 + $0x1c90] sm:$0xff]
    %v4771 = vld [vmem:[#allocation7 + $0x1c98] sm:$0xff]
    %v4772 = vld [vmem:[#allocation7 + $0x1ca0] sm:$0xff]
    %v4773 = vld [vmem:[#allocation7 + $0x1ca8] sm:$0xff]
    %v4774 = vld [vmem:[#allocation7 + $0x1cb0] sm:$0xff]
    %v4775 = vld [vmem:[#allocation7 + $0x1cb8] sm:$0xff]
    %v4776 = vld [vmem:[#allocation7 + $0x1cc0] sm:$0xff]
    %v4777 = vld [vmem:[#allocation7 + $0x1cc8] sm:$0xff]
    %v4778 = vld [vmem:[#allocation7 + $0x1cd0] sm:$0xff]
    %v4779 = vld [vmem:[#allocation7 + $0x1cd8] sm:$0xff]
    %v4780 = vld [vmem:[#allocation7 + $0x1ce0] sm:$0xff]
    %v4781 = vld [vmem:[#allocation7 + $0x1ce8] sm:$0xff]
    %v4782 = vld [vmem:[#allocation7 + $0x1cf0] sm:$0xff]
    %v4783 = vld [vmem:[#allocation7 + $0x1cf8] sm:$0xff]
    %v4784 = vld [vmem:[#allocation7 + $0x1d00] sm:$0xff]
    %v4785 = vld [vmem:[#allocation7 + $0x1d08] sm:$0xff]
    %v4786 = vld [vmem:[#allocation7 + $0x1d10] sm:$0xff]
    %v4787 = vld [vmem:[#allocation7 + $0x1d18] sm:$0xff]
    %v4788 = vld [vmem:[#allocation7 + $0x1d20] sm:$0xff]
    %v4789 = vld [vmem:[#allocation7 + $0x1d28] sm:$0xff]
    %v4790 = vld [vmem:[#allocation7 + $0x1d30] sm:$0xff]
    %v4791 = vld [vmem:[#allocation7 + $0x1d38] sm:$0xff]
    %v4792 = vld [vmem:[#allocation7 + $0x1d40] sm:$0xff]
    %v4793 = vld [vmem:[#allocation7 + $0x1d48] sm:$0xff]
    %v4794 = vld [vmem:[#allocation7 + $0x1d50] sm:$0xff]
    %v4795 = vld [vmem:[#allocation7 + $0x1d58] sm:$0xff]
    %v4796 = vld [vmem:[#allocation7 + $0x1d60] sm:$0xff]
    %v4797 = vld [vmem:[#allocation7 + $0x1d68] sm:$0xff]
    %v4798 = vld [vmem:[#allocation7 + $0x1d70] sm:$0xff]
    %v4799 = vld [vmem:[#allocation7 + $0x1d78] sm:$0xff]
    %v4800 = vld [vmem:[#allocation7 + $0x1d80] sm:$0xff]
    %v4801 = vld [vmem:[#allocation7 + $0x1d88] sm:$0xff]
    %v4802 = vld [vmem:[#allocation7 + $0x1d90] sm:$0xff]
    %v4803 = vld [vmem:[#allocation7 + $0x1d98] sm:$0xff]
    %v4804 = vld [vmem:[#allocation7 + $0x1da0] sm:$0xff]
    %v4805 = vld [vmem:[#allocation7 + $0x1da8] sm:$0xff]
    %v4806 = vld [vmem:[#allocation7 + $0x1db0] sm:$0xff]
    %v4807 = vld [vmem:[#allocation7 + $0x1db8] sm:$0xff]
    %v4808 = vld [vmem:[#allocation7 + $0x1dc0] sm:$0xff]
    %v4809 = vld [vmem:[#allocation7 + $0x1dc8] sm:$0xff]
    %v4810 = vld [vmem:[#allocation7 + $0x1dd0] sm:$0xff]
    %v4811 = vld [vmem:[#allocation7 + $0x1dd8] sm:$0xff]
    %v4812 = vld [vmem:[#allocation7 + $0x1de0] sm:$0xff]
    %v4813 = vld [vmem:[#allocation7 + $0x1de8] sm:$0xff]
    %v4814 = vld [vmem:[#allocation7 + $0x1df0] sm:$0xff]
    %v4815 = vld [vmem:[#allocation7 + $0x1df8] sm:$0xff]
    %v4816 = vld [vmem:[#allocation7 + $0x1e00] sm:$0xff]
    %v4817 = vld [vmem:[#allocation7 + $0x1e08] sm:$0xff]
    %v4818 = vld [vmem:[#allocation7 + $0x1e10] sm:$0xff]
    %v4819 = vld [vmem:[#allocation7 + $0x1e18] sm:$0xff]
    %v4820 = vld [vmem:[#allocation7 + $0x1e20] sm:$0xff]
    %v4821 = vld [vmem:[#allocation7 + $0x1e28] sm:$0xff]
    %v4822 = vld [vmem:[#allocation7 + $0x1e30] sm:$0xff]
    %v4823 = vld [vmem:[#allocation7 + $0x1e38] sm:$0xff]
    %v4824 = vld [vmem:[#allocation7 + $0x1e40] sm:$0xff]
    %v4825 = vld [vmem:[#allocation7 + $0x1e48] sm:$0xff]
    %v4826 = vld [vmem:[#allocation7 + $0x1e50] sm:$0xff]
    %v4827 = vld [vmem:[#allocation7 + $0x1e58] sm:$0xff]
    %v4828 = vld [vmem:[#allocation7 + $0x1e60] sm:$0xff]
    %v4829 = vld [vmem:[#allocation7 + $0x1e68] sm:$0xff]
    %v4830 = vld [vmem:[#allocation7 + $0x1e70] sm:$0xff]
    %v4831 = vld [vmem:[#allocation7 + $0x1e78] sm:$0xff]
    %v4832 = vld [vmem:[#allocation7 + $0x1e80] sm:$0xff]
    %v4833 = vld [vmem:[#allocation7 + $0x1e88] sm:$0xff]
    %v4834 = vld [vmem:[#allocation7 + $0x1e90] sm:$0xff]
    %v4835 = vld [vmem:[#allocation7 + $0x1e98] sm:$0xff]
    %v4836 = vld [vmem:[#allocation7 + $0x1ea0] sm:$0xff]
    %v4837 = vld [vmem:[#allocation7 + $0x1ea8] sm:$0xff]
    %v4838 = vld [vmem:[#allocation7 + $0x1eb0] sm:$0xff]
    %v4839 = vld [vmem:[#allocation7 + $0x1eb8] sm:$0xff]
    %v4840 = vld [vmem:[#allocation7 + $0x1ec0] sm:$0xff]
    %v4841 = vld [vmem:[#allocation7 + $0x1ec8] sm:$0xff]
    %v4842 = vld [vmem:[#allocation7 + $0x1ed0] sm:$0xff]
    %v4843 = vld [vmem:[#allocation7 + $0x1ed8] sm:$0xff]
    %v4844 = vld [vmem:[#allocation7 + $0x1ee0] sm:$0xff]
    %v4845 = vld [vmem:[#allocation7 + $0x1ee8] sm:$0xff]
    %v4846 = vld [vmem:[#allocation7 + $0x1ef0] sm:$0xff]
    %v4847 = vld [vmem:[#allocation7 + $0x1ef8] sm:$0xff]
    %v4848 = vld [vmem:[#allocation7 + $0x1f00] sm:$0xff]
    %v4849 = vld [vmem:[#allocation7 + $0x1f08] sm:$0xff]
    %v4850 = vld [vmem:[#allocation7 + $0x1f10] sm:$0xff]
    %v4851 = vld [vmem:[#allocation7 + $0x1f18] sm:$0xff]
    %v4852 = vld [vmem:[#allocation7 + $0x1f20] sm:$0xff]
    %v4853 = vld [vmem:[#allocation7 + $0x1f28] sm:$0xff]
    %v4854 = vld [vmem:[#allocation7 + $0x1f30] sm:$0xff]
    %v4855 = vld [vmem:[#allocation7 + $0x1f38] sm:$0xff]
    %v4856 = vld [vmem:[#allocation7 + $0x1f40] sm:$0xff]
    %v4857 = vld [vmem:[#allocation7 + $0x1f48] sm:$0xff]
    %v4858 = vld [vmem:[#allocation7 + $0x1f50] sm:$0xff]
    %v4859 = vld [vmem:[#allocation7 + $0x1f58] sm:$0xff]
    %v4860 = vld [vmem:[#allocation7 + $0x1f60] sm:$0xff]
    %v4861 = vld [vmem:[#allocation7 + $0x1f68] sm:$0xff]
    %v4862 = vld [vmem:[#allocation7 + $0x1f70] sm:$0xff]
    %v4863 = vld [vmem:[#allocation7 + $0x1f78] sm:$0xff]
    %v4864 = vld [vmem:[#allocation7 + $0x1f80] sm:$0xff]
    %v4865 = vld [vmem:[#allocation7 + $0x1f88] sm:$0xff]
    %v4866 = vld [vmem:[#allocation7 + $0x1f90] sm:$0xff]
    %v4867 = vld [vmem:[#allocation7 + $0x1f98] sm:$0xff]
    %v4868 = vld [vmem:[#allocation7 + $0x1fa0] sm:$0xff]
    %v4869 = vld [vmem:[#allocation7 + $0x1fa8] sm:$0xff]
    %v4870 = vld [vmem:[#allocation7 + $0x1fb0] sm:$0xff]
    %v4871 = vld [vmem:[#allocation7 + $0x1fb8] sm:$0xff]
    %v4872 = vld [vmem:[#allocation7 + $0x1fc0] sm:$0xff]
    %v4873 = vld [vmem:[#allocation7 + $0x1fc8] sm:$0xff]
    %v4874 = vld [vmem:[#allocation7 + $0x1fd0] sm:$0xff]
    %v4875 = vld [vmem:[#allocation7 + $0x1fd8] sm:$0xff]
    %v4876 = vld [vmem:[#allocation7 + $0x1fe0] sm:$0xff]
    %v4877 = vld [vmem:[#allocation7 + $0x1fe8] sm:$0xff]
    %v4878 = vld [vmem:[#allocation7 + $0x1ff0] sm:$0xff]
    %v4879 = vld [vmem:[#allocation7 + $0x1ff8] sm:$0xff]
    %v4880 = vld [vmem:[#allocation7 + $0x2000] sm:$0xff]
    %v4881 = vld [vmem:[#allocation7 + $0x2008] sm:$0xff]
    %v4882 = vld [vmem:[#allocation7 + $0x2010] sm:$0xff]
    %v4883 = vld [vmem:[#allocation7 + $0x2018] sm:$0xff]
    %v4884 = vld [vmem:[#allocation7 + $0x2020] sm:$0xff]
    %v4885 = vld [vmem:[#allocation7 + $0x2028] sm:$0xff]
    %v4886 = vld [vmem:[#allocation7 + $0x2030] sm:$0xff]
    %v4887 = vld [vmem:[#allocation7 + $0x2038] sm:$0xff]
    %v4888 = vld [vmem:[#allocation7 + $0x2040] sm:$0xff]
    %v4889 = vld [vmem:[#allocation7 + $0x2048] sm:$0xff]
    %v4890 = vld [vmem:[#allocation7 + $0x2050] sm:$0xff]
    %v4891 = vld [vmem:[#allocation7 + $0x2058] sm:$0xff]
    %v4892 = vld [vmem:[#allocation7 + $0x2060] sm:$0xff]
    %v4893 = vld [vmem:[#allocation7 + $0x2068] sm:$0xff]
    %v4894 = vld [vmem:[#allocation7 + $0x2070] sm:$0xff]
    %v4895 = vld [vmem:[#allocation7 + $0x2078] sm:$0xff]
    %v4896 = vld [vmem:[#allocation7 + $0x2080] sm:$0xff]
    %v4897 = vld [vmem:[#allocation7 + $0x2088] sm:$0xff]
    %v4898 = vld [vmem:[#allocation7 + $0x2090] sm:$0xff]
    %v4899 = vld [vmem:[#allocation7 + $0x2098] sm:$0xff]
    %v4900 = vld [vmem:[#allocation7 + $0x20a0] sm:$0xff]
    %v4901 = vld [vmem:[#allocation7 + $0x20a8] sm:$0xff]
    %v4902 = vld [vmem:[#allocation7 + $0x20b0] sm:$0xff]
    %v4903 = vld [vmem:[#allocation7 + $0x20b8] sm:$0xff]
    %v4904 = vld [vmem:[#allocation7 + $0x20c0] sm:$0xff]
    %v4905 = vld [vmem:[#allocation7 + $0x20c8] sm:$0xff]
    %v4906 = vld [vmem:[#allocation7 + $0x20d0] sm:$0xff]
    %v4907 = vld [vmem:[#allocation7 + $0x20d8] sm:$0xff]
    %v4908 = vld [vmem:[#allocation7 + $0x20e0] sm:$0xff]
    %v4909 = vld [vmem:[#allocation7 + $0x20e8] sm:$0xff]
    %v4910 = vld [vmem:[#allocation7 + $0x20f0] sm:$0xff]
    %v4911 = vld [vmem:[#allocation7 + $0x20f8] sm:$0xff]
    %v4912 = vld [vmem:[#allocation7 + $0x2100] sm:$0xff]
    %v4913 = vld [vmem:[#allocation7 + $0x2108] sm:$0xff]
    %v4914 = vld [vmem:[#allocation7 + $0x2110] sm:$0xff]
    %v4915 = vld [vmem:[#allocation7 + $0x2118] sm:$0xff]
    %v4916 = vld [vmem:[#allocation7 + $0x2120] sm:$0xff]
    %v4917 = vld [vmem:[#allocation7 + $0x2128] sm:$0xff]
    %v4918 = vld [vmem:[#allocation7 + $0x2130] sm:$0xff]
    %v4919 = vld [vmem:[#allocation7 + $0x2138] sm:$0xff]
    %v4920 = vld [vmem:[#allocation7 + $0x2140] sm:$0xff]
    %v4921 = vld [vmem:[#allocation7 + $0x2148] sm:$0xff]
    %v4922 = vld [vmem:[#allocation7 + $0x2150] sm:$0xff]
    %v4923 = vld [vmem:[#allocation7 + $0x2158] sm:$0xff]
    %v4924 = vld [vmem:[#allocation7 + $0x2160] sm:$0xff]
    %v4925 = vld [vmem:[#allocation7 + $0x2168] sm:$0xff]
    %v4926 = vld [vmem:[#allocation7 + $0x2170] sm:$0xff]
    %v4927 = vld [vmem:[#allocation7 + $0x2178] sm:$0xff]
    %v4928 = vld [vmem:[#allocation7 + $0x2180] sm:$0xff]
    %v4929 = vld [vmem:[#allocation7 + $0x2188] sm:$0xff]
    %v4930 = vld [vmem:[#allocation7 + $0x2190] sm:$0xff]
    %v4931 = vld [vmem:[#allocation7 + $0x2198] sm:$0xff]
    %v4932 = vld [vmem:[#allocation7 + $0x21a0] sm:$0xff]
    %v4933 = vld [vmem:[#allocation7 + $0x21a8] sm:$0xff]
    %v4934 = vld [vmem:[#allocation7 + $0x21b0] sm:$0xff]
    %v4935 = vld [vmem:[#allocation7 + $0x21b8] sm:$0xff]
    %v4936 = vld [vmem:[#allocation7 + $0x21c0] sm:$0xff]
    %v4937 = vld [vmem:[#allocation7 + $0x21c8] sm:$0xff]
    %v4938 = vld [vmem:[#allocation7 + $0x21d0] sm:$0xff]
    %v4939 = vld [vmem:[#allocation7 + $0x21d8] sm:$0xff]
    %v4940 = vld [vmem:[#allocation7 + $0x21e0] sm:$0xff]
    %v4941 = vld [vmem:[#allocation7 + $0x21e8] sm:$0xff]
    %v4942 = vld [vmem:[#allocation7 + $0x21f0] sm:$0xff]
    %v4943 = vld [vmem:[#allocation7 + $0x21f8] sm:$0xff]
    %v4944 = vld [vmem:[#allocation7 + $0x2200] sm:$0xff]
    %v4945 = vld [vmem:[#allocation7 + $0x2208] sm:$0xff]
    %v4946 = vld [vmem:[#allocation7 + $0x2210] sm:$0xff]
    %v4947 = vld [vmem:[#allocation7 + $0x2218] sm:$0xff]
    %v4948 = vld [vmem:[#allocation7 + $0x2220] sm:$0xff]
    %v4949 = vld [vmem:[#allocation7 + $0x2228] sm:$0xff]
    %v4950 = vld [vmem:[#allocation7 + $0x2230] sm:$0xff]
    %v4951 = vld [vmem:[#allocation7 + $0x2238] sm:$0xff]
    %v4952 = vld [vmem:[#allocation7 + $0x2240] sm:$0xff]
    %v4953 = vld [vmem:[#allocation7 + $0x2248] sm:$0xff]
    %v4954 = vld [vmem:[#allocation7 + $0x2250] sm:$0xff]
    %v4955 = vld [vmem:[#allocation7 + $0x2258] sm:$0xff]
    %v4956 = vld [vmem:[#allocation7 + $0x2260] sm:$0xff]
    %v4957 = vld [vmem:[#allocation7 + $0x2268] sm:$0xff]
    %v4958 = vld [vmem:[#allocation7 + $0x2270] sm:$0xff]
    %v4959 = vld [vmem:[#allocation7 + $0x2278] sm:$0xff]
    %v4960 = vld [vmem:[#allocation7 + $0x2280] sm:$0xff]
    %v4961 = vld [vmem:[#allocation7 + $0x2288] sm:$0xff]
    %v4962 = vld [vmem:[#allocation7 + $0x2290] sm:$0xff]
    %v4963 = vld [vmem:[#allocation7 + $0x2298] sm:$0xff]
    %v4964 = vld [vmem:[#allocation7 + $0x22a0] sm:$0xff]
    %v4965 = vld [vmem:[#allocation7 + $0x22a8] sm:$0xff]
    %v4966 = vld [vmem:[#allocation7 + $0x22b0] sm:$0xff]
    %v4967 = vld [vmem:[#allocation7 + $0x22b8] sm:$0xff]
    %v4968 = vld [vmem:[#allocation7 + $0x22c0] sm:$0xff]
    %v4969 = vld [vmem:[#allocation7 + $0x22c8] sm:$0xff]
    %v4970 = vld [vmem:[#allocation7 + $0x22d0] sm:$0xff]
    %v4971 = vld [vmem:[#allocation7 + $0x22d8] sm:$0xff]
    %v4972 = vld [vmem:[#allocation7 + $0x22e0] sm:$0xff]
    %v4973 = vld [vmem:[#allocation7 + $0x22e8] sm:$0xff]
    %v4974 = vld [vmem:[#allocation7 + $0x22f0] sm:$0xff]
    %v4975 = vld [vmem:[#allocation7 + $0x22f8] sm:$0xff]
    %v4976 = vld [vmem:[#allocation7 + $0x2300] sm:$0xff]
    %v4977 = vld [vmem:[#allocation7 + $0x2308] sm:$0xff]
    %v4978 = vld [vmem:[#allocation7 + $0x2310] sm:$0xff]
    %v4979 = vld [vmem:[#allocation7 + $0x2318] sm:$0xff]
    %v4980 = vld [vmem:[#allocation7 + $0x2320] sm:$0xff]
    %v4981 = vld [vmem:[#allocation7 + $0x2328] sm:$0xff]
    %v4982 = vld [vmem:[#allocation7 + $0x2330] sm:$0xff]
    %v4983 = vld [vmem:[#allocation7 + $0x2338] sm:$0xff]
    %v4984 = vld [vmem:[#allocation7 + $0x2340] sm:$0xff]
    %v4985 = vld [vmem:[#allocation7 + $0x2348] sm:$0xff]
    %v4986 = vld [vmem:[#allocation7 + $0x2350] sm:$0xff]
    %v4987 = vld [vmem:[#allocation7 + $0x2358] sm:$0xff]
    %v4988 = vld [vmem:[#allocation7 + $0x2360] sm:$0xff]
    %v4989 = vld [vmem:[#allocation7 + $0x2368] sm:$0xff]
    %v4990 = vld [vmem:[#allocation7 + $0x2370] sm:$0xff]
    %v4991 = vld [vmem:[#allocation7 + $0x2378] sm:$0xff]
    %v4992 = vld [vmem:[#allocation7 + $0x2380] sm:$0xff]
    %v4993 = vld [vmem:[#allocation7 + $0x2388] sm:$0xff]
    %v4994 = vld [vmem:[#allocation7 + $0x2390] sm:$0xff]
    %v4995 = vld [vmem:[#allocation7 + $0x2398] sm:$0xff]
    %v4996 = vld [vmem:[#allocation7 + $0x23a0] sm:$0xff]
    %v4997 = vld [vmem:[#allocation7 + $0x23a8] sm:$0xff]
    %v4998 = vld [vmem:[#allocation7 + $0x23b0] sm:$0xff]
    %v4999 = vld [vmem:[#allocation7 + $0x23b8] sm:$0xff]
    %v5000 = vld [vmem:[#allocation7 + $0x23c0] sm:$0xff]
    %v5001 = vld [vmem:[#allocation7 + $0x23c8] sm:$0xff]
    %v5002 = vld [vmem:[#allocation7 + $0x23d0] sm:$0xff]
    %v5003 = vld [vmem:[#allocation7 + $0x23d8] sm:$0xff]
    %v5004 = vld [vmem:[#allocation7 + $0x23e0] sm:$0xff]
    %v5005 = vld [vmem:[#allocation7 + $0x23e8] sm:$0xff]
    %v5006 = vld [vmem:[#allocation7 + $0x23f0] sm:$0xff]
    %v5007 = vld [vmem:[#allocation7 + $0x23f8] sm:$0xff]
    %v5008 = vld [vmem:[#allocation7 + $0x2400] sm:$0xff]
    %v5009 = vld [vmem:[#allocation7 + $0x2408] sm:$0xff]
    %v5010 = vld [vmem:[#allocation7 + $0x2410] sm:$0xff]
    %v5011 = vld [vmem:[#allocation7 + $0x2418] sm:$0xff]
    %v5012 = vld [vmem:[#allocation7 + $0x2420] sm:$0xff]
    %v5013 = vld [vmem:[#allocation7 + $0x2428] sm:$0xff]
    %v5014 = vld [vmem:[#allocation7 + $0x2430] sm:$0xff]
    %v5015 = vld [vmem:[#allocation7 + $0x2438] sm:$0xff]
    %v5016 = vld [vmem:[#allocation7 + $0x2440] sm:$0xff]
    %v5017 = vld [vmem:[#allocation7 + $0x2448] sm:$0xff]
    %v5018 = vld [vmem:[#allocation7 + $0x2450] sm:$0xff]
    %v5019 = vld [vmem:[#allocation7 + $0x2458] sm:$0xff]
    %v5020 = vld [vmem:[#allocation7 + $0x2460] sm:$0xff]
    %v5021 = vld [vmem:[#allocation7 + $0x2468] sm:$0xff]
    %v5022 = vld [vmem:[#allocation7 + $0x2470] sm:$0xff]
    %v5023 = vld [vmem:[#allocation7 + $0x2478] sm:$0xff]
    %v5024 = vld [vmem:[#allocation7 + $0x2480] sm:$0xff]
    %v5025 = vld [vmem:[#allocation7 + $0x2488] sm:$0xff]
    %v5026 = vld [vmem:[#allocation7 + $0x2490] sm:$0xff]
    %v5027 = vld [vmem:[#allocation7 + $0x2498] sm:$0xff]
    %v5028 = vld [vmem:[#allocation7 + $0x24a0] sm:$0xff]
    %v5029 = vld [vmem:[#allocation7 + $0x24a8] sm:$0xff]
    %v5030 = vld [vmem:[#allocation7 + $0x24b0] sm:$0xff]
    %v5031 = vld [vmem:[#allocation7 + $0x24b8] sm:$0xff]
    %v5032 = vld [vmem:[#allocation7 + $0x24c0] sm:$0xff]
    %v5033 = vld [vmem:[#allocation7 + $0x24c8] sm:$0xff]
    %v5034 = vld [vmem:[#allocation7 + $0x24d0] sm:$0xff]
    %v5035 = vld [vmem:[#allocation7 + $0x24d8] sm:$0xff]
    %v5036 = vld [vmem:[#allocation7 + $0x24e0] sm:$0xff]
    %v5037 = vld [vmem:[#allocation7 + $0x24e8] sm:$0xff]
    %v5038 = vld [vmem:[#allocation7 + $0x24f0] sm:$0xff]
    %v5039 = vld [vmem:[#allocation7 + $0x24f8] sm:$0xff]
    %v5040 = vld [vmem:[#allocation7 + $0x2500] sm:$0xff]
    %v5041 = vld [vmem:[#allocation7 + $0x2508] sm:$0xff]
    %v5042 = vld [vmem:[#allocation7 + $0x2510] sm:$0xff]
    %v5043 = vld [vmem:[#allocation7 + $0x2518] sm:$0xff]
    %v5044 = vld [vmem:[#allocation7 + $0x2520] sm:$0xff]
    %v5045 = vld [vmem:[#allocation7 + $0x2528] sm:$0xff]
    %v5046 = vld [vmem:[#allocation7 + $0x2530] sm:$0xff]
    %v5047 = vld [vmem:[#allocation7 + $0x2538] sm:$0xff]
    %v5048 = vld [vmem:[#allocation7 + $0x2540] sm:$0xff]
    %v5049 = vld [vmem:[#allocation7 + $0x2548] sm:$0xff]
    %v5050 = vld [vmem:[#allocation7 + $0x2550] sm:$0xff]
    %v5051 = vld [vmem:[#allocation7 + $0x2558] sm:$0xff]
    %v5052 = vld [vmem:[#allocation7 + $0x2560] sm:$0xff]
    %v5053 = vld [vmem:[#allocation7 + $0x2568] sm:$0xff]
    %v5054 = vld [vmem:[#allocation7 + $0x2570] sm:$0xff]
    %v5055 = vld [vmem:[#allocation7 + $0x2578] sm:$0xff]
    %v5056 = vld [vmem:[#allocation7 + $0x2580] sm:$0xff]
    %v5057 = vld [vmem:[#allocation7 + $0x2588] sm:$0xff]
    %v5058 = vld [vmem:[#allocation7 + $0x2590] sm:$0xff]
    %v5059 = vld [vmem:[#allocation7 + $0x2598] sm:$0xff]
    %v5060 = vld [vmem:[#allocation7 + $0x25a0] sm:$0xff]
    %v5061 = vld [vmem:[#allocation7 + $0x25a8] sm:$0xff]
    %v5062 = vld [vmem:[#allocation7 + $0x25b0] sm:$0xff]
    %v5063 = vld [vmem:[#allocation7 + $0x25b8] sm:$0xff]
    %v5064 = vld [vmem:[#allocation7 + $0x25c0] sm:$0xff]
    %v5065 = vld [vmem:[#allocation7 + $0x25c8] sm:$0xff]
    %v5066 = vld [vmem:[#allocation7 + $0x25d0] sm:$0xff]
    %v5067 = vld [vmem:[#allocation7 + $0x25d8] sm:$0xff]
    %v5068 = vld [vmem:[#allocation7 + $0x25e0] sm:$0xff]
    %v5069 = vld [vmem:[#allocation7 + $0x25e8] sm:$0xff]
    %v5070 = vld [vmem:[#allocation7 + $0x25f0] sm:$0xff]
    %v5071 = vld [vmem:[#allocation7 + $0x25f8] sm:$0xff]
    %v5072 = vld [vmem:[#allocation7 + $0x2600] sm:$0xff]
    %v5073 = vld [vmem:[#allocation7 + $0x2608] sm:$0xff]
    %v5074 = vld [vmem:[#allocation7 + $0x2610] sm:$0xff]
    %v5075 = vld [vmem:[#allocation7 + $0x2618] sm:$0xff]
    %v5076 = vld [vmem:[#allocation7 + $0x2620] sm:$0xff]
    %v5077 = vld [vmem:[#allocation7 + $0x2628] sm:$0xff]
    %v5078 = vld [vmem:[#allocation7 + $0x2630] sm:$0xff]
    %v5079 = vld [vmem:[#allocation7 + $0x2638] sm:$0xff]
    %v5080 = vld [vmem:[#allocation7 + $0x2640] sm:$0xff]
    %v5081 = vld [vmem:[#allocation7 + $0x2648] sm:$0xff]
    %v5082 = vld [vmem:[#allocation7 + $0x2650] sm:$0xff]
    %v5083 = vld [vmem:[#allocation7 + $0x2658] sm:$0xff]
    %v5084 = vld [vmem:[#allocation7 + $0x2660] sm:$0xff]
    %v5085 = vld [vmem:[#allocation7 + $0x2668] sm:$0xff]
    %v5086 = vld [vmem:[#allocation7 + $0x2670] sm:$0xff]
    %v5087 = vld [vmem:[#allocation7 + $0x2678] sm:$0xff]
    %v5088 = vld [vmem:[#allocation7 + $0x2680] sm:$0xff]
    %v5089 = vld [vmem:[#allocation7 + $0x2688] sm:$0xff]
    %v5090 = vld [vmem:[#allocation7 + $0x2690] sm:$0xff]
    %v5091 = vld [vmem:[#allocation7 + $0x2698] sm:$0xff]
    %v5092 = vld [vmem:[#allocation7 + $0x26a0] sm:$0xff]
    %v5093 = vld [vmem:[#allocation7 + $0x26a8] sm:$0xff]
    %v5094 = vld [vmem:[#allocation7 + $0x26b0] sm:$0xff]
    %v5095 = vld [vmem:[#allocation7 + $0x26b8] sm:$0xff]
    %v5096 = vld [vmem:[#allocation7 + $0x26c0] sm:$0xff]
    %v5097 = vld [vmem:[#allocation7 + $0x26c8] sm:$0xff]
    %v5098 = vld [vmem:[#allocation7 + $0x26d0] sm:$0xff]
    %v5099 = vld [vmem:[#allocation7 + $0x26d8] sm:$0xff]
    %v5100 = vld [vmem:[#allocation7 + $0x26e0] sm:$0xff]
    %v5101 = vld [vmem:[#allocation7 + $0x26e8] sm:$0xff]
    %v5102 = vld [vmem:[#allocation7 + $0x26f0] sm:$0xff]
    %v5103 = vld [vmem:[#allocation7 + $0x26f8] sm:$0xff]
    %v5104 = vld [vmem:[#allocation7 + $0x2700] sm:$0xff]
    %v5105 = vld [vmem:[#allocation7 + $0x2708] sm:$0xff]
    %v5106 = vld [vmem:[#allocation7 + $0x2710] sm:$0xff]
    %v5107 = vld [vmem:[#allocation7 + $0x2718] sm:$0xff]
    %v5108 = vld [vmem:[#allocation7 + $0x2720] sm:$0xff]
    %v5109 = vld [vmem:[#allocation7 + $0x2728] sm:$0xff]
    %v5110 = vld [vmem:[#allocation7 + $0x2730] sm:$0xff]
    %v5111 = vld [vmem:[#allocation7 + $0x2738] sm:$0xff]
    %v5112 = vld [vmem:[#allocation7 + $0x2740] sm:$0xff]
    %v5113 = vld [vmem:[#allocation7 + $0x2748] sm:$0xff]
    %v5114 = vld [vmem:[#allocation7 + $0x2750] sm:$0xff]
    %v5115 = vld [vmem:[#allocation7 + $0x2758] sm:$0xff]
    %v5116 = vld [vmem:[#allocation7 + $0x2760] sm:$0xff]
    %v5117 = vld [vmem:[#allocation7 + $0x2768] sm:$0xff]
    %v5118 = vld [vmem:[#allocation7 + $0x2770] sm:$0xff]
    %v5119 = vld [vmem:[#allocation7 + $0x2778] sm:$0xff]
    %v5120 = vld [vmem:[#allocation7 + $0x2780] sm:$0xff]
    %v5121 = vld [vmem:[#allocation7 + $0x2788] sm:$0xff]
    %v5122 = vld [vmem:[#allocation7 + $0x2790] sm:$0xff]
    %v5123 = vld [vmem:[#allocation7 + $0x2798] sm:$0xff]
    %v5124 = vld [vmem:[#allocation7 + $0x27a0] sm:$0xff]
    %v5125 = vld [vmem:[#allocation7 + $0x27a8] sm:$0xff]
    %v5126 = vld [vmem:[#allocation7 + $0x27b0] sm:$0xff]
    %v5127 = vld [vmem:[#allocation7 + $0x27b8] sm:$0xff]
    %v5128 = vld [vmem:[#allocation7 + $0x27c0] sm:$0xff]
    %v5129 = vld [vmem:[#allocation7 + $0x27c8] sm:$0xff]
    %v5130 = vld [vmem:[#allocation7 + $0x27d0] sm:$0xff]
    %v5131 = vld [vmem:[#allocation7 + $0x27d8] sm:$0xff]
    %v5132 = vld [vmem:[#allocation7 + $0x27e0] sm:$0xff]
    %v5133 = vld [vmem:[#allocation7 + $0x27e8] sm:$0xff]
    %v5134 = vld [vmem:[#allocation7 + $0x27f0] sm:$0xff]
    %v5135 = vld [vmem:[#allocation7 + $0x27f8] sm:$0xff]
    %v5136 = vld [vmem:[#allocation7 + $0x2800] sm:$0xff]
    %v5137 = vld [vmem:[#allocation7 + $0x2808] sm:$0xff]
    %v5138 = vld [vmem:[#allocation7 + $0x2810] sm:$0xff]
    %v5139 = vld [vmem:[#allocation7 + $0x2818] sm:$0xff]
    %v5140 = vld [vmem:[#allocation7 + $0x2820] sm:$0xff]
    %v5141 = vld [vmem:[#allocation7 + $0x2828] sm:$0xff]
    %v5142 = vld [vmem:[#allocation7 + $0x2830] sm:$0xff]
    %v5143 = vld [vmem:[#allocation7 + $0x2838] sm:$0xff]
    %v5144 = vld [vmem:[#allocation7 + $0x2840] sm:$0xff]
    %v5145 = vld [vmem:[#allocation7 + $0x2848] sm:$0xff]
    %v5146 = vld [vmem:[#allocation7 + $0x2850] sm:$0xff]
    %v5147 = vld [vmem:[#allocation7 + $0x2858] sm:$0xff]
    %v5148 = vld [vmem:[#allocation7 + $0x2860] sm:$0xff]
    %v5149 = vld [vmem:[#allocation7 + $0x2868] sm:$0xff]
    %v5150 = vld [vmem:[#allocation7 + $0x2870] sm:$0xff]
    %v5151 = vld [vmem:[#allocation7 + $0x2878] sm:$0xff]
    %v5152 = vld [vmem:[#allocation7 + $0x2880] sm:$0xff]
    %v5153 = vld [vmem:[#allocation7 + $0x2888] sm:$0xff]
    %v5154 = vld [vmem:[#allocation7 + $0x2890] sm:$0xff]
    %v5155 = vld [vmem:[#allocation7 + $0x2898] sm:$0xff]
    %v5156 = vld [vmem:[#allocation7 + $0x28a0] sm:$0xff]
    %v5157 = vld [vmem:[#allocation7 + $0x28a8] sm:$0xff]
    %v5158 = vld [vmem:[#allocation7 + $0x28b0] sm:$0xff]
    %v5159 = vld [vmem:[#allocation7 + $0x28b8] sm:$0xff]
    %v5160 = vld [vmem:[#allocation7 + $0x28c0] sm:$0xff]
    %v5161 = vld [vmem:[#allocation7 + $0x28c8] sm:$0xff]
    %v5162 = vld [vmem:[#allocation7 + $0x28d0] sm:$0xff]
    %v5163 = vld [vmem:[#allocation7 + $0x28d8] sm:$0xff]
    %v5164 = vld [vmem:[#allocation7 + $0x28e0] sm:$0xff]
    %v5165 = vld [vmem:[#allocation7 + $0x28e8] sm:$0xff]
    %v5166 = vld [vmem:[#allocation7 + $0x28f0] sm:$0xff]
    %v5167 = vld [vmem:[#allocation7 + $0x28f8] sm:$0xff]
    %v5168 = vld [vmem:[#allocation7 + $0x2900] sm:$0xff]
    %v5169 = vld [vmem:[#allocation7 + $0x2908] sm:$0xff]
    %v5170 = vld [vmem:[#allocation7 + $0x2910] sm:$0xff]
    %v5171 = vld [vmem:[#allocation7 + $0x2918] sm:$0xff]
    %v5172 = vld [vmem:[#allocation7 + $0x2920] sm:$0xff]
    %v5173 = vld [vmem:[#allocation7 + $0x2928] sm:$0xff]
    %v5174 = vld [vmem:[#allocation7 + $0x2930] sm:$0xff]
    %v5175 = vld [vmem:[#allocation7 + $0x2938] sm:$0xff]
    %v5176 = vld [vmem:[#allocation7 + $0x2940] sm:$0xff]
    %v5177 = vld [vmem:[#allocation7 + $0x2948] sm:$0xff]
    %v5178 = vld [vmem:[#allocation7 + $0x2950] sm:$0xff]
    %v5179 = vld [vmem:[#allocation7 + $0x2958] sm:$0xff]
    %v5180 = vld [vmem:[#allocation7 + $0x2960] sm:$0xff]
    %v5181 = vld [vmem:[#allocation7 + $0x2968] sm:$0xff]
    %v5182 = vld [vmem:[#allocation7 + $0x2970] sm:$0xff]
    %v5183 = vld [vmem:[#allocation7 + $0x2978] sm:$0xff]
    %v5184 = vld [vmem:[#allocation7 + $0x2980] sm:$0xff]
    %v5185 = vld [vmem:[#allocation7 + $0x2988] sm:$0xff]
    %v5186 = vld [vmem:[#allocation7 + $0x2990] sm:$0xff]
    %v5187 = vld [vmem:[#allocation7 + $0x2998] sm:$0xff]
    %v5188 = vld [vmem:[#allocation7 + $0x29a0] sm:$0xff]
    %v5189 = vld [vmem:[#allocation7 + $0x29a8] sm:$0xff]
    %v5190 = vld [vmem:[#allocation7 + $0x29b0] sm:$0xff]
    %v5191 = vld [vmem:[#allocation7 + $0x29b8] sm:$0xff]
    %v5192 = vld [vmem:[#allocation7 + $0x29c0] sm:$0xff]
    %v5193 = vld [vmem:[#allocation7 + $0x29c8] sm:$0xff]
    %v5194 = vld [vmem:[#allocation7 + $0x29d0] sm:$0xff]
    %v5195 = vld [vmem:[#allocation7 + $0x29d8] sm:$0xff]
    %v5196 = vld [vmem:[#allocation7 + $0x29e0] sm:$0xff]
    %v5197 = vld [vmem:[#allocation7 + $0x29e8] sm:$0xff]
    %v5198 = vld [vmem:[#allocation7 + $0x29f0] sm:$0xff]
    %v5199 = vld [vmem:[#allocation7 + $0x29f8] sm:$0xff]
    %v5200 = vld [vmem:[#allocation7 + $0x2a00] sm:$0xff]
    %v5201 = vld [vmem:[#allocation7 + $0x2a08] sm:$0xff]
    %v5202 = vld [vmem:[#allocation7 + $0x2a10] sm:$0xff]
    %v5203 = vld [vmem:[#allocation7 + $0x2a18] sm:$0xff]
    %v5204 = vld [vmem:[#allocation7 + $0x2a20] sm:$0xff]
    %v5205 = vld [vmem:[#allocation7 + $0x2a28] sm:$0xff]
    %v5206 = vld [vmem:[#allocation7 + $0x2a30] sm:$0xff]
    %v5207 = vld [vmem:[#allocation7 + $0x2a38] sm:$0xff]
    %v5208 = vld [vmem:[#allocation7 + $0x2a40] sm:$0xff]
    %v5209 = vld [vmem:[#allocation7 + $0x2a48] sm:$0xff]
    %v5210 = vld [vmem:[#allocation7 + $0x2a50] sm:$0xff]
    %v5211 = vld [vmem:[#allocation7 + $0x2a58] sm:$0xff]
    %v5212 = vld [vmem:[#allocation7 + $0x2a60] sm:$0xff]
    %v5213 = vld [vmem:[#allocation7 + $0x2a68] sm:$0xff]
    %v5214 = vld [vmem:[#allocation7 + $0x2a70] sm:$0xff]
    %v5215 = vld [vmem:[#allocation7 + $0x2a78] sm:$0xff]
    %v5216 = vld [vmem:[#allocation7 + $0x2a80] sm:$0xff]
    %v5217 = vld [vmem:[#allocation7 + $0x2a88] sm:$0xff]
    %v5218 = vld [vmem:[#allocation7 + $0x2a90] sm:$0xff]
    %v5219 = vld [vmem:[#allocation7 + $0x2a98] sm:$0xff]
    %v5220 = vld [vmem:[#allocation7 + $0x2aa0] sm:$0xff]
    %v5221 = vld [vmem:[#allocation7 + $0x2aa8] sm:$0xff]
    %v5222 = vld [vmem:[#allocation7 + $0x2ab0] sm:$0xff]
    %v5223 = vld [vmem:[#allocation7 + $0x2ab8] sm:$0xff]
    %v5224 = vld [vmem:[#allocation7 + $0x2ac0] sm:$0xff]
    %v5225 = vld [vmem:[#allocation7 + $0x2ac8] sm:$0xff]
    %v5226 = vld [vmem:[#allocation7 + $0x2ad0] sm:$0xff]
    %v5227 = vld [vmem:[#allocation7 + $0x2ad8] sm:$0xff]
    %v5228 = vld [vmem:[#allocation7 + $0x2ae0] sm:$0xff]
    %v5229 = vld [vmem:[#allocation7 + $0x2ae8] sm:$0xff]
    %v5230 = vld [vmem:[#allocation7 + $0x2af0] sm:$0xff]
    %v5231 = vld [vmem:[#allocation7 + $0x2af8] sm:$0xff]
    %v5232 = vld [vmem:[#allocation7 + $0x2b00] sm:$0xff]
    %v5233 = vld [vmem:[#allocation7 + $0x2b08] sm:$0xff]
    %v5234 = vld [vmem:[#allocation7 + $0x2b10] sm:$0xff]
    %v5235 = vld [vmem:[#allocation7 + $0x2b18] sm:$0xff]
    %v5236 = vld [vmem:[#allocation7 + $0x2b20] sm:$0xff]
    %v5237 = vld [vmem:[#allocation7 + $0x2b28] sm:$0xff]
    %v5238 = vld [vmem:[#allocation7 + $0x2b30] sm:$0xff]
    %v5239 = vld [vmem:[#allocation7 + $0x2b38] sm:$0xff]
    %v5240 = vld [vmem:[#allocation7 + $0x2b40] sm:$0xff]
    %v5241 = vld [vmem:[#allocation7 + $0x2b48] sm:$0xff]
    %v5242 = vld [vmem:[#allocation7 + $0x2b50] sm:$0xff]
    %v5243 = vld [vmem:[#allocation7 + $0x2b58] sm:$0xff]
    %v5244 = vld [vmem:[#allocation7 + $0x2b60] sm:$0xff]
    %v5245 = vld [vmem:[#allocation7 + $0x2b68] sm:$0xff]
    %v5246 = vld [vmem:[#allocation7 + $0x2b70] sm:$0xff]
    %v5247 = vld [vmem:[#allocation7 + $0x2b78] sm:$0xff]
    %v5248 = vld [vmem:[#allocation7 + $0x2b80] sm:$0xff]
    %v5249 = vld [vmem:[#allocation7 + $0x2b88] sm:$0xff]
    %v5250 = vld [vmem:[#allocation7 + $0x2b90] sm:$0xff]
    %v5251 = vld [vmem:[#allocation7 + $0x2b98] sm:$0xff]
    %v5252 = vld [vmem:[#allocation7 + $0x2ba0] sm:$0xff]
    %v5253 = vld [vmem:[#allocation7 + $0x2ba8] sm:$0xff]
    %v5254 = vld [vmem:[#allocation7 + $0x2bb0] sm:$0xff]
    %v5255 = vld [vmem:[#allocation7 + $0x2bb8] sm:$0xff]
    %v5256 = vld [vmem:[#allocation7 + $0x2bc0] sm:$0xff]
    %v5257 = vld [vmem:[#allocation7 + $0x2bc8] sm:$0xff]
    %v5258 = vld [vmem:[#allocation7 + $0x2bd0] sm:$0xff]
    %v5259 = vld [vmem:[#allocation7 + $0x2bd8] sm:$0xff]
    %v5260 = vld [vmem:[#allocation7 + $0x2be0] sm:$0xff]
    %v5261 = vld [vmem:[#allocation7 + $0x2be8] sm:$0xff]
    %v5262 = vld [vmem:[#allocation7 + $0x2bf0] sm:$0xff]
    %v5263 = vld [vmem:[#allocation7 + $0x2bf8] sm:$0xff]
    %v5264 = vld [vmem:[#allocation7 + $0x2c00] sm:$0xff]
    %v5265 = vld [vmem:[#allocation7 + $0x2c08] sm:$0xff]
    %v5266 = vld [vmem:[#allocation7 + $0x2c10] sm:$0xff]
    %v5267 = vld [vmem:[#allocation7 + $0x2c18] sm:$0xff]
    %v5268 = vld [vmem:[#allocation7 + $0x2c20] sm:$0xff]
    %v5269 = vld [vmem:[#allocation7 + $0x2c28] sm:$0xff]
    %v5270 = vld [vmem:[#allocation7 + $0x2c30] sm:$0xff]
    %v5271 = vld [vmem:[#allocation7 + $0x2c38] sm:$0xff]
    %v5272 = vld [vmem:[#allocation7 + $0x2c40] sm:$0xff]
    %v5273 = vld [vmem:[#allocation7 + $0x2c48] sm:$0xff]
    %v5274 = vld [vmem:[#allocation7 + $0x2c50] sm:$0xff]
    %v5275 = vld [vmem:[#allocation7 + $0x2c58] sm:$0xff]
    %v5276 = vld [vmem:[#allocation7 + $0x2c60] sm:$0xff]
    %v5277 = vld [vmem:[#allocation7 + $0x2c68] sm:$0xff]
    %v5278 = vld [vmem:[#allocation7 + $0x2c70] sm:$0xff]
    %v5279 = vld [vmem:[#allocation7 + $0x2c78] sm:$0xff]
    %v5280 = vld [vmem:[#allocation7 + $0x2c80] sm:$0xff]
    %v5281 = vld [vmem:[#allocation7 + $0x2c88] sm:$0xff]
    %v5282 = vld [vmem:[#allocation7 + $0x2c90] sm:$0xff]
    %v5283 = vld [vmem:[#allocation7 + $0x2c98] sm:$0xff]
    %v5284 = vld [vmem:[#allocation7 + $0x2ca0] sm:$0xff]
    %v5285 = vld [vmem:[#allocation7 + $0x2ca8] sm:$0xff]
    %v5286 = vld [vmem:[#allocation7 + $0x2cb0] sm:$0xff]
    %v5287 = vld [vmem:[#allocation7 + $0x2cb8] sm:$0xff]
    %v5288 = vld [vmem:[#allocation7 + $0x2cc0] sm:$0xff]
    %v5289 = vld [vmem:[#allocation7 + $0x2cc8] sm:$0xff]
    %v5290 = vld [vmem:[#allocation7 + $0x2cd0] sm:$0xff]
    %v5291 = vld [vmem:[#allocation7 + $0x2cd8] sm:$0xff]
    %v5292 = vld [vmem:[#allocation7 + $0x2ce0] sm:$0xff]
    %v5293 = vld [vmem:[#allocation7 + $0x2ce8] sm:$0xff]
    %v5294 = vld [vmem:[#allocation7 + $0x2cf0] sm:$0xff]
    %v5295 = vld [vmem:[#allocation7 + $0x2cf8] sm:$0xff]
    %v5296 = vld [vmem:[#allocation7 + $0x2d00] sm:$0xff]
    %v5297 = vld [vmem:[#allocation7 + $0x2d08] sm:$0xff]
    %v5298 = vld [vmem:[#allocation7 + $0x2d10] sm:$0xff]
    %v5299 = vld [vmem:[#allocation7 + $0x2d18] sm:$0xff]
    %v5300 = vld [vmem:[#allocation7 + $0x2d20] sm:$0xff]
    %v5301 = vld [vmem:[#allocation7 + $0x2d28] sm:$0xff]
    %v5302 = vld [vmem:[#allocation7 + $0x2d30] sm:$0xff]
    %v5303 = vld [vmem:[#allocation7 + $0x2d38] sm:$0xff]
    %v5304 = vld [vmem:[#allocation7 + $0x2d40] sm:$0xff]
    %v5305 = vld [vmem:[#allocation7 + $0x2d48] sm:$0xff]
    %v5306 = vld [vmem:[#allocation7 + $0x2d50] sm:$0xff]
    %v5307 = vld [vmem:[#allocation7 + $0x2d58] sm:$0xff]
    %v5308 = vld [vmem:[#allocation7 + $0x2d60] sm:$0xff]
    %v5309 = vld [vmem:[#allocation7 + $0x2d68] sm:$0xff]
    %v5310 = vld [vmem:[#allocation7 + $0x2d70] sm:$0xff]
    %v5311 = vld [vmem:[#allocation7 + $0x2d78] sm:$0xff]
    %v5312 = vld [vmem:[#allocation7 + $0x2d80] sm:$0xff]
    %v5313 = vld [vmem:[#allocation7 + $0x2d88] sm:$0xff]
    %v5314 = vld [vmem:[#allocation7 + $0x2d90] sm:$0xff]
    %v5315 = vld [vmem:[#allocation7 + $0x2d98] sm:$0xff]
    %v5316 = vld [vmem:[#allocation7 + $0x2da0] sm:$0xff]
    %v5317 = vld [vmem:[#allocation7 + $0x2da8] sm:$0xff]
    %v5318 = vld [vmem:[#allocation7 + $0x2db0] sm:$0xff]
    %v5319 = vld [vmem:[#allocation7 + $0x2db8] sm:$0xff]
    %v5320 = vld [vmem:[#allocation7 + $0x2dc0] sm:$0xff]
    %v5321 = vld [vmem:[#allocation7 + $0x2dc8] sm:$0xff]
    %v5322 = vld [vmem:[#allocation7 + $0x2dd0] sm:$0xff]
    %v5323 = vld [vmem:[#allocation7 + $0x2dd8] sm:$0xff]
    %v5324 = vld [vmem:[#allocation7 + $0x2de0] sm:$0xff]
    %v5325 = vld [vmem:[#allocation7 + $0x2de8] sm:$0xff]
    %v5326 = vld [vmem:[#allocation7 + $0x2df0] sm:$0xff]
    %v5327 = vld [vmem:[#allocation7 + $0x2df8] sm:$0xff]
    %v5328 = vld [vmem:[#allocation7 + $0x2e00] sm:$0xff]
    %v5329 = vld [vmem:[#allocation7 + $0x2e08] sm:$0xff]
    %v5330 = vld [vmem:[#allocation7 + $0x2e10] sm:$0xff]
    %v5331 = vld [vmem:[#allocation7 + $0x2e18] sm:$0xff]
    %v5332 = vld [vmem:[#allocation7 + $0x2e20] sm:$0xff]
    %v5333 = vld [vmem:[#allocation7 + $0x2e28] sm:$0xff]
    %v5334 = vld [vmem:[#allocation7 + $0x2e30] sm:$0xff]
    %v5335 = vld [vmem:[#allocation7 + $0x2e38] sm:$0xff]
    %v5336 = vld [vmem:[#allocation7 + $0x2e40] sm:$0xff]
    %v5337 = vld [vmem:[#allocation7 + $0x2e48] sm:$0xff]
    %v5338 = vld [vmem:[#allocation7 + $0x2e50] sm:$0xff]
    %v5339 = vld [vmem:[#allocation7 + $0x2e58] sm:$0xff]
    %v5340 = vld [vmem:[#allocation7 + $0x2e60] sm:$0xff]
    %v5341 = vld [vmem:[#allocation7 + $0x2e68] sm:$0xff]
    %v5342 = vld [vmem:[#allocation7 + $0x2e70] sm:$0xff]
    %v5343 = vld [vmem:[#allocation7 + $0x2e78] sm:$0xff]
    %v5344 = vld [vmem:[#allocation7 + $0x2e80] sm:$0xff]
    %v5345 = vld [vmem:[#allocation7 + $0x2e88] sm:$0xff]
    %v5346 = vld [vmem:[#allocation7 + $0x2e90] sm:$0xff]
    %v5347 = vld [vmem:[#allocation7 + $0x2e98] sm:$0xff]
    %v5348 = vld [vmem:[#allocation7 + $0x2ea0] sm:$0xff]
    %v5349 = vld [vmem:[#allocation7 + $0x2ea8] sm:$0xff]
    %v5350 = vld [vmem:[#allocation7 + $0x2eb0] sm:$0xff]
    %v5351 = vld [vmem:[#allocation7 + $0x2eb8] sm:$0xff]
    %v5352 = vld [vmem:[#allocation7 + $0x2ec0] sm:$0xff]
    %v5353 = vld [vmem:[#allocation7 + $0x2ec8] sm:$0xff]
    %v5354 = vld [vmem:[#allocation7 + $0x2ed0] sm:$0xff]
    %v5355 = vld [vmem:[#allocation7 + $0x2ed8] sm:$0xff]
    %v5356 = vld [vmem:[#allocation7 + $0x2ee0] sm:$0xff]
    %v5357 = vld [vmem:[#allocation7 + $0x2ee8] sm:$0xff]
    %v5358 = vld [vmem:[#allocation7 + $0x2ef0] sm:$0xff]
    %v5359 = vld [vmem:[#allocation7 + $0x2ef8] sm:$0xff]
    %v5360 = vld [vmem:[#allocation7 + $0x2f00] sm:$0xff]
    %v5361 = vld [vmem:[#allocation7 + $0x2f08] sm:$0xff]
    %v5362 = vld [vmem:[#allocation7 + $0x2f10] sm:$0xff]
    %v5363 = vld [vmem:[#allocation7 + $0x2f18] sm:$0xff]
    %v5364 = vld [vmem:[#allocation7 + $0x2f20] sm:$0xff]
    %v5365 = vld [vmem:[#allocation7 + $0x2f28] sm:$0xff]
    %v5366 = vld [vmem:[#allocation7 + $0x2f30] sm:$0xff]
    %v5367 = vld [vmem:[#allocation7 + $0x2f38] sm:$0xff]
    %v5368 = vld [vmem:[#allocation7 + $0x2f40] sm:$0xff]
    %v5369 = vld [vmem:[#allocation7 + $0x2f48] sm:$0xff]
    %v5370 = vld [vmem:[#allocation7 + $0x2f50] sm:$0xff]
    %v5371 = vld [vmem:[#allocation7 + $0x2f58] sm:$0xff]
    %v5372 = vld [vmem:[#allocation7 + $0x2f60] sm:$0xff]
    %v5373 = vld [vmem:[#allocation7 + $0x2f68] sm:$0xff]
    %v5374 = vld [vmem:[#allocation7 + $0x2f70] sm:$0xff]
    %v5375 = vld [vmem:[#allocation7 + $0x2f78] sm:$0xff]
    %v5376 = vld [vmem:[#allocation7 + $0x2f80] sm:$0xff]
    %v5377 = vld [vmem:[#allocation7 + $0x2f88] sm:$0xff]
    %v5378 = vld [vmem:[#allocation7 + $0x2f90] sm:$0xff]
    %v5379 = vld [vmem:[#allocation7 + $0x2f98] sm:$0xff]
    %v5380 = vld [vmem:[#allocation7 + $0x2fa0] sm:$0xff]
    %v5381 = vld [vmem:[#allocation7 + $0x2fa8] sm:$0xff]
    %v5382 = vld [vmem:[#allocation7 + $0x2fb0] sm:$0xff]
    %v5383 = vld [vmem:[#allocation7 + $0x2fb8] sm:$0xff]
    %v5384 = vld [vmem:[#allocation7 + $0x2fc0] sm:$0xff]
    %v5385 = vld [vmem:[#allocation7 + $0x2fc8] sm:$0xff]
    %v5386 = vld [vmem:[#allocation7 + $0x2fd0] sm:$0xff]
    %v5387 = vld [vmem:[#allocation7 + $0x2fd8] sm:$0xff]
    %v5388 = vld [vmem:[#allocation7 + $0x2fe0] sm:$0xff]
    %v5389 = vld [vmem:[#allocation7 + $0x2fe8] sm:$0xff]
    %v5390 = vld [vmem:[#allocation7 + $0x2ff0] sm:$0xff]
    %v5391 = vld [vmem:[#allocation7 + $0x2ff8] sm:$0xff]
    %5392 = vmatpush.msra.mxu0 %v3946
    %5393 = vmatpush.msra.mxu0 %v3940
    %5394 = vmatpush.msra.mxu0 %v3934
    %5395 = vmatpush.msra.mxu0 %v3928
    %5396 = vmatpush.msra.mxu0 %v3922
    %5397 = vmatpush.msra.mxu0 %v3916
    %5398 = vmatpush.msra.mxu0 %v3910
    %5399 = vmatpush.msra.mxu0 %v3904
    %5400 = vmatpush.msra.mxu0 %v3898
    %5401 = vmatpush.msra.mxu0 %v3892
    %5402 = vmatpush.msra.mxu0 %v3886
    %5403 = vmatpush.msra.mxu0 %v3880
    %5404 = vmatpush.msra.mxu0 %v3874
    %5405 = vmatpush.msra.mxu0 %v3868
    %5406 = vmatpush.msra.mxu0 %v3862
    %5407 = vmatpush.msra.mxu0 %v3856
    %5408 = vmatmul.f32.gmra.mxu0 %v3824
    %v5409 = vpop.f32.mrf.mxu0
    %v5410 = vadd.f32 %v68, %v5409
    %5411 = vmatmul.f32.gmra.mxu0 %v3840
    %v5412 = vpop.f32.mrf.mxu0
    %v5413 = vadd.f32 %v74, %v5412
    %5414 = vdwg.mxu0
    %5415 = vmatpush.msra.mxu0 %v4042
    %5416 = vmatpush.msra.mxu0 %v4036
    %5417 = vmatpush.msra.mxu0 %v4030
    %5418 = vmatpush.msra.mxu0 %v4024
    %5419 = vmatpush.msra.mxu0 %v4018
    %5420 = vmatpush.msra.mxu0 %v4012
    %5421 = vmatpush.msra.mxu0 %v4006
    %5422 = vmatpush.msra.mxu0 %v4000
    %5423 = vmatpush.msra.mxu0 %v3994
    %5424 = vmatpush.msra.mxu0 %v3988
    %5425 = vmatpush.msra.mxu0 %v3982
    %5426 = vmatpush.msra.mxu0 %v3976
    %5427 = vmatpush.msra.mxu0 %v3970
    %5428 = vmatpush.msra.mxu0 %v3964
    %5429 = vmatpush.msra.mxu0 %v3958
    %5430 = vmatpush.msra.mxu0 %v3952
    %5431 = vmatmul.f32.gmra.mxu0 %v3825
    %v5432 = vpop.f32.mrf.mxu0
    %v5433 = vadd.f32 %v5410, %v5432
    %5434 = vmatmul.f32.gmra.mxu0 %v3841
    %v5435 = vpop.f32.mrf.mxu0
    %v5436 = vadd.f32 %v5413, %v5435
    %5437 = vdwg.mxu0
    %5438 = vmatpush.msra.mxu0 %v4138
    %5439 = vmatpush.msra.mxu0 %v4132
    %5440 = vmatpush.msra.mxu0 %v4126
    %5441 = vmatpush.msra.mxu0 %v4120
    %5442 = vmatpush.msra.mxu0 %v4114
    %5443 = vmatpush.msra.mxu0 %v4108
    %5444 = vmatpush.msra.mxu0 %v4102
    %5445 = vmatpush.msra.mxu0 %v4096
    %5446 = vmatpush.msra.mxu0 %v4090
    %5447 = vmatpush.msra.mxu0 %v4084
    %5448 = vmatpush.msra.mxu0 %v4078
    %5449 = vmatpush.msra.mxu0 %v4072
    %5450 = vmatpush.msra.mxu0 %v4066
    %5451 = vmatpush.msra.mxu0 %v4060
    %5452 = vmatpush.msra.mxu0 %v4054
    %5453 = vmatpush.msra.mxu0 %v4048
    %5454 = vmatmul.f32.gmra.mxu0 %v3826
    %v5455 = vpop.f32.mrf.mxu0
    %v5456 = vadd.f32 %v5433, %v5455
    %5457 = vmatmul.f32.gmra.mxu0 %v3842
    %v5458 = vpop.f32.mrf.mxu0
    %v5459 = vadd.f32 %v5436, %v5458
    %5460 = vdwg.mxu0
    %5461 = vmatpush.msra.mxu0 %v4234
    %5462 = vmatpush.msra.mxu0 %v4228
    %5463 = vmatpush.msra.mxu0 %v4222
    %5464 = vmatpush.msra.mxu0 %v4216
    %5465 = vmatpush.msra.mxu0 %v4210
    %5466 = vmatpush.msra.mxu0 %v4204
    %5467 = vmatpush.msra.mxu0 %v4198
    %5468 = vmatpush.msra.mxu0 %v4192
    %5469 = vmatpush.msra.mxu0 %v4186
    %5470 = vmatpush.msra.mxu0 %v4180
    %5471 = vmatpush.msra.mxu0 %v4174
    %5472 = vmatpush.msra.mxu0 %v4168
    %5473 = vmatpush.msra.mxu0 %v4162
    %5474 = vmatpush.msra.mxu0 %v4156
    %5475 = vmatpush.msra.mxu0 %v4150
    %5476 = vmatpush.msra.mxu0 %v4144
    %5477 = vmatmul.f32.gmra.mxu0 %v3827
    %v5478 = vpop.f32.mrf.mxu0
    %v5479 = vadd.f32 %v5456, %v5478
    %5480 = vmatmul.f32.gmra.mxu0 %v3843
    %v5481 = vpop.f32.mrf.mxu0
    %v5482 = vadd.f32 %v5459, %v5481
    %5483 = vdwg.mxu0
    %5484 = vmatpush.msra.mxu0 %v4330
    %5485 = vmatpush.msra.mxu0 %v4324
    %5486 = vmatpush.msra.mxu0 %v4318
    %5487 = vmatpush.msra.mxu0 %v4312
    %5488 = vmatpush.msra.mxu0 %v4306
    %5489 = vmatpush.msra.mxu0 %v4300
    %5490 = vmatpush.msra.mxu0 %v4294
    %5491 = vmatpush.msra.mxu0 %v4288
    %5492 = vmatpush.msra.mxu0 %v4282
    %5493 = vmatpush.msra.mxu0 %v4276
    %5494 = vmatpush.msra.mxu0 %v4270
    %5495 = vmatpush.msra.mxu0 %v4264
    %5496 = vmatpush.msra.mxu0 %v4258
    %5497 = vmatpush.msra.mxu0 %v4252
    %5498 = vmatpush.msra.mxu0 %v4246
    %5499 = vmatpush.msra.mxu0 %v4240
    %5500 = vmatmul.f32.gmra.mxu0 %v3828
    %v5501 = vpop.f32.mrf.mxu0
    %v5502 = vadd.f32 %v5479, %v5501
    %5503 = vmatmul.f32.gmra.mxu0 %v3844
    %v5504 = vpop.f32.mrf.mxu0
    %v5505 = vadd.f32 %v5482, %v5504
    %5506 = vdwg.mxu0
    %5507 = vmatpush.msra.mxu0 %v4426
    %5508 = vmatpush.msra.mxu0 %v4420
    %5509 = vmatpush.msra.mxu0 %v4414
    %5510 = vmatpush.msra.mxu0 %v4408
    %5511 = vmatpush.msra.mxu0 %v4402
    %5512 = vmatpush.msra.mxu0 %v4396
    %5513 = vmatpush.msra.mxu0 %v4390
    %5514 = vmatpush.msra.mxu0 %v4384
    %5515 = vmatpush.msra.mxu0 %v4378
    %5516 = vmatpush.msra.mxu0 %v4372
    %5517 = vmatpush.msra.mxu0 %v4366
    %5518 = vmatpush.msra.mxu0 %v4360
    %5519 = vmatpush.msra.mxu0 %v4354
    %5520 = vmatpush.msra.mxu0 %v4348
    %5521 = vmatpush.msra.mxu0 %v4342
    %5522 = vmatpush.msra.mxu0 %v4336
    %5523 = vmatmul.f32.gmra.mxu0 %v3829
    %v5524 = vpop.f32.mrf.mxu0
    %v5525 = vadd.f32 %v5502, %v5524
    %5526 = vmatmul.f32.gmra.mxu0 %v3845
    %v5527 = vpop.f32.mrf.mxu0
    %v5528 = vadd.f32 %v5505, %v5527
    %5529 = vdwg.mxu0
    %5530 = vmatpush.msra.mxu0 %v4522
    %5531 = vmatpush.msra.mxu0 %v4516
    %5532 = vmatpush.msra.mxu0 %v4510
    %5533 = vmatpush.msra.mxu0 %v4504
    %5534 = vmatpush.msra.mxu0 %v4498
    %5535 = vmatpush.msra.mxu0 %v4492
    %5536 = vmatpush.msra.mxu0 %v4486
    %5537 = vmatpush.msra.mxu0 %v4480
    %5538 = vmatpush.msra.mxu0 %v4474
    %5539 = vmatpush.msra.mxu0 %v4468
    %5540 = vmatpush.msra.mxu0 %v4462
    %5541 = vmatpush.msra.mxu0 %v4456
    %5542 = vmatpush.msra.mxu0 %v4450
    %5543 = vmatpush.msra.mxu0 %v4444
    %5544 = vmatpush.msra.mxu0 %v4438
    %5545 = vmatpush.msra.mxu0 %v4432
    %5546 = vmatmul.f32.gmra.mxu0 %v3830
    %v5547 = vpop.f32.mrf.mxu0
    %v5548 = vadd.f32 %v5525, %v5547
    %5549 = vmatmul.f32.gmra.mxu0 %v3846
    %v5550 = vpop.f32.mrf.mxu0
    %v5551 = vadd.f32 %v5528, %v5550
    %5552 = vdwg.mxu0
    %5553 = vmatpush.msra.mxu0 %v4618
    %5554 = vmatpush.msra.mxu0 %v4612
    %5555 = vmatpush.msra.mxu0 %v4606
    %5556 = vmatpush.msra.mxu0 %v4600
    %5557 = vmatpush.msra.mxu0 %v4594
    %5558 = vmatpush.msra.mxu0 %v4588
    %5559 = vmatpush.msra.mxu0 %v4582
    %5560 = vmatpush.msra.mxu0 %v4576
    %5561 = vmatpush.msra.mxu0 %v4570
    %5562 = vmatpush.msra.mxu0 %v4564
    %5563 = vmatpush.msra.mxu0 %v4558
    %5564 = vmatpush.msra.mxu0 %v4552
    %5565 = vmatpush.msra.mxu0 %v4546
    %5566 = vmatpush.msra.mxu0 %v4540
    %5567 = vmatpush.msra.mxu0 %v4534
    %5568 = vmatpush.msra.mxu0 %v4528
    %5569 = vmatmul.f32.gmra.mxu0 %v3831
    %v5570 = vpop.f32.mrf.mxu0
    %v5571 = vadd.f32 %v5548, %v5570
    %5572 = vmatmul.f32.gmra.mxu0 %v3847
    %v5573 = vpop.f32.mrf.mxu0
    %v5574 = vadd.f32 %v5551, %v5573
    %5575 = vdwg.mxu0
    %5576 = vmatpush.msra.mxu0 %v4714
    %5577 = vmatpush.msra.mxu0 %v4708
    %5578 = vmatpush.msra.mxu0 %v4702
    %5579 = vmatpush.msra.mxu0 %v4696
    %5580 = vmatpush.msra.mxu0 %v4690
    %5581 = vmatpush.msra.mxu0 %v4684
    %5582 = vmatpush.msra.mxu0 %v4678
    %5583 = vmatpush.msra.mxu0 %v4672
    %5584 = vmatpush.msra.mxu0 %v4666
    %5585 = vmatpush.msra.mxu0 %v4660
    %5586 = vmatpush.msra.mxu0 %v4654
    %5587 = vmatpush.msra.mxu0 %v4648
    %5588 = vmatpush.msra.mxu0 %v4642
    %5589 = vmatpush.msra.mxu0 %v4636
    %5590 = vmatpush.msra.mxu0 %v4630
    %5591 = vmatpush.msra.mxu0 %v4624
    %5592 = vmatmul.f32.gmra.mxu0 %v3832
    %v5593 = vpop.f32.mrf.mxu0
    %v5594 = vadd.f32 %v5571, %v5593
    %5595 = vmatmul.f32.gmra.mxu0 %v3848
    %v5596 = vpop.f32.mrf.mxu0
    %v5597 = vadd.f32 %v5574, %v5596
    %5598 = vdwg.mxu0
    %5599 = vmatpush.msra.mxu0 %v4810
    %5600 = vmatpush.msra.mxu0 %v4804
    %5601 = vmatpush.msra.mxu0 %v4798
    %5602 = vmatpush.msra.mxu0 %v4792
    %5603 = vmatpush.msra.mxu0 %v4786
    %5604 = vmatpush.msra.mxu0 %v4780
    %5605 = vmatpush.msra.mxu0 %v4774
    %5606 = vmatpush.msra.mxu0 %v4768
    %5607 = vmatpush.msra.mxu0 %v4762
    %5608 = vmatpush.msra.mxu0 %v4756
    %5609 = vmatpush.msra.mxu0 %v4750
    %5610 = vmatpush.msra.mxu0 %v4744
    %5611 = vmatpush.msra.mxu0 %v4738
    %5612 = vmatpush.msra.mxu0 %v4732
    %5613 = vmatpush.msra.mxu0 %v4726
    %5614 = vmatpush.msra.mxu0 %v4720
    %5615 = vmatmul.f32.gmra.mxu0 %v3833
    %v5616 = vpop.f32.mrf.mxu0
    %v5617 = vadd.f32 %v5594, %v5616
    %5618 = vmatmul.f32.gmra.mxu0 %v3849
    %v5619 = vpop.f32.mrf.mxu0
    %v5620 = vadd.f32 %v5597, %v5619
    %5621 = vdwg.mxu0
    %5622 = vmatpush.msra.mxu0 %v4906
    %5623 = vmatpush.msra.mxu0 %v4900
    %5624 = vmatpush.msra.mxu0 %v4894
    %5625 = vmatpush.msra.mxu0 %v4888
    %5626 = vmatpush.msra.mxu0 %v4882
    %5627 = vmatpush.msra.mxu0 %v4876
    %5628 = vmatpush.msra.mxu0 %v4870
    %5629 = vmatpush.msra.mxu0 %v4864
    %5630 = vmatpush.msra.mxu0 %v4858
    %5631 = vmatpush.msra.mxu0 %v4852
    %5632 = vmatpush.msra.mxu0 %v4846
    %5633 = vmatpush.msra.mxu0 %v4840
    %5634 = vmatpush.msra.mxu0 %v4834
    %5635 = vmatpush.msra.mxu0 %v4828
    %5636 = vmatpush.msra.mxu0 %v4822
    %5637 = vmatpush.msra.mxu0 %v4816
    %5638 = vmatmul.f32.gmra.mxu0 %v3834
    %v5639 = vpop.f32.mrf.mxu0
    %v5640 = vadd.f32 %v5617, %v5639
    %5641 = vmatmul.f32.gmra.mxu0 %v3850
    %v5642 = vpop.f32.mrf.mxu0
    %v5643 = vadd.f32 %v5620, %v5642
    %5644 = vdwg.mxu0
    %5645 = vmatpush.msra.mxu0 %v5002
    %5646 = vmatpush.msra.mxu0 %v4996
    %5647 = vmatpush.msra.mxu0 %v4990
    %5648 = vmatpush.msra.mxu0 %v4984
    %5649 = vmatpush.msra.mxu0 %v4978
    %5650 = vmatpush.msra.mxu0 %v4972
    %5651 = vmatpush.msra.mxu0 %v4966
    %5652 = vmatpush.msra.mxu0 %v4960
    %5653 = vmatpush.msra.mxu0 %v4954
    %5654 = vmatpush.msra.mxu0 %v4948
    %5655 = vmatpush.msra.mxu0 %v4942
    %5656 = vmatpush.msra.mxu0 %v4936
    %5657 = vmatpush.msra.mxu0 %v4930
    %5658 = vmatpush.msra.mxu0 %v4924
    %5659 = vmatpush.msra.mxu0 %v4918
    %5660 = vmatpush.msra.mxu0 %v4912
    %5661 = vmatmul.f32.gmra.mxu0 %v3835
    %v5662 = vpop.f32.mrf.mxu0
    %v5663 = vadd.f32 %v5640, %v5662
    %5664 = vmatmul.f32.gmra.mxu0 %v3851
    %v5665 = vpop.f32.mrf.mxu0
    %v5666 = vadd.f32 %v5643, %v5665
    %5667 = vdwg.mxu0
    %5668 = vmatpush.msra.mxu0 %v5098
    %5669 = vmatpush.msra.mxu0 %v5092
    %5670 = vmatpush.msra.mxu0 %v5086
    %5671 = vmatpush.msra.mxu0 %v5080
    %5672 = vmatpush.msra.mxu0 %v5074
    %5673 = vmatpush.msra.mxu0 %v5068
    %5674 = vmatpush.msra.mxu0 %v5062
    %5675 = vmatpush.msra.mxu0 %v5056
    %5676 = vmatpush.msra.mxu0 %v5050
    %5677 = vmatpush.msra.mxu0 %v5044
    %5678 = vmatpush.msra.mxu0 %v5038
    %5679 = vmatpush.msra.mxu0 %v5032
    %5680 = vmatpush.msra.mxu0 %v5026
    %5681 = vmatpush.msra.mxu0 %v5020
    %5682 = vmatpush.msra.mxu0 %v5014
    %5683 = vmatpush.msra.mxu0 %v5008
    %5684 = vmatmul.f32.gmra.mxu0 %v3836
    %v5685 = vpop.f32.mrf.mxu0
    %v5686 = vadd.f32 %v5663, %v5685
    %5687 = vmatmul.f32.gmra.mxu0 %v3852
    %v5688 = vpop.f32.mrf.mxu0
    %v5689 = vadd.f32 %v5666, %v5688
    %5690 = vdwg.mxu0
    %5691 = vmatpush.msra.mxu0 %v5194
    %5692 = vmatpush.msra.mxu0 %v5188
    %5693 = vmatpush.msra.mxu0 %v5182
    %5694 = vmatpush.msra.mxu0 %v5176
    %5695 = vmatpush.msra.mxu0 %v5170
    %5696 = vmatpush.msra.mxu0 %v5164
    %5697 = vmatpush.msra.mxu0 %v5158
    %5698 = vmatpush.msra.mxu0 %v5152
    %5699 = vmatpush.msra.mxu0 %v5146
    %5700 = vmatpush.msra.mxu0 %v5140
    %5701 = vmatpush.msra.mxu0 %v5134
    %5702 = vmatpush.msra.mxu0 %v5128
    %5703 = vmatpush.msra.mxu0 %v5122
    %5704 = vmatpush.msra.mxu0 %v5116
    %5705 = vmatpush.msra.mxu0 %v5110
    %5706 = vmatpush.msra.mxu0 %v5104
    %5707 = vmatmul.f32.gmra.mxu0 %v3837
    %v5708 = vpop.f32.mrf.mxu0
    %v5709 = vadd.f32 %v5686, %v5708
    %5710 = vmatmul.f32.gmra.mxu0 %v3853
    %v5711 = vpop.f32.mrf.mxu0
    %v5712 = vadd.f32 %v5689, %v5711
    %5713 = vdwg.mxu0
    %5714 = vmatpush.msra.mxu0 %v5290
    %5715 = vmatpush.msra.mxu0 %v5284
    %5716 = vmatpush.msra.mxu0 %v5278
    %5717 = vmatpush.msra.mxu0 %v5272
    %5718 = vmatpush.msra.mxu0 %v5266
    %5719 = vmatpush.msra.mxu0 %v5260
    %5720 = vmatpush.msra.mxu0 %v5254
    %5721 = vmatpush.msra.mxu0 %v5248
    %5722 = vmatpush.msra.mxu0 %v5242
    %5723 = vmatpush.msra.mxu0 %v5236
    %5724 = vmatpush.msra.mxu0 %v5230
    %5725 = vmatpush.msra.mxu0 %v5224
    %5726 = vmatpush.msra.mxu0 %v5218
    %5727 = vmatpush.msra.mxu0 %v5212
    %5728 = vmatpush.msra.mxu0 %v5206
    %5729 = vmatpush.msra.mxu0 %v5200
    %5730 = vmatmul.f32.gmra.mxu0 %v3838
    %v5731 = vpop.f32.mrf.mxu0
    %v5732 = vadd.f32 %v5709, %v5731
    %5733 = vmatmul.f32.gmra.mxu0 %v3854
    %v5734 = vpop.f32.mrf.mxu0
    %v5735 = vadd.f32 %v5712, %v5734
    %5736 = vdwg.mxu0
    %5737 = vmatpush.msra.mxu0 %v5386
    %5738 = vmatpush.msra.mxu0 %v5380
    %5739 = vmatpush.msra.mxu0 %v5374
    %5740 = vmatpush.msra.mxu0 %v5368
    %5741 = vmatpush.msra.mxu0 %v5362
    %5742 = vmatpush.msra.mxu0 %v5356
    %5743 = vmatpush.msra.mxu0 %v5350
    %5744 = vmatpush.msra.mxu0 %v5344
    %5745 = vmatpush.msra.mxu0 %v5338
    %5746 = vmatpush.msra.mxu0 %v5332
    %5747 = vmatpush.msra.mxu0 %v5326
    %5748 = vmatpush.msra.mxu0 %v5320
    %5749 = vmatpush.msra.mxu0 %v5314
    %5750 = vmatpush.msra.mxu0 %v5308
    %5751 = vmatpush.msra.mxu0 %v5302
    %5752 = vmatpush.msra.mxu0 %v5296
    %5753 = vmatmul.f32.gmra.mxu0 %v3839
    %v5754 = vpop.f32.mrf.mxu0
    %v5755 = vadd.f32 %v5732, %v5754
    %5756 = vmatmul.f32.gmra.mxu0 %v3855
    %v5757 = vpop.f32.mrf.mxu0
    %v5758 = vadd.f32 %v5735, %v5757
    %5759 = vdwg.mxu0
    %5760 = vmatpush.msra.mxu0 %v3947
    %5761 = vmatpush.msra.mxu0 %v3941
    %5762 = vmatpush.msra.mxu0 %v3935
    %5763 = vmatpush.msra.mxu0 %v3929
    %5764 = vmatpush.msra.mxu0 %v3923
    %5765 = vmatpush.msra.mxu0 %v3917
    %5766 = vmatpush.msra.mxu0 %v3911
    %5767 = vmatpush.msra.mxu0 %v3905
    %5768 = vmatpush.msra.mxu0 %v3899
    %5769 = vmatpush.msra.mxu0 %v3893
    %5770 = vmatpush.msra.mxu0 %v3887
    %5771 = vmatpush.msra.mxu0 %v3881
    %5772 = vmatpush.msra.mxu0 %v3875
    %5773 = vmatpush.msra.mxu0 %v3869
    %5774 = vmatpush.msra.mxu0 %v3863
    %5775 = vmatpush.msra.mxu0 %v3857
    %5776 = vmatmul.f32.gmra.mxu0 %v3824
    %v5777 = vpop.f32.mrf.mxu0
    %v5778 = vadd.f32 %v69, %v5777
    %5779 = vmatmul.f32.gmra.mxu0 %v3840
    %v5780 = vpop.f32.mrf.mxu0
    %v5781 = vadd.f32 %v75, %v5780
    %5782 = vdwg.mxu0
    %5783 = vmatpush.msra.mxu0 %v4043
    %5784 = vmatpush.msra.mxu0 %v4037
    %5785 = vmatpush.msra.mxu0 %v4031
    %5786 = vmatpush.msra.mxu0 %v4025
    %5787 = vmatpush.msra.mxu0 %v4019
    %5788 = vmatpush.msra.mxu0 %v4013
    %5789 = vmatpush.msra.mxu0 %v4007
    %5790 = vmatpush.msra.mxu0 %v4001
    %5791 = vmatpush.msra.mxu0 %v3995
    %5792 = vmatpush.msra.mxu0 %v3989
    %5793 = vmatpush.msra.mxu0 %v3983
    %5794 = vmatpush.msra.mxu0 %v3977
    %5795 = vmatpush.msra.mxu0 %v3971
    %5796 = vmatpush.msra.mxu0 %v3965
    %5797 = vmatpush.msra.mxu0 %v3959
    %5798 = vmatpush.msra.mxu0 %v3953
    %5799 = vmatmul.f32.gmra.mxu0 %v3825
    %v5800 = vpop.f32.mrf.mxu0
    %v5801 = vadd.f32 %v5778, %v5800
    %5802 = vmatmul.f32.gmra.mxu0 %v3841
    %v5803 = vpop.f32.mrf.mxu0
    %v5804 = vadd.f32 %v5781, %v5803
    %5805 = vdwg.mxu0
    %5806 = vmatpush.msra.mxu0 %v4139
    %5807 = vmatpush.msra.mxu0 %v4133
    %5808 = vmatpush.msra.mxu0 %v4127
    %5809 = vmatpush.msra.mxu0 %v4121
    %5810 = vmatpush.msra.mxu0 %v4115
    %5811 = vmatpush.msra.mxu0 %v4109
    %5812 = vmatpush.msra.mxu0 %v4103
    %5813 = vmatpush.msra.mxu0 %v4097
    %5814 = vmatpush.msra.mxu0 %v4091
    %5815 = vmatpush.msra.mxu0 %v4085
    %5816 = vmatpush.msra.mxu0 %v4079
    %5817 = vmatpush.msra.mxu0 %v4073
    %5818 = vmatpush.msra.mxu0 %v4067
    %5819 = vmatpush.msra.mxu0 %v4061
    %5820 = vmatpush.msra.mxu0 %v4055
    %5821 = vmatpush.msra.mxu0 %v4049
    %5822 = vmatmul.f32.gmra.mxu0 %v3826
    %v5823 = vpop.f32.mrf.mxu0
    %v5824 = vadd.f32 %v5801, %v5823
    %5825 = vmatmul.f32.gmra.mxu0 %v3842
    %v5826 = vpop.f32.mrf.mxu0
    %v5827 = vadd.f32 %v5804, %v5826
    %5828 = vdwg.mxu0
    %5829 = vmatpush.msra.mxu0 %v4235
    %5830 = vmatpush.msra.mxu0 %v4229
    %5831 = vmatpush.msra.mxu0 %v4223
    %5832 = vmatpush.msra.mxu0 %v4217
    %5833 = vmatpush.msra.mxu0 %v4211
    %5834 = vmatpush.msra.mxu0 %v4205
    %5835 = vmatpush.msra.mxu0 %v4199
    %5836 = vmatpush.msra.mxu0 %v4193
    %5837 = vmatpush.msra.mxu0 %v4187
    %5838 = vmatpush.msra.mxu0 %v4181
    %5839 = vmatpush.msra.mxu0 %v4175
    %5840 = vmatpush.msra.mxu0 %v4169
    %5841 = vmatpush.msra.mxu0 %v4163
    %5842 = vmatpush.msra.mxu0 %v4157
    %5843 = vmatpush.msra.mxu0 %v4151
    %5844 = vmatpush.msra.mxu0 %v4145
    %5845 = vmatmul.f32.gmra.mxu0 %v3827
    %v5846 = vpop.f32.mrf.mxu0
    %v5847 = vadd.f32 %v5824, %v5846
    %5848 = vmatmul.f32.gmra.mxu0 %v3843
    %v5849 = vpop.f32.mrf.mxu0
    %v5850 = vadd.f32 %v5827, %v5849
    %5851 = vdwg.mxu0
    %5852 = vmatpush.msra.mxu0 %v4331
    %5853 = vmatpush.msra.mxu0 %v4325
    %5854 = vmatpush.msra.mxu0 %v4319
    %5855 = vmatpush.msra.mxu0 %v4313
    %5856 = vmatpush.msra.mxu0 %v4307
    %5857 = vmatpush.msra.mxu0 %v4301
    %5858 = vmatpush.msra.mxu0 %v4295
    %5859 = vmatpush.msra.mxu0 %v4289
    %5860 = vmatpush.msra.mxu0 %v4283
    %5861 = vmatpush.msra.mxu0 %v4277
    %5862 = vmatpush.msra.mxu0 %v4271
    %5863 = vmatpush.msra.mxu0 %v4265
    %5864 = vmatpush.msra.mxu0 %v4259
    %5865 = vmatpush.msra.mxu0 %v4253
    %5866 = vmatpush.msra.mxu0 %v4247
    %5867 = vmatpush.msra.mxu0 %v4241
    %5868 = vmatmul.f32.gmra.mxu0 %v3828
    %v5869 = vpop.f32.mrf.mxu0
    %v5870 = vadd.f32 %v5847, %v5869
    %5871 = vmatmul.f32.gmra.mxu0 %v3844
    %v5872 = vpop.f32.mrf.mxu0
    %v5873 = vadd.f32 %v5850, %v5872
    %5874 = vdwg.mxu0
    %5875 = vmatpush.msra.mxu0 %v4427
    %5876 = vmatpush.msra.mxu0 %v4421
    %5877 = vmatpush.msra.mxu0 %v4415
    %5878 = vmatpush.msra.mxu0 %v4409
    %5879 = vmatpush.msra.mxu0 %v4403
    %5880 = vmatpush.msra.mxu0 %v4397
    %5881 = vmatpush.msra.mxu0 %v4391
    %5882 = vmatpush.msra.mxu0 %v4385
    %5883 = vmatpush.msra.mxu0 %v4379
    %5884 = vmatpush.msra.mxu0 %v4373
    %5885 = vmatpush.msra.mxu0 %v4367
    %5886 = vmatpush.msra.mxu0 %v4361
    %5887 = vmatpush.msra.mxu0 %v4355
    %5888 = vmatpush.msra.mxu0 %v4349
    %5889 = vmatpush.msra.mxu0 %v4343
    %5890 = vmatpush.msra.mxu0 %v4337
    %5891 = vmatmul.f32.gmra.mxu0 %v3829
    %v5892 = vpop.f32.mrf.mxu0
    %v5893 = vadd.f32 %v5870, %v5892
    %5894 = vmatmul.f32.gmra.mxu0 %v3845
    %v5895 = vpop.f32.mrf.mxu0
    %v5896 = vadd.f32 %v5873, %v5895
    %5897 = vdwg.mxu0
    %5898 = vmatpush.msra.mxu0 %v4523
    %5899 = vmatpush.msra.mxu0 %v4517
    %5900 = vmatpush.msra.mxu0 %v4511
    %5901 = vmatpush.msra.mxu0 %v4505
    %5902 = vmatpush.msra.mxu0 %v4499
    %5903 = vmatpush.msra.mxu0 %v4493
    %5904 = vmatpush.msra.mxu0 %v4487
    %5905 = vmatpush.msra.mxu0 %v4481
    %5906 = vmatpush.msra.mxu0 %v4475
    %5907 = vmatpush.msra.mxu0 %v4469
    %5908 = vmatpush.msra.mxu0 %v4463
    %5909 = vmatpush.msra.mxu0 %v4457
    %5910 = vmatpush.msra.mxu0 %v4451
    %5911 = vmatpush.msra.mxu0 %v4445
    %5912 = vmatpush.msra.mxu0 %v4439
    %5913 = vmatpush.msra.mxu0 %v4433
    %5914 = vmatmul.f32.gmra.mxu0 %v3830
    %v5915 = vpop.f32.mrf.mxu0
    %v5916 = vadd.f32 %v5893, %v5915
    %5917 = vmatmul.f32.gmra.mxu0 %v3846
    %v5918 = vpop.f32.mrf.mxu0
    %v5919 = vadd.f32 %v5896, %v5918
    %5920 = vdwg.mxu0
    %5921 = vmatpush.msra.mxu0 %v4619
    %5922 = vmatpush.msra.mxu0 %v4613
    %5923 = vmatpush.msra.mxu0 %v4607
    %5924 = vmatpush.msra.mxu0 %v4601
    %5925 = vmatpush.msra.mxu0 %v4595
    %5926 = vmatpush.msra.mxu0 %v4589
    %5927 = vmatpush.msra.mxu0 %v4583
    %5928 = vmatpush.msra.mxu0 %v4577
    %5929 = vmatpush.msra.mxu0 %v4571
    %5930 = vmatpush.msra.mxu0 %v4565
    %5931 = vmatpush.msra.mxu0 %v4559
    %5932 = vmatpush.msra.mxu0 %v4553
    %5933 = vmatpush.msra.mxu0 %v4547
    %5934 = vmatpush.msra.mxu0 %v4541
    %5935 = vmatpush.msra.mxu0 %v4535
    %5936 = vmatpush.msra.mxu0 %v4529
    %5937 = vmatmul.f32.gmra.mxu0 %v3831
    %v5938 = vpop.f32.mrf.mxu0
    %v5939 = vadd.f32 %v5916, %v5938
    %5940 = vmatmul.f32.gmra.mxu0 %v3847
    %v5941 = vpop.f32.mrf.mxu0
    %v5942 = vadd.f32 %v5919, %v5941
    %5943 = vdwg.mxu0
    %5944 = vmatpush.msra.mxu0 %v4715
    %5945 = vmatpush.msra.mxu0 %v4709
    %5946 = vmatpush.msra.mxu0 %v4703
    %5947 = vmatpush.msra.mxu0 %v4697
    %5948 = vmatpush.msra.mxu0 %v4691
    %5949 = vmatpush.msra.mxu0 %v4685
    %5950 = vmatpush.msra.mxu0 %v4679
    %5951 = vmatpush.msra.mxu0 %v4673
    %5952 = vmatpush.msra.mxu0 %v4667
    %5953 = vmatpush.msra.mxu0 %v4661
    %5954 = vmatpush.msra.mxu0 %v4655
    %5955 = vmatpush.msra.mxu0 %v4649
    %5956 = vmatpush.msra.mxu0 %v4643
    %5957 = vmatpush.msra.mxu0 %v4637
    %5958 = vmatpush.msra.mxu0 %v4631
    %5959 = vmatpush.msra.mxu0 %v4625
    %5960 = vmatmul.f32.gmra.mxu0 %v3832
    %v5961 = vpop.f32.mrf.mxu0
    %v5962 = vadd.f32 %v5939, %v5961
    %5963 = vmatmul.f32.gmra.mxu0 %v3848
    %v5964 = vpop.f32.mrf.mxu0
    %v5965 = vadd.f32 %v5942, %v5964
    %5966 = vdwg.mxu0
    %5967 = vmatpush.msra.mxu0 %v4811
    %5968 = vmatpush.msra.mxu0 %v4805
    %5969 = vmatpush.msra.mxu0 %v4799
    %5970 = vmatpush.msra.mxu0 %v4793
    %5971 = vmatpush.msra.mxu0 %v4787
    %5972 = vmatpush.msra.mxu0 %v4781
    %5973 = vmatpush.msra.mxu0 %v4775
    %5974 = vmatpush.msra.mxu0 %v4769
    %5975 = vmatpush.msra.mxu0 %v4763
    %5976 = vmatpush.msra.mxu0 %v4757
    %5977 = vmatpush.msra.mxu0 %v4751
    %5978 = vmatpush.msra.mxu0 %v4745
    %5979 = vmatpush.msra.mxu0 %v4739
    %5980 = vmatpush.msra.mxu0 %v4733
    %5981 = vmatpush.msra.mxu0 %v4727
    %5982 = vmatpush.msra.mxu0 %v4721
    %5983 = vmatmul.f32.gmra.mxu0 %v3833
    %v5984 = vpop.f32.mrf.mxu0
    %v5985 = vadd.f32 %v5962, %v5984
    %5986 = vmatmul.f32.gmra.mxu0 %v3849
    %v5987 = vpop.f32.mrf.mxu0
    %v5988 = vadd.f32 %v5965, %v5987
    %5989 = vdwg.mxu0
    %5990 = vmatpush.msra.mxu0 %v4907
    %5991 = vmatpush.msra.mxu0 %v4901
    %5992 = vmatpush.msra.mxu0 %v4895
    %5993 = vmatpush.msra.mxu0 %v4889
    %5994 = vmatpush.msra.mxu0 %v4883
    %5995 = vmatpush.msra.mxu0 %v4877
    %5996 = vmatpush.msra.mxu0 %v4871
    %5997 = vmatpush.msra.mxu0 %v4865
    %5998 = vmatpush.msra.mxu0 %v4859
    %5999 = vmatpush.msra.mxu0 %v4853
    %6000 = vmatpush.msra.mxu0 %v4847
    %6001 = vmatpush.msra.mxu0 %v4841
    %6002 = vmatpush.msra.mxu0 %v4835
    %6003 = vmatpush.msra.mxu0 %v4829
    %6004 = vmatpush.msra.mxu0 %v4823
    %6005 = vmatpush.msra.mxu0 %v4817
    %6006 = vmatmul.f32.gmra.mxu0 %v3834
    %v6007 = vpop.f32.mrf.mxu0
    %v6008 = vadd.f32 %v5985, %v6007
    %6009 = vmatmul.f32.gmra.mxu0 %v3850
    %v6010 = vpop.f32.mrf.mxu0
    %v6011 = vadd.f32 %v5988, %v6010
    %6012 = vdwg.mxu0
    %6013 = vmatpush.msra.mxu0 %v5003
    %6014 = vmatpush.msra.mxu0 %v4997
    %6015 = vmatpush.msra.mxu0 %v4991
    %6016 = vmatpush.msra.mxu0 %v4985
    %6017 = vmatpush.msra.mxu0 %v4979
    %6018 = vmatpush.msra.mxu0 %v4973
    %6019 = vmatpush.msra.mxu0 %v4967
    %6020 = vmatpush.msra.mxu0 %v4961
    %6021 = vmatpush.msra.mxu0 %v4955
    %6022 = vmatpush.msra.mxu0 %v4949
    %6023 = vmatpush.msra.mxu0 %v4943
    %6024 = vmatpush.msra.mxu0 %v4937
    %6025 = vmatpush.msra.mxu0 %v4931
    %6026 = vmatpush.msra.mxu0 %v4925
    %6027 = vmatpush.msra.mxu0 %v4919
    %6028 = vmatpush.msra.mxu0 %v4913
    %6029 = vmatmul.f32.gmra.mxu0 %v3835
    %v6030 = vpop.f32.mrf.mxu0
    %v6031 = vadd.f32 %v6008, %v6030
    %6032 = vmatmul.f32.gmra.mxu0 %v3851
    %v6033 = vpop.f32.mrf.mxu0
    %v6034 = vadd.f32 %v6011, %v6033
    %6035 = vdwg.mxu0
    %6036 = vmatpush.msra.mxu0 %v5099
    %6037 = vmatpush.msra.mxu0 %v5093
    %6038 = vmatpush.msra.mxu0 %v5087
    %6039 = vmatpush.msra.mxu0 %v5081
    %6040 = vmatpush.msra.mxu0 %v5075
    %6041 = vmatpush.msra.mxu0 %v5069
    %6042 = vmatpush.msra.mxu0 %v5063
    %6043 = vmatpush.msra.mxu0 %v5057
    %6044 = vmatpush.msra.mxu0 %v5051
    %6045 = vmatpush.msra.mxu0 %v5045
    %6046 = vmatpush.msra.mxu0 %v5039
    %6047 = vmatpush.msra.mxu0 %v5033
    %6048 = vmatpush.msra.mxu0 %v5027
    %6049 = vmatpush.msra.mxu0 %v5021
    %6050 = vmatpush.msra.mxu0 %v5015
    %6051 = vmatpush.msra.mxu0 %v5009
    %6052 = vmatmul.f32.gmra.mxu0 %v3836
    %v6053 = vpop.f32.mrf.mxu0
    %v6054 = vadd.f32 %v6031, %v6053
    %6055 = vmatmul.f32.gmra.mxu0 %v3852
    %v6056 = vpop.f32.mrf.mxu0
    %v6057 = vadd.f32 %v6034, %v6056
    %6058 = vdwg.mxu0
    %6059 = vmatpush.msra.mxu0 %v5195
    %6060 = vmatpush.msra.mxu0 %v5189
    %6061 = vmatpush.msra.mxu0 %v5183
    %6062 = vmatpush.msra.mxu0 %v5177
    %6063 = vmatpush.msra.mxu0 %v5171
    %6064 = vmatpush.msra.mxu0 %v5165
    %6065 = vmatpush.msra.mxu0 %v5159
    %6066 = vmatpush.msra.mxu0 %v5153
    %6067 = vmatpush.msra.mxu0 %v5147
    %6068 = vmatpush.msra.mxu0 %v5141
    %6069 = vmatpush.msra.mxu0 %v5135
    %6070 = vmatpush.msra.mxu0 %v5129
    %6071 = vmatpush.msra.mxu0 %v5123
    %6072 = vmatpush.msra.mxu0 %v5117
    %6073 = vmatpush.msra.mxu0 %v5111
    %6074 = vmatpush.msra.mxu0 %v5105
    %6075 = vmatmul.f32.gmra.mxu0 %v3837
    %v6076 = vpop.f32.mrf.mxu0
    %v6077 = vadd.f32 %v6054, %v6076
    %6078 = vmatmul.f32.gmra.mxu0 %v3853
    %v6079 = vpop.f32.mrf.mxu0
    %v6080 = vadd.f32 %v6057, %v6079
    %6081 = vdwg.mxu0
    %6082 = vmatpush.msra.mxu0 %v5291
    %6083 = vmatpush.msra.mxu0 %v5285
    %6084 = vmatpush.msra.mxu0 %v5279
    %6085 = vmatpush.msra.mxu0 %v5273
    %6086 = vmatpush.msra.mxu0 %v5267
    %6087 = vmatpush.msra.mxu0 %v5261
    %6088 = vmatpush.msra.mxu0 %v5255
    %6089 = vmatpush.msra.mxu0 %v5249
    %6090 = vmatpush.msra.mxu0 %v5243
    %6091 = vmatpush.msra.mxu0 %v5237
    %6092 = vmatpush.msra.mxu0 %v5231
    %6093 = vmatpush.msra.mxu0 %v5225
    %6094 = vmatpush.msra.mxu0 %v5219
    %6095 = vmatpush.msra.mxu0 %v5213
    %6096 = vmatpush.msra.mxu0 %v5207
    %6097 = vmatpush.msra.mxu0 %v5201
    %6098 = vmatmul.f32.gmra.mxu0 %v3838
    %v6099 = vpop.f32.mrf.mxu0
    %v6100 = vadd.f32 %v6077, %v6099
    %6101 = vmatmul.f32.gmra.mxu0 %v3854
    %v6102 = vpop.f32.mrf.mxu0
    %v6103 = vadd.f32 %v6080, %v6102
    %6104 = vdwg.mxu0
    %6105 = vmatpush.msra.mxu0 %v5387
    %6106 = vmatpush.msra.mxu0 %v5381
    %6107 = vmatpush.msra.mxu0 %v5375
    %6108 = vmatpush.msra.mxu0 %v5369
    %6109 = vmatpush.msra.mxu0 %v5363
    %6110 = vmatpush.msra.mxu0 %v5357
    %6111 = vmatpush.msra.mxu0 %v5351
    %6112 = vmatpush.msra.mxu0 %v5345
    %6113 = vmatpush.msra.mxu0 %v5339
    %6114 = vmatpush.msra.mxu0 %v5333
    %6115 = vmatpush.msra.mxu0 %v5327
    %6116 = vmatpush.msra.mxu0 %v5321
    %6117 = vmatpush.msra.mxu0 %v5315
    %6118 = vmatpush.msra.mxu0 %v5309
    %6119 = vmatpush.msra.mxu0 %v5303
    %6120 = vmatpush.msra.mxu0 %v5297
    %6121 = vmatmul.f32.gmra.mxu0 %v3839
    %v6122 = vpop.f32.mrf.mxu0
    %v6123 = vadd.f32 %v6100, %v6122
    %6124 = vmatmul.f32.gmra.mxu0 %v3855
    %v6125 = vpop.f32.mrf.mxu0
    %v6126 = vadd.f32 %v6103, %v6125
    %6127 = vdwg.mxu0
    %6128 = vmatpush.msra.mxu0 %v3948
    %6129 = vmatpush.msra.mxu0 %v3942
    %6130 = vmatpush.msra.mxu0 %v3936
    %6131 = vmatpush.msra.mxu0 %v3930
    %6132 = vmatpush.msra.mxu0 %v3924
    %6133 = vmatpush.msra.mxu0 %v3918
    %6134 = vmatpush.msra.mxu0 %v3912
    %6135 = vmatpush.msra.mxu0 %v3906
    %6136 = vmatpush.msra.mxu0 %v3900
    %6137 = vmatpush.msra.mxu0 %v3894
    %6138 = vmatpush.msra.mxu0 %v3888
    %6139 = vmatpush.msra.mxu0 %v3882
    %6140 = vmatpush.msra.mxu0 %v3876
    %6141 = vmatpush.msra.mxu0 %v3870
    %6142 = vmatpush.msra.mxu0 %v3864
    %6143 = vmatpush.msra.mxu0 %v3858
    %6144 = vmatmul.f32.gmra.mxu0 %v3824
    %v6145 = vpop.f32.mrf.mxu0
    %v6146 = vadd.f32 %v70, %v6145
    %6147 = vmatmul.f32.gmra.mxu0 %v3840
    %v6148 = vpop.f32.mrf.mxu0
    %v6149 = vadd.f32 %v76, %v6148
    %6150 = vdwg.mxu0
    %6151 = vmatpush.msra.mxu0 %v4044
    %6152 = vmatpush.msra.mxu0 %v4038
    %6153 = vmatpush.msra.mxu0 %v4032
    %6154 = vmatpush.msra.mxu0 %v4026
    %6155 = vmatpush.msra.mxu0 %v4020
    %6156 = vmatpush.msra.mxu0 %v4014
    %6157 = vmatpush.msra.mxu0 %v4008
    %6158 = vmatpush.msra.mxu0 %v4002
    %6159 = vmatpush.msra.mxu0 %v3996
    %6160 = vmatpush.msra.mxu0 %v3990
    %6161 = vmatpush.msra.mxu0 %v3984
    %6162 = vmatpush.msra.mxu0 %v3978
    %6163 = vmatpush.msra.mxu0 %v3972
    %6164 = vmatpush.msra.mxu0 %v3966
    %6165 = vmatpush.msra.mxu0 %v3960
    %6166 = vmatpush.msra.mxu0 %v3954
    %6167 = vmatmul.f32.gmra.mxu0 %v3825
    %v6168 = vpop.f32.mrf.mxu0
    %v6169 = vadd.f32 %v6146, %v6168
    %6170 = vmatmul.f32.gmra.mxu0 %v3841
    %v6171 = vpop.f32.mrf.mxu0
    %v6172 = vadd.f32 %v6149, %v6171
    %6173 = vdwg.mxu0
    %6174 = vmatpush.msra.mxu0 %v4140
    %6175 = vmatpush.msra.mxu0 %v4134
    %6176 = vmatpush.msra.mxu0 %v4128
    %6177 = vmatpush.msra.mxu0 %v4122
    %6178 = vmatpush.msra.mxu0 %v4116
    %6179 = vmatpush.msra.mxu0 %v4110
    %6180 = vmatpush.msra.mxu0 %v4104
    %6181 = vmatpush.msra.mxu0 %v4098
    %6182 = vmatpush.msra.mxu0 %v4092
    %6183 = vmatpush.msra.mxu0 %v4086
    %6184 = vmatpush.msra.mxu0 %v4080
    %6185 = vmatpush.msra.mxu0 %v4074
    %6186 = vmatpush.msra.mxu0 %v4068
    %6187 = vmatpush.msra.mxu0 %v4062
    %6188 = vmatpush.msra.mxu0 %v4056
    %6189 = vmatpush.msra.mxu0 %v4050
    %6190 = vmatmul.f32.gmra.mxu0 %v3826
    %v6191 = vpop.f32.mrf.mxu0
    %v6192 = vadd.f32 %v6169, %v6191
    %6193 = vmatmul.f32.gmra.mxu0 %v3842
    %v6194 = vpop.f32.mrf.mxu0
    %v6195 = vadd.f32 %v6172, %v6194
    %6196 = vdwg.mxu0
    %6197 = vmatpush.msra.mxu0 %v4236
    %6198 = vmatpush.msra.mxu0 %v4230
    %6199 = vmatpush.msra.mxu0 %v4224
    %6200 = vmatpush.msra.mxu0 %v4218
    %6201 = vmatpush.msra.mxu0 %v4212
    %6202 = vmatpush.msra.mxu0 %v4206
    %6203 = vmatpush.msra.mxu0 %v4200
    %6204 = vmatpush.msra.mxu0 %v4194
    %6205 = vmatpush.msra.mxu0 %v4188
    %6206 = vmatpush.msra.mxu0 %v4182
    %6207 = vmatpush.msra.mxu0 %v4176
    %6208 = vmatpush.msra.mxu0 %v4170
    %6209 = vmatpush.msra.mxu0 %v4164
    %6210 = vmatpush.msra.mxu0 %v4158
    %6211 = vmatpush.msra.mxu0 %v4152
    %6212 = vmatpush.msra.mxu0 %v4146
    %6213 = vmatmul.f32.gmra.mxu0 %v3827
    %v6214 = vpop.f32.mrf.mxu0
    %v6215 = vadd.f32 %v6192, %v6214
    %6216 = vmatmul.f32.gmra.mxu0 %v3843
    %v6217 = vpop.f32.mrf.mxu0
    %v6218 = vadd.f32 %v6195, %v6217
    %6219 = vdwg.mxu0
    %6220 = vmatpush.msra.mxu0 %v4332
    %6221 = vmatpush.msra.mxu0 %v4326
    %6222 = vmatpush.msra.mxu0 %v4320
    %6223 = vmatpush.msra.mxu0 %v4314
    %6224 = vmatpush.msra.mxu0 %v4308
    %6225 = vmatpush.msra.mxu0 %v4302
    %6226 = vmatpush.msra.mxu0 %v4296
    %6227 = vmatpush.msra.mxu0 %v4290
    %6228 = vmatpush.msra.mxu0 %v4284
    %6229 = vmatpush.msra.mxu0 %v4278
    %6230 = vmatpush.msra.mxu0 %v4272
    %6231 = vmatpush.msra.mxu0 %v4266
    %6232 = vmatpush.msra.mxu0 %v4260
    %6233 = vmatpush.msra.mxu0 %v4254
    %6234 = vmatpush.msra.mxu0 %v4248
    %6235 = vmatpush.msra.mxu0 %v4242
    %6236 = vmatmul.f32.gmra.mxu0 %v3828
    %v6237 = vpop.f32.mrf.mxu0
    %v6238 = vadd.f32 %v6215, %v6237
    %6239 = vmatmul.f32.gmra.mxu0 %v3844
    %v6240 = vpop.f32.mrf.mxu0
    %v6241 = vadd.f32 %v6218, %v6240
    %6242 = vdwg.mxu0
    %6243 = vmatpush.msra.mxu0 %v4428
    %6244 = vmatpush.msra.mxu0 %v4422
    %6245 = vmatpush.msra.mxu0 %v4416
    %6246 = vmatpush.msra.mxu0 %v4410
    %6247 = vmatpush.msra.mxu0 %v4404
    %6248 = vmatpush.msra.mxu0 %v4398
    %6249 = vmatpush.msra.mxu0 %v4392
    %6250 = vmatpush.msra.mxu0 %v4386
    %6251 = vmatpush.msra.mxu0 %v4380
    %6252 = vmatpush.msra.mxu0 %v4374
    %6253 = vmatpush.msra.mxu0 %v4368
    %6254 = vmatpush.msra.mxu0 %v4362
    %6255 = vmatpush.msra.mxu0 %v4356
    %6256 = vmatpush.msra.mxu0 %v4350
    %6257 = vmatpush.msra.mxu0 %v4344
    %6258 = vmatpush.msra.mxu0 %v4338
    %6259 = vmatmul.f32.gmra.mxu0 %v3829
    %v6260 = vpop.f32.mrf.mxu0
    %v6261 = vadd.f32 %v6238, %v6260
    %6262 = vmatmul.f32.gmra.mxu0 %v3845
    %v6263 = vpop.f32.mrf.mxu0
    %v6264 = vadd.f32 %v6241, %v6263
    %6265 = vdwg.mxu0
    %6266 = vmatpush.msra.mxu0 %v4524
    %6267 = vmatpush.msra.mxu0 %v4518
    %6268 = vmatpush.msra.mxu0 %v4512
    %6269 = vmatpush.msra.mxu0 %v4506
    %6270 = vmatpush.msra.mxu0 %v4500
    %6271 = vmatpush.msra.mxu0 %v4494
    %6272 = vmatpush.msra.mxu0 %v4488
    %6273 = vmatpush.msra.mxu0 %v4482
    %6274 = vmatpush.msra.mxu0 %v4476
    %6275 = vmatpush.msra.mxu0 %v4470
    %6276 = vmatpush.msra.mxu0 %v4464
    %6277 = vmatpush.msra.mxu0 %v4458
    %6278 = vmatpush.msra.mxu0 %v4452
    %6279 = vmatpush.msra.mxu0 %v4446
    %6280 = vmatpush.msra.mxu0 %v4440
    %6281 = vmatpush.msra.mxu0 %v4434
    %6282 = vmatmul.f32.gmra.mxu0 %v3830
    %v6283 = vpop.f32.mrf.mxu0
    %v6284 = vadd.f32 %v6261, %v6283
    %6285 = vmatmul.f32.gmra.mxu0 %v3846
    %v6286 = vpop.f32.mrf.mxu0
    %v6287 = vadd.f32 %v6264, %v6286
    %6288 = vdwg.mxu0
    %6289 = vmatpush.msra.mxu0 %v4620
    %6290 = vmatpush.msra.mxu0 %v4614
    %6291 = vmatpush.msra.mxu0 %v4608
    %6292 = vmatpush.msra.mxu0 %v4602
    %6293 = vmatpush.msra.mxu0 %v4596
    %6294 = vmatpush.msra.mxu0 %v4590
    %6295 = vmatpush.msra.mxu0 %v4584
    %6296 = vmatpush.msra.mxu0 %v4578
    %6297 = vmatpush.msra.mxu0 %v4572
    %6298 = vmatpush.msra.mxu0 %v4566
    %6299 = vmatpush.msra.mxu0 %v4560
    %6300 = vmatpush.msra.mxu0 %v4554
    %6301 = vmatpush.msra.mxu0 %v4548
    %6302 = vmatpush.msra.mxu0 %v4542
    %6303 = vmatpush.msra.mxu0 %v4536
    %6304 = vmatpush.msra.mxu0 %v4530
    %6305 = vmatmul.f32.gmra.mxu0 %v3831
    %v6306 = vpop.f32.mrf.mxu0
    %v6307 = vadd.f32 %v6284, %v6306
    %6308 = vmatmul.f32.gmra.mxu0 %v3847
    %v6309 = vpop.f32.mrf.mxu0
    %v6310 = vadd.f32 %v6287, %v6309
    %6311 = vdwg.mxu0
    %6312 = vmatpush.msra.mxu0 %v4716
    %6313 = vmatpush.msra.mxu0 %v4710
    %6314 = vmatpush.msra.mxu0 %v4704
    %6315 = vmatpush.msra.mxu0 %v4698
    %6316 = vmatpush.msra.mxu0 %v4692
    %6317 = vmatpush.msra.mxu0 %v4686
    %6318 = vmatpush.msra.mxu0 %v4680
    %6319 = vmatpush.msra.mxu0 %v4674
    %6320 = vmatpush.msra.mxu0 %v4668
    %6321 = vmatpush.msra.mxu0 %v4662
    %6322 = vmatpush.msra.mxu0 %v4656
    %6323 = vmatpush.msra.mxu0 %v4650
    %6324 = vmatpush.msra.mxu0 %v4644
    %6325 = vmatpush.msra.mxu0 %v4638
    %6326 = vmatpush.msra.mxu0 %v4632
    %6327 = vmatpush.msra.mxu0 %v4626
    %6328 = vmatmul.f32.gmra.mxu0 %v3832
    %v6329 = vpop.f32.mrf.mxu0
    %v6330 = vadd.f32 %v6307, %v6329
    %6331 = vmatmul.f32.gmra.mxu0 %v3848
    %v6332 = vpop.f32.mrf.mxu0
    %v6333 = vadd.f32 %v6310, %v6332
    %6334 = vdwg.mxu0
    %6335 = vmatpush.msra.mxu0 %v4812
    %6336 = vmatpush.msra.mxu0 %v4806
    %6337 = vmatpush.msra.mxu0 %v4800
    %6338 = vmatpush.msra.mxu0 %v4794
    %6339 = vmatpush.msra.mxu0 %v4788
    %6340 = vmatpush.msra.mxu0 %v4782
    %6341 = vmatpush.msra.mxu0 %v4776
    %6342 = vmatpush.msra.mxu0 %v4770
    %6343 = vmatpush.msra.mxu0 %v4764
    %6344 = vmatpush.msra.mxu0 %v4758
    %6345 = vmatpush.msra.mxu0 %v4752
    %6346 = vmatpush.msra.mxu0 %v4746
    %6347 = vmatpush.msra.mxu0 %v4740
    %6348 = vmatpush.msra.mxu0 %v4734
    %6349 = vmatpush.msra.mxu0 %v4728
    %6350 = vmatpush.msra.mxu0 %v4722
    %6351 = vmatmul.f32.gmra.mxu0 %v3833
    %v6352 = vpop.f32.mrf.mxu0
    %v6353 = vadd.f32 %v6330, %v6352
    %6354 = vmatmul.f32.gmra.mxu0 %v3849
    %v6355 = vpop.f32.mrf.mxu0
    %v6356 = vadd.f32 %v6333, %v6355
    %6357 = vdwg.mxu0
    %6358 = vmatpush.msra.mxu0 %v4908
    %6359 = vmatpush.msra.mxu0 %v4902
    %6360 = vmatpush.msra.mxu0 %v4896
    %6361 = vmatpush.msra.mxu0 %v4890
    %6362 = vmatpush.msra.mxu0 %v4884
    %6363 = vmatpush.msra.mxu0 %v4878
    %6364 = vmatpush.msra.mxu0 %v4872
    %6365 = vmatpush.msra.mxu0 %v4866
    %6366 = vmatpush.msra.mxu0 %v4860
    %6367 = vmatpush.msra.mxu0 %v4854
    %6368 = vmatpush.msra.mxu0 %v4848
    %6369 = vmatpush.msra.mxu0 %v4842
    %6370 = vmatpush.msra.mxu0 %v4836
    %6371 = vmatpush.msra.mxu0 %v4830
    %6372 = vmatpush.msra.mxu0 %v4824
    %6373 = vmatpush.msra.mxu0 %v4818
    %6374 = vmatmul.f32.gmra.mxu0 %v3834
    %v6375 = vpop.f32.mrf.mxu0
    %v6376 = vadd.f32 %v6353, %v6375
    %6377 = vmatmul.f32.gmra.mxu0 %v3850
    %v6378 = vpop.f32.mrf.mxu0
    %v6379 = vadd.f32 %v6356, %v6378
    %6380 = vdwg.mxu0
    %6381 = vmatpush.msra.mxu0 %v5004
    %6382 = vmatpush.msra.mxu0 %v4998
    %6383 = vmatpush.msra.mxu0 %v4992
    %6384 = vmatpush.msra.mxu0 %v4986
    %6385 = vmatpush.msra.mxu0 %v4980
    %6386 = vmatpush.msra.mxu0 %v4974
    %6387 = vmatpush.msra.mxu0 %v4968
    %6388 = vmatpush.msra.mxu0 %v4962
    %6389 = vmatpush.msra.mxu0 %v4956
    %6390 = vmatpush.msra.mxu0 %v4950
    %6391 = vmatpush.msra.mxu0 %v4944
    %6392 = vmatpush.msra.mxu0 %v4938
    %6393 = vmatpush.msra.mxu0 %v4932
    %6394 = vmatpush.msra.mxu0 %v4926
    %6395 = vmatpush.msra.mxu0 %v4920
    %6396 = vmatpush.msra.mxu0 %v4914
    %6397 = vmatmul.f32.gmra.mxu0 %v3835
    %v6398 = vpop.f32.mrf.mxu0
    %v6399 = vadd.f32 %v6376, %v6398
    %6400 = vmatmul.f32.gmra.mxu0 %v3851
    %v6401 = vpop.f32.mrf.mxu0
    %v6402 = vadd.f32 %v6379, %v6401
    %6403 = vdwg.mxu0
    %6404 = vmatpush.msra.mxu0 %v5100
    %6405 = vmatpush.msra.mxu0 %v5094
    %6406 = vmatpush.msra.mxu0 %v5088
    %6407 = vmatpush.msra.mxu0 %v5082
    %6408 = vmatpush.msra.mxu0 %v5076
    %6409 = vmatpush.msra.mxu0 %v5070
    %6410 = vmatpush.msra.mxu0 %v5064
    %6411 = vmatpush.msra.mxu0 %v5058
    %6412 = vmatpush.msra.mxu0 %v5052
    %6413 = vmatpush.msra.mxu0 %v5046
    %6414 = vmatpush.msra.mxu0 %v5040
    %6415 = vmatpush.msra.mxu0 %v5034
    %6416 = vmatpush.msra.mxu0 %v5028
    %6417 = vmatpush.msra.mxu0 %v5022
    %6418 = vmatpush.msra.mxu0 %v5016
    %6419 = vmatpush.msra.mxu0 %v5010
    %6420 = vmatmul.f32.gmra.mxu0 %v3836
    %v6421 = vpop.f32.mrf.mxu0
    %v6422 = vadd.f32 %v6399, %v6421
    %6423 = vmatmul.f32.gmra.mxu0 %v3852
    %v6424 = vpop.f32.mrf.mxu0
    %v6425 = vadd.f32 %v6402, %v6424
    %6426 = vdwg.mxu0
    %6427 = vmatpush.msra.mxu0 %v5196
    %6428 = vmatpush.msra.mxu0 %v5190
    %6429 = vmatpush.msra.mxu0 %v5184
    %6430 = vmatpush.msra.mxu0 %v5178
    %6431 = vmatpush.msra.mxu0 %v5172
    %6432 = vmatpush.msra.mxu0 %v5166
    %6433 = vmatpush.msra.mxu0 %v5160
    %6434 = vmatpush.msra.mxu0 %v5154
    %6435 = vmatpush.msra.mxu0 %v5148
    %6436 = vmatpush.msra.mxu0 %v5142
    %6437 = vmatpush.msra.mxu0 %v5136
    %6438 = vmatpush.msra.mxu0 %v5130
    %6439 = vmatpush.msra.mxu0 %v5124
    %6440 = vmatpush.msra.mxu0 %v5118
    %6441 = vmatpush.msra.mxu0 %v5112
    %6442 = vmatpush.msra.mxu0 %v5106
    %6443 = vmatmul.f32.gmra.mxu0 %v3837
    %v6444 = vpop.f32.mrf.mxu0
    %v6445 = vadd.f32 %v6422, %v6444
    %6446 = vmatmul.f32.gmra.mxu0 %v3853
    %v6447 = vpop.f32.mrf.mxu0
    %v6448 = vadd.f32 %v6425, %v6447
    %6449 = vdwg.mxu0
    %6450 = vmatpush.msra.mxu0 %v5292
    %6451 = vmatpush.msra.mxu0 %v5286
    %6452 = vmatpush.msra.mxu0 %v5280
    %6453 = vmatpush.msra.mxu0 %v5274
    %6454 = vmatpush.msra.mxu0 %v5268
    %6455 = vmatpush.msra.mxu0 %v5262
    %6456 = vmatpush.msra.mxu0 %v5256
    %6457 = vmatpush.msra.mxu0 %v5250
    %6458 = vmatpush.msra.mxu0 %v5244
    %6459 = vmatpush.msra.mxu0 %v5238
    %6460 = vmatpush.msra.mxu0 %v5232
    %6461 = vmatpush.msra.mxu0 %v5226
    %6462 = vmatpush.msra.mxu0 %v5220
    %6463 = vmatpush.msra.mxu0 %v5214
    %6464 = vmatpush.msra.mxu0 %v5208
    %6465 = vmatpush.msra.mxu0 %v5202
    %6466 = vmatmul.f32.gmra.mxu0 %v3838
    %v6467 = vpop.f32.mrf.mxu0
    %v6468 = vadd.f32 %v6445, %v6467
    %6469 = vmatmul.f32.gmra.mxu0 %v3854
    %v6470 = vpop.f32.mrf.mxu0
    %v6471 = vadd.f32 %v6448, %v6470
    %6472 = vdwg.mxu0
    %6473 = vmatpush.msra.mxu0 %v5388
    %6474 = vmatpush.msra.mxu0 %v5382
    %6475 = vmatpush.msra.mxu0 %v5376
    %6476 = vmatpush.msra.mxu0 %v5370
    %6477 = vmatpush.msra.mxu0 %v5364
    %6478 = vmatpush.msra.mxu0 %v5358
    %6479 = vmatpush.msra.mxu0 %v5352
    %6480 = vmatpush.msra.mxu0 %v5346
    %6481 = vmatpush.msra.mxu0 %v5340
    %6482 = vmatpush.msra.mxu0 %v5334
    %6483 = vmatpush.msra.mxu0 %v5328
    %6484 = vmatpush.msra.mxu0 %v5322
    %6485 = vmatpush.msra.mxu0 %v5316
    %6486 = vmatpush.msra.mxu0 %v5310
    %6487 = vmatpush.msra.mxu0 %v5304
    %6488 = vmatpush.msra.mxu0 %v5298
    %6489 = vmatmul.f32.gmra.mxu0 %v3839
    %v6490 = vpop.f32.mrf.mxu0
    %v6491 = vadd.f32 %v6468, %v6490
    %6492 = vmatmul.f32.gmra.mxu0 %v3855
    %v6493 = vpop.f32.mrf.mxu0
    %v6494 = vadd.f32 %v6471, %v6493
    %6495 = vdwg.mxu0
    %6496 = vmatpush.msra.mxu0 %v3949
    %6497 = vmatpush.msra.mxu0 %v3943
    %6498 = vmatpush.msra.mxu0 %v3937
    %6499 = vmatpush.msra.mxu0 %v3931
    %6500 = vmatpush.msra.mxu0 %v3925
    %6501 = vmatpush.msra.mxu0 %v3919
    %6502 = vmatpush.msra.mxu0 %v3913
    %6503 = vmatpush.msra.mxu0 %v3907
    %6504 = vmatpush.msra.mxu0 %v3901
    %6505 = vmatpush.msra.mxu0 %v3895
    %6506 = vmatpush.msra.mxu0 %v3889
    %6507 = vmatpush.msra.mxu0 %v3883
    %6508 = vmatpush.msra.mxu0 %v3877
    %6509 = vmatpush.msra.mxu0 %v3871
    %6510 = vmatpush.msra.mxu0 %v3865
    %6511 = vmatpush.msra.mxu0 %v3859
    %6512 = vmatmul.f32.gmra.mxu0 %v3824
    %v6513 = vpop.f32.mrf.mxu0
    %v6514 = vadd.f32 %v71, %v6513
    %6515 = vmatmul.f32.gmra.mxu0 %v3840
    %v6516 = vpop.f32.mrf.mxu0
    %v6517 = vadd.f32 %v77, %v6516
    %6518 = vdwg.mxu0
    %6519 = vmatpush.msra.mxu0 %v4045
    %6520 = vmatpush.msra.mxu0 %v4039
    %6521 = vmatpush.msra.mxu0 %v4033
    %6522 = vmatpush.msra.mxu0 %v4027
    %6523 = vmatpush.msra.mxu0 %v4021
    %6524 = vmatpush.msra.mxu0 %v4015
    %6525 = vmatpush.msra.mxu0 %v4009
    %6526 = vmatpush.msra.mxu0 %v4003
    %6527 = vmatpush.msra.mxu0 %v3997
    %6528 = vmatpush.msra.mxu0 %v3991
    %6529 = vmatpush.msra.mxu0 %v3985
    %6530 = vmatpush.msra.mxu0 %v3979
    %6531 = vmatpush.msra.mxu0 %v3973
    %6532 = vmatpush.msra.mxu0 %v3967
    %6533 = vmatpush.msra.mxu0 %v3961
    %6534 = vmatpush.msra.mxu0 %v3955
    %6535 = vmatmul.f32.gmra.mxu0 %v3825
    %v6536 = vpop.f32.mrf.mxu0
    %v6537 = vadd.f32 %v6514, %v6536
    %6538 = vmatmul.f32.gmra.mxu0 %v3841
    %v6539 = vpop.f32.mrf.mxu0
    %v6540 = vadd.f32 %v6517, %v6539
    %6541 = vdwg.mxu0
    %6542 = vmatpush.msra.mxu0 %v4141
    %6543 = vmatpush.msra.mxu0 %v4135
    %6544 = vmatpush.msra.mxu0 %v4129
    %6545 = vmatpush.msra.mxu0 %v4123
    %6546 = vmatpush.msra.mxu0 %v4117
    %6547 = vmatpush.msra.mxu0 %v4111
    %6548 = vmatpush.msra.mxu0 %v4105
    %6549 = vmatpush.msra.mxu0 %v4099
    %6550 = vmatpush.msra.mxu0 %v4093
    %6551 = vmatpush.msra.mxu0 %v4087
    %6552 = vmatpush.msra.mxu0 %v4081
    %6553 = vmatpush.msra.mxu0 %v4075
    %6554 = vmatpush.msra.mxu0 %v4069
    %6555 = vmatpush.msra.mxu0 %v4063
    %6556 = vmatpush.msra.mxu0 %v4057
    %6557 = vmatpush.msra.mxu0 %v4051
    %6558 = vmatmul.f32.gmra.mxu0 %v3826
    %v6559 = vpop.f32.mrf.mxu0
    %v6560 = vadd.f32 %v6537, %v6559
    %6561 = vmatmul.f32.gmra.mxu0 %v3842
    %v6562 = vpop.f32.mrf.mxu0
    %v6563 = vadd.f32 %v6540, %v6562
    %6564 = vdwg.mxu0
    %6565 = vmatpush.msra.mxu0 %v4237
    %6566 = vmatpush.msra.mxu0 %v4231
    %6567 = vmatpush.msra.mxu0 %v4225
    %6568 = vmatpush.msra.mxu0 %v4219
    %6569 = vmatpush.msra.mxu0 %v4213
    %6570 = vmatpush.msra.mxu0 %v4207
    %6571 = vmatpush.msra.mxu0 %v4201
    %6572 = vmatpush.msra.mxu0 %v4195
    %6573 = vmatpush.msra.mxu0 %v4189
    %6574 = vmatpush.msra.mxu0 %v4183
    %6575 = vmatpush.msra.mxu0 %v4177
    %6576 = vmatpush.msra.mxu0 %v4171
    %6577 = vmatpush.msra.mxu0 %v4165
    %6578 = vmatpush.msra.mxu0 %v4159
    %6579 = vmatpush.msra.mxu0 %v4153
    %6580 = vmatpush.msra.mxu0 %v4147
    %6581 = vmatmul.f32.gmra.mxu0 %v3827
    %v6582 = vpop.f32.mrf.mxu0
    %v6583 = vadd.f32 %v6560, %v6582
    %6584 = vmatmul.f32.gmra.mxu0 %v3843
    %v6585 = vpop.f32.mrf.mxu0
    %v6586 = vadd.f32 %v6563, %v6585
    %6587 = vdwg.mxu0
    %6588 = vmatpush.msra.mxu0 %v4333
    %6589 = vmatpush.msra.mxu0 %v4327
    %6590 = vmatpush.msra.mxu0 %v4321
    %6591 = vmatpush.msra.mxu0 %v4315
    %6592 = vmatpush.msra.mxu0 %v4309
    %6593 = vmatpush.msra.mxu0 %v4303
    %6594 = vmatpush.msra.mxu0 %v4297
    %6595 = vmatpush.msra.mxu0 %v4291
    %6596 = vmatpush.msra.mxu0 %v4285
    %6597 = vmatpush.msra.mxu0 %v4279
    %6598 = vmatpush.msra.mxu0 %v4273
    %6599 = vmatpush.msra.mxu0 %v4267
    %6600 = vmatpush.msra.mxu0 %v4261
    %6601 = vmatpush.msra.mxu0 %v4255
    %6602 = vmatpush.msra.mxu0 %v4249
    %6603 = vmatpush.msra.mxu0 %v4243
    %6604 = vmatmul.f32.gmra.mxu0 %v3828
    %v6605 = vpop.f32.mrf.mxu0
    %v6606 = vadd.f32 %v6583, %v6605
    %6607 = vmatmul.f32.gmra.mxu0 %v3844
    %v6608 = vpop.f32.mrf.mxu0
    %v6609 = vadd.f32 %v6586, %v6608
    %6610 = vdwg.mxu0
    %6611 = vmatpush.msra.mxu0 %v4429
    %6612 = vmatpush.msra.mxu0 %v4423
    %6613 = vmatpush.msra.mxu0 %v4417
    %6614 = vmatpush.msra.mxu0 %v4411
    %6615 = vmatpush.msra.mxu0 %v4405
    %6616 = vmatpush.msra.mxu0 %v4399
    %6617 = vmatpush.msra.mxu0 %v4393
    %6618 = vmatpush.msra.mxu0 %v4387
    %6619 = vmatpush.msra.mxu0 %v4381
    %6620 = vmatpush.msra.mxu0 %v4375
    %6621 = vmatpush.msra.mxu0 %v4369
    %6622 = vmatpush.msra.mxu0 %v4363
    %6623 = vmatpush.msra.mxu0 %v4357
    %6624 = vmatpush.msra.mxu0 %v4351
    %6625 = vmatpush.msra.mxu0 %v4345
    %6626 = vmatpush.msra.mxu0 %v4339
    %6627 = vmatmul.f32.gmra.mxu0 %v3829
    %v6628 = vpop.f32.mrf.mxu0
    %v6629 = vadd.f32 %v6606, %v6628
    %6630 = vmatmul.f32.gmra.mxu0 %v3845
    %v6631 = vpop.f32.mrf.mxu0
    %v6632 = vadd.f32 %v6609, %v6631
    %6633 = vdwg.mxu0
    %6634 = vmatpush.msra.mxu0 %v4525
    %6635 = vmatpush.msra.mxu0 %v4519
    %6636 = vmatpush.msra.mxu0 %v4513
    %6637 = vmatpush.msra.mxu0 %v4507
    %6638 = vmatpush.msra.mxu0 %v4501
    %6639 = vmatpush.msra.mxu0 %v4495
    %6640 = vmatpush.msra.mxu0 %v4489
    %6641 = vmatpush.msra.mxu0 %v4483
    %6642 = vmatpush.msra.mxu0 %v4477
    %6643 = vmatpush.msra.mxu0 %v4471
    %6644 = vmatpush.msra.mxu0 %v4465
    %6645 = vmatpush.msra.mxu0 %v4459
    %6646 = vmatpush.msra.mxu0 %v4453
    %6647 = vmatpush.msra.mxu0 %v4447
    %6648 = vmatpush.msra.mxu0 %v4441
    %6649 = vmatpush.msra.mxu0 %v4435
    %6650 = vmatmul.f32.gmra.mxu0 %v3830
    %v6651 = vpop.f32.mrf.mxu0
    %v6652 = vadd.f32 %v6629, %v6651
    %6653 = vmatmul.f32.gmra.mxu0 %v3846
    %v6654 = vpop.f32.mrf.mxu0
    %v6655 = vadd.f32 %v6632, %v6654
    %6656 = vdwg.mxu0
    %6657 = vmatpush.msra.mxu0 %v4621
    %6658 = vmatpush.msra.mxu0 %v4615
    %6659 = vmatpush.msra.mxu0 %v4609
    %6660 = vmatpush.msra.mxu0 %v4603
    %6661 = vmatpush.msra.mxu0 %v4597
    %6662 = vmatpush.msra.mxu0 %v4591
    %6663 = vmatpush.msra.mxu0 %v4585
    %6664 = vmatpush.msra.mxu0 %v4579
    %6665 = vmatpush.msra.mxu0 %v4573
    %6666 = vmatpush.msra.mxu0 %v4567
    %6667 = vmatpush.msra.mxu0 %v4561
    %6668 = vmatpush.msra.mxu0 %v4555
    %6669 = vmatpush.msra.mxu0 %v4549
    %6670 = vmatpush.msra.mxu0 %v4543
    %6671 = vmatpush.msra.mxu0 %v4537
    %6672 = vmatpush.msra.mxu0 %v4531
    %6673 = vmatmul.f32.gmra.mxu0 %v3831
    %v6674 = vpop.f32.mrf.mxu0
    %v6675 = vadd.f32 %v6652, %v6674
    %6676 = vmatmul.f32.gmra.mxu0 %v3847
    %v6677 = vpop.f32.mrf.mxu0
    %v6678 = vadd.f32 %v6655, %v6677
    %6679 = vdwg.mxu0
    %6680 = vmatpush.msra.mxu0 %v4717
    %6681 = vmatpush.msra.mxu0 %v4711
    %6682 = vmatpush.msra.mxu0 %v4705
    %6683 = vmatpush.msra.mxu0 %v4699
    %6684 = vmatpush.msra.mxu0 %v4693
    %6685 = vmatpush.msra.mxu0 %v4687
    %6686 = vmatpush.msra.mxu0 %v4681
    %6687 = vmatpush.msra.mxu0 %v4675
    %6688 = vmatpush.msra.mxu0 %v4669
    %6689 = vmatpush.msra.mxu0 %v4663
    %6690 = vmatpush.msra.mxu0 %v4657
    %6691 = vmatpush.msra.mxu0 %v4651
    %6692 = vmatpush.msra.mxu0 %v4645
    %6693 = vmatpush.msra.mxu0 %v4639
    %6694 = vmatpush.msra.mxu0 %v4633
    %6695 = vmatpush.msra.mxu0 %v4627
    %6696 = vmatmul.f32.gmra.mxu0 %v3832
    %v6697 = vpop.f32.mrf.mxu0
    %v6698 = vadd.f32 %v6675, %v6697
    %6699 = vmatmul.f32.gmra.mxu0 %v3848
    %v6700 = vpop.f32.mrf.mxu0
    %v6701 = vadd.f32 %v6678, %v6700
    %6702 = vdwg.mxu0
    %6703 = vmatpush.msra.mxu0 %v4813
    %6704 = vmatpush.msra.mxu0 %v4807
    %6705 = vmatpush.msra.mxu0 %v4801
    %6706 = vmatpush.msra.mxu0 %v4795
    %6707 = vmatpush.msra.mxu0 %v4789
    %6708 = vmatpush.msra.mxu0 %v4783
    %6709 = vmatpush.msra.mxu0 %v4777
    %6710 = vmatpush.msra.mxu0 %v4771
    %6711 = vmatpush.msra.mxu0 %v4765
    %6712 = vmatpush.msra.mxu0 %v4759
    %6713 = vmatpush.msra.mxu0 %v4753
    %6714 = vmatpush.msra.mxu0 %v4747
    %6715 = vmatpush.msra.mxu0 %v4741
    %6716 = vmatpush.msra.mxu0 %v4735
    %6717 = vmatpush.msra.mxu0 %v4729
    %6718 = vmatpush.msra.mxu0 %v4723
    %6719 = vmatmul.f32.gmra.mxu0 %v3833
    %v6720 = vpop.f32.mrf.mxu0
    %v6721 = vadd.f32 %v6698, %v6720
    %6722 = vmatmul.f32.gmra.mxu0 %v3849
    %v6723 = vpop.f32.mrf.mxu0
    %v6724 = vadd.f32 %v6701, %v6723
    %6725 = vdwg.mxu0
    %6726 = vmatpush.msra.mxu0 %v4909
    %6727 = vmatpush.msra.mxu0 %v4903
    %6728 = vmatpush.msra.mxu0 %v4897
    %6729 = vmatpush.msra.mxu0 %v4891
    %6730 = vmatpush.msra.mxu0 %v4885
    %6731 = vmatpush.msra.mxu0 %v4879
    %6732 = vmatpush.msra.mxu0 %v4873
    %6733 = vmatpush.msra.mxu0 %v4867
    %6734 = vmatpush.msra.mxu0 %v4861
    %6735 = vmatpush.msra.mxu0 %v4855
    %6736 = vmatpush.msra.mxu0 %v4849
    %6737 = vmatpush.msra.mxu0 %v4843
    %6738 = vmatpush.msra.mxu0 %v4837
    %6739 = vmatpush.msra.mxu0 %v4831
    %6740 = vmatpush.msra.mxu0 %v4825
    %6741 = vmatpush.msra.mxu0 %v4819
    %6742 = vmatmul.f32.gmra.mxu0 %v3834
    %v6743 = vpop.f32.mrf.mxu0
    %v6744 = vadd.f32 %v6721, %v6743
    %6745 = vmatmul.f32.gmra.mxu0 %v3850
    %v6746 = vpop.f32.mrf.mxu0
    %v6747 = vadd.f32 %v6724, %v6746
    %6748 = vdwg.mxu0
    %6749 = vmatpush.msra.mxu0 %v5005
    %6750 = vmatpush.msra.mxu0 %v4999
    %6751 = vmatpush.msra.mxu0 %v4993
    %6752 = vmatpush.msra.mxu0 %v4987
    %6753 = vmatpush.msra.mxu0 %v4981
    %6754 = vmatpush.msra.mxu0 %v4975
    %6755 = vmatpush.msra.mxu0 %v4969
    %6756 = vmatpush.msra.mxu0 %v4963
    %6757 = vmatpush.msra.mxu0 %v4957
    %6758 = vmatpush.msra.mxu0 %v4951
    %6759 = vmatpush.msra.mxu0 %v4945
    %6760 = vmatpush.msra.mxu0 %v4939
    %6761 = vmatpush.msra.mxu0 %v4933
    %6762 = vmatpush.msra.mxu0 %v4927
    %6763 = vmatpush.msra.mxu0 %v4921
    %6764 = vmatpush.msra.mxu0 %v4915
    %6765 = vmatmul.f32.gmra.mxu0 %v3835
    %v6766 = vpop.f32.mrf.mxu0
    %v6767 = vadd.f32 %v6744, %v6766
    %6768 = vmatmul.f32.gmra.mxu0 %v3851
    %v6769 = vpop.f32.mrf.mxu0
    %v6770 = vadd.f32 %v6747, %v6769
    %6771 = vdwg.mxu0
    %6772 = vmatpush.msra.mxu0 %v5101
    %6773 = vmatpush.msra.mxu0 %v5095
    %6774 = vmatpush.msra.mxu0 %v5089
    %6775 = vmatpush.msra.mxu0 %v5083
    %6776 = vmatpush.msra.mxu0 %v5077
    %6777 = vmatpush.msra.mxu0 %v5071
    %6778 = vmatpush.msra.mxu0 %v5065
    %6779 = vmatpush.msra.mxu0 %v5059
    %6780 = vmatpush.msra.mxu0 %v5053
    %6781 = vmatpush.msra.mxu0 %v5047
    %6782 = vmatpush.msra.mxu0 %v5041
    %6783 = vmatpush.msra.mxu0 %v5035
    %6784 = vmatpush.msra.mxu0 %v5029
    %6785 = vmatpush.msra.mxu0 %v5023
    %6786 = vmatpush.msra.mxu0 %v5017
    %6787 = vmatpush.msra.mxu0 %v5011
    %6788 = vmatmul.f32.gmra.mxu0 %v3836
    %v6789 = vpop.f32.mrf.mxu0
    %v6790 = vadd.f32 %v6767, %v6789
    %6791 = vmatmul.f32.gmra.mxu0 %v3852
    %v6792 = vpop.f32.mrf.mxu0
    %v6793 = vadd.f32 %v6770, %v6792
    %6794 = vdwg.mxu0
    %6795 = vmatpush.msra.mxu0 %v5197
    %6796 = vmatpush.msra.mxu0 %v5191
    %6797 = vmatpush.msra.mxu0 %v5185
    %6798 = vmatpush.msra.mxu0 %v5179
    %6799 = vmatpush.msra.mxu0 %v5173
    %6800 = vmatpush.msra.mxu0 %v5167
    %6801 = vmatpush.msra.mxu0 %v5161
    %6802 = vmatpush.msra.mxu0 %v5155
    %6803 = vmatpush.msra.mxu0 %v5149
    %6804 = vmatpush.msra.mxu0 %v5143
    %6805 = vmatpush.msra.mxu0 %v5137
    %6806 = vmatpush.msra.mxu0 %v5131
    %6807 = vmatpush.msra.mxu0 %v5125
    %6808 = vmatpush.msra.mxu0 %v5119
    %6809 = vmatpush.msra.mxu0 %v5113
    %6810 = vmatpush.msra.mxu0 %v5107
    %6811 = vmatmul.f32.gmra.mxu0 %v3837
    %v6812 = vpop.f32.mrf.mxu0
    %v6813 = vadd.f32 %v6790, %v6812
    %6814 = vmatmul.f32.gmra.mxu0 %v3853
    %v6815 = vpop.f32.mrf.mxu0
    %v6816 = vadd.f32 %v6793, %v6815
    %6817 = vdwg.mxu0
    %6818 = vmatpush.msra.mxu0 %v5293
    %6819 = vmatpush.msra.mxu0 %v5287
    %6820 = vmatpush.msra.mxu0 %v5281
    %6821 = vmatpush.msra.mxu0 %v5275
    %6822 = vmatpush.msra.mxu0 %v5269
    %6823 = vmatpush.msra.mxu0 %v5263
    %6824 = vmatpush.msra.mxu0 %v5257
    %6825 = vmatpush.msra.mxu0 %v5251
    %6826 = vmatpush.msra.mxu0 %v5245
    %6827 = vmatpush.msra.mxu0 %v5239
    %6828 = vmatpush.msra.mxu0 %v5233
    %6829 = vmatpush.msra.mxu0 %v5227
    %6830 = vmatpush.msra.mxu0 %v5221
    %6831 = vmatpush.msra.mxu0 %v5215
    %6832 = vmatpush.msra.mxu0 %v5209
    %6833 = vmatpush.msra.mxu0 %v5203
    %6834 = vmatmul.f32.gmra.mxu0 %v3838
    %v6835 = vpop.f32.mrf.mxu0
    %v6836 = vadd.f32 %v6813, %v6835
    %6837 = vmatmul.f32.gmra.mxu0 %v3854
    %v6838 = vpop.f32.mrf.mxu0
    %v6839 = vadd.f32 %v6816, %v6838
    %6840 = vdwg.mxu0
    %6841 = vmatpush.msra.mxu0 %v5389
    %6842 = vmatpush.msra.mxu0 %v5383
    %6843 = vmatpush.msra.mxu0 %v5377
    %6844 = vmatpush.msra.mxu0 %v5371
    %6845 = vmatpush.msra.mxu0 %v5365
    %6846 = vmatpush.msra.mxu0 %v5359
    %6847 = vmatpush.msra.mxu0 %v5353
    %6848 = vmatpush.msra.mxu0 %v5347
    %6849 = vmatpush.msra.mxu0 %v5341
    %6850 = vmatpush.msra.mxu0 %v5335
    %6851 = vmatpush.msra.mxu0 %v5329
    %6852 = vmatpush.msra.mxu0 %v5323
    %6853 = vmatpush.msra.mxu0 %v5317
    %6854 = vmatpush.msra.mxu0 %v5311
    %6855 = vmatpush.msra.mxu0 %v5305
    %6856 = vmatpush.msra.mxu0 %v5299
    %6857 = vmatmul.f32.gmra.mxu0 %v3839
    %v6858 = vpop.f32.mrf.mxu0
    %v6859 = vadd.f32 %v6836, %v6858
    %6860 = vmatmul.f32.gmra.mxu0 %v3855
    %v6861 = vpop.f32.mrf.mxu0
    %v6862 = vadd.f32 %v6839, %v6861
    %6863 = vdwg.mxu0
    %6864 = vmatpush.msra.mxu0 %v3950
    %6865 = vmatpush.msra.mxu0 %v3944
    %6866 = vmatpush.msra.mxu0 %v3938
    %6867 = vmatpush.msra.mxu0 %v3932
    %6868 = vmatpush.msra.mxu0 %v3926
    %6869 = vmatpush.msra.mxu0 %v3920
    %6870 = vmatpush.msra.mxu0 %v3914
    %6871 = vmatpush.msra.mxu0 %v3908
    %6872 = vmatpush.msra.mxu0 %v3902
    %6873 = vmatpush.msra.mxu0 %v3896
    %6874 = vmatpush.msra.mxu0 %v3890
    %6875 = vmatpush.msra.mxu0 %v3884
    %6876 = vmatpush.msra.mxu0 %v3878
    %6877 = vmatpush.msra.mxu0 %v3872
    %6878 = vmatpush.msra.mxu0 %v3866
    %6879 = vmatpush.msra.mxu0 %v3860
    %6880 = vmatmul.f32.gmra.mxu0 %v3824
    %v6881 = vpop.f32.mrf.mxu0
    %v6882 = vadd.f32 %v72, %v6881
    %6883 = vmatmul.f32.gmra.mxu0 %v3840
    %v6884 = vpop.f32.mrf.mxu0
    %v6885 = vadd.f32 %v78, %v6884
    %6886 = vdwg.mxu0
    %6887 = vmatpush.msra.mxu0 %v4046
    %6888 = vmatpush.msra.mxu0 %v4040
    %6889 = vmatpush.msra.mxu0 %v4034
    %6890 = vmatpush.msra.mxu0 %v4028
    %6891 = vmatpush.msra.mxu0 %v4022
    %6892 = vmatpush.msra.mxu0 %v4016
    %6893 = vmatpush.msra.mxu0 %v4010
    %6894 = vmatpush.msra.mxu0 %v4004
    %6895 = vmatpush.msra.mxu0 %v3998
    %6896 = vmatpush.msra.mxu0 %v3992
    %6897 = vmatpush.msra.mxu0 %v3986
    %6898 = vmatpush.msra.mxu0 %v3980
    %6899 = vmatpush.msra.mxu0 %v3974
    %6900 = vmatpush.msra.mxu0 %v3968
    %6901 = vmatpush.msra.mxu0 %v3962
    %6902 = vmatpush.msra.mxu0 %v3956
    %6903 = vmatmul.f32.gmra.mxu0 %v3825
    %v6904 = vpop.f32.mrf.mxu0
    %v6905 = vadd.f32 %v6882, %v6904
    %6906 = vmatmul.f32.gmra.mxu0 %v3841
    %v6907 = vpop.f32.mrf.mxu0
    %v6908 = vadd.f32 %v6885, %v6907
    %6909 = vdwg.mxu0
    %6910 = vmatpush.msra.mxu0 %v4142
    %6911 = vmatpush.msra.mxu0 %v4136
    %6912 = vmatpush.msra.mxu0 %v4130
    %6913 = vmatpush.msra.mxu0 %v4124
    %6914 = vmatpush.msra.mxu0 %v4118
    %6915 = vmatpush.msra.mxu0 %v4112
    %6916 = vmatpush.msra.mxu0 %v4106
    %6917 = vmatpush.msra.mxu0 %v4100
    %6918 = vmatpush.msra.mxu0 %v4094
    %6919 = vmatpush.msra.mxu0 %v4088
    %6920 = vmatpush.msra.mxu0 %v4082
    %6921 = vmatpush.msra.mxu0 %v4076
    %6922 = vmatpush.msra.mxu0 %v4070
    %6923 = vmatpush.msra.mxu0 %v4064
    %6924 = vmatpush.msra.mxu0 %v4058
    %6925 = vmatpush.msra.mxu0 %v4052
    %6926 = vmatmul.f32.gmra.mxu0 %v3826
    %v6927 = vpop.f32.mrf.mxu0
    %v6928 = vadd.f32 %v6905, %v6927
    %6929 = vmatmul.f32.gmra.mxu0 %v3842
    %v6930 = vpop.f32.mrf.mxu0
    %v6931 = vadd.f32 %v6908, %v6930
    %6932 = vdwg.mxu0
    %6933 = vmatpush.msra.mxu0 %v4238
    %6934 = vmatpush.msra.mxu0 %v4232
    %6935 = vmatpush.msra.mxu0 %v4226
    %6936 = vmatpush.msra.mxu0 %v4220
    %6937 = vmatpush.msra.mxu0 %v4214
    %6938 = vmatpush.msra.mxu0 %v4208
    %6939 = vmatpush.msra.mxu0 %v4202
    %6940 = vmatpush.msra.mxu0 %v4196
    %6941 = vmatpush.msra.mxu0 %v4190
    %6942 = vmatpush.msra.mxu0 %v4184
    %6943 = vmatpush.msra.mxu0 %v4178
    %6944 = vmatpush.msra.mxu0 %v4172
    %6945 = vmatpush.msra.mxu0 %v4166
    %6946 = vmatpush.msra.mxu0 %v4160
    %6947 = vmatpush.msra.mxu0 %v4154
    %6948 = vmatpush.msra.mxu0 %v4148
    %6949 = vmatmul.f32.gmra.mxu0 %v3827
    %v6950 = vpop.f32.mrf.mxu0
    %v6951 = vadd.f32 %v6928, %v6950
    %6952 = vmatmul.f32.gmra.mxu0 %v3843
    %v6953 = vpop.f32.mrf.mxu0
    %v6954 = vadd.f32 %v6931, %v6953
    %6955 = vdwg.mxu0
    %6956 = vmatpush.msra.mxu0 %v4334
    %6957 = vmatpush.msra.mxu0 %v4328
    %6958 = vmatpush.msra.mxu0 %v4322
    %6959 = vmatpush.msra.mxu0 %v4316
    %6960 = vmatpush.msra.mxu0 %v4310
    %6961 = vmatpush.msra.mxu0 %v4304
    %6962 = vmatpush.msra.mxu0 %v4298
    %6963 = vmatpush.msra.mxu0 %v4292
    %6964 = vmatpush.msra.mxu0 %v4286
    %6965 = vmatpush.msra.mxu0 %v4280
    %6966 = vmatpush.msra.mxu0 %v4274
    %6967 = vmatpush.msra.mxu0 %v4268
    %6968 = vmatpush.msra.mxu0 %v4262
    %6969 = vmatpush.msra.mxu0 %v4256
    %6970 = vmatpush.msra.mxu0 %v4250
    %6971 = vmatpush.msra.mxu0 %v4244
    %6972 = vmatmul.f32.gmra.mxu0 %v3828
    %v6973 = vpop.f32.mrf.mxu0
    %v6974 = vadd.f32 %v6951, %v6973
    %6975 = vmatmul.f32.gmra.mxu0 %v3844
    %v6976 = vpop.f32.mrf.mxu0
    %v6977 = vadd.f32 %v6954, %v6976
    %6978 = vdwg.mxu0
    %6979 = vmatpush.msra.mxu0 %v4430
    %6980 = vmatpush.msra.mxu0 %v4424
    %6981 = vmatpush.msra.mxu0 %v4418
    %6982 = vmatpush.msra.mxu0 %v4412
    %6983 = vmatpush.msra.mxu0 %v4406
    %6984 = vmatpush.msra.mxu0 %v4400
    %6985 = vmatpush.msra.mxu0 %v4394
    %6986 = vmatpush.msra.mxu0 %v4388
    %6987 = vmatpush.msra.mxu0 %v4382
    %6988 = vmatpush.msra.mxu0 %v4376
    %6989 = vmatpush.msra.mxu0 %v4370
    %6990 = vmatpush.msra.mxu0 %v4364
    %6991 = vmatpush.msra.mxu0 %v4358
    %6992 = vmatpush.msra.mxu0 %v4352
    %6993 = vmatpush.msra.mxu0 %v4346
    %6994 = vmatpush.msra.mxu0 %v4340
    %6995 = vmatmul.f32.gmra.mxu0 %v3829
    %v6996 = vpop.f32.mrf.mxu0
    %v6997 = vadd.f32 %v6974, %v6996
    %6998 = vmatmul.f32.gmra.mxu0 %v3845
    %v6999 = vpop.f32.mrf.mxu0
    %v7000 = vadd.f32 %v6977, %v6999
    %7001 = vdwg.mxu0
    %7002 = vmatpush.msra.mxu0 %v4526
    %7003 = vmatpush.msra.mxu0 %v4520
    %7004 = vmatpush.msra.mxu0 %v4514
    %7005 = vmatpush.msra.mxu0 %v4508
    %7006 = vmatpush.msra.mxu0 %v4502
    %7007 = vmatpush.msra.mxu0 %v4496
    %7008 = vmatpush.msra.mxu0 %v4490
    %7009 = vmatpush.msra.mxu0 %v4484
    %7010 = vmatpush.msra.mxu0 %v4478
    %7011 = vmatpush.msra.mxu0 %v4472
    %7012 = vmatpush.msra.mxu0 %v4466
    %7013 = vmatpush.msra.mxu0 %v4460
    %7014 = vmatpush.msra.mxu0 %v4454
    %7015 = vmatpush.msra.mxu0 %v4448
    %7016 = vmatpush.msra.mxu0 %v4442
    %7017 = vmatpush.msra.mxu0 %v4436
    %7018 = vmatmul.f32.gmra.mxu0 %v3830
    %v7019 = vpop.f32.mrf.mxu0
    %v7020 = vadd.f32 %v6997, %v7019
    %7021 = vmatmul.f32.gmra.mxu0 %v3846
    %v7022 = vpop.f32.mrf.mxu0
    %v7023 = vadd.f32 %v7000, %v7022
    %7024 = vdwg.mxu0
    %7025 = vmatpush.msra.mxu0 %v4622
    %7026 = vmatpush.msra.mxu0 %v4616
    %7027 = vmatpush.msra.mxu0 %v4610
    %7028 = vmatpush.msra.mxu0 %v4604
    %7029 = vmatpush.msra.mxu0 %v4598
    %7030 = vmatpush.msra.mxu0 %v4592
    %7031 = vmatpush.msra.mxu0 %v4586
    %7032 = vmatpush.msra.mxu0 %v4580
    %7033 = vmatpush.msra.mxu0 %v4574
    %7034 = vmatpush.msra.mxu0 %v4568
    %7035 = vmatpush.msra.mxu0 %v4562
    %7036 = vmatpush.msra.mxu0 %v4556
    %7037 = vmatpush.msra.mxu0 %v4550
    %7038 = vmatpush.msra.mxu0 %v4544
    %7039 = vmatpush.msra.mxu0 %v4538
    %7040 = vmatpush.msra.mxu0 %v4532
    %7041 = vmatmul.f32.gmra.mxu0 %v3831
    %v7042 = vpop.f32.mrf.mxu0
    %v7043 = vadd.f32 %v7020, %v7042
    %7044 = vmatmul.f32.gmra.mxu0 %v3847
    %v7045 = vpop.f32.mrf.mxu0
    %v7046 = vadd.f32 %v7023, %v7045
    %7047 = vdwg.mxu0
    %7048 = vmatpush.msra.mxu0 %v4718
    %7049 = vmatpush.msra.mxu0 %v4712
    %7050 = vmatpush.msra.mxu0 %v4706
    %7051 = vmatpush.msra.mxu0 %v4700
    %7052 = vmatpush.msra.mxu0 %v4694
    %7053 = vmatpush.msra.mxu0 %v4688
    %7054 = vmatpush.msra.mxu0 %v4682
    %7055 = vmatpush.msra.mxu0 %v4676
    %7056 = vmatpush.msra.mxu0 %v4670
    %7057 = vmatpush.msra.mxu0 %v4664
    %7058 = vmatpush.msra.mxu0 %v4658
    %7059 = vmatpush.msra.mxu0 %v4652
    %7060 = vmatpush.msra.mxu0 %v4646
    %7061 = vmatpush.msra.mxu0 %v4640
    %7062 = vmatpush.msra.mxu0 %v4634
    %7063 = vmatpush.msra.mxu0 %v4628
    %7064 = vmatmul.f32.gmra.mxu0 %v3832
    %v7065 = vpop.f32.mrf.mxu0
    %v7066 = vadd.f32 %v7043, %v7065
    %7067 = vmatmul.f32.gmra.mxu0 %v3848
    %v7068 = vpop.f32.mrf.mxu0
    %v7069 = vadd.f32 %v7046, %v7068
    %7070 = vdwg.mxu0
    %7071 = vmatpush.msra.mxu0 %v4814
    %7072 = vmatpush.msra.mxu0 %v4808
    %7073 = vmatpush.msra.mxu0 %v4802
    %7074 = vmatpush.msra.mxu0 %v4796
    %7075 = vmatpush.msra.mxu0 %v4790
    %7076 = vmatpush.msra.mxu0 %v4784
    %7077 = vmatpush.msra.mxu0 %v4778
    %7078 = vmatpush.msra.mxu0 %v4772
    %7079 = vmatpush.msra.mxu0 %v4766
    %7080 = vmatpush.msra.mxu0 %v4760
    %7081 = vmatpush.msra.mxu0 %v4754
    %7082 = vmatpush.msra.mxu0 %v4748
    %7083 = vmatpush.msra.mxu0 %v4742
    %7084 = vmatpush.msra.mxu0 %v4736
    %7085 = vmatpush.msra.mxu0 %v4730
    %7086 = vmatpush.msra.mxu0 %v4724
    %7087 = vmatmul.f32.gmra.mxu0 %v3833
    %v7088 = vpop.f32.mrf.mxu0
    %v7089 = vadd.f32 %v7066, %v7088
    %7090 = vmatmul.f32.gmra.mxu0 %v3849
    %v7091 = vpop.f32.mrf.mxu0
    %v7092 = vadd.f32 %v7069, %v7091
    %7093 = vdwg.mxu0
    %7094 = vmatpush.msra.mxu0 %v4910
    %7095 = vmatpush.msra.mxu0 %v4904
    %7096 = vmatpush.msra.mxu0 %v4898
    %7097 = vmatpush.msra.mxu0 %v4892
    %7098 = vmatpush.msra.mxu0 %v4886
    %7099 = vmatpush.msra.mxu0 %v4880
    %7100 = vmatpush.msra.mxu0 %v4874
    %7101 = vmatpush.msra.mxu0 %v4868
    %7102 = vmatpush.msra.mxu0 %v4862
    %7103 = vmatpush.msra.mxu0 %v4856
    %7104 = vmatpush.msra.mxu0 %v4850
    %7105 = vmatpush.msra.mxu0 %v4844
    %7106 = vmatpush.msra.mxu0 %v4838
    %7107 = vmatpush.msra.mxu0 %v4832
    %7108 = vmatpush.msra.mxu0 %v4826
    %7109 = vmatpush.msra.mxu0 %v4820
    %7110 = vmatmul.f32.gmra.mxu0 %v3834
    %v7111 = vpop.f32.mrf.mxu0
    %v7112 = vadd.f32 %v7089, %v7111
    %7113 = vmatmul.f32.gmra.mxu0 %v3850
    %v7114 = vpop.f32.mrf.mxu0
    %v7115 = vadd.f32 %v7092, %v7114
    %7116 = vdwg.mxu0
    %7117 = vmatpush.msra.mxu0 %v5006
    %7118 = vmatpush.msra.mxu0 %v5000
    %7119 = vmatpush.msra.mxu0 %v4994
    %7120 = vmatpush.msra.mxu0 %v4988
    %7121 = vmatpush.msra.mxu0 %v4982
    %7122 = vmatpush.msra.mxu0 %v4976
    %7123 = vmatpush.msra.mxu0 %v4970
    %7124 = vmatpush.msra.mxu0 %v4964
    %7125 = vmatpush.msra.mxu0 %v4958
    %7126 = vmatpush.msra.mxu0 %v4952
    %7127 = vmatpush.msra.mxu0 %v4946
    %7128 = vmatpush.msra.mxu0 %v4940
    %7129 = vmatpush.msra.mxu0 %v4934
    %7130 = vmatpush.msra.mxu0 %v4928
    %7131 = vmatpush.msra.mxu0 %v4922
    %7132 = vmatpush.msra.mxu0 %v4916
    %7133 = vmatmul.f32.gmra.mxu0 %v3835
    %v7134 = vpop.f32.mrf.mxu0
    %v7135 = vadd.f32 %v7112, %v7134
    %7136 = vmatmul.f32.gmra.mxu0 %v3851
    %v7137 = vpop.f32.mrf.mxu0
    %v7138 = vadd.f32 %v7115, %v7137
    %7139 = vdwg.mxu0
    %7140 = vmatpush.msra.mxu0 %v5102
    %7141 = vmatpush.msra.mxu0 %v5096
    %7142 = vmatpush.msra.mxu0 %v5090
    %7143 = vmatpush.msra.mxu0 %v5084
    %7144 = vmatpush.msra.mxu0 %v5078
    %7145 = vmatpush.msra.mxu0 %v5072
    %7146 = vmatpush.msra.mxu0 %v5066
    %7147 = vmatpush.msra.mxu0 %v5060
    %7148 = vmatpush.msra.mxu0 %v5054
    %7149 = vmatpush.msra.mxu0 %v5048
    %7150 = vmatpush.msra.mxu0 %v5042
    %7151 = vmatpush.msra.mxu0 %v5036
    %7152 = vmatpush.msra.mxu0 %v5030
    %7153 = vmatpush.msra.mxu0 %v5024
    %7154 = vmatpush.msra.mxu0 %v5018
    %7155 = vmatpush.msra.mxu0 %v5012
    %7156 = vmatmul.f32.gmra.mxu0 %v3836
    %v7157 = vpop.f32.mrf.mxu0
    %v7158 = vadd.f32 %v7135, %v7157
    %7159 = vmatmul.f32.gmra.mxu0 %v3852
    %v7160 = vpop.f32.mrf.mxu0
    %v7161 = vadd.f32 %v7138, %v7160
    %7162 = vdwg.mxu0
    %7163 = vmatpush.msra.mxu0 %v5198
    %7164 = vmatpush.msra.mxu0 %v5192
    %7165 = vmatpush.msra.mxu0 %v5186
    %7166 = vmatpush.msra.mxu0 %v5180
    %7167 = vmatpush.msra.mxu0 %v5174
    %7168 = vmatpush.msra.mxu0 %v5168
    %7169 = vmatpush.msra.mxu0 %v5162
    %7170 = vmatpush.msra.mxu0 %v5156
    %7171 = vmatpush.msra.mxu0 %v5150
    %7172 = vmatpush.msra.mxu0 %v5144
    %7173 = vmatpush.msra.mxu0 %v5138
    %7174 = vmatpush.msra.mxu0 %v5132
    %7175 = vmatpush.msra.mxu0 %v5126
    %7176 = vmatpush.msra.mxu0 %v5120
    %7177 = vmatpush.msra.mxu0 %v5114
    %7178 = vmatpush.msra.mxu0 %v5108
    %7179 = vmatmul.f32.gmra.mxu0 %v3837
    %v7180 = vpop.f32.mrf.mxu0
    %v7181 = vadd.f32 %v7158, %v7180
    %7182 = vmatmul.f32.gmra.mxu0 %v3853
    %v7183 = vpop.f32.mrf.mxu0
    %v7184 = vadd.f32 %v7161, %v7183
    %7185 = vdwg.mxu0
    %7186 = vmatpush.msra.mxu0 %v5294
    %7187 = vmatpush.msra.mxu0 %v5288
    %7188 = vmatpush.msra.mxu0 %v5282
    %7189 = vmatpush.msra.mxu0 %v5276
    %7190 = vmatpush.msra.mxu0 %v5270
    %7191 = vmatpush.msra.mxu0 %v5264
    %7192 = vmatpush.msra.mxu0 %v5258
    %7193 = vmatpush.msra.mxu0 %v5252
    %7194 = vmatpush.msra.mxu0 %v5246
    %7195 = vmatpush.msra.mxu0 %v5240
    %7196 = vmatpush.msra.mxu0 %v5234
    %7197 = vmatpush.msra.mxu0 %v5228
    %7198 = vmatpush.msra.mxu0 %v5222
    %7199 = vmatpush.msra.mxu0 %v5216
    %7200 = vmatpush.msra.mxu0 %v5210
    %7201 = vmatpush.msra.mxu0 %v5204
    %7202 = vmatmul.f32.gmra.mxu0 %v3838
    %v7203 = vpop.f32.mrf.mxu0
    %v7204 = vadd.f32 %v7181, %v7203
    %7205 = vmatmul.f32.gmra.mxu0 %v3854
    %v7206 = vpop.f32.mrf.mxu0
    %v7207 = vadd.f32 %v7184, %v7206
    %7208 = vdwg.mxu0
    %7209 = vmatpush.msra.mxu0 %v5390
    %7210 = vmatpush.msra.mxu0 %v5384
    %7211 = vmatpush.msra.mxu0 %v5378
    %7212 = vmatpush.msra.mxu0 %v5372
    %7213 = vmatpush.msra.mxu0 %v5366
    %7214 = vmatpush.msra.mxu0 %v5360
    %7215 = vmatpush.msra.mxu0 %v5354
    %7216 = vmatpush.msra.mxu0 %v5348
    %7217 = vmatpush.msra.mxu0 %v5342
    %7218 = vmatpush.msra.mxu0 %v5336
    %7219 = vmatpush.msra.mxu0 %v5330
    %7220 = vmatpush.msra.mxu0 %v5324
    %7221 = vmatpush.msra.mxu0 %v5318
    %7222 = vmatpush.msra.mxu0 %v5312
    %7223 = vmatpush.msra.mxu0 %v5306
    %7224 = vmatpush.msra.mxu0 %v5300
    %7225 = vmatmul.f32.gmra.mxu0 %v3839
    %v7226 = vpop.f32.mrf.mxu0
    %v7227 = vadd.f32 %v7204, %v7226
    %7228 = vmatmul.f32.gmra.mxu0 %v3855
    %v7229 = vpop.f32.mrf.mxu0
    %v7230 = vadd.f32 %v7207, %v7229
    %7231 = vdwg.mxu0
    %7232 = vmatpush.msra.mxu0 %v3951
    %7233 = vmatpush.msra.mxu0 %v3945
    %7234 = vmatpush.msra.mxu0 %v3939
    %7235 = vmatpush.msra.mxu0 %v3933
    %7236 = vmatpush.msra.mxu0 %v3927
    %7237 = vmatpush.msra.mxu0 %v3921
    %7238 = vmatpush.msra.mxu0 %v3915
    %7239 = vmatpush.msra.mxu0 %v3909
    %7240 = vmatpush.msra.mxu0 %v3903
    %7241 = vmatpush.msra.mxu0 %v3897
    %7242 = vmatpush.msra.mxu0 %v3891
    %7243 = vmatpush.msra.mxu0 %v3885
    %7244 = vmatpush.msra.mxu0 %v3879
    %7245 = vmatpush.msra.mxu0 %v3873
    %7246 = vmatpush.msra.mxu0 %v3867
    %7247 = vmatpush.msra.mxu0 %v3861
    %7248 = vmatmul.f32.gmra.mxu0 %v3824
    %v7249 = vpop.f32.mrf.mxu0
    %v7250 = vadd.f32 %v73, %v7249
    %7251 = vmatmul.f32.gmra.mxu0 %v3840
    %v7252 = vpop.f32.mrf.mxu0
    %v7253 = vadd.f32 %v79, %v7252
    %7254 = vdwg.mxu0
    %7255 = vmatpush.msra.mxu0 %v4047
    %7256 = vmatpush.msra.mxu0 %v4041
    %7257 = vmatpush.msra.mxu0 %v4035
    %7258 = vmatpush.msra.mxu0 %v4029
    %7259 = vmatpush.msra.mxu0 %v4023
    %7260 = vmatpush.msra.mxu0 %v4017
    %7261 = vmatpush.msra.mxu0 %v4011
    %7262 = vmatpush.msra.mxu0 %v4005
    %7263 = vmatpush.msra.mxu0 %v3999
    %7264 = vmatpush.msra.mxu0 %v3993
    %7265 = vmatpush.msra.mxu0 %v3987
    %7266 = vmatpush.msra.mxu0 %v3981
    %7267 = vmatpush.msra.mxu0 %v3975
    %7268 = vmatpush.msra.mxu0 %v3969
    %7269 = vmatpush.msra.mxu0 %v3963
    %7270 = vmatpush.msra.mxu0 %v3957
    %7271 = vmatmul.f32.gmra.mxu0 %v3825
    %v7272 = vpop.f32.mrf.mxu0
    %v7273 = vadd.f32 %v7250, %v7272
    %7274 = vmatmul.f32.gmra.mxu0 %v3841
    %v7275 = vpop.f32.mrf.mxu0
    %v7276 = vadd.f32 %v7253, %v7275
    %7277 = vdwg.mxu0
    %7278 = vmatpush.msra.mxu0 %v4143
    %7279 = vmatpush.msra.mxu0 %v4137
    %7280 = vmatpush.msra.mxu0 %v4131
    %7281 = vmatpush.msra.mxu0 %v4125
    %7282 = vmatpush.msra.mxu0 %v4119
    %7283 = vmatpush.msra.mxu0 %v4113
    %7284 = vmatpush.msra.mxu0 %v4107
    %7285 = vmatpush.msra.mxu0 %v4101
    %7286 = vmatpush.msra.mxu0 %v4095
    %7287 = vmatpush.msra.mxu0 %v4089
    %7288 = vmatpush.msra.mxu0 %v4083
    %7289 = vmatpush.msra.mxu0 %v4077
    %7290 = vmatpush.msra.mxu0 %v4071
    %7291 = vmatpush.msra.mxu0 %v4065
    %7292 = vmatpush.msra.mxu0 %v4059
    %7293 = vmatpush.msra.mxu0 %v4053
    %7294 = vmatmul.f32.gmra.mxu0 %v3826
    %v7295 = vpop.f32.mrf.mxu0
    %v7296 = vadd.f32 %v7273, %v7295
    %7297 = vmatmul.f32.gmra.mxu0 %v3842
    %v7298 = vpop.f32.mrf.mxu0
    %v7299 = vadd.f32 %v7276, %v7298
    %7300 = vdwg.mxu0
    %7301 = vmatpush.msra.mxu0 %v4239
    %7302 = vmatpush.msra.mxu0 %v4233
    %7303 = vmatpush.msra.mxu0 %v4227
    %7304 = vmatpush.msra.mxu0 %v4221
    %7305 = vmatpush.msra.mxu0 %v4215
    %7306 = vmatpush.msra.mxu0 %v4209
    %7307 = vmatpush.msra.mxu0 %v4203
    %7308 = vmatpush.msra.mxu0 %v4197
    %7309 = vmatpush.msra.mxu0 %v4191
    %7310 = vmatpush.msra.mxu0 %v4185
    %7311 = vmatpush.msra.mxu0 %v4179
    %7312 = vmatpush.msra.mxu0 %v4173
    %7313 = vmatpush.msra.mxu0 %v4167
    %7314 = vmatpush.msra.mxu0 %v4161
    %7315 = vmatpush.msra.mxu0 %v4155
    %7316 = vmatpush.msra.mxu0 %v4149
    %7317 = vmatmul.f32.gmra.mxu0 %v3827
    %v7318 = vpop.f32.mrf.mxu0
    %v7319 = vadd.f32 %v7296, %v7318
    %7320 = vmatmul.f32.gmra.mxu0 %v3843
    %v7321 = vpop.f32.mrf.mxu0
    %v7322 = vadd.f32 %v7299, %v7321
    %7323 = vdwg.mxu0
    %7324 = vmatpush.msra.mxu0 %v4335
    %7325 = vmatpush.msra.mxu0 %v4329
    %7326 = vmatpush.msra.mxu0 %v4323
    %7327 = vmatpush.msra.mxu0 %v4317
    %7328 = vmatpush.msra.mxu0 %v4311
    %7329 = vmatpush.msra.mxu0 %v4305
    %7330 = vmatpush.msra.mxu0 %v4299
    %7331 = vmatpush.msra.mxu0 %v4293
    %7332 = vmatpush.msra.mxu0 %v4287
    %7333 = vmatpush.msra.mxu0 %v4281
    %7334 = vmatpush.msra.mxu0 %v4275
    %7335 = vmatpush.msra.mxu0 %v4269
    %7336 = vmatpush.msra.mxu0 %v4263
    %7337 = vmatpush.msra.mxu0 %v4257
    %7338 = vmatpush.msra.mxu0 %v4251
    %7339 = vmatpush.msra.mxu0 %v4245
    %7340 = vmatmul.f32.gmra.mxu0 %v3828
    %v7341 = vpop.f32.mrf.mxu0
    %v7342 = vadd.f32 %v7319, %v7341
    %7343 = vmatmul.f32.gmra.mxu0 %v3844
    %v7344 = vpop.f32.mrf.mxu0
    %v7345 = vadd.f32 %v7322, %v7344
    %7346 = vdwg.mxu0
    %7347 = vmatpush.msra.mxu0 %v4431
    %7348 = vmatpush.msra.mxu0 %v4425
    %7349 = vmatpush.msra.mxu0 %v4419
    %7350 = vmatpush.msra.mxu0 %v4413
    %7351 = vmatpush.msra.mxu0 %v4407
    %7352 = vmatpush.msra.mxu0 %v4401
    %7353 = vmatpush.msra.mxu0 %v4395
    %7354 = vmatpush.msra.mxu0 %v4389
    %7355 = vmatpush.msra.mxu0 %v4383
    %7356 = vmatpush.msra.mxu0 %v4377
    %7357 = vmatpush.msra.mxu0 %v4371
    %7358 = vmatpush.msra.mxu0 %v4365
    %7359 = vmatpush.msra.mxu0 %v4359
    %7360 = vmatpush.msra.mxu0 %v4353
    %7361 = vmatpush.msra.mxu0 %v4347
    %7362 = vmatpush.msra.mxu0 %v4341
    %7363 = vmatmul.f32.gmra.mxu0 %v3829
    %v7364 = vpop.f32.mrf.mxu0
    %v7365 = vadd.f32 %v7342, %v7364
    %7366 = vmatmul.f32.gmra.mxu0 %v3845
    %v7367 = vpop.f32.mrf.mxu0
    %v7368 = vadd.f32 %v7345, %v7367
    %7369 = vdwg.mxu0
    %7370 = vmatpush.msra.mxu0 %v4527
    %7371 = vmatpush.msra.mxu0 %v4521
    %7372 = vmatpush.msra.mxu0 %v4515
    %7373 = vmatpush.msra.mxu0 %v4509
    %7374 = vmatpush.msra.mxu0 %v4503
    %7375 = vmatpush.msra.mxu0 %v4497
    %7376 = vmatpush.msra.mxu0 %v4491
    %7377 = vmatpush.msra.mxu0 %v4485
    %7378 = vmatpush.msra.mxu0 %v4479
    %7379 = vmatpush.msra.mxu0 %v4473
    %7380 = vmatpush.msra.mxu0 %v4467
    %7381 = vmatpush.msra.mxu0 %v4461
    %7382 = vmatpush.msra.mxu0 %v4455
    %7383 = vmatpush.msra.mxu0 %v4449
    %7384 = vmatpush.msra.mxu0 %v4443
    %7385 = vmatpush.msra.mxu0 %v4437
    %7386 = vmatmul.f32.gmra.mxu0 %v3830
    %v7387 = vpop.f32.mrf.mxu0
    %v7388 = vadd.f32 %v7365, %v7387
    %7389 = vmatmul.f32.gmra.mxu0 %v3846
    %v7390 = vpop.f32.mrf.mxu0
    %v7391 = vadd.f32 %v7368, %v7390
    %7392 = vdwg.mxu0
    %7393 = vmatpush.msra.mxu0 %v4623
    %7394 = vmatpush.msra.mxu0 %v4617
    %7395 = vmatpush.msra.mxu0 %v4611
    %7396 = vmatpush.msra.mxu0 %v4605
    %7397 = vmatpush.msra.mxu0 %v4599
    %7398 = vmatpush.msra.mxu0 %v4593
    %7399 = vmatpush.msra.mxu0 %v4587
    %7400 = vmatpush.msra.mxu0 %v4581
    %7401 = vmatpush.msra.mxu0 %v4575
    %7402 = vmatpush.msra.mxu0 %v4569
    %7403 = vmatpush.msra.mxu0 %v4563
    %7404 = vmatpush.msra.mxu0 %v4557
    %7405 = vmatpush.msra.mxu0 %v4551
    %7406 = vmatpush.msra.mxu0 %v4545
    %7407 = vmatpush.msra.mxu0 %v4539
    %7408 = vmatpush.msra.mxu0 %v4533
    %7409 = vmatmul.f32.gmra.mxu0 %v3831
    %v7410 = vpop.f32.mrf.mxu0
    %v7411 = vadd.f32 %v7388, %v7410
    %7412 = vmatmul.f32.gmra.mxu0 %v3847
    %v7413 = vpop.f32.mrf.mxu0
    %v7414 = vadd.f32 %v7391, %v7413
    %7415 = vdwg.mxu0
    %7416 = vmatpush.msra.mxu0 %v4719
    %7417 = vmatpush.msra.mxu0 %v4713
    %7418 = vmatpush.msra.mxu0 %v4707
    %7419 = vmatpush.msra.mxu0 %v4701
    %7420 = vmatpush.msra.mxu0 %v4695
    %7421 = vmatpush.msra.mxu0 %v4689
    %7422 = vmatpush.msra.mxu0 %v4683
    %7423 = vmatpush.msra.mxu0 %v4677
    %7424 = vmatpush.msra.mxu0 %v4671
    %7425 = vmatpush.msra.mxu0 %v4665
    %7426 = vmatpush.msra.mxu0 %v4659
    %7427 = vmatpush.msra.mxu0 %v4653
    %7428 = vmatpush.msra.mxu0 %v4647
    %7429 = vmatpush.msra.mxu0 %v4641
    %7430 = vmatpush.msra.mxu0 %v4635
    %7431 = vmatpush.msra.mxu0 %v4629
    %7432 = vmatmul.f32.gmra.mxu0 %v3832
    %v7433 = vpop.f32.mrf.mxu0
    %v7434 = vadd.f32 %v7411, %v7433
    %7435 = vmatmul.f32.gmra.mxu0 %v3848
    %v7436 = vpop.f32.mrf.mxu0
    %v7437 = vadd.f32 %v7414, %v7436
    %7438 = vdwg.mxu0
    %7439 = vmatpush.msra.mxu0 %v4815
    %7440 = vmatpush.msra.mxu0 %v4809
    %7441 = vmatpush.msra.mxu0 %v4803
    %7442 = vmatpush.msra.mxu0 %v4797
    %7443 = vmatpush.msra.mxu0 %v4791
    %7444 = vmatpush.msra.mxu0 %v4785
    %7445 = vmatpush.msra.mxu0 %v4779
    %7446 = vmatpush.msra.mxu0 %v4773
    %7447 = vmatpush.msra.mxu0 %v4767
    %7448 = vmatpush.msra.mxu0 %v4761
    %7449 = vmatpush.msra.mxu0 %v4755
    %7450 = vmatpush.msra.mxu0 %v4749
    %7451 = vmatpush.msra.mxu0 %v4743
    %7452 = vmatpush.msra.mxu0 %v4737
    %7453 = vmatpush.msra.mxu0 %v4731
    %7454 = vmatpush.msra.mxu0 %v4725
    %7455 = vmatmul.f32.gmra.mxu0 %v3833
    %v7456 = vpop.f32.mrf.mxu0
    %v7457 = vadd.f32 %v7434, %v7456
    %7458 = vmatmul.f32.gmra.mxu0 %v3849
    %v7459 = vpop.f32.mrf.mxu0
    %v7460 = vadd.f32 %v7437, %v7459
    %7461 = vdwg.mxu0
    %7462 = vmatpush.msra.mxu0 %v4911
    %7463 = vmatpush.msra.mxu0 %v4905
    %7464 = vmatpush.msra.mxu0 %v4899
    %7465 = vmatpush.msra.mxu0 %v4893
    %7466 = vmatpush.msra.mxu0 %v4887
    %7467 = vmatpush.msra.mxu0 %v4881
    %7468 = vmatpush.msra.mxu0 %v4875
    %7469 = vmatpush.msra.mxu0 %v4869
    %7470 = vmatpush.msra.mxu0 %v4863
    %7471 = vmatpush.msra.mxu0 %v4857
    %7472 = vmatpush.msra.mxu0 %v4851
    %7473 = vmatpush.msra.mxu0 %v4845
    %7474 = vmatpush.msra.mxu0 %v4839
    %7475 = vmatpush.msra.mxu0 %v4833
    %7476 = vmatpush.msra.mxu0 %v4827
    %7477 = vmatpush.msra.mxu0 %v4821
    %7478 = vmatmul.f32.gmra.mxu0 %v3834
    %v7479 = vpop.f32.mrf.mxu0
    %v7480 = vadd.f32 %v7457, %v7479
    %7481 = vmatmul.f32.gmra.mxu0 %v3850
    %v7482 = vpop.f32.mrf.mxu0
    %v7483 = vadd.f32 %v7460, %v7482
    %7484 = vdwg.mxu0
    %7485 = vmatpush.msra.mxu0 %v5007
    %7486 = vmatpush.msra.mxu0 %v5001
    %7487 = vmatpush.msra.mxu0 %v4995
    %7488 = vmatpush.msra.mxu0 %v4989
    %7489 = vmatpush.msra.mxu0 %v4983
    %7490 = vmatpush.msra.mxu0 %v4977
    %7491 = vmatpush.msra.mxu0 %v4971
    %7492 = vmatpush.msra.mxu0 %v4965
    %7493 = vmatpush.msra.mxu0 %v4959
    %7494 = vmatpush.msra.mxu0 %v4953
    %7495 = vmatpush.msra.mxu0 %v4947
    %7496 = vmatpush.msra.mxu0 %v4941
    %7497 = vmatpush.msra.mxu0 %v4935
    %7498 = vmatpush.msra.mxu0 %v4929
    %7499 = vmatpush.msra.mxu0 %v4923
    %7500 = vmatpush.msra.mxu0 %v4917
    %7501 = vmatmul.f32.gmra.mxu0 %v3835
    %v7502 = vpop.f32.mrf.mxu0
    %v7503 = vadd.f32 %v7480, %v7502
    %7504 = vmatmul.f32.gmra.mxu0 %v3851
    %v7505 = vpop.f32.mrf.mxu0
    %v7506 = vadd.f32 %v7483, %v7505
    %7507 = vdwg.mxu0
    %7508 = vmatpush.msra.mxu0 %v5103
    %7509 = vmatpush.msra.mxu0 %v5097
    %7510 = vmatpush.msra.mxu0 %v5091
    %7511 = vmatpush.msra.mxu0 %v5085
    %7512 = vmatpush.msra.mxu0 %v5079
    %7513 = vmatpush.msra.mxu0 %v5073
    %7514 = vmatpush.msra.mxu0 %v5067
    %7515 = vmatpush.msra.mxu0 %v5061
    %7516 = vmatpush.msra.mxu0 %v5055
    %7517 = vmatpush.msra.mxu0 %v5049
    %7518 = vmatpush.msra.mxu0 %v5043
    %7519 = vmatpush.msra.mxu0 %v5037
    %7520 = vmatpush.msra.mxu0 %v5031
    %7521 = vmatpush.msra.mxu0 %v5025
    %7522 = vmatpush.msra.mxu0 %v5019
    %7523 = vmatpush.msra.mxu0 %v5013
    %7524 = vmatmul.f32.gmra.mxu0 %v3836
    %v7525 = vpop.f32.mrf.mxu0
    %v7526 = vadd.f32 %v7503, %v7525
    %7527 = vmatmul.f32.gmra.mxu0 %v3852
    %v7528 = vpop.f32.mrf.mxu0
    %v7529 = vadd.f32 %v7506, %v7528
    %7530 = vdwg.mxu0
    %7531 = vmatpush.msra.mxu0 %v5199
    %7532 = vmatpush.msra.mxu0 %v5193
    %7533 = vmatpush.msra.mxu0 %v5187
    %7534 = vmatpush.msra.mxu0 %v5181
    %7535 = vmatpush.msra.mxu0 %v5175
    %7536 = vmatpush.msra.mxu0 %v5169
    %7537 = vmatpush.msra.mxu0 %v5163
    %7538 = vmatpush.msra.mxu0 %v5157
    %7539 = vmatpush.msra.mxu0 %v5151
    %7540 = vmatpush.msra.mxu0 %v5145
    %7541 = vmatpush.msra.mxu0 %v5139
    %7542 = vmatpush.msra.mxu0 %v5133
    %7543 = vmatpush.msra.mxu0 %v5127
    %7544 = vmatpush.msra.mxu0 %v5121
    %7545 = vmatpush.msra.mxu0 %v5115
    %7546 = vmatpush.msra.mxu0 %v5109
    %7547 = vmatmul.f32.gmra.mxu0 %v3837
    %v7548 = vpop.f32.mrf.mxu0
    %v7549 = vadd.f32 %v7526, %v7548
    %7550 = vmatmul.f32.gmra.mxu0 %v3853
    %v7551 = vpop.f32.mrf.mxu0
    %v7552 = vadd.f32 %v7529, %v7551
    %7553 = vdwg.mxu0
    %7554 = vmatpush.msra.mxu0 %v5295
    %7555 = vmatpush.msra.mxu0 %v5289
    %7556 = vmatpush.msra.mxu0 %v5283
    %7557 = vmatpush.msra.mxu0 %v5277
    %7558 = vmatpush.msra.mxu0 %v5271
    %7559 = vmatpush.msra.mxu0 %v5265
    %7560 = vmatpush.msra.mxu0 %v5259
    %7561 = vmatpush.msra.mxu0 %v5253
    %7562 = vmatpush.msra.mxu0 %v5247
    %7563 = vmatpush.msra.mxu0 %v5241
    %7564 = vmatpush.msra.mxu0 %v5235
    %7565 = vmatpush.msra.mxu0 %v5229
    %7566 = vmatpush.msra.mxu0 %v5223
    %7567 = vmatpush.msra.mxu0 %v5217
    %7568 = vmatpush.msra.mxu0 %v5211
    %7569 = vmatpush.msra.mxu0 %v5205
    %7570 = vmatmul.f32.gmra.mxu0 %v3838
    %v7571 = vpop.f32.mrf.mxu0
    %v7572 = vadd.f32 %v7549, %v7571
    %7573 = vmatmul.f32.gmra.mxu0 %v3854
    %v7574 = vpop.f32.mrf.mxu0
    %v7575 = vadd.f32 %v7552, %v7574
    %7576 = vdwg.mxu0
    %7577 = vmatpush.msra.mxu0 %v5391
    %7578 = vmatpush.msra.mxu0 %v5385
    %7579 = vmatpush.msra.mxu0 %v5379
    %7580 = vmatpush.msra.mxu0 %v5373
    %7581 = vmatpush.msra.mxu0 %v5367
    %7582 = vmatpush.msra.mxu0 %v5361
    %7583 = vmatpush.msra.mxu0 %v5355
    %7584 = vmatpush.msra.mxu0 %v5349
    %7585 = vmatpush.msra.mxu0 %v5343
    %7586 = vmatpush.msra.mxu0 %v5337
    %7587 = vmatpush.msra.mxu0 %v5331
    %7588 = vmatpush.msra.mxu0 %v5325
    %7589 = vmatpush.msra.mxu0 %v5319
    %7590 = vmatpush.msra.mxu0 %v5313
    %7591 = vmatpush.msra.mxu0 %v5307
    %7592 = vmatpush.msra.mxu0 %v5301
    %7593 = vmatmul.f32.gmra.mxu0 %v3839
    %v7594 = vpop.f32.mrf.mxu0
    %v7595 = vadd.f32 %v7572, %v7594
    %7596 = vmatmul.f32.gmra.mxu0 %v3855
    %v7597 = vpop.f32.mrf.mxu0
    %v7598 = vadd.f32 %v7575, %v7597
    %7599 = vdwg.mxu0
    %v7600 = vadd.f32 %v5755, %v6123
    %v7601 = vadd.f32 %v7600, %v6491
    %v7602 = vadd.f32 %v7601, %v6859
    %v7603 = vadd.f32 %v7602, %v7227
    %v7604 = vadd.f32 %v7603, %v7595
    %7605 = vadd.xlane.f32.xlu0 %v7604
    %v7606 = vpop.xlane.xlu0 %7605
    %v7607 = vadd.f32 %v5758, %v6126
    %v7608 = vadd.f32 %v7607, %v6494
    %v7609 = vadd.f32 %v7608, %v6862
    %v7610 = vadd.f32 %v7609, %v7230
    %v7611 = vadd.f32 %v7610, %v7598
    %7612 = vadd.xlane.f32.xlu0 %v7611
    %v7613 = vpop.xlane.xlu0 %7612
    %v7614 = vrcp.pop 768.0
    %v7615 = vmul.f32 768.0, %v7614
    %v7616 = vsub.f32 1.0, %v7615
    %v7617 = vmul.f32 %v7614, %v7616
    %v7618 = vadd.f32 %v7614, %v7617
    %vm7619 = vweird.f32 %v7614
    %v7620 = vsel %vm7619, %v7614, %v7618
    %v7621 = vmul.f32 %v7606, %v7620
    %v7622 = vmul.f32 %v7613, %v7620
    %v7623 = vsub.f32 %v5755, %v7621
    %v7624 = vsub.f32 %v6123, %v7621
    %v7625 = vsub.f32 %v6491, %v7621
    %v7626 = vsub.f32 %v6859, %v7621
    %v7627 = vsub.f32 %v7227, %v7621
    %v7628 = vsub.f32 %v7595, %v7621
    %v7629 = vsub.f32 %v5758, %v7622
    %v7630 = vsub.f32 %v6126, %v7622
    %v7631 = vsub.f32 %v6494, %v7622
    %v7632 = vsub.f32 %v6862, %v7622
    %v7633 = vsub.f32 %v7230, %v7622
    %v7634 = vsub.f32 %v7598, %v7622
    %v7635 = vmul.f32 %v7623, %v7623
    %v7636 = vmul.f32 %v7624, %v7624
    %v7637 = vmul.f32 %v7625, %v7625
    %v7638 = vmul.f32 %v7626, %v7626
    %v7639 = vmul.f32 %v7627, %v7627
    %v7640 = vmul.f32 %v7628, %v7628
    %v7641 = vmul.f32 %v7629, %v7629
    %v7642 = vmul.f32 %v7630, %v7630
    %v7643 = vmul.f32 %v7631, %v7631
    %v7644 = vmul.f32 %v7632, %v7632
    %v7645 = vmul.f32 %v7633, %v7633
    %v7646 = vmul.f32 %v7634, %v7634
    %v7647 = vadd.f32 %v7635, %v7636
    %v7648 = vadd.f32 %v7647, %v7637
    %v7649 = vadd.f32 %v7648, %v7638
    %v7650 = vadd.f32 %v7649, %v7639
    %v7651 = vadd.f32 %v7650, %v7640
    %7652 = vadd.xlane.f32.xlu0 %v7651
    %v7653 = vpop.xlane.xlu0 %7652
    %v7654 = vadd.f32 %v7641, %v7642
    %v7655 = vadd.f32 %v7654, %v7643
    %v7656 = vadd.f32 %v7655, %v7644
    %v7657 = vadd.f32 %v7656, %v7645
    %v7658 = vadd.f32 %v7657, %v7646
    %7659 = vadd.xlane.f32.xlu0 %v7658
    %v7660 = vpop.xlane.xlu0 %7659
    %v7661 = vmul.f32 %v7653, %v7620
    %v7662 = vmul.f32 %v7660, %v7620
    %v7663 = vadd.f32 %v7661, 1e-05
    %v7664 = vadd.f32 %v7662, 1e-05
    %v7665 = vrsqrt.pop %v7663
    %v7666 = vmul.f32 %v7665, %v7663
    %v7667 = vmul.f32 %v7666, %v7665
    %v7668 = vmul.f32 0.5, %v7667
    %v7669 = vsub.f32 1.5, %v7668
    %v7670 = vmul.f32 %v7665, %v7669
    %vm7671 = vweird.f32 %v7663
    %vm7672 = vweird.f32 %v7665
    %vm7673 = vmor %vm7671, %vm7672
    %v7674 = vsel %vm7673, %v7665, %v7670
    %v7675 = vrsqrt.pop %v7664
    %v7676 = vmul.f32 %v7675, %v7664
    %v7677 = vmul.f32 %v7676, %v7675
    %v7678 = vmul.f32 0.5, %v7677
    %v7679 = vsub.f32 1.5, %v7678
    %v7680 = vmul.f32 %v7675, %v7679
    %vm7681 = vweird.f32 %v7664
    %vm7682 = vweird.f32 %v7675
    %vm7683 = vmor %vm7681, %vm7682
    %v7684 = vsel %vm7683, %v7675, %v7680
    %v7685 = vmul.f32 %v7623, %v7674
    %v7686 = vmul.f32 %v7624, %v7674
    %v7687 = vmul.f32 %v7625, %v7674
    %v7688 = vmul.f32 %v7626, %v7674
    %v7689 = vmul.f32 %v7627, %v7674
    %v7690 = vmul.f32 %v7628, %v7674
    %v7691 = vmul.f32 %v7629, %v7684
    %v7692 = vmul.f32 %v7630, %v7684
    %v7693 = vmul.f32 %v7631, %v7684
    %v7694 = vmul.f32 %v7632, %v7684
    %v7695 = vmul.f32 %v7633, %v7684
    %v7696 = vmul.f32 %v7634, %v7684
    %v7697 = vld [vmem:[%s3] sm:$0x3f]
    %v7699 = vperm.slane %v7697, 0
    %v7700 = vperm.slane %v7697, 1
    %v7701 = vperm.slane %v7697, 2
    %v7702 = vperm.slane %v7697, 3
    %v7703 = vperm.slane %v7697, 4
    %v7704 = vperm.slane %v7697, 5
    %v7711 = vmul.f32 %v7685, %v7699
    %v7712 = vmul.f32 %v7686, %v7700
    %v7713 = vmul.f32 %v7687, %v7701
    %v7714 = vmul.f32 %v7688, %v7702
    %v7715 = vmul.f32 %v7689, %v7703
    %v7716 = vmul.f32 %v7690, %v7704
    %v7717 = vmul.f32 %v7691, %v7699
    %v7718 = vmul.f32 %v7692, %v7700
    %v7719 = vmul.f32 %v7693, %v7701
    %v7720 = vmul.f32 %v7694, %v7702
    %v7721 = vmul.f32 %v7695, %v7703
    %v7722 = vmul.f32 %v7696, %v7704
    %v7723 = vld [vmem:[%s4] sm:$0x3f]
    %v7725 = vperm.slane %v7723, 0
    %v7726 = vperm.slane %v7723, 1
    %v7727 = vperm.slane %v7723, 2
    %v7728 = vperm.slane %v7723, 3
    %v7729 = vperm.slane %v7723, 4
    %v7730 = vperm.slane %v7723, 5
    %v7737 = vadd.f32 %v7711, %v7725
    %v7738 = vadd.f32 %v7712, %v7726
    %v7739 = vadd.f32 %v7713, %v7727
    %v7740 = vadd.f32 %v7714, %v7728
    %v7741 = vadd.f32 %v7715, %v7729
    %v7742 = vadd.f32 %v7716, %v7730
    %v7743 = vadd.f32 %v7717, %v7725
    %v7744 = vadd.f32 %v7718, %v7726
    %v7745 = vadd.f32 %v7719, %v7727
    %v7746 = vadd.f32 %v7720, %v7728
    %v7747 = vadd.f32 %v7721, %v7729
    %v7748 = vadd.f32 %v7722, %v7730
    %7749 = vst [vmem:[#allocation8] sm:$0xff] %v7737
    %7750 = vst [vmem:[#allocation8 + $0x8] sm:$0xff] %v7738
    %7751 = vst [vmem:[#allocation8 + $0x10] sm:$0xff] %v7739
    %7752 = vst [vmem:[#allocation8 + $0x18] sm:$0xff] %v7740
    %7753 = vst [vmem:[#allocation8 + $0x20] sm:$0xff] %v7741
    %7754 = vst [vmem:[#allocation8 + $0x28] sm:$0xff] %v7742
    %7755 = vst [vmem:[#allocation8 + $0x30] sm:$0xff] %v7743
    %7756 = vst [vmem:[#allocation8 + $0x38] sm:$0xff] %v7744
    %7757 = vst [vmem:[#allocation8 + $0x40] sm:$0xff] %v7745
    %7758 = vst [vmem:[#allocation8 + $0x48] sm:$0xff] %v7746
    %7759 = vst [vmem:[#allocation8 + $0x50] sm:$0xff] %v7747
    %7760 = vst [vmem:[#allocation8 + $0x58] sm:$0xff] %v7748
    // Predicated region
    $region34: #{poswise_ffn.1} parent=1 // pred_check
      _
    $region35: #{poswise_ffn.1} parent=1 // pred_check_branch
      %7762 = sbr.rel (0) target = $region37
    $region36: #{poswise_ffn.1} parent=1 // pred_region
      %7764 = vsyncadd [#allocation4], 0
      %s7765 = sshll.u32 [#allocation8], 4
      %s7766 = int_to_ptr.vmem [resolvable:$true] %s7765
      %s7767 = sshll.u32 %s5, 4
      %s7768 = int_to_ptr.hbm [resolvable:$true] %s7767
      %7773 = dma.vmem_to_hbm [thread:$0]  %s7766, 1536, %s7768, [#allocation4], 768, 768, 48
    $region37: #{poswise_ffn.1} parent=1 // pred_fallthru
      _
    // Predicated region
    $region38: #{poswise_ffn.1} parent=1 // pred_check
      _
    $region39: #{poswise_ffn.1} parent=1 // pred_check_branch
      %7775 = sbr.rel (0) target = $region41
    $region40: #{poswise_ffn.1} parent=1 // pred_region
      %7777 = dma.done [#allocation4], 1536
    $region41: #{poswise_ffn.1} parent=1 // pred_fallthru
      _
    %7778 = vsyncpa [#allocation3], 1
    %7779 = vsyncpa [#allocation6], 1
    %7780 = vsyncpa [#allocation4], 1

</llo_original>
